<compile_context>
chip_gen: v7x
topology: tpu7x:2x2x1
jax: 0.10.0
libtpu: 0.0.40
codegen_flags: <defaults>
</compile_context>

<pallas_src>
import functools

import jax
import jax.numpy as jnp
from jax.experimental import pallas as pl
from jax.experimental.pallas import tpu as pltpu


def _round_up(v, m):
    return ((v + m - 1) // m) * m


# ----------------------- tiled fused matmul (conv core) -----------------------

def _fused_matmul_kernel(x_ref, w_ref, scale_ref, bias_ref, o_ref, acc_ref, *,
                         apply_relu):
    # grid = (M tiles, N tiles, K tiles); K (reduction) is the last, "arbitrary" axis.
    @pl.when(pl.program_id(2) == 0)
    def _():
        acc_ref[...] = jnp.zeros_like(acc_ref)

    acc_ref[...] += jnp.dot(x_ref[...], w_ref[...],
                            preferred_element_type=jnp.float32)

    @pl.when(pl.program_id(2) == pl.num_programs(2) - 1)
    def _():
        y = acc_ref[...] * scale_ref[...] + bias_ref[...]   # f32 epilogue
        if apply_relu:
            y = jnp.maximum(y, 0.0)
        o_ref[...] = y.astype(o_ref.dtype)


def fused_matmul(x, w, scale, bias, *, apply_relu, out_dtype=jnp.float32,
                 tm=256, tk=512, tn=256):
    """out[:M,:N] = maybe_relu((x @ w) * scale + bias), scale/bias broadcast over rows.

    x: (M, K), w: (K, N), scale/bias: (N,). MXU runs in bf16 with f32 accumulation.
    M/N/K are zero-padded up to tile multiples so every block is (8,128)-aligned and
    output stores are lane-dense; the result is sliced back to (M, N).
    """
    M, K = x.shape
    K2, N = w.shape
    assert K == K2

    TM = tm if M >= tm else _round_up(M, 8)
    TN = tn if N >= tn else _round_up(N, 128)
    # Keep K untiled when it is small (avoids zero-K padding waste); tile when large.
    TK = tk if K > 2048 else _round_up(K, 128)

    Mp, Kp, Np = _round_up(M, TM), _round_up(K, TK), _round_up(N, TN)

    xb = jnp.pad(x.astype(jnp.bfloat16), ((0, Mp - M), (0, Kp - K)))
    wb = jnp.pad(w.astype(jnp.bfloat16), ((0, Kp - K), (0, Np - N)))
    sb = jnp.pad(scale.astype(jnp.float32), (0, Np - N)).reshape(1, Np)
    bb = jnp.pad(bias.astype(jnp.float32), (0, Np - N)).reshape(1, Np)

    grid = (Mp // TM, Np // TN, Kp // TK)
    out_itemsize = jnp.dtype(out_dtype).itemsize
    cost = pl.CostEstimate(
        flops=2 * Mp * Kp * Np,
        transcendentals=0,
        bytes_accessed=2 * (Mp * Kp + Kp * Np) + Mp * Np * out_itemsize,
    )

    out = pl.pallas_call(
        functools.partial(_fused_matmul_kernel, apply_relu=apply_relu),
        grid=grid,
        in_specs=[
            pl.BlockSpec((TM, TK), lambda i, j, k: (i, k)),
            pl.BlockSpec((TK, TN), lambda i, j, k: (k, j)),
            pl.BlockSpec((1, TN), lambda i, j, k: (0, j)),
            pl.BlockSpec((1, TN), lambda i, j, k: (0, j)),
        ],
        out_specs=pl.BlockSpec((TM, TN), lambda i, j, k: (i, j)),
        out_shape=jax.ShapeDtypeStruct((Mp, Np), out_dtype),
        scratch_shapes=[pltpu.VMEM((TM, TN), jnp.float32)],
        compiler_params=pltpu.CompilerParams(
            dimension_semantics=("parallel", "parallel", "arbitrary"),
            vmem_limit_bytes=32 * 1024 * 1024,
        ),
        cost_estimate=cost,
    )(xb, wb, sb, bb)
    return out[:M, :N]


# -------------------- fused GAP + FC1(+ReLU) + FC2 tail kernel ----------------

def _tail_kernel(x_ref, w1_ref, b1_ref, w2_ref, b2_ref, o_ref):
    # x_ref: (Nb, HW, C) activations (bf16). Everything stays resident in VMEM.
    pooled = jnp.mean(x_ref[...].astype(jnp.float32), axis=1)            # (Nb, C)
    h = jnp.dot(pooled, w1_ref[...], preferred_element_type=jnp.float32) + b1_ref[...]
    h = jnp.maximum(h, 0.0)                                              # ReLU
    o_ref[...] = (jnp.dot(h, w2_ref[...], preferred_element_type=jnp.float32)
                  + b2_ref[...])


def gap_fc_head(x_nhwc, w1, b1, w2, b2):
    """(N,Ho,Wo,C) -> GAP -> FC1+ReLU -> FC2 logits, one pallas_call."""
    Nb, Ho, Wo, C = x_nhwc.shape
    HW = Ho * Wo
    x3 = x_nhwc.reshape(Nb, HW, C)
    D1 = w1.shape[1]
    NC = w2.shape[1]
    NCp = _round_up(NC, 128)  # lane-dense output, sliced afterwards

    w1f = w1.astype(jnp.float32)
    b1r = b1.astype(jnp.float32).reshape(1, D1)
    w2p = jnp.pad(w2.astype(jnp.float32), ((0, 0), (0, NCp - NC)))
    b2p = jnp.pad(b2.astype(jnp.float32), (0, NCp - NC)).reshape(1, NCp)

    out = pl.pallas_call(
        _tail_kernel,
        grid=(1,),
        in_specs=[
            pl.BlockSpec((Nb, HW, C), lambda i: (0, 0, 0)),
            pl.BlockSpec((C, D1), lambda i: (0, 0)),
            pl.BlockSpec((1, D1), lambda i: (0, 0)),
            pl.BlockSpec((D1, NCp), lambda i: (0, 0)),
            pl.BlockSpec((1, NCp), lambda i: (0, 0)),
        ],
        out_specs=pl.BlockSpec((Nb, NCp), lambda i: (0, 0)),
        out_shape=jax.ShapeDtypeStruct((Nb, NCp), jnp.float32),
        compiler_params=pltpu.CompilerParams(
            dimension_semantics=("arbitrary",)),
    )(x3, w1f, b1r, w2p, b2p)
    return out[:, :NC]


# ------------------------------- Glue (JAX) ----------------------------------

def im2col(x_nhwc, kh, kw, stride, pad):
    """Extract conv patches. Returns (N*Ho*Wo, kh*kw*C), Ho, Wo."""
    N, H, W, C = x_nhwc.shape
    xp = jnp.pad(x_nhwc, ((0, 0), (pad, pad), (pad, pad), (0, 0)))
    Hp, Wp = H + 2 * pad, W + 2 * pad
    Ho = (Hp - kh) // stride + 1
    Wo = (Wp - kw) // stride + 1
    cols = []
    for di in range(kh):
        for dj in range(kw):
            sl = xp[:, di:di + (Ho - 1) * stride + 1:stride,
                    dj:dj + (Wo - 1) * stride + 1:stride, :]
            cols.append(sl)  # (N, Ho, Wo, C)
    patches = jnp.stack(cols, axis=3)  # (N, Ho, Wo, kh*kw, C)
    return patches.reshape(N * Ho * Wo, kh * kw * C), Ho, Wo


def init_params(key, num_classes):
    conv_cfg = [
        dict(cin=1,   cout=32,  kh=5, kw=7, stride=2, pad=1),
        dict(cin=32,  cout=64,  kh=5, kw=7, stride=2, pad=1),
        dict(cin=64,  cout=128, kh=3, kw=5, stride=2, pad=1),
        dict(cin=128, cout=256, kh=3, kw=5, stride=2, pad=1),
    ]
    params = {}
    keys = jax.random.split(key, len(conv_cfg) * 2 + 4)
    ki = 0
    for i, cfg in enumerate(conv_cfg):
        fan_in = cfg["cin"] * cfg["kh"] * cfg["kw"]
        w = jax.random.normal(
            keys[ki], (cfg["cout"], cfg["cin"], cfg["kh"], cfg["kw"]), jnp.float32
        ) * (1.0 / jnp.sqrt(fan_in)); ki += 1
        b = jax.random.normal(keys[ki], (cfg["cout"],), jnp.float32) * 0.01; ki += 1
        params[f"conv{i+1}"] = dict(
            weight=w, bias=b,
            bn_gamma=jnp.ones((cfg["cout"],), jnp.float32),
            bn_beta=jnp.zeros((cfg["cout"],), jnp.float32),
            bn_mean=jnp.zeros((cfg["cout"],), jnp.float32),
            bn_var=jnp.ones((cfg["cout"],), jnp.float32),
            ksize=(cfg["kh"], cfg["kw"]), stride=cfg["stride"], pad=cfg["pad"],
        )
    w1 = jax.random.normal(keys[ki], (128, 256), jnp.float32) * (1.0 / jnp.sqrt(256.0)); ki += 1
    b1 = jax.random.normal(keys[ki], (128,), jnp.float32) * 0.01; ki += 1
    w2 = jax.random.normal(keys[ki], (num_classes, 128), jnp.float32) * (1.0 / jnp.sqrt(128.0)); ki += 1
    b2 = jax.random.normal(keys[ki], (num_classes,), jnp.float32) * 0.01; ki += 1
    params["fc1"] = dict(weight=w1, bias=b1)
    params["fc2"] = dict(weight=w2, bias=b2)
    return params


def cnn_forward(x_nchw, params, eps=1e-5):
    # NCHW (PyTorch) -> NHWC (internal layout); activations kept in bf16 between layers.
    x = jnp.transpose(x_nchw, (0, 2, 3, 1)).astype(jnp.bfloat16)
    N = x.shape[0]
    for i in range(4):
        p = params[f"conv{i+1}"]
        kh, kw = p["ksize"]
        cout, cin = p["weight"].shape[0], p["weight"].shape[1]
        patches, Ho, Wo = im2col(x, kh, kw, p["stride"], p["pad"])
        # Fold conv bias + eval-mode BN into per-channel scale/bias for the fused epilogue.
        inv_std = 1.0 / jnp.sqrt(p["bn_var"] + eps)
        scale = p["bn_gamma"] * inv_std
        bias = (p["bias"] - p["bn_mean"]) * scale + p["bn_beta"]
        # (Cout, Cin, kh, kw) -> (kh*kw*Cin, Cout), matching patch flattening order.
        w_mat = jnp.transpose(p["weight"], (2, 3, 1, 0)).reshape(kh * kw * cin, cout)
        y = fused_matmul(patches, w_mat, scale, bias,
                         apply_relu=True, out_dtype=jnp.bfloat16)
        x = y.reshape(N, Ho, Wo, cout)

    # Fused GAP + FC1(+ReLU) + FC2 tail (single kernel).
    fc1, fc2 = params["fc1"], params["fc2"]
    return gap_fc_head(x, fc1["weight"].T, fc1["bias"], fc2["weight"].T, fc2["bias"])


if __name__ == "__main__":
    key = jax.random.PRNGKey(0)
    pkey, xkey = jax.random.split(key)
    H, W, num_classes, batch = 64, 64, 10, 2
    params = init_params(pkey, num_classes)
    x = jax.random.normal(xkey, (batch, 1, H, W), dtype=jnp.float32)  # NCHW like PyTorch
    fwd = jax.jit(lambda inp: cnn_forward(inp, params))
    y = fwd(x)
    jax.block_until_ready(y)
    assert y.shape == (batch, num_classes), y.shape
    assert bool(jnp.all(jnp.isfinite(y)))
    print("KERNEL_OK")
</pallas_src>

<mosaic_0001>
module attributes {stable_mosaic.version = 11 : i64} {
  func.func @_fused_matmul_kernel(%arg0: i32, %arg1: i32, %arg2: i32, %arg3: memref<256x128xbf16, #tpu.memory_space<vmem>>, %arg4: memref<128x128xbf16, #tpu.memory_space<vmem>>, %arg5: memref<1x128xf32, #tpu.memory_space<vmem>>, %arg6: memref<1x128xf32, #tpu.memory_space<vmem>>, %arg7: memref<256x128xbf16, #tpu.memory_space<vmem>>, %arg8: memref<256x128xf32, #tpu.memory_space<vmem>>) attributes {dimension_semantics = [#tpu.dimension_semantics<parallel>, #tpu.dimension_semantics<parallel>, #tpu.dimension_semantics<arbitrary>], iteration_bounds = array<i64: 8, 1, 1>, scalar_prefetch = 0 : i64, scratch_operands = 1 : i64, tpu.core_type = #tpu.core_type<tc>, window_params = [{transform_indices = @transform_0, window_bounds = array<i64: 256, 128>}, {transform_indices = @transform_1, window_bounds = array<i64: 128, 128>}, {transform_indices = @transform_2, window_bounds = array<i64: 1, 128>}, {transform_indices = @transform_3, window_bounds = array<i64: 1, 128>}, {transform_indices = @transform_4, window_bounds = array<i64: 256, 128>}]} {
    %c0_i32 = arith.constant 0 : i32
    %0 = arith.cmpi eq, %arg2, %c0_i32 : i32
    %1 = arith.extui %0 : i1 to i32
    %c0_i32_0 = arith.constant 0 : i32
    %2 = arith.cmpi ne, %1, %c0_i32_0 : i32
    scf.if %2 {
      %cst_10 = arith.constant 0.000000e+00 : f32
      %12 = vector.broadcast %cst_10 : f32 to vector<256x128xf32>
      %c0_11 = arith.constant 0 : index
      %c0_12 = arith.constant 0 : index
      %13 = vector.load %arg8[%c0_11, %c0_12] : memref<256x128xf32, #tpu.memory_space<vmem>>, vector<256x128xf32>
      tpu.vector_store %arg8[%c0_11, %c0_12], %12 {strides = array<i32>} : memref<256x128xf32, #tpu.memory_space<vmem>>, vector<256x128xf32>,
    } else {
    }
    %c0 = arith.constant 0 : index
    %c0_1 = arith.constant 0 : index
    %3 = vector.load %arg8[%c0, %c0_1] : memref<256x128xf32, #tpu.memory_space<vmem>>, vector<256x128xf32>
    %c0_2 = arith.constant 0 : index
    %c0_3 = arith.constant 0 : index
    %4 = vector.load %arg3[%c0_2, %c0_3] : memref<256x128xbf16, #tpu.memory_space<vmem>>, vector<256x128xbf16>
    %c0_4 = arith.constant 0 : index
    %c0_5 = arith.constant 0 : index
    %5 = vector.load %arg4[%c0_4, %c0_5] : memref<128x128xbf16, #tpu.memory_space<vmem>>, vector<128x128xbf16>
    %cst = arith.constant dense<0.000000e+00> : vector<256x128xf32>
    %6 = tpu.matmul %4, %5, %cst {dimension_numbers = #tpu.dot_dimension_numbers<[1], [0], [0], [1], [0, 0, 1, 1], [], []>} : vector<256x128xbf16>, vector<128x128xbf16>, vector<256x128xf32> -> vector<256x128xf32>
    %7 = arith.addf %3, %6 : vector<256x128xf32>
    %c0_6 = arith.constant 0 : index
    %c0_7 = arith.constant 0 : index
    %8 = vector.load %arg8[%c0_6, %c0_7] : memref<256x128xf32, #tpu.memory_space<vmem>>, vector<256x128xf32>
    tpu.vector_store %arg8[%c0_6, %c0_7], %7 {strides = array<i32>} : memref<256x128xf32, #tpu.memory_space<vmem>>, vector<256x128xf32>,
    %c0_i32_8 = arith.constant 0 : i32
    %9 = arith.cmpi eq, %arg2, %c0_i32_8 : i32
    %10 = arith.extui %9 : i1 to i32
    %c0_i32_9 = arith.constant 0 : i32
    %11 = arith.cmpi ne, %10, %c0_i32_9 : i32
    scf.if %11 {
      %c0_10 = arith.constant 0 : index
      %c0_11 = arith.constant 0 : index
      %12 = vector.load %arg8[%c0_10, %c0_11] : memref<256x128xf32, #tpu.memory_space<vmem>>, vector<256x128xf32>
      %c0_12 = arith.constant 0 : index
      %c0_13 = arith.constant 0 : index
      %13 = vector.load %arg5[%c0_12, %c0_13] : memref<1x128xf32, #tpu.memory_space<vmem>>, vector<1x128xf32>
      %14 = vector.broadcast %13 : vector<1x128xf32> to vector<256x128xf32>
      %15 = arith.mulf %12, %14 : vector<256x128xf32>
      %c0_14 = arith.constant 0 : index
      %c0_15 = arith.constant 0 : index
      %16 = vector.load %arg6[%c0_14, %c0_15] : memref<1x128xf32, #tpu.memory_space<vmem>>, vector<1x128xf32>
      %17 = vector.broadcast %16 : vector<1x128xf32> to vector<256x128xf32>
      %18 = arith.addf %15, %17 : vector<256x128xf32>
      %cst_16 = arith.constant 0.000000e+00 : f32
      %19 = vector.broadcast %cst_16 : f32 to vector<256x128xf32>
      %20 = arith.maximumf %18, %19 : vector<256x128xf32>
      %21 = arith.truncf %20 : vector<256x128xf32> to vector<256x128xbf16>
      %c0_17 = arith.constant 0 : index
      %c0_18 = arith.constant 0 : index
      %22 = vector.load %arg7[%c0_17, %c0_18] : memref<256x128xbf16, #tpu.memory_space<vmem>>, vector<256x128xbf16>
      tpu.vector_store %arg7[%c0_17, %c0_18], %21 {strides = array<i32>} : memref<256x128xbf16, #tpu.memory_space<vmem>>, vector<256x128xbf16>,
    } else {
    }
    return
  }
  func.func @transform_0(%arg0: i32, %arg1: i32, %arg2: i32) -> (i32, i32) {
    %c0_i32 = arith.constant 0 : i32
    return %arg0, %arg2 : i32, i32
  }
  func.func @transform_1(%arg0: i32, %arg1: i32, %arg2: i32) -> (i32, i32) {
    %c0_i32 = arith.constant 0 : i32
    return %arg2, %arg1 : i32, i32
  }
  func.func @transform_2(%arg0: i32, %arg1: i32, %arg2: i32) -> (i32, i32) {
    %c0_i32 = arith.constant 0 : i32
    %c0_i32_0 = arith.constant 0 : i32
    return %c0_i32, %arg1 : i32, i32
  }
  func.func @transform_3(%arg0: i32, %arg1: i32, %arg2: i32) -> (i32, i32) {
    %c0_i32 = arith.constant 0 : i32
    %c0_i32_0 = arith.constant 0 : i32
    return %c0_i32, %arg1 : i32, i32
  }
  func.func @transform_4(%arg0: i32, %arg1: i32, %arg2: i32) -> (i32, i32) {
    %c0_i32 = arith.constant 0 : i32
    return %arg0, %arg1 : i32, i32
  }
}

module attributes {stable_mosaic.version = 11 : i64} {
  func.func @_fused_matmul_kernel(%arg0: i32, %arg1: i32, %arg2: i32, %arg3: memref<256x1152xbf16, #tpu.memory_space<vmem>>, %arg4: memref<1152x128xbf16, #tpu.memory_space<vmem>>, %arg5: memref<1x128xf32, #tpu.memory_space<vmem>>, %arg6: memref<1x128xf32, #tpu.memory_space<vmem>>, %arg7: memref<256x128xbf16, #tpu.memory_space<vmem>>, %arg8: memref<256x128xf32, #tpu.memory_space<vmem>>) attributes {dimension_semantics = [#tpu.dimension_semantics<parallel>, #tpu.dimension_semantics<parallel>, #tpu.dimension_semantics<arbitrary>], iteration_bounds = array<i64: 2, 1, 1>, scalar_prefetch = 0 : i64, scratch_operands = 1 : i64, tpu.core_type = #tpu.core_type<tc>, window_params = [{transform_indices = @transform_0, window_bounds = array<i64: 256, 1152>}, {transform_indices = @transform_1, window_bounds = array<i64: 1152, 128>}, {transform_indices = @transform_2, window_bounds = array<i64: 1, 128>}, {transform_indices = @transform_3, window_bounds = array<i64: 1, 128>}, {transform_indices = @transform_4, window_bounds = array<i64: 256, 128>}]} {
    %c0_i32 = arith.constant 0 : i32
    %0 = arith.cmpi eq, %arg2, %c0_i32 : i32
    %1 = arith.extui %0 : i1 to i32
    %c0_i32_0 = arith.constant 0 : i32
    %2 = arith.cmpi ne, %1, %c0_i32_0 : i32
    scf.if %2 {
      %cst_10 = arith.constant 0.000000e+00 : f32
      %12 = vector.broadcast %cst_10 : f32 to vector<256x128xf32>
      %c0_11 = arith.constant 0 : index
      %c0_12 = arith.constant 0 : index
      %13 = vector.load %arg8[%c0_11, %c0_12] : memref<256x128xf32, #tpu.memory_space<vmem>>, vector<256x128xf32>
      tpu.vector_store %arg8[%c0_11, %c0_12], %12 {strides = array<i32>} : memref<256x128xf32, #tpu.memory_space<vmem>>, vector<256x128xf32>,
    } else {
    }
    %c0 = arith.constant 0 : index
    %c0_1 = arith.constant 0 : index
    %3 = vector.load %arg8[%c0, %c0_1] : memref<256x128xf32, #tpu.memory_space<vmem>>, vector<256x128xf32>
    %c0_2 = arith.constant 0 : index
    %c0_3 = arith.constant 0 : index
    %4 = vector.load %arg3[%c0_2, %c0_3] : memref<256x1152xbf16, #tpu.memory_space<vmem>>, vector<256x1152xbf16>
    %c0_4 = arith.constant 0 : index
    %c0_5 = arith.constant 0 : index
    %5 = vector.load %arg4[%c0_4, %c0_5] : memref<1152x128xbf16, #tpu.memory_space<vmem>>, vector<1152x128xbf16>
    %cst = arith.constant dense<0.000000e+00> : vector<256x128xf32>
    %6 = tpu.matmul %4, %5, %cst {dimension_numbers = #tpu.dot_dimension_numbers<[1], [0], [0], [1], [0, 0, 1, 1], [], []>} : vector<256x1152xbf16>, vector<1152x128xbf16>, vector<256x128xf32> -> vector<256x128xf32>
    %7 = arith.addf %3, %6 : vector<256x128xf32>
    %c0_6 = arith.constant 0 : index
    %c0_7 = arith.constant 0 : index
    %8 = vector.load %arg8[%c0_6, %c0_7] : memref<256x128xf32, #tpu.memory_space<vmem>>, vector<256x128xf32>
    tpu.vector_store %arg8[%c0_6, %c0_7], %7 {strides = array<i32>} : memref<256x128xf32, #tpu.memory_space<vmem>>, vector<256x128xf32>,
    %c0_i32_8 = arith.constant 0 : i32
    %9 = arith.cmpi eq, %arg2, %c0_i32_8 : i32
    %10 = arith.extui %9 : i1 to i32
    %c0_i32_9 = arith.constant 0 : i32
    %11 = arith.cmpi ne, %10, %c0_i32_9 : i32
    scf.if %11 {
      %c0_10 = arith.constant 0 : index
      %c0_11 = arith.constant 0 : index
      %12 = vector.load %arg8[%c0_10, %c0_11] : memref<256x128xf32, #tpu.memory_space<vmem>>, vector<256x128xf32>
      %c0_12 = arith.constant 0 : index
      %c0_13 = arith.constant 0 : index
      %13 = vector.load %arg5[%c0_12, %c0_13] : memref<1x128xf32, #tpu.memory_space<vmem>>, vector<1x128xf32>
      %14 = vector.broadcast %13 : vector<1x128xf32> to vector<256x128xf32>
      %15 = arith.mulf %12, %14 : vector<256x128xf32>
      %c0_14 = arith.constant 0 : index
      %c0_15 = arith.constant 0 : index
      %16 = vector.load %arg6[%c0_14, %c0_15] : memref<1x128xf32, #tpu.memory_space<vmem>>, vector<1x128xf32>
      %17 = vector.broadcast %16 : vector<1x128xf32> to vector<256x128xf32>
      %18 = arith.addf %15, %17 : vector<256x128xf32>
      %cst_16 = arith.constant 0.000000e+00 : f32
      %19 = vector.broadcast %cst_16 : f32 to vector<256x128xf32>
      %20 = arith.maximumf %18, %19 : vector<256x128xf32>
      %21 = arith.truncf %20 : vector<256x128xf32> to vector<256x128xbf16>
      %c0_17 = arith.constant 0 : index
      %c0_18 = arith.constant 0 : index
      %22 = vector.load %arg7[%c0_17, %c0_18] : memref<256x128xbf16, #tpu.memory_space<vmem>>, vector<256x128xbf16>
      tpu.vector_store %arg7[%c0_17, %c0_18], %21 {strides = array<i32>} : memref<256x128xbf16, #tpu.memory_space<vmem>>, vector<256x128xbf16>,
    } else {
    }
    return
  }
  func.func @transform_0(%arg0: i32, %arg1: i32, %arg2: i32) -> (i32, i32) {
    %c0_i32 = arith.constant 0 : i32
    return %arg0, %arg2 : i32, i32
  }
  func.func @transform_1(%arg0: i32, %arg1: i32, %arg2: i32) -> (i32, i32) {
    %c0_i32 = arith.constant 0 : i32
    return %arg2, %arg1 : i32, i32
  }
  func.func @transform_2(%arg0: i32, %arg1: i32, %arg2: i32) -> (i32, i32) {
    %c0_i32 = arith.constant 0 : i32
    %c0_i32_0 = arith.constant 0 : i32
    return %c0_i32, %arg1 : i32, i32
  }
  func.func @transform_3(%arg0: i32, %arg1: i32, %arg2: i32) -> (i32, i32) {
    %c0_i32 = arith.constant 0 : i32
    %c0_i32_0 = arith.constant 0 : i32
    return %c0_i32, %arg1 : i32, i32
  }
  func.func @transform_4(%arg0: i32, %arg1: i32, %arg2: i32) -> (i32, i32) {
    %c0_i32 = arith.constant 0 : i32
    return %arg0, %arg1 : i32, i32
  }
}

module attributes {stable_mosaic.version = 11 : i64} {
  func.func @_fused_matmul_kernel(%arg0: i32, %arg1: i32, %arg2: i32, %arg3: memref<96x1024xbf16, #tpu.memory_space<vmem>>, %arg4: memref<1024x128xbf16, #tpu.memory_space<vmem>>, %arg5: memref<1x128xf32, #tpu.memory_space<vmem>>, %arg6: memref<1x128xf32, #tpu.memory_space<vmem>>, %arg7: memref<96x128xbf16, #tpu.memory_space<vmem>>, %arg8: memref<96x128xf32, #tpu.memory_space<vmem>>) attributes {dimension_semantics = [#tpu.dimension_semantics<parallel>, #tpu.dimension_semantics<parallel>, #tpu.dimension_semantics<arbitrary>], iteration_bounds = array<i64: 1, 1, 1>, scalar_prefetch = 0 : i64, scratch_operands = 1 : i64, tpu.core_type = #tpu.core_type<tc>, window_params = [{transform_indices = @transform_0, window_bounds = array<i64: 96, 1024>}, {transform_indices = @transform_1, window_bounds = array<i64: 1024, 128>}, {transform_indices = @transform_2, window_bounds = array<i64: 1, 128>}, {transform_indices = @transform_3, window_bounds = array<i64: 1, 128>}, {transform_indices = @transform_4, window_bounds = array<i64: 96, 128>}]} {
    %c0_i32 = arith.constant 0 : i32
    %0 = arith.cmpi eq, %arg2, %c0_i32 : i32
    %1 = arith.extui %0 : i1 to i32
    %c0_i32_0 = arith.constant 0 : i32
    %2 = arith.cmpi ne, %1, %c0_i32_0 : i32
    scf.if %2 {
      %cst_10 = arith.constant 0.000000e+00 : f32
      %12 = vector.broadcast %cst_10 : f32 to vector<96x128xf32>
      %c0_11 = arith.constant 0 : index
      %c0_12 = arith.constant 0 : index
      %13 = vector.load %arg8[%c0_11, %c0_12] : memref<96x128xf32, #tpu.memory_space<vmem>>, vector<96x128xf32>
      tpu.vector_store %arg8[%c0_11, %c0_12], %12 {strides = array<i32>} : memref<96x128xf32, #tpu.memory_space<vmem>>, vector<96x128xf32>,
    } else {
    }
    %c0 = arith.constant 0 : index
    %c0_1 = arith.constant 0 : index
    %3 = vector.load %arg8[%c0, %c0_1] : memref<96x128xf32, #tpu.memory_space<vmem>>, vector<96x128xf32>
    %c0_2 = arith.constant 0 : index
    %c0_3 = arith.constant 0 : index
    %4 = vector.load %arg3[%c0_2, %c0_3] : memref<96x1024xbf16, #tpu.memory_space<vmem>>, vector<96x1024xbf16>
    %c0_4 = arith.constant 0 : index
    %c0_5 = arith.constant 0 : index
    %5 = vector.load %arg4[%c0_4, %c0_5] : memref<1024x128xbf16, #tpu.memory_space<vmem>>, vector<1024x128xbf16>
    %cst = arith.constant dense<0.000000e+00> : vector<96x128xf32>
    %6 = tpu.matmul %4, %5, %cst {dimension_numbers = #tpu.dot_dimension_numbers<[1], [0], [0], [1], [0, 0, 1, 1], [], []>} : vector<96x1024xbf16>, vector<1024x128xbf16>, vector<96x128xf32> -> vector<96x128xf32>
    %7 = arith.addf %3, %6 : vector<96x128xf32>
    %c0_6 = arith.constant 0 : index
    %c0_7 = arith.constant 0 : index
    %8 = vector.load %arg8[%c0_6, %c0_7] : memref<96x128xf32, #tpu.memory_space<vmem>>, vector<96x128xf32>
    tpu.vector_store %arg8[%c0_6, %c0_7], %7 {strides = array<i32>} : memref<96x128xf32, #tpu.memory_space<vmem>>, vector<96x128xf32>,
    %c0_i32_8 = arith.constant 0 : i32
    %9 = arith.cmpi eq, %arg2, %c0_i32_8 : i32
    %10 = arith.extui %9 : i1 to i32
    %c0_i32_9 = arith.constant 0 : i32
    %11 = arith.cmpi ne, %10, %c0_i32_9 : i32
    scf.if %11 {
      %c0_10 = arith.constant 0 : index
      %c0_11 = arith.constant 0 : index
      %12 = vector.load %arg8[%c0_10, %c0_11] : memref<96x128xf32, #tpu.memory_space<vmem>>, vector<96x128xf32>
      %c0_12 = arith.constant 0 : index
      %c0_13 = arith.constant 0 : index
      %13 = vector.load %arg5[%c0_12, %c0_13] : memref<1x128xf32, #tpu.memory_space<vmem>>, vector<1x128xf32>
      %14 = vector.broadcast %13 : vector<1x128xf32> to vector<96x128xf32>
      %15 = arith.mulf %12, %14 : vector<96x128xf32>
      %c0_14 = arith.constant 0 : index
      %c0_15 = arith.constant 0 : index
      %16 = vector.load %arg6[%c0_14, %c0_15] : memref<1x128xf32, #tpu.memory_space<vmem>>, vector<1x128xf32>
      %17 = vector.broadcast %16 : vector<1x128xf32> to vector<96x128xf32>
      %18 = arith.addf %15, %17 : vector<96x128xf32>
      %cst_16 = arith.constant 0.000000e+00 : f32
      %19 = vector.broadcast %cst_16 : f32 to vector<96x128xf32>
      %20 = arith.maximumf %18, %19 : vector<96x128xf32>
      %21 = arith.truncf %20 : vector<96x128xf32> to vector<96x128xbf16>
      %c0_17 = arith.constant 0 : index
      %c0_18 = arith.constant 0 : index
      %22 = vector.load %arg7[%c0_17, %c0_18] : memref<96x128xbf16, #tpu.memory_space<vmem>>, vector<96x128xbf16>
      tpu.vector_store %arg7[%c0_17, %c0_18], %21 {strides = array<i32>} : memref<96x128xbf16, #tpu.memory_space<vmem>>, vector<96x128xbf16>,
    } else {
    }
    return
  }
  func.func @transform_0(%arg0: i32, %arg1: i32, %arg2: i32) -> (i32, i32) {
    %c0_i32 = arith.constant 0 : i32
    return %arg0, %arg2 : i32, i32
  }
  func.func @transform_1(%arg0: i32, %arg1: i32, %arg2: i32) -> (i32, i32) {
    %c0_i32 = arith.constant 0 : i32
    return %arg2, %arg1 : i32, i32
  }
  func.func @transform_2(%arg0: i32, %arg1: i32, %arg2: i32) -> (i32, i32) {
    %c0_i32 = arith.constant 0 : i32
    %c0_i32_0 = arith.constant 0 : i32
    return %c0_i32, %arg1 : i32, i32
  }
  func.func @transform_3(%arg0: i32, %arg1: i32, %arg2: i32) -> (i32, i32) {
    %c0_i32 = arith.constant 0 : i32
    %c0_i32_0 = arith.constant 0 : i32
    return %c0_i32, %arg1 : i32, i32
  }
  func.func @transform_4(%arg0: i32, %arg1: i32, %arg2: i32) -> (i32, i32) {
    %c0_i32 = arith.constant 0 : i32
    return %arg0, %arg1 : i32, i32
  }
}

module attributes {stable_mosaic.version = 11 : i64} {
  func.func @_tail_kernel(%arg0: i32, %arg1: memref<2x8x256xbf16, #tpu.memory_space<vmem>>, %arg2: memref<256x128xf32, #tpu.memory_space<vmem>>, %arg3: memref<1x128xf32, #tpu.memory_space<vmem>>, %arg4: memref<128x128xf32, #tpu.memory_space<vmem>>, %arg5: memref<1x128xf32, #tpu.memory_space<vmem>>, %arg6: memref<2x128xf32, #tpu.memory_space<vmem>>) attributes {dimension_semantics = [#tpu.dimension_semantics<arbitrary>], iteration_bounds = array<i64: 1>, scalar_prefetch = 0 : i64, scratch_operands = 0 : i64, tpu.core_type = #tpu.core_type<tc>, window_params = [{pipeline_mode = #tpu.pipeline_mode<synchronous>, transform_indices = @transform_0, window_bounds = array<i64: 2, 8, 256>}, {pipeline_mode = #tpu.pipeline_mode<synchronous>, transform_indices = @transform_1, window_bounds = array<i64: 256, 128>}, {pipeline_mode = #tpu.pipeline_mode<synchronous>, transform_indices = @transform_2, window_bounds = array<i64: 1, 128>}, {pipeline_mode = #tpu.pipeline_mode<synchronous>, transform_indices = @transform_3, window_bounds = array<i64: 128, 128>}, {pipeline_mode = #tpu.pipeline_mode<synchronous>, transform_indices = @transform_4, window_bounds = array<i64: 1, 128>}, {pipeline_mode = #tpu.pipeline_mode<synchronous>, transform_indices = @transform_5, window_bounds = array<i64: 2, 128>}]} {
    %c0 = arith.constant 0 : index
    %c0_0 = arith.constant 0 : index
    %c0_1 = arith.constant 0 : index
    %0 = vector.load %arg1[%c0, %c0_0, %c0_1] : memref<2x8x256xbf16, #tpu.memory_space<vmem>>, vector<2x8x256xbf16>
    %1 = arith.extf %0 : vector<2x8x256xbf16> to vector<2x8x256xf32>
    %cst = arith.constant dense<0.000000e+00> : vector<2x256xf32>
    %2 = vector.multi_reduction <add>, %1, %cst [1] : vector<2x8x256xf32> to vector<2x256xf32>
    %cst_2 = arith.constant 8.000000e+00 : f32
    %3 = vector.broadcast %cst_2 : f32 to vector<2x256xf32>
    %4 = arith.divf %2, %3 : vector<2x256xf32>
    %c0_3 = arith.constant 0 : index
    %c0_4 = arith.constant 0 : index
    %5 = vector.load %arg2[%c0_3, %c0_4] : memref<256x128xf32, #tpu.memory_space<vmem>>, vector<256x128xf32>
    %cst_5 = arith.constant dense<0.000000e+00> : vector<2x128xf32>
    %6 = tpu.matmul %4, %5, %cst_5 {dimension_numbers = #tpu.dot_dimension_numbers<[1], [0], [0], [1], [0, 0, 1, 1], [], []>} : vector<2x256xf32>, vector<256x128xf32>, vector<2x128xf32> -> vector<2x128xf32>
    %c0_6 = arith.constant 0 : index
    %c0_7 = arith.constant 0 : index
    %7 = vector.load %arg3[%c0_6, %c0_7] : memref<1x128xf32, #tpu.memory_space<vmem>>, vector<1x128xf32>
    %8 = vector.broadcast %7 : vector<1x128xf32> to vector<2x128xf32>
    %9 = arith.addf %6, %8 : vector<2x128xf32>
    %cst_8 = arith.constant 0.000000e+00 : f32
    %10 = vector.broadcast %cst_8 : f32 to vector<2x128xf32>
    %11 = arith.maximumf %9, %10 : vector<2x128xf32>
    %c0_9 = arith.constant 0 : index
    %c0_10 = arith.constant 0 : index
    %12 = vector.load %arg4[%c0_9, %c0_10] : memref<128x128xf32, #tpu.memory_space<vmem>>, vector<128x128xf32>
    %cst_11 = arith.constant dense<0.000000e+00> : vector<2x128xf32>
    %13 = tpu.matmul %11, %12, %cst_11 {dimension_numbers = #tpu.dot_dimension_numbers<[1], [0], [0], [1], [0, 0, 1, 1], [], []>} : vector<2x128xf32>, vector<128x128xf32>, vector<2x128xf32> -> vector<2x128xf32>
    %c0_12 = arith.constant 0 : index
    %c0_13 = arith.constant 0 : index
    %14 = vector.load %arg5[%c0_12, %c0_13] : memref<1x128xf32, #tpu.memory_space<vmem>>, vector<1x128xf32>
    %15 = vector.broadcast %14 : vector<1x128xf32> to vector<2x128xf32>
    %16 = arith.addf %13, %15 : vector<2x128xf32>
    %c0_14 = arith.constant 0 : index
    %c0_15 = arith.constant 0 : index
    %17 = vector.load %arg6[%c0_14, %c0_15] : memref<2x128xf32, #tpu.memory_space<vmem>>, vector<2x128xf32>
    tpu.vector_store %arg6[%c0_14, %c0_15], %16 {strides = array<i32>} : memref<2x128xf32, #tpu.memory_space<vmem>>, vector<2x128xf32>,
    return
  }
  func.func @transform_0(%arg0: i32) -> (i32, i32, i32) {
    %c0_i32 = arith.constant 0 : i32
    %c0_i32_0 = arith.constant 0 : i32
    %c0_i32_1 = arith.constant 0 : i32
    %c0_i32_2 = arith.constant 0 : i32
    return %c0_i32, %c0_i32_0, %c0_i32_1 : i32, i32, i32
  }
  func.func @transform_1(%arg0: i32) -> (i32, i32) {
    %c0_i32 = arith.constant 0 : i32
    %c0_i32_0 = arith.constant 0 : i32
    %c0_i32_1 = arith.constant 0 : i32
    return %c0_i32, %c0_i32_0 : i32, i32
  }
  func.func @transform_2(%arg0: i32) -> (i32, i32) {
    %c0_i32 = arith.constant 0 : i32
    %c0_i32_0 = arith.constant 0 : i32
    %c0_i32_1 = arith.constant 0 : i32
    return %c0_i32, %c0_i32_0 : i32, i32
  }
  func.func @transform_3(%arg0: i32) -> (i32, i32) {
    %c0_i32 = arith.constant 0 : i32
    %c0_i32_0 = arith.constant 0 : i32
    %c0_i32_1 = arith.constant 0 : i32
    return %c0_i32, %c0_i32_0 : i32, i32
  }
  func.func @transform_4(%arg0: i32) -> (i32, i32) {
    %c0_i32 = arith.constant 0 : i32
    %c0_i32_0 = arith.constant 0 : i32
    %c0_i32_1 = arith.constant 0 : i32
    return %c0_i32, %c0_i32_0 : i32, i32
  }
  func.func @transform_5(%arg0: i32) -> (i32, i32) {
    %c0_i32 = arith.constant 0 : i32
    %c0_i32_0 = arith.constant 0 : i32
    %c0_i32_1 = arith.constant 0 : i32
    return %c0_i32, %c0_i32_0 : i32, i32
  }
}

module attributes {stable_mosaic.version = 11 : i64} {
  func.func @_fused_matmul_kernel(%arg0: i32, %arg1: i32, %arg2: i32, %arg3: memref<16x1920xbf16, #tpu.memory_space<vmem>>, %arg4: memref<1920x256xbf16, #tpu.memory_space<vmem>>, %arg5: memref<1x256xf32, #tpu.memory_space<vmem>>, %arg6: memref<1x256xf32, #tpu.memory_space<vmem>>, %arg7: memref<16x256xbf16, #tpu.memory_space<vmem>>, %arg8: memref<16x256xf32, #tpu.memory_space<vmem>>) attributes {dimension_semantics = [#tpu.dimension_semantics<parallel>, #tpu.dimension_semantics<parallel>, #tpu.dimension_semantics<arbitrary>], iteration_bounds = array<i64: 1, 1, 1>, scalar_prefetch = 0 : i64, scratch_operands = 1 : i64, tpu.core_type = #tpu.core_type<tc>, window_params = [{transform_indices = @transform_0, window_bounds = array<i64: 16, 1920>}, {transform_indices = @transform_1, window_bounds = array<i64: 1920, 256>}, {transform_indices = @transform_2, window_bounds = array<i64: 1, 256>}, {transform_indices = @transform_3, window_bounds = array<i64: 1, 256>}, {transform_indices = @transform_4, window_bounds = array<i64: 16, 256>}]} {
    %c0_i32 = arith.constant 0 : i32
    %0 = arith.cmpi eq, %arg2, %c0_i32 : i32
    %1 = arith.extui %0 : i1 to i32
    %c0_i32_0 = arith.constant 0 : i32
    %2 = arith.cmpi ne, %1, %c0_i32_0 : i32
    scf.if %2 {
      %cst_10 = arith.constant 0.000000e+00 : f32
      %12 = vector.broadcast %cst_10 : f32 to vector<16x256xf32>
      %c0_11 = arith.constant 0 : index
      %c0_12 = arith.constant 0 : index
      %13 = vector.load %arg8[%c0_11, %c0_12] : memref<16x256xf32, #tpu.memory_space<vmem>>, vector<16x256xf32>
      tpu.vector_store %arg8[%c0_11, %c0_12], %12 {strides = array<i32>} : memref<16x256xf32, #tpu.memory_space<vmem>>, vector<16x256xf32>,
    } else {
    }
    %c0 = arith.constant 0 : index
    %c0_1 = arith.constant 0 : index
    %3 = vector.load %arg8[%c0, %c0_1] : memref<16x256xf32, #tpu.memory_space<vmem>>, vector<16x256xf32>
    %c0_2 = arith.constant 0 : index
    %c0_3 = arith.constant 0 : index
    %4 = vector.load %arg3[%c0_2, %c0_3] : memref<16x1920xbf16, #tpu.memory_space<vmem>>, vector<16x1920xbf16>
    %c0_4 = arith.constant 0 : index
    %c0_5 = arith.constant 0 : index
    %5 = vector.load %arg4[%c0_4, %c0_5] : memref<1920x256xbf16, #tpu.memory_space<vmem>>, vector<1920x256xbf16>
    %cst = arith.constant dense<0.000000e+00> : vector<16x256xf32>
    %6 = tpu.matmul %4, %5, %cst {dimension_numbers = #tpu.dot_dimension_numbers<[1], [0], [0], [1], [0, 0, 1, 1], [], []>} : vector<16x1920xbf16>, vector<1920x256xbf16>, vector<16x256xf32> -> vector<16x256xf32>
    %7 = arith.addf %3, %6 : vector<16x256xf32>
    %c0_6 = arith.constant 0 : index
    %c0_7 = arith.constant 0 : index
    %8 = vector.load %arg8[%c0_6, %c0_7] : memref<16x256xf32, #tpu.memory_space<vmem>>, vector<16x256xf32>
    tpu.vector_store %arg8[%c0_6, %c0_7], %7 {strides = array<i32>} : memref<16x256xf32, #tpu.memory_space<vmem>>, vector<16x256xf32>,
    %c0_i32_8 = arith.constant 0 : i32
    %9 = arith.cmpi eq, %arg2, %c0_i32_8 : i32
    %10 = arith.extui %9 : i1 to i32
    %c0_i32_9 = arith.constant 0 : i32
    %11 = arith.cmpi ne, %10, %c0_i32_9 : i32
    scf.if %11 {
      %c0_10 = arith.constant 0 : index
      %c0_11 = arith.constant 0 : index
      %12 = vector.load %arg8[%c0_10, %c0_11] : memref<16x256xf32, #tpu.memory_space<vmem>>, vector<16x256xf32>
      %c0_12 = arith.constant 0 : index
      %c0_13 = arith.constant 0 : index
      %13 = vector.load %arg5[%c0_12, %c0_13] : memref<1x256xf32, #tpu.memory_space<vmem>>, vector<1x256xf32>
      %14 = vector.broadcast %13 : vector<1x256xf32> to vector<16x256xf32>
      %15 = arith.mulf %12, %14 : vector<16x256xf32>
      %c0_14 = arith.constant 0 : index
      %c0_15 = arith.constant 0 : index
      %16 = vector.load %arg6[%c0_14, %c0_15] : memref<1x256xf32, #tpu.memory_space<vmem>>, vector<1x256xf32>
      %17 = vector.broadcast %16 : vector<1x256xf32> to vector<16x256xf32>
      %18 = arith.addf %15, %17 : vector<16x256xf32>
      %cst_16 = arith.constant 0.000000e+00 : f32
      %19 = vector.broadcast %cst_16 : f32 to vector<16x256xf32>
      %20 = arith.maximumf %18, %19 : vector<16x256xf32>
      %21 = arith.truncf %20 : vector<16x256xf32> to vector<16x256xbf16>
      %c0_17 = arith.constant 0 : index
      %c0_18 = arith.constant 0 : index
      %22 = vector.load %arg7[%c0_17, %c0_18] : memref<16x256xbf16, #tpu.memory_space<vmem>>, vector<16x256xbf16>
      tpu.vector_store %arg7[%c0_17, %c0_18], %21 {strides = array<i32>} : memref<16x256xbf16, #tpu.memory_space<vmem>>, vector<16x256xbf16>,
    } else {
    }
    return
  }
  func.func @transform_0(%arg0: i32, %arg1: i32, %arg2: i32) -> (i32, i32) {
    %c0_i32 = arith.constant 0 : i32
    return %arg0, %arg2 : i32, i32
  }
  func.func @transform_1(%arg0: i32, %arg1: i32, %arg2: i32) -> (i32, i32) {
    %c0_i32 = arith.constant 0 : i32
    return %arg2, %arg1 : i32, i32
  }
  func.func @transform_2(%arg0: i32, %arg1: i32, %arg2: i32) -> (i32, i32) {
    %c0_i32 = arith.constant 0 : i32
    %c0_i32_0 = arith.constant 0 : i32
    return %c0_i32, %arg1 : i32, i32
  }
  func.func @transform_3(%arg0: i32, %arg1: i32, %arg2: i32) -> (i32, i32) {
    %c0_i32 = arith.constant 0 : i32
    %c0_i32_0 = arith.constant 0 : i32
    return %c0_i32, %arg1 : i32, i32
  }
  func.func @transform_4(%arg0: i32, %arg1: i32, %arg2: i32) -> (i32, i32) {
    %c0_i32 = arith.constant 0 : i32
    return %arg0, %arg1 : i32, i32
  }
}

</mosaic_0001>

<llo_original>
// kernel: div.7
$region0: #{div.7}
  #allocation0 [shape = 's32[1]{0}', space=sflag, size = 0x4, scoped, tag = 'scoped memory for div.7']
  %s0 = inlined_call_operand.<no memory space> [shape: f32[], index: 0, kind: input, shape index: {}]
  %s1 = inlined_call_operand.vmem [shape: f32[32], index: 1, kind: output, shape index: {}]
  %v2 = vstv %s0
  %3 = vst [vmem:[%s1] sm:$0x1] %v2

// kernel: _lambda_.5
$region0: #{_lambda_.5}
  #allocation0 [shape = 'u32[]', space=smem, size = 0x4, offset = 0x4, fixed_abs, tag = 'smem constant byte address 0x4 - core index']
  #allocation1 [shape = 'u32[144,128]{1,0:T(1,128)}', space=vmem, size = 0x12000, scoped, tag = 'internal scratch']
  #allocation2 [shape = 'f32[256,128]{1,0:T(8,128)}', space=vmem, size = 0x20000, scoped, tag = 'scratch operand']
  %s0 = inlined_call_operand.vmem [shape: bf16[2048,128], index: 0, kind: input, shape index: {}]
  %s1 = inlined_call_operand.hbm [shape: bf16[128,128], index: 1, kind: input, shape index: {}]
  %s2 = inlined_call_operand.vmem [shape: f32[1,128], index: 2, kind: input, shape index: {}]
  %s3 = inlined_call_operand.hbm [shape: f32[1,128], index: 3, kind: input, shape index: {}]
  %s4 = inlined_call_operand.vmem [shape: bf16[2048,128], index: 4, kind: output, shape index: {}]
  %s5 = sld [smem:[#allocation0]]
  $region65: #{_lambda_.5} parent=0
    _
  %s7 = ssub.s32 1, %s5
  %s8 = scalar_select 0, %s7, %s5
  $region1: #{_lambda_.5} parent=0
    #allocation3 [shape = 'u8[32768]{0}', space=vmem, size = 0x8000, scoped, tag = 'input window, operand 1, single buffered']
    #allocation4 [shape = 's32[2]{0}', space=sflag, size = 0x8, scoped, tag = 'scoped memory for _lambda_.5']
    #allocation5 [shape = 'u8[512]{0}', space=vmem, size = 0x400, scoped, tag = 'input window, operand 3, single buffered']
    #allocation6 [shape = 's32[1]{0}', space=sflag, size = 0x4, scoped, tag = 'scoped memory for _lambda_.5']
    %9 = vsyncpa [#allocation4], 0
    %10 = vsyncpa [#allocation6], 0
    loop: start=0, step=1, limit=10
    $region2: #{_lambda_.5} parent=1 // loop_pre_header
      _
    $region3: #{_lambda_.5} parent=1 // loop_header
      %s12 = sphi 0, %s16
      %p13 = scmp.ge.s32.totalorder %s12, 10
      %s19 = sphi 0, %s38
      %s20 = sphi 0, %s34
      %s21 = sphi 0, %s30
      %s22 = sphi 0, %s19
      %s23 = sphi 0, %s20
      %s24 = sphi 0, %s21
      %s25 = sphi 0, %s22
      %s26 = sphi 0, %s23
      %s27 = sphi 0, %s24
      %s43 = sphi 0, %s45
      %s46 = sphi 0, %s43
      %s47 = sphi 0, %s46
      %s63 = sphi 0, %s47
      %s71 = sphi 0, %s73
      %s74 = sphi 0, %s71
      %s75 = sphi 0, %s74
      %s91 = sphi 0, %s75
      %s97 = sphi 0, %s99
      %s100 = sphi 0, %s97
      %s101 = sphi 0, %s100
      %s117 = sphi 0, %s101
      %s123 = sphi 0, %s125
      %s126 = sphi 0, %s123
      %s127 = sphi 0, %s126
      %s143 = sphi 0, %s127
      %s151 = sphi 0, %s153
      %s154 = sphi 0, %s151
      %s155 = sphi 0, %s154
      %s171 = sphi 0, %s155
    $region4: #{_lambda_.5} parent=1 // loop_header_branch
      %15 = sbr.rel (%p13) target = $region8
    $region5: #{_lambda_.5} parent=1 // loop_body
      %s17 = ssub.s32 %s12, 1
      %s18 = ssub.s32 %s12, 2
      %s28 = sadd.s32 1, %s21
      %p29 = scmp.ge.s32.totalorder %s28, 1
      %s30 = scalar_select %p29, 0, %s28
      %s31 = sadd.s32 1, %s20
      %s32 = scalar_select %p29, %s31, %s20
      %p33 = scmp.ge.s32.totalorder %s32, 1
      %s34 = scalar_select %p33, 0, %s32
      %s35 = sadd.s32 1, %s19
      %s36 = scalar_select %p33, %s35, %s19
      %p37 = scmp.ge.s32.totalorder %s36, 8
      %s38 = scalar_select %p37, 0, %s36
      %s39 = ssub.s32 %s19, %s38
      %s40 = ssub.s32 %s21, %s30
      %s41 = sor.u32 %s39, %s40
      %p42 = scmp.eq.s32.totalorder %s41, 0
      %s44 = sadd.s32 %s43, 1
      %s45 = scalar_select %p42, %s43, %s44
      %p48 = pneg %p42
      %p49 = scmp.eq.s32.totalorder %s12, 7
      %p50 = por %p48, %p49
      %p51 = scmp.ne.s32.totalorder %s43, %s46
      %p52 = scmp.eq.s32.totalorder %s12, 0
      %p53 = por %p51, %p52
      %p54 = scmp.ne.s32.totalorder %s43, %s46
      %p55 = scmp.eq.s32.totalorder %s17, 7
      %p56 = por %p54, %p55
      %p57 = scmp.ne.s32.totalorder %s46, %s47
      %p58 = scmp.eq.s32.totalorder %s17, 0
      %p59 = por %p57, %p58
      %p60 = scmp.ne.s32.totalorder %s46, %s47
      %p61 = scmp.eq.s32.totalorder %s18, 7
      %p62 = por %p60, %p61
      %p64 = scmp.ne.s32.totalorder %s47, %s63
      %p65 = scmp.eq.s32.totalorder %s18, 0
      %p66 = por %p64, %p65
      %s67 = ssub.s32 %s21, %s30
      %s68 = ssub.s32 %s20, %s34
      %s69 = sor.u32 %s67, %s68
      %p70 = scmp.eq.s32.totalorder %s69, 0
      %s72 = sadd.s32 %s71, 1
      %s73 = scalar_select %p70, %s71, %s72
      %p76 = pneg %p70
      %p77 = scmp.eq.s32.totalorder %s12, 7
      %p78 = por %p76, %p77
      %p79 = scmp.ne.s32.totalorder %s71, %s74
      %p80 = scmp.eq.s32.totalorder %s12, 0
      %p81 = por %p79, %p80
      %p82 = scmp.ne.s32.totalorder %s71, %s74
      %p83 = scmp.eq.s32.totalorder %s17, 7
      %p84 = por %p82, %p83
      %p85 = scmp.ne.s32.totalorder %s74, %s75
      %p86 = scmp.eq.s32.totalorder %s17, 0
      %p87 = por %p85, %p86
      %p88 = scmp.ne.s32.totalorder %s74, %s75
      %p89 = scmp.eq.s32.totalorder %s18, 7
      %p90 = por %p88, %p89
      %p92 = scmp.ne.s32.totalorder %s75, %s91
      %p93 = scmp.eq.s32.totalorder %s18, 0
      %p94 = por %p92, %p93
      %s95 = ssub.s32 %s20, %s34
      %p96 = scmp.eq.s32.totalorder %s95, 0
      %s98 = sadd.s32 %s97, 1
      %s99 = scalar_select %p96, %s97, %s98
      %p102 = pneg %p96
      %p103 = scmp.eq.s32.totalorder %s12, 7
      %p104 = por %p102, %p103
      %p105 = scmp.ne.s32.totalorder %s97, %s100
      %p106 = scmp.eq.s32.totalorder %s12, 0
      %p107 = por %p105, %p106
      %p108 = scmp.ne.s32.totalorder %s97, %s100
      %p109 = scmp.eq.s32.totalorder %s17, 7
      %p110 = por %p108, %p109
      %p111 = scmp.ne.s32.totalorder %s100, %s101
      %p112 = scmp.eq.s32.totalorder %s17, 0
      %p113 = por %p111, %p112
      %p114 = scmp.ne.s32.totalorder %s100, %s101
      %p115 = scmp.eq.s32.totalorder %s18, 7
      %p116 = por %p114, %p115
      %p118 = scmp.ne.s32.totalorder %s101, %s117
      %p119 = scmp.eq.s32.totalorder %s18, 0
      %p120 = por %p118, %p119
      %s121 = ssub.s32 %s20, %s34
      %p122 = scmp.eq.s32.totalorder %s121, 0
      %s124 = sadd.s32 %s123, 1
      %s125 = scalar_select %p122, %s123, %s124
      %p128 = pneg %p122
      %p129 = scmp.eq.s32.totalorder %s12, 7
      %p130 = por %p128, %p129
      %p131 = scmp.ne.s32.totalorder %s123, %s126
      %p132 = scmp.eq.s32.totalorder %s12, 0
      %p133 = por %p131, %p132
      %p134 = scmp.ne.s32.totalorder %s123, %s126
      %p135 = scmp.eq.s32.totalorder %s17, 7
      %p136 = por %p134, %p135
      %p137 = scmp.ne.s32.totalorder %s126, %s127
      %p138 = scmp.eq.s32.totalorder %s17, 0
      %p139 = por %p137, %p138
      %p140 = scmp.ne.s32.totalorder %s126, %s127
      %p141 = scmp.eq.s32.totalorder %s18, 7
      %p142 = por %p140, %p141
      %p144 = scmp.ne.s32.totalorder %s127, %s143
      %p145 = scmp.eq.s32.totalorder %s18, 0
      %p146 = por %p144, %p145
      %s147 = ssub.s32 %s19, %s38
      %s148 = ssub.s32 %s20, %s34
      %s149 = sor.u32 %s147, %s148
      %p150 = scmp.eq.s32.totalorder %s149, 0
      %s152 = sadd.s32 %s151, 1
      %s153 = scalar_select %p150, %s151, %s152
      %p156 = pneg %p150
      %p157 = scmp.eq.s32.totalorder %s12, 7
      %p158 = por %p156, %p157
      %p159 = scmp.ne.s32.totalorder %s151, %s154
      %p160 = scmp.eq.s32.totalorder %s12, 0
      %p161 = por %p159, %p160
      %p162 = scmp.ne.s32.totalorder %s151, %s154
      %p163 = scmp.eq.s32.totalorder %s17, 7
      %p164 = por %p162, %p163
      %p165 = scmp.ne.s32.totalorder %s154, %s155
      %p166 = scmp.eq.s32.totalorder %s17, 0
      %p167 = por %p165, %p166
      %p168 = scmp.ne.s32.totalorder %s154, %s155
      %p169 = scmp.eq.s32.totalorder %s18, 7
      %p170 = por %p168, %p169
      %p172 = scmp.ne.s32.totalorder %s155, %s171
      %p173 = scmp.eq.s32.totalorder %s18, 0
      %p174 = por %p172, %p173
      %p175 = scmp.le.s32.totalorder 1, %s12
      %p176 = scmp.lt.s32.totalorder %s12, 9
      %p177 = pnand %p175, %p176
      %p178 = pneg %p177
      // Predicated region
      $region9: #{_lambda_.5} parent=5 // pred_check
        _
      $region10: #{_lambda_.5} parent=5 // pred_check_branch
        %180 = sbr.rel (%p177) target = $region12
      $region11: #{_lambda_.5} parent=5 // pred_region
        %s181 = ssub.s32 %s12, 1
        // Predicated region
        $region13: #{_lambda_.5} parent=11 // pred_check
          %p182 = pneg %p87
        $region14: #{_lambda_.5} parent=11 // pred_check_branch
          %184 = sbr.rel (%p182) target = $region16
        $region15: #{_lambda_.5} parent=11 // pred_region
          %s185 = smul.u32 16, %s24
          %s187 = ssub.s32 1024, 1024
          %188 = vsyncadd [#allocation4], %s187
          %s189 = sadd.s32 %s23, %s185
          %s190 = smul.addr %s189, 64
          %s191 = scalar_lea.hbm %s1, %s190
          %s192 = sshll.u32 [#allocation3], 4
          %s193 = int_to_ptr.vmem [resolvable:$true] %s192
          %198 = dma.hbm_to_vmem [thread:$0]  %s191, 1024, %s193, [#allocation4], 64, 64, 4
        $region16: #{_lambda_.5} parent=11 // pred_fallthru
          _
        // Predicated region
        $region17: #{_lambda_.5} parent=11 // pred_check
          %p199 = pneg %p113
        $region18: #{_lambda_.5} parent=11 // pred_check_branch
          %201 = sbr.rel (%p199) target = $region20
        $region19: #{_lambda_.5} parent=11 // pred_region
          %p202 = scmp.lt.s32.totalorder %s23, 0
          %s203 = scalar_select %p202, %s23, 0
          %s204 = scalar_lea.vmem %s2, %s203
        $region20: #{_lambda_.5} parent=11 // pred_fallthru
          _
        // Predicated region
        $region21: #{_lambda_.5} parent=11 // pred_check
          %p205 = pneg %p139
        $region22: #{_lambda_.5} parent=11 // pred_check_branch
          %207 = sbr.rel (%p205) target = $region24
        $region23: #{_lambda_.5} parent=11 // pred_region
          %s209 = ssub.s32 16, 16
          %210 = vsyncadd [#allocation6], %s209
          %s211 = smul.addr %s23, 16
          %s212 = scalar_lea.hbm %s3, %s211
          %s214 = sshll.u32 [#allocation5], 4
          %s215 = int_to_ptr.vmem [resolvable:$true] %s214
          %217 = dma.hbm_to_vmem [thread:$0]  %s212, 16, %s215, [#allocation6]
        $region24: #{_lambda_.5} parent=11 // pred_fallthru
          _
      $region12: #{_lambda_.5} parent=5 // pred_fallthru
        _
      %p218 = scmp.lt.s32.totalorder %s12, 8
      // Predicated region
      $region25: #{_lambda_.5} parent=5 // pred_check
        %p219 = pneg %p218
      $region26: #{_lambda_.5} parent=5 // pred_check_branch
        %221 = sbr.rel (%p219) target = $region28
      $region27: #{_lambda_.5} parent=5 // pred_region
        // Predicated region
        $region29: #{_lambda_.5} parent=27 // pred_check
          %p222 = pneg %p53
        $region30: #{_lambda_.5} parent=27 // pred_check_branch
          %224 = sbr.rel (%p222) target = $region32
        $region31: #{_lambda_.5} parent=27 // pred_region
          %s225 = smul.u32 32, %s19
          %p226 = scmp.lt.s32.totalorder %s225, 255
          %s227 = scalar_select %p226, %s225, 255
          %p228 = scmp.lt.s32.totalorder %s21, 0
          %s229 = scalar_select %p228, %s21, 0
          %s230 = sadd.s32 %s229, %s227
          %s231 = smul.addr %s230, 4
          %s232 = scalar_lea.vmem %s0, %s231
          %s233 = smul.u32 32, %s19
        $region32: #{_lambda_.5} parent=27 // pred_fallthru
          _
      $region28: #{_lambda_.5} parent=5 // pred_fallthru
        _
      %p234 = scmp.le.s32.totalorder 1, %s12
      %p235 = scmp.lt.s32.totalorder %s12, 9
      %p236 = pnand %p234, %p235
      %p237 = pneg %p236
      // Predicated region
      $region33: #{_lambda_.5} parent=5 // pred_check
        _
      $region34: #{_lambda_.5} parent=5 // pred_check_branch
        %239 = sbr.rel (%p236) target = $region36
      $region35: #{_lambda_.5} parent=5 // pred_region
        %s240 = ssub.s32 %s12, 1
        // Predicated region
        $region37: #{_lambda_.5} parent=35 // pred_check
          %p241 = pneg %p87
        $region38: #{_lambda_.5} parent=35 // pred_check_branch
          %243 = sbr.rel (%p241) target = $region40
        $region39: #{_lambda_.5} parent=35 // pred_region
          %244 = dma.done [#allocation4], 1024
        $region40: #{_lambda_.5} parent=35 // pred_fallthru
          _
        // Predicated region
        $region41: #{_lambda_.5} parent=35 // pred_check
          %p245 = pneg %p139
        $region42: #{_lambda_.5} parent=35 // pred_check_branch
          %247 = sbr.rel (%p245) target = $region44
        $region43: #{_lambda_.5} parent=35 // pred_region
          %248 = dma.done [#allocation6], 16
        $region44: #{_lambda_.5} parent=35 // pred_fallthru
          _
        %s249 = smul.u32 32, %s22
        %p250 = scmp.lt.s32.totalorder %s249, 255
        %s251 = scalar_select %p250, %s249, 255
        %p252 = scmp.lt.s32.totalorder %s24, 0
        %s253 = scalar_select %p252, %s24, 0
        %s254 = sadd.s32 %s253, %s251
        %s255 = smul.addr %s254, 4
        %s256 = scalar_lea.vmem %s0, %s255
        %p257 = pneg %p59
        %p258 = pneg %p56
        %p259 = pneg %p87
        %p260 = pneg %p84
        %p261 = scmp.lt.s32.totalorder %s23, 0
        %s262 = scalar_select %p261, %s23, 0
        %s263 = scalar_lea.vmem %s2, %s262
        %p264 = pneg %p113
        %p265 = pneg %p110
        %p266 = pneg %p139
        %p267 = pneg %p136
        %p268 = pneg %p167
        %p269 = pneg %p164
        %s270 = smul.u32 32, %s22
        %p271 = scmp.lt.s32.totalorder %s270, 255
        %s272 = scalar_select %p271, %s270, 255
        %p273 = scmp.lt.s32.totalorder %s23, 0
        %s274 = scalar_select %p273, %s23, 0
        %s275 = sadd.s32 %s274, %s272
        %s276 = smul.addr %s275, 4
        %s277 = scalar_lea.vmem %s4, %s276
        %s278 = smul.u32 32, %s22
        %p279 = scmp.lt.s32.totalorder %s278, 255
        %s280 = scalar_select %p279, %s278, 255
        %p281 = scmp.lt.s32.totalorder %s24, 0
        %s282 = scalar_select %p281, %s24, 0
        %s283 = sadd.s32 %s282, %s280
        %s284 = smul.addr %s283, 4
        %s285 = scalar_lea.vmem %s0, %s284
        %s286 = smul.u32 32, %s22
        %s287 = smul.u32 16, %s24
        %p288 = scmp.lt.s32.totalorder %s23, 0
        %s289 = scalar_select %p288, %s23, 0
        %s290 = scalar_lea.vmem %s2, %s289
        %s291 = smul.u32 32, %s22
        %p292 = scmp.lt.s32.totalorder %s291, 255
        %s293 = scalar_select %p292, %s291, 255
        %p294 = scmp.lt.s32.totalorder %s23, 0
        %s295 = scalar_select %p294, %s23, 0
        %s296 = sadd.s32 %s295, %s293
        %s297 = smul.addr %s296, 4
        %s298 = scalar_lea.vmem %s4, %s297
        %s299 = smul.u32 32, %s22
        %p301 = scmp.eq.s32.totalorder %s24, 0
        // Predicated region
        $region45: #{_lambda_.5} parent=35 // pred_check
          %p302 = pneg %p301
        $region46: #{_lambda_.5} parent=35 // pred_check_branch
          %304 = sbr.rel (%p302) target = $region48
        $region47: #{_lambda_.5} parent=35 // pred_region
          %305 = vst [vmem:[#allocation2] sm:$0xff] 0.0
          %306 = vst [vmem:[#allocation2 + $0x8] sm:$0xff] 0.0
          %307 = vst [vmem:[#allocation2 + $0x10] sm:$0xff] 0.0
          %308 = vst [vmem:[#allocation2 + $0x18] sm:$0xff] 0.0
          %309 = vst [vmem:[#allocation2 + $0x20] sm:$0xff] 0.0
          %310 = vst [vmem:[#allocation2 + $0x28] sm:$0xff] 0.0
          %311 = vst [vmem:[#allocation2 + $0x30] sm:$0xff] 0.0
          %312 = vst [vmem:[#allocation2 + $0x38] sm:$0xff] 0.0
          %313 = vst [vmem:[#allocation2 + $0x40] sm:$0xff] 0.0
          %314 = vst [vmem:[#allocation2 + $0x48] sm:$0xff] 0.0
          %315 = vst [vmem:[#allocation2 + $0x50] sm:$0xff] 0.0
          %316 = vst [vmem:[#allocation2 + $0x58] sm:$0xff] 0.0
          %317 = vst [vmem:[#allocation2 + $0x60] sm:$0xff] 0.0
          %318 = vst [vmem:[#allocation2 + $0x68] sm:$0xff] 0.0
          %319 = vst [vmem:[#allocation2 + $0x70] sm:$0xff] 0.0
          %320 = vst [vmem:[#allocation2 + $0x78] sm:$0xff] 0.0
          %321 = vst [vmem:[#allocation2 + $0x80] sm:$0xff] 0.0
          %322 = vst [vmem:[#allocation2 + $0x88] sm:$0xff] 0.0
          %323 = vst [vmem:[#allocation2 + $0x90] sm:$0xff] 0.0
          %324 = vst [vmem:[#allocation2 + $0x98] sm:$0xff] 0.0
          %325 = vst [vmem:[#allocation2 + $0xa0] sm:$0xff] 0.0
          %326 = vst [vmem:[#allocation2 + $0xa8] sm:$0xff] 0.0
          %327 = vst [vmem:[#allocation2 + $0xb0] sm:$0xff] 0.0
          %328 = vst [vmem:[#allocation2 + $0xb8] sm:$0xff] 0.0
          %329 = vst [vmem:[#allocation2 + $0xc0] sm:$0xff] 0.0
          %330 = vst [vmem:[#allocation2 + $0xc8] sm:$0xff] 0.0
          %331 = vst [vmem:[#allocation2 + $0xd0] sm:$0xff] 0.0
          %332 = vst [vmem:[#allocation2 + $0xd8] sm:$0xff] 0.0
          %333 = vst [vmem:[#allocation2 + $0xe0] sm:$0xff] 0.0
          %334 = vst [vmem:[#allocation2 + $0xe8] sm:$0xff] 0.0
          %335 = vst [vmem:[#allocation2 + $0xf0] sm:$0xff] 0.0
          %336 = vst [vmem:[#allocation2 + $0xf8] sm:$0xff] 0.0
        $region48: #{_lambda_.5} parent=35 // pred_fallthru
          _
        %v337 = vld [vmem:[#allocation2] sm:$0xff]
        %v338 = vld [vmem:[#allocation2 + $0x8] sm:$0xff]
        %v339 = vld [vmem:[#allocation2 + $0x10] sm:$0xff]
        %v340 = vld [vmem:[#allocation2 + $0x18] sm:$0xff]
        %v341 = vld [vmem:[#allocation2 + $0x20] sm:$0xff]
        %v342 = vld [vmem:[#allocation2 + $0x28] sm:$0xff]
        %v343 = vld [vmem:[#allocation2 + $0x30] sm:$0xff]
        %v344 = vld [vmem:[#allocation2 + $0x38] sm:$0xff]
        %v345 = vld [vmem:[#allocation2 + $0x40] sm:$0xff]
        %v346 = vld [vmem:[#allocation2 + $0x48] sm:$0xff]
        %v347 = vld [vmem:[#allocation2 + $0x50] sm:$0xff]
        %v348 = vld [vmem:[#allocation2 + $0x58] sm:$0xff]
        %v349 = vld [vmem:[#allocation2 + $0x60] sm:$0xff]
        %v350 = vld [vmem:[#allocation2 + $0x68] sm:$0xff]
        %v351 = vld [vmem:[#allocation2 + $0x70] sm:$0xff]
        %v352 = vld [vmem:[#allocation2 + $0x78] sm:$0xff]
        %v353 = vld [vmem:[#allocation2 + $0x80] sm:$0xff]
        %v354 = vld [vmem:[#allocation2 + $0x88] sm:$0xff]
        %v355 = vld [vmem:[#allocation2 + $0x90] sm:$0xff]
        %v356 = vld [vmem:[#allocation2 + $0x98] sm:$0xff]
        %v357 = vld [vmem:[#allocation2 + $0xa0] sm:$0xff]
        %v358 = vld [vmem:[#allocation2 + $0xa8] sm:$0xff]
        %v359 = vld [vmem:[#allocation2 + $0xb0] sm:$0xff]
        %v360 = vld [vmem:[#allocation2 + $0xb8] sm:$0xff]
        %v361 = vld [vmem:[#allocation2 + $0xc0] sm:$0xff]
        %v362 = vld [vmem:[#allocation2 + $0xc8] sm:$0xff]
        %v363 = vld [vmem:[#allocation2 + $0xd0] sm:$0xff]
        %v364 = vld [vmem:[#allocation2 + $0xd8] sm:$0xff]
        %v365 = vld [vmem:[#allocation2 + $0xe0] sm:$0xff]
        %v366 = vld [vmem:[#allocation2 + $0xe8] sm:$0xff]
        %v367 = vld [vmem:[#allocation2 + $0xf0] sm:$0xff]
        %v368 = vld [vmem:[#allocation2 + $0xf8] sm:$0xff]
        %v369 = vld [vmem:[%s285] sm:$0xf]
        %v370 = vld [vmem:[%s285 + $0x4] sm:$0xf]
        %v371 = vld [vmem:[%s285 + $0x8] sm:$0xf]
        %v372 = vld [vmem:[%s285 + $0xc] sm:$0xf]
        %v373 = vld [vmem:[%s285 + $0x10] sm:$0xf]
        %v374 = vld [vmem:[%s285 + $0x14] sm:$0xf]
        %v375 = vld [vmem:[%s285 + $0x18] sm:$0xf]
        %v376 = vld [vmem:[%s285 + $0x1c] sm:$0xf]
        %v377 = vld [vmem:[%s285 + $0x20] sm:$0xf]
        %v378 = vld [vmem:[%s285 + $0x24] sm:$0xf]
        %v379 = vld [vmem:[%s285 + $0x28] sm:$0xf]
        %v380 = vld [vmem:[%s285 + $0x2c] sm:$0xf]
        %v381 = vld [vmem:[%s285 + $0x30] sm:$0xf]
        %v382 = vld [vmem:[%s285 + $0x34] sm:$0xf]
        %v383 = vld [vmem:[%s285 + $0x38] sm:$0xf]
        %v384 = vld [vmem:[%s285 + $0x3c] sm:$0xf]
        %v385 = vld [vmem:[%s285 + $0x40] sm:$0xf]
        %v386 = vld [vmem:[%s285 + $0x44] sm:$0xf]
        %v387 = vld [vmem:[%s285 + $0x48] sm:$0xf]
        %v388 = vld [vmem:[%s285 + $0x4c] sm:$0xf]
        %v389 = vld [vmem:[%s285 + $0x50] sm:$0xf]
        %v390 = vld [vmem:[%s285 + $0x54] sm:$0xf]
        %v391 = vld [vmem:[%s285 + $0x58] sm:$0xf]
        %v392 = vld [vmem:[%s285 + $0x5c] sm:$0xf]
        %v393 = vld [vmem:[%s285 + $0x60] sm:$0xf]
        %v394 = vld [vmem:[%s285 + $0x64] sm:$0xf]
        %v395 = vld [vmem:[%s285 + $0x68] sm:$0xf]
        %v396 = vld [vmem:[%s285 + $0x6c] sm:$0xf]
        %v397 = vld [vmem:[%s285 + $0x70] sm:$0xf]
        %v398 = vld [vmem:[%s285 + $0x74] sm:$0xf]
        %v399 = vld [vmem:[%s285 + $0x78] sm:$0xf]
        %v400 = vld [vmem:[%s285 + $0x7c] sm:$0xf]
        %v401 = vld [vmem:[#allocation3] sm:$0xf]
        %v402 = vld [vmem:[#allocation3 + $0x4] sm:$0xf]
        %v403 = vld [vmem:[#allocation3 + $0x8] sm:$0xf]
        %v404 = vld [vmem:[#allocation3 + $0xc] sm:$0xf]
        %v405 = vld [vmem:[#allocation3 + $0x10] sm:$0xf]
        %v406 = vld [vmem:[#allocation3 + $0x14] sm:$0xf]
        %v407 = vld [vmem:[#allocation3 + $0x18] sm:$0xf]
        %v408 = vld [vmem:[#allocation3 + $0x1c] sm:$0xf]
        %v409 = vld [vmem:[#allocation3 + $0x20] sm:$0xf]
        %v410 = vld [vmem:[#allocation3 + $0x24] sm:$0xf]
        %v411 = vld [vmem:[#allocation3 + $0x28] sm:$0xf]
        %v412 = vld [vmem:[#allocation3 + $0x2c] sm:$0xf]
        %v413 = vld [vmem:[#allocation3 + $0x30] sm:$0xf]
        %v414 = vld [vmem:[#allocation3 + $0x34] sm:$0xf]
        %v415 = vld [vmem:[#allocation3 + $0x38] sm:$0xf]
        %v416 = vld [vmem:[#allocation3 + $0x3c] sm:$0xf]
        %v449 = vunpack.c.l.b16 %v369
        %v450 = vunpack.c.l.b16 %v370
        %v451 = vunpack.c.l.b16 %v371
        %v452 = vunpack.c.l.b16 %v372
        %v453 = vunpack.c.l.b16 %v373
        %v454 = vunpack.c.l.b16 %v374
        %v455 = vunpack.c.l.b16 %v375
        %v456 = vunpack.c.l.b16 %v376
        %v457 = vunpack.c.l.b16 %v377
        %v458 = vunpack.c.l.b16 %v378
        %v459 = vunpack.c.l.b16 %v379
        %v460 = vunpack.c.l.b16 %v380
        %v461 = vunpack.c.l.b16 %v381
        %v462 = vunpack.c.l.b16 %v382
        %v463 = vunpack.c.l.b16 %v383
        %v464 = vunpack.c.l.b16 %v384
        %v465 = vunpack.c.l.b16 %v385
        %v466 = vunpack.c.l.b16 %v386
        %v467 = vunpack.c.l.b16 %v387
        %v468 = vunpack.c.l.b16 %v388
        %v469 = vunpack.c.l.b16 %v389
        %v470 = vunpack.c.l.b16 %v390
        %v471 = vunpack.c.l.b16 %v391
        %v472 = vunpack.c.l.b16 %v392
        %v473 = vunpack.c.l.b16 %v393
        %v474 = vunpack.c.l.b16 %v394
        %v475 = vunpack.c.l.b16 %v395
        %v476 = vunpack.c.l.b16 %v396
        %v477 = vunpack.c.l.b16 %v397
        %v478 = vunpack.c.l.b16 %v398
        %v479 = vunpack.c.l.b16 %v399
        %v480 = vunpack.c.l.b16 %v400
        %v481 = vpack.c.b16 %v450, %v449
        %v482 = vpack.c.b16 %v452, %v451
        %v483 = vpack.c.b16 %v454, %v453
        %v484 = vpack.c.b16 %v456, %v455
        %v485 = vpack.c.b16 %v458, %v457
        %v486 = vpack.c.b16 %v460, %v459
        %v487 = vpack.c.b16 %v462, %v461
        %v488 = vpack.c.b16 %v464, %v463
        %v489 = vpack.c.b16 %v466, %v465
        %v490 = vpack.c.b16 %v468, %v467
        %v491 = vpack.c.b16 %v470, %v469
        %v492 = vpack.c.b16 %v472, %v471
        %v493 = vpack.c.b16 %v474, %v473
        %v494 = vpack.c.b16 %v476, %v475
        %v495 = vpack.c.b16 %v478, %v477
        %v496 = vpack.c.b16 %v480, %v479
        %v529 = vunpack.c.l.b16 %v401
        %v530 = vunpack.c.l.b16 %v402
        %v531 = vunpack.c.l.b16 %v403
        %v532 = vunpack.c.l.b16 %v404
        %v533 = vunpack.c.l.b16 %v405
        %v534 = vunpack.c.l.b16 %v406
        %v535 = vunpack.c.l.b16 %v407
        %v536 = vunpack.c.l.b16 %v408
        %v537 = vunpack.c.l.b16 %v409
        %v538 = vunpack.c.l.b16 %v410
        %v539 = vunpack.c.l.b16 %v411
        %v540 = vunpack.c.l.b16 %v412
        %v541 = vunpack.c.l.b16 %v413
        %v542 = vunpack.c.l.b16 %v414
        %v543 = vunpack.c.l.b16 %v415
        %v544 = vunpack.c.l.b16 %v416
        %v545 = vpack.c.b16 %v530, %v529
        %v546 = vpack.c.b16 %v532, %v531
        %v547 = vpack.c.b16 %v534, %v533
        %v548 = vpack.c.b16 %v536, %v535
        %v549 = vpack.c.b16 %v538, %v537
        %v550 = vpack.c.b16 %v540, %v539
        %v551 = vpack.c.b16 %v542, %v541
        %v552 = vpack.c.b16 %v544, %v543
        %561 = vmatprep.subr.bf16.mxu0 0
        %562 = vmatpush1.bf16.msra.mxu0 %v545
        %563 = vmatprep.subr.bf16.mxu0 0
        %564 = vmatpush1.bf16.msra.mxu0 %v546
        %565 = vmatprep.subr.bf16.mxu0 0
        %566 = vmatpush1.bf16.msra.mxu0 %v547
        %567 = vmatprep.subr.bf16.mxu0 0
        %568 = vmatpush1.bf16.msra.mxu0 %v548
        %569 = vmatprep.subr.bf16.mxu0 0
        %570 = vmatpush1.bf16.msra.mxu0 %v549
        %571 = vmatprep.subr.bf16.mxu0 0
        %572 = vmatpush1.bf16.msra.mxu0 %v550
        %573 = vmatprep.subr.bf16.mxu0 0
        %574 = vmatpush1.bf16.msra.mxu0 %v551
        %575 = vmatprep.subr.bf16.mxu0 0
        %576 = vmatpush1.bf16.msra.mxu0 %v552
        %577 = vmatprep.subr.bf16.mxu0 0
        %578 = vmatpush1.bf16.msra.mxu0 0
        %579 = vmatprep.subr.bf16.mxu0 0
        %580 = vmatpush1.bf16.msra.mxu0 0
        %581 = vmatprep.subr.bf16.mxu0 0
        %582 = vmatpush1.bf16.msra.mxu0 0
        %583 = vmatprep.subr.bf16.mxu0 0
        %584 = vmatpush1.bf16.msra.mxu0 0
        %585 = vmatprep.subr.bf16.mxu0 0
        %586 = vmatpush1.bf16.msra.mxu0 0
        %587 = vmatprep.subr.bf16.mxu0 0
        %588 = vmatpush1.bf16.msra.mxu0 0
        %589 = vmatprep.subr.bf16.mxu0 0
        %590 = vmatpush1.bf16.msra.mxu0 0
        %591 = vmatprep.subr.bf16.mxu0 0
        %592 = vmatpush1.bf16.msra.mxu0 0
        %593 = vmatprep.mubr.bf16.mxu0 0
        %594 = vmatmul.mubr.bf16.gmra.mrb[0].mxu0 %v481
        %v595 = vpop.f32.mrb[0].mxu0
        %v596 = vadd.f32 0.0, %v595
        %v597 = vpop.f32.mrb[0].mxu0
        %v598 = vpop.f32.mrb[0].mxu0
        %v599 = vadd.f32 0.0, %v598
        %v600 = vpop.f32.mrb[0].mxu0
        %601 = vmatprep.mubr.bf16.mxu0 0
        %602 = vmatmul.mubr.bf16.gmra.mrb[0].mxu0 %v482
        %v603 = vpop.f32.mrb[0].mxu0
        %v604 = vadd.f32 0.0, %v603
        %v605 = vpop.f32.mrb[0].mxu0
        %v606 = vpop.f32.mrb[0].mxu0
        %v607 = vadd.f32 0.0, %v606
        %v608 = vpop.f32.mrb[0].mxu0
        %609 = vmatprep.mubr.bf16.mxu0 0
        %610 = vmatmul.mubr.bf16.gmra.mrb[0].mxu0 %v483
        %v611 = vpop.f32.mrb[0].mxu0
        %v612 = vadd.f32 0.0, %v611
        %v613 = vpop.f32.mrb[0].mxu0
        %v614 = vpop.f32.mrb[0].mxu0
        %v615 = vadd.f32 0.0, %v614
        %v616 = vpop.f32.mrb[0].mxu0
        %617 = vmatprep.mubr.bf16.mxu0 0
        %618 = vmatmul.mubr.bf16.gmra.mrb[0].mxu0 %v484
        %v619 = vpop.f32.mrb[0].mxu0
        %v620 = vadd.f32 0.0, %v619
        %v621 = vpop.f32.mrb[0].mxu0
        %v622 = vpop.f32.mrb[0].mxu0
        %v623 = vadd.f32 0.0, %v622
        %v624 = vpop.f32.mrb[0].mxu0
        %625 = vmatprep.mubr.bf16.mxu0 0
        %626 = vmatmul.mubr.bf16.gmra.mrb[0].mxu0 %v485
        %v627 = vpop.f32.mrb[0].mxu0
        %v628 = vadd.f32 0.0, %v627
        %v629 = vpop.f32.mrb[0].mxu0
        %v630 = vpop.f32.mrb[0].mxu0
        %v631 = vadd.f32 0.0, %v630
        %v632 = vpop.f32.mrb[0].mxu0
        %633 = vmatprep.mubr.bf16.mxu0 0
        %634 = vmatmul.mubr.bf16.gmra.mrb[0].mxu0 %v486
        %v635 = vpop.f32.mrb[0].mxu0
        %v636 = vadd.f32 0.0, %v635
        %v637 = vpop.f32.mrb[0].mxu0
        %v638 = vpop.f32.mrb[0].mxu0
        %v639 = vadd.f32 0.0, %v638
        %v640 = vpop.f32.mrb[0].mxu0
        %641 = vmatprep.mubr.bf16.mxu0 0
        %642 = vmatmul.mubr.bf16.gmra.mrb[0].mxu0 %v487
        %v643 = vpop.f32.mrb[0].mxu0
        %v644 = vadd.f32 0.0, %v643
        %v645 = vpop.f32.mrb[0].mxu0
        %v646 = vpop.f32.mrb[0].mxu0
        %v647 = vadd.f32 0.0, %v646
        %v648 = vpop.f32.mrb[0].mxu0
        %649 = vmatprep.mubr.bf16.mxu0 0
        %650 = vmatmul.mubr.bf16.gmra.mrb[0].mxu0 %v488
        %v651 = vpop.f32.mrb[0].mxu0
        %v652 = vadd.f32 0.0, %v651
        %v653 = vpop.f32.mrb[0].mxu0
        %v654 = vpop.f32.mrb[0].mxu0
        %v655 = vadd.f32 0.0, %v654
        %v656 = vpop.f32.mrb[0].mxu0
        %657 = vmatprep.mubr.bf16.mxu0 0
        %658 = vmatmul.mubr.bf16.gmra.mrb[0].mxu0 %v489
        %v659 = vpop.f32.mrb[0].mxu0
        %v660 = vadd.f32 0.0, %v659
        %v661 = vpop.f32.mrb[0].mxu0
        %v662 = vpop.f32.mrb[0].mxu0
        %v663 = vadd.f32 0.0, %v662
        %v664 = vpop.f32.mrb[0].mxu0
        %665 = vmatprep.mubr.bf16.mxu0 0
        %666 = vmatmul.mubr.bf16.gmra.mrb[0].mxu0 %v490
        %v667 = vpop.f32.mrb[0].mxu0
        %v668 = vadd.f32 0.0, %v667
        %v669 = vpop.f32.mrb[0].mxu0
        %v670 = vpop.f32.mrb[0].mxu0
        %v671 = vadd.f32 0.0, %v670
        %v672 = vpop.f32.mrb[0].mxu0
        %673 = vmatprep.mubr.bf16.mxu0 0
        %674 = vmatmul.mubr.bf16.gmra.mrb[0].mxu0 %v491
        %v675 = vpop.f32.mrb[0].mxu0
        %v676 = vadd.f32 0.0, %v675
        %v677 = vpop.f32.mrb[0].mxu0
        %v678 = vpop.f32.mrb[0].mxu0
        %v679 = vadd.f32 0.0, %v678
        %v680 = vpop.f32.mrb[0].mxu0
        %681 = vmatprep.mubr.bf16.mxu0 0
        %682 = vmatmul.mubr.bf16.gmra.mrb[0].mxu0 %v492
        %v683 = vpop.f32.mrb[0].mxu0
        %v684 = vadd.f32 0.0, %v683
        %v685 = vpop.f32.mrb[0].mxu0
        %v686 = vpop.f32.mrb[0].mxu0
        %v687 = vadd.f32 0.0, %v686
        %v688 = vpop.f32.mrb[0].mxu0
        %689 = vmatprep.mubr.bf16.mxu0 0
        %690 = vmatmul.mubr.bf16.gmra.mrb[0].mxu0 %v493
        %v691 = vpop.f32.mrb[0].mxu0
        %v692 = vadd.f32 0.0, %v691
        %v693 = vpop.f32.mrb[0].mxu0
        %v694 = vpop.f32.mrb[0].mxu0
        %v695 = vadd.f32 0.0, %v694
        %v696 = vpop.f32.mrb[0].mxu0
        %697 = vmatprep.mubr.bf16.mxu0 0
        %698 = vmatmul.mubr.bf16.gmra.mrb[0].mxu0 %v494
        %v699 = vpop.f32.mrb[0].mxu0
        %v700 = vadd.f32 0.0, %v699
        %v701 = vpop.f32.mrb[0].mxu0
        %v702 = vpop.f32.mrb[0].mxu0
        %v703 = vadd.f32 0.0, %v702
        %v704 = vpop.f32.mrb[0].mxu0
        %705 = vmatprep.mubr.bf16.mxu0 0
        %706 = vmatmul.mubr.bf16.gmra.mrb[0].mxu0 %v495
        %v707 = vpop.f32.mrb[0].mxu0
        %v708 = vadd.f32 0.0, %v707
        %v709 = vpop.f32.mrb[0].mxu0
        %v710 = vpop.f32.mrb[0].mxu0
        %v711 = vadd.f32 0.0, %v710
        %v712 = vpop.f32.mrb[0].mxu0
        %713 = vmatprep.mubr.bf16.mxu0 0
        %714 = vmatmul.mubr.bf16.gmra.mrb[0].mxu0 %v496
        %v715 = vpop.f32.mrb[0].mxu0
        %v716 = vadd.f32 0.0, %v715
        %v717 = vpop.f32.mrb[0].mxu0
        %v718 = vpop.f32.mrb[0].mxu0
        %v719 = vadd.f32 0.0, %v718
        %v720 = vpop.f32.mrb[0].mxu0
        %721 = vdwg.mxu0
        %v722 = vadd.f32 %v337, %v596
        %v723 = vadd.f32 %v338, %v599
        %v724 = vadd.f32 %v339, %v604
        %v725 = vadd.f32 %v340, %v607
        %v726 = vadd.f32 %v341, %v612
        %v727 = vadd.f32 %v342, %v615
        %v728 = vadd.f32 %v343, %v620
        %v729 = vadd.f32 %v344, %v623
        %v730 = vadd.f32 %v345, %v628
        %v731 = vadd.f32 %v346, %v631
        %v732 = vadd.f32 %v347, %v636
        %v733 = vadd.f32 %v348, %v639
        %v734 = vadd.f32 %v349, %v644
        %v735 = vadd.f32 %v350, %v647
        %v736 = vadd.f32 %v351, %v652
        %v737 = vadd.f32 %v352, %v655
        %v738 = vadd.f32 %v353, %v660
        %v739 = vadd.f32 %v354, %v663
        %v740 = vadd.f32 %v355, %v668
        %v741 = vadd.f32 %v356, %v671
        %v742 = vadd.f32 %v357, %v676
        %v743 = vadd.f32 %v358, %v679
        %v744 = vadd.f32 %v359, %v684
        %v745 = vadd.f32 %v360, %v687
        %v746 = vadd.f32 %v361, %v692
        %v747 = vadd.f32 %v362, %v695
        %v748 = vadd.f32 %v363, %v700
        %v749 = vadd.f32 %v364, %v703
        %v750 = vadd.f32 %v365, %v708
        %v751 = vadd.f32 %v366, %v711
        %v752 = vadd.f32 %v367, %v716
        %v753 = vadd.f32 %v368, %v719
        %754 = vst [vmem:[#allocation2] sm:$0xff] %v722
        %755 = vst [vmem:[#allocation2 + $0x8] sm:$0xff] %v723
        %756 = vst [vmem:[#allocation2 + $0x10] sm:$0xff] %v724
        %757 = vst [vmem:[#allocation2 + $0x18] sm:$0xff] %v725
        %758 = vst [vmem:[#allocation2 + $0x20] sm:$0xff] %v726
        %759 = vst [vmem:[#allocation2 + $0x28] sm:$0xff] %v727
        %760 = vst [vmem:[#allocation2 + $0x30] sm:$0xff] %v728
        %761 = vst [vmem:[#allocation2 + $0x38] sm:$0xff] %v729
        %762 = vst [vmem:[#allocation2 + $0x40] sm:$0xff] %v730
        %763 = vst [vmem:[#allocation2 + $0x48] sm:$0xff] %v731
        %764 = vst [vmem:[#allocation2 + $0x50] sm:$0xff] %v732
        %765 = vst [vmem:[#allocation2 + $0x58] sm:$0xff] %v733
        %766 = vst [vmem:[#allocation2 + $0x60] sm:$0xff] %v734
        %767 = vst [vmem:[#allocation2 + $0x68] sm:$0xff] %v735
        %768 = vst [vmem:[#allocation2 + $0x70] sm:$0xff] %v736
        %769 = vst [vmem:[#allocation2 + $0x78] sm:$0xff] %v737
        %770 = vst [vmem:[#allocation2 + $0x80] sm:$0xff] %v738
        %771 = vst [vmem:[#allocation2 + $0x88] sm:$0xff] %v739
        %772 = vst [vmem:[#allocation2 + $0x90] sm:$0xff] %v740
        %773 = vst [vmem:[#allocation2 + $0x98] sm:$0xff] %v741
        %774 = vst [vmem:[#allocation2 + $0xa0] sm:$0xff] %v742
        %775 = vst [vmem:[#allocation2 + $0xa8] sm:$0xff] %v743
        %776 = vst [vmem:[#allocation2 + $0xb0] sm:$0xff] %v744
        %777 = vst [vmem:[#allocation2 + $0xb8] sm:$0xff] %v745
        %778 = vst [vmem:[#allocation2 + $0xc0] sm:$0xff] %v746
        %779 = vst [vmem:[#allocation2 + $0xc8] sm:$0xff] %v747
        %780 = vst [vmem:[#allocation2 + $0xd0] sm:$0xff] %v748
        %781 = vst [vmem:[#allocation2 + $0xd8] sm:$0xff] %v749
        %782 = vst [vmem:[#allocation2 + $0xe0] sm:$0xff] %v750
        %783 = vst [vmem:[#allocation2 + $0xe8] sm:$0xff] %v751
        %784 = vst [vmem:[#allocation2 + $0xf0] sm:$0xff] %v752
        %785 = vst [vmem:[#allocation2 + $0xf8] sm:$0xff] %v753
        // Predicated region
        $region49: #{_lambda_.5} parent=35 // pred_check
          %p786 = pneg %p301
        $region50: #{_lambda_.5} parent=35 // pred_check_branch
          %788 = sbr.rel (%p786) target = $region52
        $region51: #{_lambda_.5} parent=35 // pred_region
          %v789 = vld [vmem:[#allocation2] sm:$0xff]
          %v790 = vld [vmem:[#allocation2 + $0x8] sm:$0xff]
          %v791 = vld [vmem:[#allocation2 + $0x10] sm:$0xff]
          %v792 = vld [vmem:[#allocation2 + $0x18] sm:$0xff]
          %v793 = vld [vmem:[#allocation2 + $0x20] sm:$0xff]
          %v794 = vld [vmem:[#allocation2 + $0x28] sm:$0xff]
          %v795 = vld [vmem:[#allocation2 + $0x30] sm:$0xff]
          %v796 = vld [vmem:[#allocation2 + $0x38] sm:$0xff]
          %v797 = vld [vmem:[#allocation2 + $0x40] sm:$0xff]
          %v798 = vld [vmem:[#allocation2 + $0x48] sm:$0xff]
          %v799 = vld [vmem:[#allocation2 + $0x50] sm:$0xff]
          %v800 = vld [vmem:[#allocation2 + $0x58] sm:$0xff]
          %v801 = vld [vmem:[#allocation2 + $0x60] sm:$0xff]
          %v802 = vld [vmem:[#allocation2 + $0x68] sm:$0xff]
          %v803 = vld [vmem:[#allocation2 + $0x70] sm:$0xff]
          %v804 = vld [vmem:[#allocation2 + $0x78] sm:$0xff]
          %v805 = vld [vmem:[#allocation2 + $0x80] sm:$0xff]
          %v806 = vld [vmem:[#allocation2 + $0x88] sm:$0xff]
          %v807 = vld [vmem:[#allocation2 + $0x90] sm:$0xff]
          %v808 = vld [vmem:[#allocation2 + $0x98] sm:$0xff]
          %v809 = vld [vmem:[#allocation2 + $0xa0] sm:$0xff]
          %v810 = vld [vmem:[#allocation2 + $0xa8] sm:$0xff]
          %v811 = vld [vmem:[#allocation2 + $0xb0] sm:$0xff]
          %v812 = vld [vmem:[#allocation2 + $0xb8] sm:$0xff]
          %v813 = vld [vmem:[#allocation2 + $0xc0] sm:$0xff]
          %v814 = vld [vmem:[#allocation2 + $0xc8] sm:$0xff]
          %v815 = vld [vmem:[#allocation2 + $0xd0] sm:$0xff]
          %v816 = vld [vmem:[#allocation2 + $0xd8] sm:$0xff]
          %v817 = vld [vmem:[#allocation2 + $0xe0] sm:$0xff]
          %v818 = vld [vmem:[#allocation2 + $0xe8] sm:$0xff]
          %v819 = vld [vmem:[#allocation2 + $0xf0] sm:$0xff]
          %v820 = vld [vmem:[#allocation2 + $0xf8] sm:$0xff]
          %v821 = vld [vmem:[%s290] sm:$0x1]
          %v823 = vlaneseq
          %v824 = vshrl.u32 %v823, 7
          %v825 = vsub.s32 0, %v824
          %v826 = vrot.slane %v821, %v825
          %v828 = vmul.f32 %v789, %v826
          %v829 = vmul.f32 %v790, %v826
          %v830 = vmul.f32 %v791, %v826
          %v831 = vmul.f32 %v792, %v826
          %v832 = vmul.f32 %v793, %v826
          %v833 = vmul.f32 %v794, %v826
          %v834 = vmul.f32 %v795, %v826
          %v835 = vmul.f32 %v796, %v826
          %v836 = vmul.f32 %v797, %v826
          %v837 = vmul.f32 %v798, %v826
          %v838 = vmul.f32 %v799, %v826
          %v839 = vmul.f32 %v800, %v826
          %v840 = vmul.f32 %v801, %v826
          %v841 = vmul.f32 %v802, %v826
          %v842 = vmul.f32 %v803, %v826
          %v843 = vmul.f32 %v804, %v826
          %v844 = vmul.f32 %v805, %v826
          %v845 = vmul.f32 %v806, %v826
          %v846 = vmul.f32 %v807, %v826
          %v847 = vmul.f32 %v808, %v826
          %v848 = vmul.f32 %v809, %v826
          %v849 = vmul.f32 %v810, %v826
          %v850 = vmul.f32 %v811, %v826
          %v851 = vmul.f32 %v812, %v826
          %v852 = vmul.f32 %v813, %v826
          %v853 = vmul.f32 %v814, %v826
          %v854 = vmul.f32 %v815, %v826
          %v855 = vmul.f32 %v816, %v826
          %v856 = vmul.f32 %v817, %v826
          %v857 = vmul.f32 %v818, %v826
          %v858 = vmul.f32 %v819, %v826
          %v859 = vmul.f32 %v820, %v826
          %v860 = vld [vmem:[#allocation5] sm:$0x1]
          %v862 = vlaneseq
          %v863 = vshrl.u32 %v862, 7
          %v864 = vsub.s32 0, %v863
          %v865 = vrot.slane %v860, %v864
          %v867 = vadd.f32 %v828, %v865
          %v868 = vadd.f32 %v829, %v865
          %v869 = vadd.f32 %v830, %v865
          %v870 = vadd.f32 %v831, %v865
          %v871 = vadd.f32 %v832, %v865
          %v872 = vadd.f32 %v833, %v865
          %v873 = vadd.f32 %v834, %v865
          %v874 = vadd.f32 %v835, %v865
          %v875 = vadd.f32 %v836, %v865
          %v876 = vadd.f32 %v837, %v865
          %v877 = vadd.f32 %v838, %v865
          %v878 = vadd.f32 %v839, %v865
          %v879 = vadd.f32 %v840, %v865
          %v880 = vadd.f32 %v841, %v865
          %v881 = vadd.f32 %v842, %v865
          %v882 = vadd.f32 %v843, %v865
          %v883 = vadd.f32 %v844, %v865
          %v884 = vadd.f32 %v845, %v865
          %v885 = vadd.f32 %v846, %v865
          %v886 = vadd.f32 %v847, %v865
          %v887 = vadd.f32 %v848, %v865
          %v888 = vadd.f32 %v849, %v865
          %v889 = vadd.f32 %v850, %v865
          %v890 = vadd.f32 %v851, %v865
          %v891 = vadd.f32 %v852, %v865
          %v892 = vadd.f32 %v853, %v865
          %v893 = vadd.f32 %v854, %v865
          %v894 = vadd.f32 %v855, %v865
          %v895 = vadd.f32 %v856, %v865
          %v896 = vadd.f32 %v857, %v865
          %v897 = vadd.f32 %v858, %v865
          %v898 = vadd.f32 %v859, %v865
          %v899 = vmax.f32 %v867, 0.0
          %v900 = vmax.f32 %v868, 0.0
          %v901 = vmax.f32 %v869, 0.0
          %v902 = vmax.f32 %v870, 0.0
          %v903 = vmax.f32 %v871, 0.0
          %v904 = vmax.f32 %v872, 0.0
          %v905 = vmax.f32 %v873, 0.0
          %v906 = vmax.f32 %v874, 0.0
          %v907 = vmax.f32 %v875, 0.0
          %v908 = vmax.f32 %v876, 0.0
          %v909 = vmax.f32 %v877, 0.0
          %v910 = vmax.f32 %v878, 0.0
          %v911 = vmax.f32 %v879, 0.0
          %v912 = vmax.f32 %v880, 0.0
          %v913 = vmax.f32 %v881, 0.0
          %v914 = vmax.f32 %v882, 0.0
          %v915 = vmax.f32 %v883, 0.0
          %v916 = vmax.f32 %v884, 0.0
          %v917 = vmax.f32 %v885, 0.0
          %v918 = vmax.f32 %v886, 0.0
          %v919 = vmax.f32 %v887, 0.0
          %v920 = vmax.f32 %v888, 0.0
          %v921 = vmax.f32 %v889, 0.0
          %v922 = vmax.f32 %v890, 0.0
          %v923 = vmax.f32 %v891, 0.0
          %v924 = vmax.f32 %v892, 0.0
          %v925 = vmax.f32 %v893, 0.0
          %v926 = vmax.f32 %v894, 0.0
          %v927 = vmax.f32 %v895, 0.0
          %v928 = vmax.f32 %v896, 0.0
          %v929 = vmax.f32 %v897, 0.0
          %v930 = vmax.f32 %v898, 0.0
          %v931 = vpack.c.bf16 %v900, %v899
          %v932 = vpack.c.bf16 %v902, %v901
          %v933 = vpack.c.bf16 %v904, %v903
          %v934 = vpack.c.bf16 %v906, %v905
          %v935 = vpack.c.bf16 %v908, %v907
          %v936 = vpack.c.bf16 %v910, %v909
          %v937 = vpack.c.bf16 %v912, %v911
          %v938 = vpack.c.bf16 %v914, %v913
          %v939 = vpack.c.bf16 %v916, %v915
          %v940 = vpack.c.bf16 %v918, %v917
          %v941 = vpack.c.bf16 %v920, %v919
          %v942 = vpack.c.bf16 %v922, %v921
          %v943 = vpack.c.bf16 %v924, %v923
          %v944 = vpack.c.bf16 %v926, %v925
          %v945 = vpack.c.bf16 %v928, %v927
          %v946 = vpack.c.bf16 %v930, %v929
          %v963 = vunpack.c.l.b16 %v931
          %v964 = vunpack.c.h.b16 %v931
          %v965 = vunpack.c.l.b16 %v932
          %v966 = vunpack.c.h.b16 %v932
          %v967 = vunpack.c.l.b16 %v933
          %v968 = vunpack.c.h.b16 %v933
          %v969 = vunpack.c.l.b16 %v934
          %v970 = vunpack.c.h.b16 %v934
          %v971 = vunpack.c.l.b16 %v935
          %v972 = vunpack.c.h.b16 %v935
          %v973 = vunpack.c.l.b16 %v936
          %v974 = vunpack.c.h.b16 %v936
          %v975 = vunpack.c.l.b16 %v937
          %v976 = vunpack.c.h.b16 %v937
          %v977 = vunpack.c.l.b16 %v938
          %v978 = vunpack.c.h.b16 %v938
          %v979 = vunpack.c.l.b16 %v939
          %v980 = vunpack.c.h.b16 %v939
          %v981 = vunpack.c.l.b16 %v940
          %v982 = vunpack.c.h.b16 %v940
          %v983 = vunpack.c.l.b16 %v941
          %v984 = vunpack.c.h.b16 %v941
          %v985 = vunpack.c.l.b16 %v942
          %v986 = vunpack.c.h.b16 %v942
          %v987 = vunpack.c.l.b16 %v943
          %v988 = vunpack.c.h.b16 %v943
          %v989 = vunpack.c.l.b16 %v944
          %v990 = vunpack.c.h.b16 %v944
          %v991 = vunpack.c.l.b16 %v945
          %v992 = vunpack.c.h.b16 %v945
          %v993 = vunpack.c.l.b16 %v946
          %v994 = vunpack.c.h.b16 %v946
          %v995 = vpack.c.b16 %v963, %v963
          %v996 = vpack.c.b16 %v964, %v964
          %v997 = vpack.c.b16 %v965, %v965
          %v998 = vpack.c.b16 %v966, %v966
          %v999 = vpack.c.b16 %v967, %v967
          %v1000 = vpack.c.b16 %v968, %v968
          %v1001 = vpack.c.b16 %v969, %v969
          %v1002 = vpack.c.b16 %v970, %v970
          %v1003 = vpack.c.b16 %v971, %v971
          %v1004 = vpack.c.b16 %v972, %v972
          %v1005 = vpack.c.b16 %v973, %v973
          %v1006 = vpack.c.b16 %v974, %v974
          %v1007 = vpack.c.b16 %v975, %v975
          %v1008 = vpack.c.b16 %v976, %v976
          %v1009 = vpack.c.b16 %v977, %v977
          %v1010 = vpack.c.b16 %v978, %v978
          %v1011 = vpack.c.b16 %v979, %v979
          %v1012 = vpack.c.b16 %v980, %v980
          %v1013 = vpack.c.b16 %v981, %v981
          %v1014 = vpack.c.b16 %v982, %v982
          %v1015 = vpack.c.b16 %v983, %v983
          %v1016 = vpack.c.b16 %v984, %v984
          %v1017 = vpack.c.b16 %v985, %v985
          %v1018 = vpack.c.b16 %v986, %v986
          %v1019 = vpack.c.b16 %v987, %v987
          %v1020 = vpack.c.b16 %v988, %v988
          %v1021 = vpack.c.b16 %v989, %v989
          %v1022 = vpack.c.b16 %v990, %v990
          %v1023 = vpack.c.b16 %v991, %v991
          %v1024 = vpack.c.b16 %v992, %v992
          %v1025 = vpack.c.b16 %v993, %v993
          %v1026 = vpack.c.b16 %v994, %v994
          %1059 = vst [vmem:[%s298] sm:$0xf] %v995
          %1060 = vst [vmem:[%s298 + $0x4] sm:$0xf] %v996
          %1061 = vst [vmem:[%s298 + $0x8] sm:$0xf] %v997
          %1062 = vst [vmem:[%s298 + $0xc] sm:$0xf] %v998
          %1063 = vst [vmem:[%s298 + $0x10] sm:$0xf] %v999
          %1064 = vst [vmem:[%s298 + $0x14] sm:$0xf] %v1000
          %1065 = vst [vmem:[%s298 + $0x18] sm:$0xf] %v1001
          %1066 = vst [vmem:[%s298 + $0x1c] sm:$0xf] %v1002
          %1067 = vst [vmem:[%s298 + $0x20] sm:$0xf] %v1003
          %1068 = vst [vmem:[%s298 + $0x24] sm:$0xf] %v1004
          %1069 = vst [vmem:[%s298 + $0x28] sm:$0xf] %v1005
          %1070 = vst [vmem:[%s298 + $0x2c] sm:$0xf] %v1006
          %1071 = vst [vmem:[%s298 + $0x30] sm:$0xf] %v1007
          %1072 = vst [vmem:[%s298 + $0x34] sm:$0xf] %v1008
          %1073 = vst [vmem:[%s298 + $0x38] sm:$0xf] %v1009
          %1074 = vst [vmem:[%s298 + $0x3c] sm:$0xf] %v1010
          %1075 = vst [vmem:[%s298 + $0x40] sm:$0xf] %v1011
          %1076 = vst [vmem:[%s298 + $0x44] sm:$0xf] %v1012
          %1077 = vst [vmem:[%s298 + $0x48] sm:$0xf] %v1013
          %1078 = vst [vmem:[%s298 + $0x4c] sm:$0xf] %v1014
          %1079 = vst [vmem:[%s298 + $0x50] sm:$0xf] %v1015
          %1080 = vst [vmem:[%s298 + $0x54] sm:$0xf] %v1016
          %1081 = vst [vmem:[%s298 + $0x58] sm:$0xf] %v1017
          %1082 = vst [vmem:[%s298 + $0x5c] sm:$0xf] %v1018
          %1083 = vst [vmem:[%s298 + $0x60] sm:$0xf] %v1019
          %1084 = vst [vmem:[%s298 + $0x64] sm:$0xf] %v1020
          %1085 = vst [vmem:[%s298 + $0x68] sm:$0xf] %v1021
          %1086 = vst [vmem:[%s298 + $0x6c] sm:$0xf] %v1022
          %1087 = vst [vmem:[%s298 + $0x70] sm:$0xf] %v1023
          %1088 = vst [vmem:[%s298 + $0x74] sm:$0xf] %v1024
          %1089 = vst [vmem:[%s298 + $0x78] sm:$0xf] %v1025
          %1090 = vst [vmem:[%s298 + $0x7c] sm:$0xf] %v1026
        $region52: #{_lambda_.5} parent=35 // pred_fallthru
          _
        %s1091 = smul.u32 32, %s22
        %p1092 = scmp.lt.s32.totalorder %s1091, 255
        %s1093 = scalar_select %p1092, %s1091, 255
        %p1094 = scmp.lt.s32.totalorder %s23, 0
        %s1095 = scalar_select %p1094, %s23, 0
        %s1096 = sadd.s32 %s1095, %s1093
        %s1097 = smul.addr %s1096, 4
        %s1098 = scalar_lea.vmem %s4, %s1097
        // Predicated region
        $region53: #{_lambda_.5} parent=35 // pred_check
          %p1099 = pneg %p164
        $region54: #{_lambda_.5} parent=35 // pred_check_branch
          %1101 = sbr.rel (%p1099) target = $region56
        $region55: #{_lambda_.5} parent=35 // pred_region
          %s1102 = smul.u32 32, %s22
        $region56: #{_lambda_.5} parent=35 // pred_fallthru
          _
      $region36: #{_lambda_.5} parent=5 // pred_fallthru
        _
      %p1103 = scmp.le.s32.totalorder 2, %s12
      // Predicated region
      $region57: #{_lambda_.5} parent=5 // pred_check
        %p1104 = pneg %p1103
      $region58: #{_lambda_.5} parent=5 // pred_check_branch
        %1106 = sbr.rel (%p1104) target = $region60
      $region59: #{_lambda_.5} parent=5 // pred_region
        %s1107 = ssub.s32 %s12, 2
        // Predicated region
        $region61: #{_lambda_.5} parent=59 // pred_check
          %p1108 = pneg %p170
        $region62: #{_lambda_.5} parent=59 // pred_check_branch
          %1110 = sbr.rel (%p1108) target = $region64
        $region63: #{_lambda_.5} parent=59 // pred_region
          %s1111 = smul.u32 32, %s25
          %p1112 = scmp.lt.s32.totalorder %s1111, 255
          %s1113 = scalar_select %p1112, %s1111, 255
          %p1114 = scmp.lt.s32.totalorder %s26, 0
          %s1115 = scalar_select %p1114, %s26, 0
          %s1116 = sadd.s32 %s1115, %s1113
          %s1117 = smul.addr %s1116, 4
          %s1118 = scalar_lea.vmem %s4, %s1117
        $region64: #{_lambda_.5} parent=59 // pred_fallthru
          _
      $region60: #{_lambda_.5} parent=5 // pred_fallthru
        _
    $region6: #{_lambda_.5} parent=1 // loop_footer
      %s16 = sadd.s32 1, %s12
    $region7: #{_lambda_.5} parent=1 // loop_footer_branch
      %11 = sbr.rel target = $region3
    $region8: #{_lambda_.5} parent=1 // loop_exit
      _
    %1119 = vsyncpa [#allocation4], 1
    %s1120 = scalar_lea.sflag [#allocation4], 1
    %1121 = vsyncpa %s1120, 1
    %1122 = vsyncpa [#allocation6], 1

// kernel: div.6
$region0: #{div.6}
  #allocation0 [shape = 's32[1]{0}', space=sflag, size = 0x4, scoped, tag = 'scoped memory for div.6']
  %s0 = inlined_call_operand.<no memory space> [shape: f32[], index: 0, kind: input, shape index: {}]
  %s1 = inlined_call_operand.vmem [shape: f32[64], index: 1, kind: output, shape index: {}]
  %v2 = vstv %s0
  %3 = vst [vmem:[%s1] sm:$0x1] %v2

// kernel: _lambda_.6
$region0: #{_lambda_.6}
  #allocation0 [shape = 'u32[]', space=smem, size = 0x4, offset = 0x4, fixed_abs, tag = 'smem constant byte address 0x4 - core index']
  #allocation1 [shape = 'u32[144,128]{1,0:T(1,128)}', space=vmem, size = 0x12000, scoped, tag = 'internal scratch']
  #allocation2 [shape = 'f32[256,128]{1,0:T(8,128)}', space=vmem, size = 0x20000, scoped, tag = 'scratch operand']
  %s0 = inlined_call_operand.vmem [shape: bf16[512,1152], index: 0, kind: input, shape index: {}]
  %s1 = inlined_call_operand.vmem [shape: bf16[1152,128], index: 1, kind: input, shape index: {}]
  %s2 = inlined_call_operand.vmem [shape: f32[1,128], index: 2, kind: input, shape index: {}]
  %s3 = inlined_call_operand.vmem [shape: f32[1,128], index: 3, kind: input, shape index: {}]
  %s4 = inlined_call_operand.vmem [shape: bf16[512,128], index: 4, kind: output, shape index: {}]
  %s5 = sld [smem:[#allocation0]]
  $region57: #{_lambda_.6} parent=0
    _
  %s7 = ssub.s32 1, %s5
  %s8 = scalar_select 0, %s7, %s5
  loop: start=0, step=1, limit=4
  $region2: #{_lambda_.6} parent=0 // loop_pre_header
    _
  $region3: #{_lambda_.6} parent=0 // loop_header
    %s10 = sphi 0, %s14
    %p11 = scmp.ge.s32.totalorder %s10, 4
    %s17 = sphi 0, %s36
    %s18 = sphi 0, %s32
    %s19 = sphi 0, %s28
    %s20 = sphi 0, %s17
    %s21 = sphi 0, %s18
    %s22 = sphi 0, %s19
    %s23 = sphi 0, %s20
    %s24 = sphi 0, %s21
    %s25 = sphi 0, %s22
    %s41 = sphi 0, %s43
    %s44 = sphi 0, %s41
    %s45 = sphi 0, %s44
    %s61 = sphi 0, %s45
    %s69 = sphi 0, %s71
    %s72 = sphi 0, %s69
    %s73 = sphi 0, %s72
    %s89 = sphi 0, %s73
    %s95 = sphi 0, %s97
    %s98 = sphi 0, %s95
    %s99 = sphi 0, %s98
    %s115 = sphi 0, %s99
    %s121 = sphi 0, %s123
    %s124 = sphi 0, %s121
    %s125 = sphi 0, %s124
    %s141 = sphi 0, %s125
    %s149 = sphi 0, %s151
    %s152 = sphi 0, %s149
    %s153 = sphi 0, %s152
    %s169 = sphi 0, %s153
  $region4: #{_lambda_.6} parent=0 // loop_header_branch
    %13 = sbr.rel (%p11) target = $region8
  $region5: #{_lambda_.6} parent=0 // loop_body
    %s15 = ssub.s32 %s10, 1
    %s16 = ssub.s32 %s10, 2
    %s26 = sadd.s32 1, %s19
    %p27 = scmp.ge.s32.totalorder %s26, 1
    %s28 = scalar_select %p27, 0, %s26
    %s29 = sadd.s32 1, %s18
    %s30 = scalar_select %p27, %s29, %s18
    %p31 = scmp.ge.s32.totalorder %s30, 1
    %s32 = scalar_select %p31, 0, %s30
    %s33 = sadd.s32 1, %s17
    %s34 = scalar_select %p31, %s33, %s17
    %p35 = scmp.ge.s32.totalorder %s34, 2
    %s36 = scalar_select %p35, 0, %s34
    %s37 = ssub.s32 %s17, %s36
    %s38 = ssub.s32 %s19, %s28
    %s39 = sor.u32 %s37, %s38
    %p40 = scmp.eq.s32.totalorder %s39, 0
    %s42 = sadd.s32 %s41, 1
    %s43 = scalar_select %p40, %s41, %s42
    %p46 = pneg %p40
    %p47 = scmp.eq.s32.totalorder %s10, 1
    %p48 = por %p46, %p47
    %p49 = scmp.ne.s32.totalorder %s41, %s44
    %p50 = scmp.eq.s32.totalorder %s10, 0
    %p51 = por %p49, %p50
    %p52 = scmp.ne.s32.totalorder %s41, %s44
    %p53 = scmp.eq.s32.totalorder %s15, 1
    %p54 = por %p52, %p53
    %p55 = scmp.ne.s32.totalorder %s44, %s45
    %p56 = scmp.eq.s32.totalorder %s15, 0
    %p57 = por %p55, %p56
    %p58 = scmp.ne.s32.totalorder %s44, %s45
    %p59 = scmp.eq.s32.totalorder %s16, 1
    %p60 = por %p58, %p59
    %p62 = scmp.ne.s32.totalorder %s45, %s61
    %p63 = scmp.eq.s32.totalorder %s16, 0
    %p64 = por %p62, %p63
    %s65 = ssub.s32 %s19, %s28
    %s66 = ssub.s32 %s18, %s32
    %s67 = sor.u32 %s65, %s66
    %p68 = scmp.eq.s32.totalorder %s67, 0
    %s70 = sadd.s32 %s69, 1
    %s71 = scalar_select %p68, %s69, %s70
    %p74 = pneg %p68
    %p75 = scmp.eq.s32.totalorder %s10, 1
    %p76 = por %p74, %p75
    %p77 = scmp.ne.s32.totalorder %s69, %s72
    %p78 = scmp.eq.s32.totalorder %s10, 0
    %p79 = por %p77, %p78
    %p80 = scmp.ne.s32.totalorder %s69, %s72
    %p81 = scmp.eq.s32.totalorder %s15, 1
    %p82 = por %p80, %p81
    %p83 = scmp.ne.s32.totalorder %s72, %s73
    %p84 = scmp.eq.s32.totalorder %s15, 0
    %p85 = por %p83, %p84
    %p86 = scmp.ne.s32.totalorder %s72, %s73
    %p87 = scmp.eq.s32.totalorder %s16, 1
    %p88 = por %p86, %p87
    %p90 = scmp.ne.s32.totalorder %s73, %s89
    %p91 = scmp.eq.s32.totalorder %s16, 0
    %p92 = por %p90, %p91
    %s93 = ssub.s32 %s18, %s32
    %p94 = scmp.eq.s32.totalorder %s93, 0
    %s96 = sadd.s32 %s95, 1
    %s97 = scalar_select %p94, %s95, %s96
    %p100 = pneg %p94
    %p101 = scmp.eq.s32.totalorder %s10, 1
    %p102 = por %p100, %p101
    %p103 = scmp.ne.s32.totalorder %s95, %s98
    %p104 = scmp.eq.s32.totalorder %s10, 0
    %p105 = por %p103, %p104
    %p106 = scmp.ne.s32.totalorder %s95, %s98
    %p107 = scmp.eq.s32.totalorder %s15, 1
    %p108 = por %p106, %p107
    %p109 = scmp.ne.s32.totalorder %s98, %s99
    %p110 = scmp.eq.s32.totalorder %s15, 0
    %p111 = por %p109, %p110
    %p112 = scmp.ne.s32.totalorder %s98, %s99
    %p113 = scmp.eq.s32.totalorder %s16, 1
    %p114 = por %p112, %p113
    %p116 = scmp.ne.s32.totalorder %s99, %s115
    %p117 = scmp.eq.s32.totalorder %s16, 0
    %p118 = por %p116, %p117
    %s119 = ssub.s32 %s18, %s32
    %p120 = scmp.eq.s32.totalorder %s119, 0
    %s122 = sadd.s32 %s121, 1
    %s123 = scalar_select %p120, %s121, %s122
    %p126 = pneg %p120
    %p127 = scmp.eq.s32.totalorder %s10, 1
    %p128 = por %p126, %p127
    %p129 = scmp.ne.s32.totalorder %s121, %s124
    %p130 = scmp.eq.s32.totalorder %s10, 0
    %p131 = por %p129, %p130
    %p132 = scmp.ne.s32.totalorder %s121, %s124
    %p133 = scmp.eq.s32.totalorder %s15, 1
    %p134 = por %p132, %p133
    %p135 = scmp.ne.s32.totalorder %s124, %s125
    %p136 = scmp.eq.s32.totalorder %s15, 0
    %p137 = por %p135, %p136
    %p138 = scmp.ne.s32.totalorder %s124, %s125
    %p139 = scmp.eq.s32.totalorder %s16, 1
    %p140 = por %p138, %p139
    %p142 = scmp.ne.s32.totalorder %s125, %s141
    %p143 = scmp.eq.s32.totalorder %s16, 0
    %p144 = por %p142, %p143
    %s145 = ssub.s32 %s17, %s36
    %s146 = ssub.s32 %s18, %s32
    %s147 = sor.u32 %s145, %s146
    %p148 = scmp.eq.s32.totalorder %s147, 0
    %s150 = sadd.s32 %s149, 1
    %s151 = scalar_select %p148, %s149, %s150
    %p154 = pneg %p148
    %p155 = scmp.eq.s32.totalorder %s10, 1
    %p156 = por %p154, %p155
    %p157 = scmp.ne.s32.totalorder %s149, %s152
    %p158 = scmp.eq.s32.totalorder %s10, 0
    %p159 = por %p157, %p158
    %p160 = scmp.ne.s32.totalorder %s149, %s152
    %p161 = scmp.eq.s32.totalorder %s15, 1
    %p162 = por %p160, %p161
    %p163 = scmp.ne.s32.totalorder %s152, %s153
    %p164 = scmp.eq.s32.totalorder %s15, 0
    %p165 = por %p163, %p164
    %p166 = scmp.ne.s32.totalorder %s152, %s153
    %p167 = scmp.eq.s32.totalorder %s16, 1
    %p168 = por %p166, %p167
    %p170 = scmp.ne.s32.totalorder %s153, %s169
    %p171 = scmp.eq.s32.totalorder %s16, 0
    %p172 = por %p170, %p171
    %p173 = scmp.le.s32.totalorder 1, %s10
    %p174 = scmp.lt.s32.totalorder %s10, 3
    %p175 = pnand %p173, %p174
    %p176 = pneg %p175
    // Predicated region
    $region9: #{_lambda_.6} parent=5 // pred_check
      _
    $region10: #{_lambda_.6} parent=5 // pred_check_branch
      %178 = sbr.rel (%p175) target = $region12
    $region11: #{_lambda_.6} parent=5 // pred_region
      %s179 = ssub.s32 %s10, 1
      // Predicated region
      $region13: #{_lambda_.6} parent=11 // pred_check
        %p180 = pneg %p85
      $region14: #{_lambda_.6} parent=11 // pred_check_branch
        %182 = sbr.rel (%p180) target = $region16
      $region15: #{_lambda_.6} parent=11 // pred_region
        %s183 = smul.u32 144, %s22
        %p184 = scmp.lt.s32.totalorder %s183, 143
        %s185 = scalar_select %p184, %s183, 143
        %p186 = scmp.lt.s32.totalorder %s21, 0
        %s187 = scalar_select %p186, %s21, 0
        %s188 = sadd.s32 %s187, %s185
        %s189 = smul.addr %s188, 4
        %s190 = scalar_lea.vmem %s1, %s189
        %s191 = smul.u32 144, %s22
      $region16: #{_lambda_.6} parent=11 // pred_fallthru
        _
      // Predicated region
      $region17: #{_lambda_.6} parent=11 // pred_check
        %p192 = pneg %p111
      $region18: #{_lambda_.6} parent=11 // pred_check_branch
        %194 = sbr.rel (%p192) target = $region20
      $region19: #{_lambda_.6} parent=11 // pred_region
        %p195 = scmp.lt.s32.totalorder %s21, 0
        %s196 = scalar_select %p195, %s21, 0
        %s197 = scalar_lea.vmem %s2, %s196
      $region20: #{_lambda_.6} parent=11 // pred_fallthru
        _
      // Predicated region
      $region21: #{_lambda_.6} parent=11 // pred_check
        %p198 = pneg %p137
      $region22: #{_lambda_.6} parent=11 // pred_check_branch
        %200 = sbr.rel (%p198) target = $region24
      $region23: #{_lambda_.6} parent=11 // pred_region
        %p201 = scmp.lt.s32.totalorder %s21, 0
        %s202 = scalar_select %p201, %s21, 0
        %s203 = scalar_lea.vmem %s3, %s202
      $region24: #{_lambda_.6} parent=11 // pred_fallthru
        _
    $region12: #{_lambda_.6} parent=5 // pred_fallthru
      _
    %p204 = scmp.lt.s32.totalorder %s10, 2
    // Predicated region
    $region25: #{_lambda_.6} parent=5 // pred_check
      %p205 = pneg %p204
    $region26: #{_lambda_.6} parent=5 // pred_check_branch
      %207 = sbr.rel (%p205) target = $region28
    $region27: #{_lambda_.6} parent=5 // pred_region
      // Predicated region
      $region29: #{_lambda_.6} parent=27 // pred_check
        %p208 = pneg %p51
      $region30: #{_lambda_.6} parent=27 // pred_check_branch
        %210 = sbr.rel (%p208) target = $region32
      $region31: #{_lambda_.6} parent=27 // pred_region
        %s211 = smul.u32 32, %s17
        %s212 = smul.u32 9, %s19
        %p213 = scmp.lt.s32.totalorder %s211, 63
        %s214 = scalar_select %p213, %s211, 63
        %p215 = scmp.lt.s32.totalorder %s212, 8
        %s216 = scalar_select %p215, %s212, 8
        %s217 = smul.addr %s214, 9
        %s218 = sadd.s32 %s216, %s217
        %s219 = smul.addr %s218, 4
        %s220 = scalar_lea.vmem %s0, %s219
        %s221 = smul.u32 32, %s17
        %s222 = smul.u32 9, %s19
      $region32: #{_lambda_.6} parent=27 // pred_fallthru
        _
    $region28: #{_lambda_.6} parent=5 // pred_fallthru
      _
    %p223 = scmp.le.s32.totalorder 1, %s10
    %p224 = scmp.lt.s32.totalorder %s10, 3
    %p225 = pnand %p223, %p224
    %p226 = pneg %p225
    // Predicated region
    $region33: #{_lambda_.6} parent=5 // pred_check
      _
    $region34: #{_lambda_.6} parent=5 // pred_check_branch
      %228 = sbr.rel (%p225) target = $region36
    $region35: #{_lambda_.6} parent=5 // pred_region
      %s229 = ssub.s32 %s10, 1
      %s230 = smul.u32 32, %s20
      %s231 = smul.u32 9, %s22
      %p232 = scmp.lt.s32.totalorder %s230, 63
      %s233 = scalar_select %p232, %s230, 63
      %p234 = scmp.lt.s32.totalorder %s231, 8
      %s235 = scalar_select %p234, %s231, 8
      %s236 = smul.addr %s233, 9
      %s237 = sadd.s32 %s235, %s236
      %s238 = smul.addr %s237, 4
      %s239 = scalar_lea.vmem %s0, %s238
      %p240 = pneg %p57
      %p241 = pneg %p54
      %s242 = smul.u32 144, %s22
      %p243 = scmp.lt.s32.totalorder %s242, 143
      %s244 = scalar_select %p243, %s242, 143
      %p245 = scmp.lt.s32.totalorder %s21, 0
      %s246 = scalar_select %p245, %s21, 0
      %s247 = sadd.s32 %s246, %s244
      %s248 = smul.addr %s247, 4
      %s249 = scalar_lea.vmem %s1, %s248
      %p250 = pneg %p85
      %p251 = pneg %p82
      %p252 = scmp.lt.s32.totalorder %s21, 0
      %s253 = scalar_select %p252, %s21, 0
      %s254 = scalar_lea.vmem %s2, %s253
      %p255 = pneg %p111
      %p256 = pneg %p108
      %p257 = scmp.lt.s32.totalorder %s21, 0
      %s258 = scalar_select %p257, %s21, 0
      %s259 = scalar_lea.vmem %s3, %s258
      %p260 = pneg %p137
      %p261 = pneg %p134
      %p262 = pneg %p165
      %p263 = pneg %p162
      %s264 = smul.u32 32, %s20
      %p265 = scmp.lt.s32.totalorder %s264, 63
      %s266 = scalar_select %p265, %s264, 63
      %p267 = scmp.lt.s32.totalorder %s21, 0
      %s268 = scalar_select %p267, %s21, 0
      %s269 = sadd.s32 %s268, %s266
      %s270 = smul.addr %s269, 4
      %s271 = scalar_lea.vmem %s4, %s270
      %s272 = smul.u32 32, %s20
      %s273 = smul.u32 9, %s22
      %p274 = scmp.lt.s32.totalorder %s272, 63
      %s275 = scalar_select %p274, %s272, 63
      %p276 = scmp.lt.s32.totalorder %s273, 8
      %s277 = scalar_select %p276, %s273, 8
      %s278 = smul.addr %s275, 9
      %s279 = sadd.s32 %s277, %s278
      %s280 = smul.addr %s279, 4
      %s281 = scalar_lea.vmem %s0, %s280
      %s282 = smul.u32 32, %s20
      %s283 = smul.u32 9, %s22
      %s284 = smul.u32 144, %s22
      %p285 = scmp.lt.s32.totalorder %s284, 143
      %s286 = scalar_select %p285, %s284, 143
      %p287 = scmp.lt.s32.totalorder %s21, 0
      %s288 = scalar_select %p287, %s21, 0
      %s289 = sadd.s32 %s288, %s286
      %s290 = smul.addr %s289, 4
      %s291 = scalar_lea.vmem %s1, %s290
      %s292 = smul.u32 144, %s22
      %p293 = scmp.lt.s32.totalorder %s21, 0
      %s294 = scalar_select %p293, %s21, 0
      %s295 = scalar_lea.vmem %s2, %s294
      %p296 = scmp.lt.s32.totalorder %s21, 0
      %s297 = scalar_select %p296, %s21, 0
      %s298 = scalar_lea.vmem %s3, %s297
      %s299 = smul.u32 32, %s20
      %p300 = scmp.lt.s32.totalorder %s299, 63
      %s301 = scalar_select %p300, %s299, 63
      %p302 = scmp.lt.s32.totalorder %s21, 0
      %s303 = scalar_select %p302, %s21, 0
      %s304 = sadd.s32 %s303, %s301
      %s305 = smul.addr %s304, 4
      %s306 = scalar_lea.vmem %s4, %s305
      %s307 = smul.u32 32, %s20
      %p309 = scmp.eq.s32.totalorder %s22, 0
      // Predicated region
      $region37: #{_lambda_.6} parent=35 // pred_check
        %p310 = pneg %p309
      $region38: #{_lambda_.6} parent=35 // pred_check_branch
        %312 = sbr.rel (%p310) target = $region40
      $region39: #{_lambda_.6} parent=35 // pred_region
        %313 = vst [vmem:[#allocation2] sm:$0xff] 0.0
        %314 = vst [vmem:[#allocation2 + $0x8] sm:$0xff] 0.0
        %315 = vst [vmem:[#allocation2 + $0x10] sm:$0xff] 0.0
        %316 = vst [vmem:[#allocation2 + $0x18] sm:$0xff] 0.0
        %317 = vst [vmem:[#allocation2 + $0x20] sm:$0xff] 0.0
        %318 = vst [vmem:[#allocation2 + $0x28] sm:$0xff] 0.0
        %319 = vst [vmem:[#allocation2 + $0x30] sm:$0xff] 0.0
        %320 = vst [vmem:[#allocation2 + $0x38] sm:$0xff] 0.0
        %321 = vst [vmem:[#allocation2 + $0x40] sm:$0xff] 0.0
        %322 = vst [vmem:[#allocation2 + $0x48] sm:$0xff] 0.0
        %323 = vst [vmem:[#allocation2 + $0x50] sm:$0xff] 0.0
        %324 = vst [vmem:[#allocation2 + $0x58] sm:$0xff] 0.0
        %325 = vst [vmem:[#allocation2 + $0x60] sm:$0xff] 0.0
        %326 = vst [vmem:[#allocation2 + $0x68] sm:$0xff] 0.0
        %327 = vst [vmem:[#allocation2 + $0x70] sm:$0xff] 0.0
        %328 = vst [vmem:[#allocation2 + $0x78] sm:$0xff] 0.0
        %329 = vst [vmem:[#allocation2 + $0x80] sm:$0xff] 0.0
        %330 = vst [vmem:[#allocation2 + $0x88] sm:$0xff] 0.0
        %331 = vst [vmem:[#allocation2 + $0x90] sm:$0xff] 0.0
        %332 = vst [vmem:[#allocation2 + $0x98] sm:$0xff] 0.0
        %333 = vst [vmem:[#allocation2 + $0xa0] sm:$0xff] 0.0
        %334 = vst [vmem:[#allocation2 + $0xa8] sm:$0xff] 0.0
        %335 = vst [vmem:[#allocation2 + $0xb0] sm:$0xff] 0.0
        %336 = vst [vmem:[#allocation2 + $0xb8] sm:$0xff] 0.0
        %337 = vst [vmem:[#allocation2 + $0xc0] sm:$0xff] 0.0
        %338 = vst [vmem:[#allocation2 + $0xc8] sm:$0xff] 0.0
        %339 = vst [vmem:[#allocation2 + $0xd0] sm:$0xff] 0.0
        %340 = vst [vmem:[#allocation2 + $0xd8] sm:$0xff] 0.0
        %341 = vst [vmem:[#allocation2 + $0xe0] sm:$0xff] 0.0
        %342 = vst [vmem:[#allocation2 + $0xe8] sm:$0xff] 0.0
        %343 = vst [vmem:[#allocation2 + $0xf0] sm:$0xff] 0.0
        %344 = vst [vmem:[#allocation2 + $0xf8] sm:$0xff] 0.0
      $region40: #{_lambda_.6} parent=35 // pred_fallthru
        _
      %v345 = vld [vmem:[#allocation2] sm:$0xff]
      %v346 = vld [vmem:[#allocation2 + $0x8] sm:$0xff]
      %v347 = vld [vmem:[#allocation2 + $0x10] sm:$0xff]
      %v348 = vld [vmem:[#allocation2 + $0x18] sm:$0xff]
      %v349 = vld [vmem:[#allocation2 + $0x20] sm:$0xff]
      %v350 = vld [vmem:[#allocation2 + $0x28] sm:$0xff]
      %v351 = vld [vmem:[#allocation2 + $0x30] sm:$0xff]
      %v352 = vld [vmem:[#allocation2 + $0x38] sm:$0xff]
      %v353 = vld [vmem:[#allocation2 + $0x40] sm:$0xff]
      %v354 = vld [vmem:[#allocation2 + $0x48] sm:$0xff]
      %v355 = vld [vmem:[#allocation2 + $0x50] sm:$0xff]
      %v356 = vld [vmem:[#allocation2 + $0x58] sm:$0xff]
      %v357 = vld [vmem:[#allocation2 + $0x60] sm:$0xff]
      %v358 = vld [vmem:[#allocation2 + $0x68] sm:$0xff]
      %v359 = vld [vmem:[#allocation2 + $0x70] sm:$0xff]
      %v360 = vld [vmem:[#allocation2 + $0x78] sm:$0xff]
      %v361 = vld [vmem:[#allocation2 + $0x80] sm:$0xff]
      %v362 = vld [vmem:[#allocation2 + $0x88] sm:$0xff]
      %v363 = vld [vmem:[#allocation2 + $0x90] sm:$0xff]
      %v364 = vld [vmem:[#allocation2 + $0x98] sm:$0xff]
      %v365 = vld [vmem:[#allocation2 + $0xa0] sm:$0xff]
      %v366 = vld [vmem:[#allocation2 + $0xa8] sm:$0xff]
      %v367 = vld [vmem:[#allocation2 + $0xb0] sm:$0xff]
      %v368 = vld [vmem:[#allocation2 + $0xb8] sm:$0xff]
      %v369 = vld [vmem:[#allocation2 + $0xc0] sm:$0xff]
      %v370 = vld [vmem:[#allocation2 + $0xc8] sm:$0xff]
      %v371 = vld [vmem:[#allocation2 + $0xd0] sm:$0xff]
      %v372 = vld [vmem:[#allocation2 + $0xd8] sm:$0xff]
      %v373 = vld [vmem:[#allocation2 + $0xe0] sm:$0xff]
      %v374 = vld [vmem:[#allocation2 + $0xe8] sm:$0xff]
      %v375 = vld [vmem:[#allocation2 + $0xf0] sm:$0xff]
      %v376 = vld [vmem:[#allocation2 + $0xf8] sm:$0xff]
      %v377 = vld [vmem:[%s281] sm:$0xff]
      %v378 = vld [vmem:[%s281 + $0x8] sm:$0xff]
      %v379 = vld [vmem:[%s281 + $0x10] sm:$0xff]
      %v380 = vld [vmem:[%s281 + $0x18] sm:$0xff]
      %v381 = vld [vmem:[%s281 + $0x20] sm:$0xf]
      %v382 = vld [vmem:[%s281 + $0x24] sm:$0xff]
      %v383 = vld [vmem:[%s281 + $0x2c] sm:$0xff]
      %v384 = vld [vmem:[%s281 + $0x34] sm:$0xff]
      %v385 = vld [vmem:[%s281 + $0x3c] sm:$0xff]
      %v386 = vld [vmem:[%s281 + $0x44] sm:$0xf]
      %v387 = vld [vmem:[%s281 + $0x48] sm:$0xff]
      %v388 = vld [vmem:[%s281 + $0x50] sm:$0xff]
      %v389 = vld [vmem:[%s281 + $0x58] sm:$0xff]
      %v390 = vld [vmem:[%s281 + $0x60] sm:$0xff]
      %v391 = vld [vmem:[%s281 + $0x68] sm:$0xf]
      %v392 = vld [vmem:[%s281 + $0x6c] sm:$0xff]
      %v393 = vld [vmem:[%s281 + $0x74] sm:$0xff]
      %v394 = vld [vmem:[%s281 + $0x7c] sm:$0xff]
      %v395 = vld [vmem:[%s281 + $0x84] sm:$0xff]
      %v396 = vld [vmem:[%s281 + $0x8c] sm:$0xf]
      %v397 = vld [vmem:[%s281 + $0x90] sm:$0xff]
      %v398 = vld [vmem:[%s281 + $0x98] sm:$0xff]
      %v399 = vld [vmem:[%s281 + $0xa0] sm:$0xff]
      %v400 = vld [vmem:[%s281 + $0xa8] sm:$0xff]
      %v401 = vld [vmem:[%s281 + $0xb0] sm:$0xf]
      %v402 = vld [vmem:[%s281 + $0xb4] sm:$0xff]
      %v403 = vld [vmem:[%s281 + $0xbc] sm:$0xff]
      %v404 = vld [vmem:[%s281 + $0xc4] sm:$0xff]
      %v405 = vld [vmem:[%s281 + $0xcc] sm:$0xff]
      %v406 = vld [vmem:[%s281 + $0xd4] sm:$0xf]
      %v407 = vld [vmem:[%s281 + $0xd8] sm:$0xff]
      %v408 = vld [vmem:[%s281 + $0xe0] sm:$0xff]
      %v409 = vld [vmem:[%s281 + $0xe8] sm:$0xff]
      %v410 = vld [vmem:[%s281 + $0xf0] sm:$0xff]
      %v411 = vld [vmem:[%s281 + $0xf8] sm:$0xf]
      %v412 = vld [vmem:[%s281 + $0xfc] sm:$0xff]
      %v413 = vld [vmem:[%s281 + $0x104] sm:$0xff]
      %v414 = vld [vmem:[%s281 + $0x10c] sm:$0xff]
      %v415 = vld [vmem:[%s281 + $0x114] sm:$0xff]
      %v416 = vld [vmem:[%s281 + $0x11c] sm:$0xf]
      %v417 = vld [vmem:[%s281 + $0x120] sm:$0xff]
      %v418 = vld [vmem:[%s281 + $0x128] sm:$0xff]
      %v419 = vld [vmem:[%s281 + $0x130] sm:$0xff]
      %v420 = vld [vmem:[%s281 + $0x138] sm:$0xff]
      %v421 = vld [vmem:[%s281 + $0x140] sm:$0xf]
      %v422 = vld [vmem:[%s281 + $0x144] sm:$0xff]
      %v423 = vld [vmem:[%s281 + $0x14c] sm:$0xff]
      %v424 = vld [vmem:[%s281 + $0x154] sm:$0xff]
      %v425 = vld [vmem:[%s281 + $0x15c] sm:$0xff]
      %v426 = vld [vmem:[%s281 + $0x164] sm:$0xf]
      %v427 = vld [vmem:[%s281 + $0x168] sm:$0xff]
      %v428 = vld [vmem:[%s281 + $0x170] sm:$0xff]
      %v429 = vld [vmem:[%s281 + $0x178] sm:$0xff]
      %v430 = vld [vmem:[%s281 + $0x180] sm:$0xff]
      %v431 = vld [vmem:[%s281 + $0x188] sm:$0xf]
      %v432 = vld [vmem:[%s281 + $0x18c] sm:$0xff]
      %v433 = vld [vmem:[%s281 + $0x194] sm:$0xff]
      %v434 = vld [vmem:[%s281 + $0x19c] sm:$0xff]
      %v435 = vld [vmem:[%s281 + $0x1a4] sm:$0xff]
      %v436 = vld [vmem:[%s281 + $0x1ac] sm:$0xf]
      %v437 = vld [vmem:[%s281 + $0x1b0] sm:$0xff]
      %v438 = vld [vmem:[%s281 + $0x1b8] sm:$0xff]
      %v439 = vld [vmem:[%s281 + $0x1c0] sm:$0xff]
      %v440 = vld [vmem:[%s281 + $0x1c8] sm:$0xff]
      %v441 = vld [vmem:[%s281 + $0x1d0] sm:$0xf]
      %v442 = vld [vmem:[%s281 + $0x1d4] sm:$0xff]
      %v443 = vld [vmem:[%s281 + $0x1dc] sm:$0xff]
      %v444 = vld [vmem:[%s281 + $0x1e4] sm:$0xff]
      %v445 = vld [vmem:[%s281 + $0x1ec] sm:$0xff]
      %v446 = vld [vmem:[%s281 + $0x1f4] sm:$0xf]
      %v447 = vld [vmem:[%s281 + $0x1f8] sm:$0xff]
      %v448 = vld [vmem:[%s281 + $0x200] sm:$0xff]
      %v449 = vld [vmem:[%s281 + $0x208] sm:$0xff]
      %v450 = vld [vmem:[%s281 + $0x210] sm:$0xff]
      %v451 = vld [vmem:[%s281 + $0x218] sm:$0xf]
      %v452 = vld [vmem:[%s281 + $0x21c] sm:$0xff]
      %v453 = vld [vmem:[%s281 + $0x224] sm:$0xff]
      %v454 = vld [vmem:[%s281 + $0x22c] sm:$0xff]
      %v455 = vld [vmem:[%s281 + $0x234] sm:$0xff]
      %v456 = vld [vmem:[%s281 + $0x23c] sm:$0xf]
      %v457 = vld [vmem:[%s281 + $0x240] sm:$0xff]
      %v458 = vld [vmem:[%s281 + $0x248] sm:$0xff]
      %v459 = vld [vmem:[%s281 + $0x250] sm:$0xff]
      %v460 = vld [vmem:[%s281 + $0x258] sm:$0xff]
      %v461 = vld [vmem:[%s281 + $0x260] sm:$0xf]
      %v462 = vld [vmem:[%s281 + $0x264] sm:$0xff]
      %v463 = vld [vmem:[%s281 + $0x26c] sm:$0xff]
      %v464 = vld [vmem:[%s281 + $0x274] sm:$0xff]
      %v465 = vld [vmem:[%s281 + $0x27c] sm:$0xff]
      %v466 = vld [vmem:[%s281 + $0x284] sm:$0xf]
      %v467 = vld [vmem:[%s281 + $0x288] sm:$0xff]
      %v468 = vld [vmem:[%s281 + $0x290] sm:$0xff]
      %v469 = vld [vmem:[%s281 + $0x298] sm:$0xff]
      %v470 = vld [vmem:[%s281 + $0x2a0] sm:$0xff]
      %v471 = vld [vmem:[%s281 + $0x2a8] sm:$0xf]
      %v472 = vld [vmem:[%s281 + $0x2ac] sm:$0xff]
      %v473 = vld [vmem:[%s281 + $0x2b4] sm:$0xff]
      %v474 = vld [vmem:[%s281 + $0x2bc] sm:$0xff]
      %v475 = vld [vmem:[%s281 + $0x2c4] sm:$0xff]
      %v476 = vld [vmem:[%s281 + $0x2cc] sm:$0xf]
      %v477 = vld [vmem:[%s281 + $0x2d0] sm:$0xff]
      %v478 = vld [vmem:[%s281 + $0x2d8] sm:$0xff]
      %v479 = vld [vmem:[%s281 + $0x2e0] sm:$0xff]
      %v480 = vld [vmem:[%s281 + $0x2e8] sm:$0xff]
      %v481 = vld [vmem:[%s281 + $0x2f0] sm:$0xf]
      %v482 = vld [vmem:[%s281 + $0x2f4] sm:$0xff]
      %v483 = vld [vmem:[%s281 + $0x2fc] sm:$0xff]
      %v484 = vld [vmem:[%s281 + $0x304] sm:$0xff]
      %v485 = vld [vmem:[%s281 + $0x30c] sm:$0xff]
      %v486 = vld [vmem:[%s281 + $0x314] sm:$0xf]
      %v487 = vld [vmem:[%s281 + $0x318] sm:$0xff]
      %v488 = vld [vmem:[%s281 + $0x320] sm:$0xff]
      %v489 = vld [vmem:[%s281 + $0x328] sm:$0xff]
      %v490 = vld [vmem:[%s281 + $0x330] sm:$0xff]
      %v491 = vld [vmem:[%s281 + $0x338] sm:$0xf]
      %v492 = vld [vmem:[%s281 + $0x33c] sm:$0xff]
      %v493 = vld [vmem:[%s281 + $0x344] sm:$0xff]
      %v494 = vld [vmem:[%s281 + $0x34c] sm:$0xff]
      %v495 = vld [vmem:[%s281 + $0x354] sm:$0xff]
      %v496 = vld [vmem:[%s281 + $0x35c] sm:$0xf]
      %v497 = vld [vmem:[%s281 + $0x360] sm:$0xff]
      %v498 = vld [vmem:[%s281 + $0x368] sm:$0xff]
      %v499 = vld [vmem:[%s281 + $0x370] sm:$0xff]
      %v500 = vld [vmem:[%s281 + $0x378] sm:$0xff]
      %v501 = vld [vmem:[%s281 + $0x380] sm:$0xf]
      %v502 = vld [vmem:[%s281 + $0x384] sm:$0xff]
      %v503 = vld [vmem:[%s281 + $0x38c] sm:$0xff]
      %v504 = vld [vmem:[%s281 + $0x394] sm:$0xff]
      %v505 = vld [vmem:[%s281 + $0x39c] sm:$0xff]
      %v506 = vld [vmem:[%s281 + $0x3a4] sm:$0xf]
      %v507 = vld [vmem:[%s281 + $0x3a8] sm:$0xff]
      %v508 = vld [vmem:[%s281 + $0x3b0] sm:$0xff]
      %v509 = vld [vmem:[%s281 + $0x3b8] sm:$0xff]
      %v510 = vld [vmem:[%s281 + $0x3c0] sm:$0xff]
      %v511 = vld [vmem:[%s281 + $0x3c8] sm:$0xf]
      %v512 = vld [vmem:[%s281 + $0x3cc] sm:$0xff]
      %v513 = vld [vmem:[%s281 + $0x3d4] sm:$0xff]
      %v514 = vld [vmem:[%s281 + $0x3dc] sm:$0xff]
      %v515 = vld [vmem:[%s281 + $0x3e4] sm:$0xff]
      %v516 = vld [vmem:[%s281 + $0x3ec] sm:$0xf]
      %v517 = vld [vmem:[%s281 + $0x3f0] sm:$0xff]
      %v518 = vld [vmem:[%s281 + $0x3f8] sm:$0xff]
      %v519 = vld [vmem:[%s281 + $0x400] sm:$0xff]
      %v520 = vld [vmem:[%s281 + $0x408] sm:$0xff]
      %v521 = vld [vmem:[%s281 + $0x410] sm:$0xf]
      %v522 = vld [vmem:[%s281 + $0x414] sm:$0xff]
      %v523 = vld [vmem:[%s281 + $0x41c] sm:$0xff]
      %v524 = vld [vmem:[%s281 + $0x424] sm:$0xff]
      %v525 = vld [vmem:[%s281 + $0x42c] sm:$0xff]
      %v526 = vld [vmem:[%s281 + $0x434] sm:$0xf]
      %v527 = vld [vmem:[%s281 + $0x438] sm:$0xff]
      %v528 = vld [vmem:[%s281 + $0x440] sm:$0xff]
      %v529 = vld [vmem:[%s281 + $0x448] sm:$0xff]
      %v530 = vld [vmem:[%s281 + $0x450] sm:$0xff]
      %v531 = vld [vmem:[%s281 + $0x458] sm:$0xf]
      %v532 = vld [vmem:[%s281 + $0x45c] sm:$0xff]
      %v533 = vld [vmem:[%s281 + $0x464] sm:$0xff]
      %v534 = vld [vmem:[%s281 + $0x46c] sm:$0xff]
      %v535 = vld [vmem:[%s281 + $0x474] sm:$0xff]
      %v536 = vld [vmem:[%s281 + $0x47c] sm:$0xf]
      %v537 = vld [vmem:[%s291] sm:$0xf]
      %v538 = vld [vmem:[%s291 + $0x4] sm:$0xf]
      %v539 = vld [vmem:[%s291 + $0x8] sm:$0xf]
      %v540 = vld [vmem:[%s291 + $0xc] sm:$0xf]
      %v541 = vld [vmem:[%s291 + $0x10] sm:$0xf]
      %v542 = vld [vmem:[%s291 + $0x14] sm:$0xf]
      %v543 = vld [vmem:[%s291 + $0x18] sm:$0xf]
      %v544 = vld [vmem:[%s291 + $0x1c] sm:$0xf]
      %v545 = vld [vmem:[%s291 + $0x20] sm:$0xf]
      %v546 = vld [vmem:[%s291 + $0x24] sm:$0xf]
      %v547 = vld [vmem:[%s291 + $0x28] sm:$0xf]
      %v548 = vld [vmem:[%s291 + $0x2c] sm:$0xf]
      %v549 = vld [vmem:[%s291 + $0x30] sm:$0xf]
      %v550 = vld [vmem:[%s291 + $0x34] sm:$0xf]
      %v551 = vld [vmem:[%s291 + $0x38] sm:$0xf]
      %v552 = vld [vmem:[%s291 + $0x3c] sm:$0xf]
      %v553 = vld [vmem:[%s291 + $0x40] sm:$0xf]
      %v554 = vld [vmem:[%s291 + $0x44] sm:$0xf]
      %v555 = vld [vmem:[%s291 + $0x48] sm:$0xf]
      %v556 = vld [vmem:[%s291 + $0x4c] sm:$0xf]
      %v557 = vld [vmem:[%s291 + $0x50] sm:$0xf]
      %v558 = vld [vmem:[%s291 + $0x54] sm:$0xf]
      %v559 = vld [vmem:[%s291 + $0x58] sm:$0xf]
      %v560 = vld [vmem:[%s291 + $0x5c] sm:$0xf]
      %v561 = vld [vmem:[%s291 + $0x60] sm:$0xf]
      %v562 = vld [vmem:[%s291 + $0x64] sm:$0xf]
      %v563 = vld [vmem:[%s291 + $0x68] sm:$0xf]
      %v564 = vld [vmem:[%s291 + $0x6c] sm:$0xf]
      %v565 = vld [vmem:[%s291 + $0x70] sm:$0xf]
      %v566 = vld [vmem:[%s291 + $0x74] sm:$0xf]
      %v567 = vld [vmem:[%s291 + $0x78] sm:$0xf]
      %v568 = vld [vmem:[%s291 + $0x7c] sm:$0xf]
      %v569 = vld [vmem:[%s291 + $0x80] sm:$0xf]
      %v570 = vld [vmem:[%s291 + $0x84] sm:$0xf]
      %v571 = vld [vmem:[%s291 + $0x88] sm:$0xf]
      %v572 = vld [vmem:[%s291 + $0x8c] sm:$0xf]
      %v573 = vld [vmem:[%s291 + $0x90] sm:$0xf]
      %v574 = vld [vmem:[%s291 + $0x94] sm:$0xf]
      %v575 = vld [vmem:[%s291 + $0x98] sm:$0xf]
      %v576 = vld [vmem:[%s291 + $0x9c] sm:$0xf]
      %v577 = vld [vmem:[%s291 + $0xa0] sm:$0xf]
      %v578 = vld [vmem:[%s291 + $0xa4] sm:$0xf]
      %v579 = vld [vmem:[%s291 + $0xa8] sm:$0xf]
      %v580 = vld [vmem:[%s291 + $0xac] sm:$0xf]
      %v581 = vld [vmem:[%s291 + $0xb0] sm:$0xf]
      %v582 = vld [vmem:[%s291 + $0xb4] sm:$0xf]
      %v583 = vld [vmem:[%s291 + $0xb8] sm:$0xf]
      %v584 = vld [vmem:[%s291 + $0xbc] sm:$0xf]
      %v585 = vld [vmem:[%s291 + $0xc0] sm:$0xf]
      %v586 = vld [vmem:[%s291 + $0xc4] sm:$0xf]
      %v587 = vld [vmem:[%s291 + $0xc8] sm:$0xf]
      %v588 = vld [vmem:[%s291 + $0xcc] sm:$0xf]
      %v589 = vld [vmem:[%s291 + $0xd0] sm:$0xf]
      %v590 = vld [vmem:[%s291 + $0xd4] sm:$0xf]
      %v591 = vld [vmem:[%s291 + $0xd8] sm:$0xf]
      %v592 = vld [vmem:[%s291 + $0xdc] sm:$0xf]
      %v593 = vld [vmem:[%s291 + $0xe0] sm:$0xf]
      %v594 = vld [vmem:[%s291 + $0xe4] sm:$0xf]
      %v595 = vld [vmem:[%s291 + $0xe8] sm:$0xf]
      %v596 = vld [vmem:[%s291 + $0xec] sm:$0xf]
      %v597 = vld [vmem:[%s291 + $0xf0] sm:$0xf]
      %v598 = vld [vmem:[%s291 + $0xf4] sm:$0xf]
      %v599 = vld [vmem:[%s291 + $0xf8] sm:$0xf]
      %v600 = vld [vmem:[%s291 + $0xfc] sm:$0xf]
      %v601 = vld [vmem:[%s291 + $0x100] sm:$0xf]
      %v602 = vld [vmem:[%s291 + $0x104] sm:$0xf]
      %v603 = vld [vmem:[%s291 + $0x108] sm:$0xf]
      %v604 = vld [vmem:[%s291 + $0x10c] sm:$0xf]
      %v605 = vld [vmem:[%s291 + $0x110] sm:$0xf]
      %v606 = vld [vmem:[%s291 + $0x114] sm:$0xf]
      %v607 = vld [vmem:[%s291 + $0x118] sm:$0xf]
      %v608 = vld [vmem:[%s291 + $0x11c] sm:$0xf]
      %v609 = vld [vmem:[%s291 + $0x120] sm:$0xf]
      %v610 = vld [vmem:[%s291 + $0x124] sm:$0xf]
      %v611 = vld [vmem:[%s291 + $0x128] sm:$0xf]
      %v612 = vld [vmem:[%s291 + $0x12c] sm:$0xf]
      %v613 = vld [vmem:[%s291 + $0x130] sm:$0xf]
      %v614 = vld [vmem:[%s291 + $0x134] sm:$0xf]
      %v615 = vld [vmem:[%s291 + $0x138] sm:$0xf]
      %v616 = vld [vmem:[%s291 + $0x13c] sm:$0xf]
      %v617 = vld [vmem:[%s291 + $0x140] sm:$0xf]
      %v618 = vld [vmem:[%s291 + $0x144] sm:$0xf]
      %v619 = vld [vmem:[%s291 + $0x148] sm:$0xf]
      %v620 = vld [vmem:[%s291 + $0x14c] sm:$0xf]
      %v621 = vld [vmem:[%s291 + $0x150] sm:$0xf]
      %v622 = vld [vmem:[%s291 + $0x154] sm:$0xf]
      %v623 = vld [vmem:[%s291 + $0x158] sm:$0xf]
      %v624 = vld [vmem:[%s291 + $0x15c] sm:$0xf]
      %v625 = vld [vmem:[%s291 + $0x160] sm:$0xf]
      %v626 = vld [vmem:[%s291 + $0x164] sm:$0xf]
      %v627 = vld [vmem:[%s291 + $0x168] sm:$0xf]
      %v628 = vld [vmem:[%s291 + $0x16c] sm:$0xf]
      %v629 = vld [vmem:[%s291 + $0x170] sm:$0xf]
      %v630 = vld [vmem:[%s291 + $0x174] sm:$0xf]
      %v631 = vld [vmem:[%s291 + $0x178] sm:$0xf]
      %v632 = vld [vmem:[%s291 + $0x17c] sm:$0xf]
      %v633 = vld [vmem:[%s291 + $0x180] sm:$0xf]
      %v634 = vld [vmem:[%s291 + $0x184] sm:$0xf]
      %v635 = vld [vmem:[%s291 + $0x188] sm:$0xf]
      %v636 = vld [vmem:[%s291 + $0x18c] sm:$0xf]
      %v637 = vld [vmem:[%s291 + $0x190] sm:$0xf]
      %v638 = vld [vmem:[%s291 + $0x194] sm:$0xf]
      %v639 = vld [vmem:[%s291 + $0x198] sm:$0xf]
      %v640 = vld [vmem:[%s291 + $0x19c] sm:$0xf]
      %v641 = vld [vmem:[%s291 + $0x1a0] sm:$0xf]
      %v642 = vld [vmem:[%s291 + $0x1a4] sm:$0xf]
      %v643 = vld [vmem:[%s291 + $0x1a8] sm:$0xf]
      %v644 = vld [vmem:[%s291 + $0x1ac] sm:$0xf]
      %v645 = vld [vmem:[%s291 + $0x1b0] sm:$0xf]
      %v646 = vld [vmem:[%s291 + $0x1b4] sm:$0xf]
      %v647 = vld [vmem:[%s291 + $0x1b8] sm:$0xf]
      %v648 = vld [vmem:[%s291 + $0x1bc] sm:$0xf]
      %v649 = vld [vmem:[%s291 + $0x1c0] sm:$0xf]
      %v650 = vld [vmem:[%s291 + $0x1c4] sm:$0xf]
      %v651 = vld [vmem:[%s291 + $0x1c8] sm:$0xf]
      %v652 = vld [vmem:[%s291 + $0x1cc] sm:$0xf]
      %v653 = vld [vmem:[%s291 + $0x1d0] sm:$0xf]
      %v654 = vld [vmem:[%s291 + $0x1d4] sm:$0xf]
      %v655 = vld [vmem:[%s291 + $0x1d8] sm:$0xf]
      %v656 = vld [vmem:[%s291 + $0x1dc] sm:$0xf]
      %v657 = vld [vmem:[%s291 + $0x1e0] sm:$0xf]
      %v658 = vld [vmem:[%s291 + $0x1e4] sm:$0xf]
      %v659 = vld [vmem:[%s291 + $0x1e8] sm:$0xf]
      %v660 = vld [vmem:[%s291 + $0x1ec] sm:$0xf]
      %v661 = vld [vmem:[%s291 + $0x1f0] sm:$0xf]
      %v662 = vld [vmem:[%s291 + $0x1f4] sm:$0xf]
      %v663 = vld [vmem:[%s291 + $0x1f8] sm:$0xf]
      %v664 = vld [vmem:[%s291 + $0x1fc] sm:$0xf]
      %v665 = vld [vmem:[%s291 + $0x200] sm:$0xf]
      %v666 = vld [vmem:[%s291 + $0x204] sm:$0xf]
      %v667 = vld [vmem:[%s291 + $0x208] sm:$0xf]
      %v668 = vld [vmem:[%s291 + $0x20c] sm:$0xf]
      %v669 = vld [vmem:[%s291 + $0x210] sm:$0xf]
      %v670 = vld [vmem:[%s291 + $0x214] sm:$0xf]
      %v671 = vld [vmem:[%s291 + $0x218] sm:$0xf]
      %v672 = vld [vmem:[%s291 + $0x21c] sm:$0xf]
      %v673 = vld [vmem:[%s291 + $0x220] sm:$0xf]
      %v674 = vld [vmem:[%s291 + $0x224] sm:$0xf]
      %v675 = vld [vmem:[%s291 + $0x228] sm:$0xf]
      %v676 = vld [vmem:[%s291 + $0x22c] sm:$0xf]
      %v677 = vld [vmem:[%s291 + $0x230] sm:$0xf]
      %v678 = vld [vmem:[%s291 + $0x234] sm:$0xf]
      %v679 = vld [vmem:[%s291 + $0x238] sm:$0xf]
      %v680 = vld [vmem:[%s291 + $0x23c] sm:$0xf]
      %v841 = vunpack.c.l.b16 %v377
      %v842 = vunpack.c.h.b16 %v377
      %v843 = vunpack.c.l.b16 %v378
      %v844 = vunpack.c.h.b16 %v378
      %v845 = vunpack.c.l.b16 %v379
      %v846 = vunpack.c.h.b16 %v379
      %v847 = vunpack.c.l.b16 %v380
      %v848 = vunpack.c.h.b16 %v380
      %v849 = vunpack.c.l.b16 %v381
      %v850 = vunpack.c.l.b16 %v382
      %v851 = vunpack.c.h.b16 %v382
      %v852 = vunpack.c.l.b16 %v383
      %v853 = vunpack.c.h.b16 %v383
      %v854 = vunpack.c.l.b16 %v384
      %v855 = vunpack.c.h.b16 %v384
      %v856 = vunpack.c.l.b16 %v385
      %v857 = vunpack.c.h.b16 %v385
      %v858 = vunpack.c.l.b16 %v386
      %v859 = vunpack.c.l.b16 %v387
      %v860 = vunpack.c.h.b16 %v387
      %v861 = vunpack.c.l.b16 %v388
      %v862 = vunpack.c.h.b16 %v388
      %v863 = vunpack.c.l.b16 %v389
      %v864 = vunpack.c.h.b16 %v389
      %v865 = vunpack.c.l.b16 %v390
      %v866 = vunpack.c.h.b16 %v390
      %v867 = vunpack.c.l.b16 %v391
      %v868 = vunpack.c.l.b16 %v392
      %v869 = vunpack.c.h.b16 %v392
      %v870 = vunpack.c.l.b16 %v393
      %v871 = vunpack.c.h.b16 %v393
      %v872 = vunpack.c.l.b16 %v394
      %v873 = vunpack.c.h.b16 %v394
      %v874 = vunpack.c.l.b16 %v395
      %v875 = vunpack.c.h.b16 %v395
      %v876 = vunpack.c.l.b16 %v396
      %v877 = vunpack.c.l.b16 %v397
      %v878 = vunpack.c.h.b16 %v397
      %v879 = vunpack.c.l.b16 %v398
      %v880 = vunpack.c.h.b16 %v398
      %v881 = vunpack.c.l.b16 %v399
      %v882 = vunpack.c.h.b16 %v399
      %v883 = vunpack.c.l.b16 %v400
      %v884 = vunpack.c.h.b16 %v400
      %v885 = vunpack.c.l.b16 %v401
      %v886 = vunpack.c.l.b16 %v402
      %v887 = vunpack.c.h.b16 %v402
      %v888 = vunpack.c.l.b16 %v403
      %v889 = vunpack.c.h.b16 %v403
      %v890 = vunpack.c.l.b16 %v404
      %v891 = vunpack.c.h.b16 %v404
      %v892 = vunpack.c.l.b16 %v405
      %v893 = vunpack.c.h.b16 %v405
      %v894 = vunpack.c.l.b16 %v406
      %v895 = vunpack.c.l.b16 %v407
      %v896 = vunpack.c.h.b16 %v407
      %v897 = vunpack.c.l.b16 %v408
      %v898 = vunpack.c.h.b16 %v408
      %v899 = vunpack.c.l.b16 %v409
      %v900 = vunpack.c.h.b16 %v409
      %v901 = vunpack.c.l.b16 %v410
      %v902 = vunpack.c.h.b16 %v410
      %v903 = vunpack.c.l.b16 %v411
      %v904 = vunpack.c.l.b16 %v412
      %v905 = vunpack.c.h.b16 %v412
      %v906 = vunpack.c.l.b16 %v413
      %v907 = vunpack.c.h.b16 %v413
      %v908 = vunpack.c.l.b16 %v414
      %v909 = vunpack.c.h.b16 %v414
      %v910 = vunpack.c.l.b16 %v415
      %v911 = vunpack.c.h.b16 %v415
      %v912 = vunpack.c.l.b16 %v416
      %v913 = vunpack.c.l.b16 %v417
      %v914 = vunpack.c.h.b16 %v417
      %v915 = vunpack.c.l.b16 %v418
      %v916 = vunpack.c.h.b16 %v418
      %v917 = vunpack.c.l.b16 %v419
      %v918 = vunpack.c.h.b16 %v419
      %v919 = vunpack.c.l.b16 %v420
      %v920 = vunpack.c.h.b16 %v420
      %v921 = vunpack.c.l.b16 %v421
      %v922 = vunpack.c.l.b16 %v422
      %v923 = vunpack.c.h.b16 %v422
      %v924 = vunpack.c.l.b16 %v423
      %v925 = vunpack.c.h.b16 %v423
      %v926 = vunpack.c.l.b16 %v424
      %v927 = vunpack.c.h.b16 %v424
      %v928 = vunpack.c.l.b16 %v425
      %v929 = vunpack.c.h.b16 %v425
      %v930 = vunpack.c.l.b16 %v426
      %v931 = vunpack.c.l.b16 %v427
      %v932 = vunpack.c.h.b16 %v427
      %v933 = vunpack.c.l.b16 %v428
      %v934 = vunpack.c.h.b16 %v428
      %v935 = vunpack.c.l.b16 %v429
      %v936 = vunpack.c.h.b16 %v429
      %v937 = vunpack.c.l.b16 %v430
      %v938 = vunpack.c.h.b16 %v430
      %v939 = vunpack.c.l.b16 %v431
      %v940 = vunpack.c.l.b16 %v432
      %v941 = vunpack.c.h.b16 %v432
      %v942 = vunpack.c.l.b16 %v433
      %v943 = vunpack.c.h.b16 %v433
      %v944 = vunpack.c.l.b16 %v434
      %v945 = vunpack.c.h.b16 %v434
      %v946 = vunpack.c.l.b16 %v435
      %v947 = vunpack.c.h.b16 %v435
      %v948 = vunpack.c.l.b16 %v436
      %v949 = vunpack.c.l.b16 %v437
      %v950 = vunpack.c.h.b16 %v437
      %v951 = vunpack.c.l.b16 %v438
      %v952 = vunpack.c.h.b16 %v438
      %v953 = vunpack.c.l.b16 %v439
      %v954 = vunpack.c.h.b16 %v439
      %v955 = vunpack.c.l.b16 %v440
      %v956 = vunpack.c.h.b16 %v440
      %v957 = vunpack.c.l.b16 %v441
      %v958 = vunpack.c.l.b16 %v442
      %v959 = vunpack.c.h.b16 %v442
      %v960 = vunpack.c.l.b16 %v443
      %v961 = vunpack.c.h.b16 %v443
      %v962 = vunpack.c.l.b16 %v444
      %v963 = vunpack.c.h.b16 %v444
      %v964 = vunpack.c.l.b16 %v445
      %v965 = vunpack.c.h.b16 %v445
      %v966 = vunpack.c.l.b16 %v446
      %v967 = vunpack.c.l.b16 %v447
      %v968 = vunpack.c.h.b16 %v447
      %v969 = vunpack.c.l.b16 %v448
      %v970 = vunpack.c.h.b16 %v448
      %v971 = vunpack.c.l.b16 %v449
      %v972 = vunpack.c.h.b16 %v449
      %v973 = vunpack.c.l.b16 %v450
      %v974 = vunpack.c.h.b16 %v450
      %v975 = vunpack.c.l.b16 %v451
      %v976 = vunpack.c.l.b16 %v452
      %v977 = vunpack.c.h.b16 %v452
      %v978 = vunpack.c.l.b16 %v453
      %v979 = vunpack.c.h.b16 %v453
      %v980 = vunpack.c.l.b16 %v454
      %v981 = vunpack.c.h.b16 %v454
      %v982 = vunpack.c.l.b16 %v455
      %v983 = vunpack.c.h.b16 %v455
      %v984 = vunpack.c.l.b16 %v456
      %v985 = vunpack.c.l.b16 %v457
      %v986 = vunpack.c.h.b16 %v457
      %v987 = vunpack.c.l.b16 %v458
      %v988 = vunpack.c.h.b16 %v458
      %v989 = vunpack.c.l.b16 %v459
      %v990 = vunpack.c.h.b16 %v459
      %v991 = vunpack.c.l.b16 %v460
      %v992 = vunpack.c.h.b16 %v460
      %v993 = vunpack.c.l.b16 %v461
      %v994 = vunpack.c.l.b16 %v462
      %v995 = vunpack.c.h.b16 %v462
      %v996 = vunpack.c.l.b16 %v463
      %v997 = vunpack.c.h.b16 %v463
      %v998 = vunpack.c.l.b16 %v464
      %v999 = vunpack.c.h.b16 %v464
      %v1000 = vunpack.c.l.b16 %v465
      %v1001 = vunpack.c.h.b16 %v465
      %v1002 = vunpack.c.l.b16 %v466
      %v1003 = vunpack.c.l.b16 %v467
      %v1004 = vunpack.c.h.b16 %v467
      %v1005 = vunpack.c.l.b16 %v468
      %v1006 = vunpack.c.h.b16 %v468
      %v1007 = vunpack.c.l.b16 %v469
      %v1008 = vunpack.c.h.b16 %v469
      %v1009 = vunpack.c.l.b16 %v470
      %v1010 = vunpack.c.h.b16 %v470
      %v1011 = vunpack.c.l.b16 %v471
      %v1012 = vunpack.c.l.b16 %v472
      %v1013 = vunpack.c.h.b16 %v472
      %v1014 = vunpack.c.l.b16 %v473
      %v1015 = vunpack.c.h.b16 %v473
      %v1016 = vunpack.c.l.b16 %v474
      %v1017 = vunpack.c.h.b16 %v474
      %v1018 = vunpack.c.l.b16 %v475
      %v1019 = vunpack.c.h.b16 %v475
      %v1020 = vunpack.c.l.b16 %v476
      %v1021 = vunpack.c.l.b16 %v477
      %v1022 = vunpack.c.h.b16 %v477
      %v1023 = vunpack.c.l.b16 %v478
      %v1024 = vunpack.c.h.b16 %v478
      %v1025 = vunpack.c.l.b16 %v479
      %v1026 = vunpack.c.h.b16 %v479
      %v1027 = vunpack.c.l.b16 %v480
      %v1028 = vunpack.c.h.b16 %v480
      %v1029 = vunpack.c.l.b16 %v481
      %v1030 = vunpack.c.l.b16 %v482
      %v1031 = vunpack.c.h.b16 %v482
      %v1032 = vunpack.c.l.b16 %v483
      %v1033 = vunpack.c.h.b16 %v483
      %v1034 = vunpack.c.l.b16 %v484
      %v1035 = vunpack.c.h.b16 %v484
      %v1036 = vunpack.c.l.b16 %v485
      %v1037 = vunpack.c.h.b16 %v485
      %v1038 = vunpack.c.l.b16 %v486
      %v1039 = vunpack.c.l.b16 %v487
      %v1040 = vunpack.c.h.b16 %v487
      %v1041 = vunpack.c.l.b16 %v488
      %v1042 = vunpack.c.h.b16 %v488
      %v1043 = vunpack.c.l.b16 %v489
      %v1044 = vunpack.c.h.b16 %v489
      %v1045 = vunpack.c.l.b16 %v490
      %v1046 = vunpack.c.h.b16 %v490
      %v1047 = vunpack.c.l.b16 %v491
      %v1048 = vunpack.c.l.b16 %v492
      %v1049 = vunpack.c.h.b16 %v492
      %v1050 = vunpack.c.l.b16 %v493
      %v1051 = vunpack.c.h.b16 %v493
      %v1052 = vunpack.c.l.b16 %v494
      %v1053 = vunpack.c.h.b16 %v494
      %v1054 = vunpack.c.l.b16 %v495
      %v1055 = vunpack.c.h.b16 %v495
      %v1056 = vunpack.c.l.b16 %v496
      %v1057 = vunpack.c.l.b16 %v497
      %v1058 = vunpack.c.h.b16 %v497
      %v1059 = vunpack.c.l.b16 %v498
      %v1060 = vunpack.c.h.b16 %v498
      %v1061 = vunpack.c.l.b16 %v499
      %v1062 = vunpack.c.h.b16 %v499
      %v1063 = vunpack.c.l.b16 %v500
      %v1064 = vunpack.c.h.b16 %v500
      %v1065 = vunpack.c.l.b16 %v501
      %v1066 = vunpack.c.l.b16 %v502
      %v1067 = vunpack.c.h.b16 %v502
      %v1068 = vunpack.c.l.b16 %v503
      %v1069 = vunpack.c.h.b16 %v503
      %v1070 = vunpack.c.l.b16 %v504
      %v1071 = vunpack.c.h.b16 %v504
      %v1072 = vunpack.c.l.b16 %v505
      %v1073 = vunpack.c.h.b16 %v505
      %v1074 = vunpack.c.l.b16 %v506
      %v1075 = vunpack.c.l.b16 %v507
      %v1076 = vunpack.c.h.b16 %v507
      %v1077 = vunpack.c.l.b16 %v508
      %v1078 = vunpack.c.h.b16 %v508
      %v1079 = vunpack.c.l.b16 %v509
      %v1080 = vunpack.c.h.b16 %v509
      %v1081 = vunpack.c.l.b16 %v510
      %v1082 = vunpack.c.h.b16 %v510
      %v1083 = vunpack.c.l.b16 %v511
      %v1084 = vunpack.c.l.b16 %v512
      %v1085 = vunpack.c.h.b16 %v512
      %v1086 = vunpack.c.l.b16 %v513
      %v1087 = vunpack.c.h.b16 %v513
      %v1088 = vunpack.c.l.b16 %v514
      %v1089 = vunpack.c.h.b16 %v514
      %v1090 = vunpack.c.l.b16 %v515
      %v1091 = vunpack.c.h.b16 %v515
      %v1092 = vunpack.c.l.b16 %v516
      %v1093 = vunpack.c.l.b16 %v517
      %v1094 = vunpack.c.h.b16 %v517
      %v1095 = vunpack.c.l.b16 %v518
      %v1096 = vunpack.c.h.b16 %v518
      %v1097 = vunpack.c.l.b16 %v519
      %v1098 = vunpack.c.h.b16 %v519
      %v1099 = vunpack.c.l.b16 %v520
      %v1100 = vunpack.c.h.b16 %v520
      %v1101 = vunpack.c.l.b16 %v521
      %v1102 = vunpack.c.l.b16 %v522
      %v1103 = vunpack.c.h.b16 %v522
      %v1104 = vunpack.c.l.b16 %v523
      %v1105 = vunpack.c.h.b16 %v523
      %v1106 = vunpack.c.l.b16 %v524
      %v1107 = vunpack.c.h.b16 %v524
      %v1108 = vunpack.c.l.b16 %v525
      %v1109 = vunpack.c.h.b16 %v525
      %v1110 = vunpack.c.l.b16 %v526
      %v1111 = vunpack.c.l.b16 %v527
      %v1112 = vunpack.c.h.b16 %v527
      %v1113 = vunpack.c.l.b16 %v528
      %v1114 = vunpack.c.h.b16 %v528
      %v1115 = vunpack.c.l.b16 %v529
      %v1116 = vunpack.c.h.b16 %v529
      %v1117 = vunpack.c.l.b16 %v530
      %v1118 = vunpack.c.h.b16 %v530
      %v1119 = vunpack.c.l.b16 %v531
      %v1120 = vunpack.c.l.b16 %v532
      %v1121 = vunpack.c.h.b16 %v532
      %v1122 = vunpack.c.l.b16 %v533
      %v1123 = vunpack.c.h.b16 %v533
      %v1124 = vunpack.c.l.b16 %v534
      %v1125 = vunpack.c.h.b16 %v534
      %v1126 = vunpack.c.l.b16 %v535
      %v1127 = vunpack.c.h.b16 %v535
      %v1128 = vunpack.c.l.b16 %v536
      %v1129 = vpack.c.b16 %v850, %v841
      %v1130 = vpack.c.b16 %v851, %v842
      %v1131 = vpack.c.b16 %v852, %v843
      %v1132 = vpack.c.b16 %v853, %v844
      %v1133 = vpack.c.b16 %v854, %v845
      %v1134 = vpack.c.b16 %v855, %v846
      %v1135 = vpack.c.b16 %v856, %v847
      %v1136 = vpack.c.b16 %v857, %v848
      %v1137 = vpack.c.b16 %v858, %v849
      %v1138 = vpack.c.b16 %v868, %v859
      %v1139 = vpack.c.b16 %v869, %v860
      %v1140 = vpack.c.b16 %v870, %v861
      %v1141 = vpack.c.b16 %v871, %v862
      %v1142 = vpack.c.b16 %v872, %v863
      %v1143 = vpack.c.b16 %v873, %v864
      %v1144 = vpack.c.b16 %v874, %v865
      %v1145 = vpack.c.b16 %v875, %v866
      %v1146 = vpack.c.b16 %v876, %v867
      %v1147 = vpack.c.b16 %v886, %v877
      %v1148 = vpack.c.b16 %v887, %v878
      %v1149 = vpack.c.b16 %v888, %v879
      %v1150 = vpack.c.b16 %v889, %v880
      %v1151 = vpack.c.b16 %v890, %v881
      %v1152 = vpack.c.b16 %v891, %v882
      %v1153 = vpack.c.b16 %v892, %v883
      %v1154 = vpack.c.b16 %v893, %v884
      %v1155 = vpack.c.b16 %v894, %v885
      %v1156 = vpack.c.b16 %v904, %v895
      %v1157 = vpack.c.b16 %v905, %v896
      %v1158 = vpack.c.b16 %v906, %v897
      %v1159 = vpack.c.b16 %v907, %v898
      %v1160 = vpack.c.b16 %v908, %v899
      %v1161 = vpack.c.b16 %v909, %v900
      %v1162 = vpack.c.b16 %v910, %v901
      %v1163 = vpack.c.b16 %v911, %v902
      %v1164 = vpack.c.b16 %v912, %v903
      %v1165 = vpack.c.b16 %v922, %v913
      %v1166 = vpack.c.b16 %v923, %v914
      %v1167 = vpack.c.b16 %v924, %v915
      %v1168 = vpack.c.b16 %v925, %v916
      %v1169 = vpack.c.b16 %v926, %v917
      %v1170 = vpack.c.b16 %v927, %v918
      %v1171 = vpack.c.b16 %v928, %v919
      %v1172 = vpack.c.b16 %v929, %v920
      %v1173 = vpack.c.b16 %v930, %v921
      %v1174 = vpack.c.b16 %v940, %v931
      %v1175 = vpack.c.b16 %v941, %v932
      %v1176 = vpack.c.b16 %v942, %v933
      %v1177 = vpack.c.b16 %v943, %v934
      %v1178 = vpack.c.b16 %v944, %v935
      %v1179 = vpack.c.b16 %v945, %v936
      %v1180 = vpack.c.b16 %v946, %v937
      %v1181 = vpack.c.b16 %v947, %v938
      %v1182 = vpack.c.b16 %v948, %v939
      %v1183 = vpack.c.b16 %v958, %v949
      %v1184 = vpack.c.b16 %v959, %v950
      %v1185 = vpack.c.b16 %v960, %v951
      %v1186 = vpack.c.b16 %v961, %v952
      %v1187 = vpack.c.b16 %v962, %v953
      %v1188 = vpack.c.b16 %v963, %v954
      %v1189 = vpack.c.b16 %v964, %v955
      %v1190 = vpack.c.b16 %v965, %v956
      %v1191 = vpack.c.b16 %v966, %v957
      %v1192 = vpack.c.b16 %v976, %v967
      %v1193 = vpack.c.b16 %v977, %v968
      %v1194 = vpack.c.b16 %v978, %v969
      %v1195 = vpack.c.b16 %v979, %v970
      %v1196 = vpack.c.b16 %v980, %v971
      %v1197 = vpack.c.b16 %v981, %v972
      %v1198 = vpack.c.b16 %v982, %v973
      %v1199 = vpack.c.b16 %v983, %v974
      %v1200 = vpack.c.b16 %v984, %v975
      %v1201 = vpack.c.b16 %v994, %v985
      %v1202 = vpack.c.b16 %v995, %v986
      %v1203 = vpack.c.b16 %v996, %v987
      %v1204 = vpack.c.b16 %v997, %v988
      %v1205 = vpack.c.b16 %v998, %v989
      %v1206 = vpack.c.b16 %v999, %v990
      %v1207 = vpack.c.b16 %v1000, %v991
      %v1208 = vpack.c.b16 %v1001, %v992
      %v1209 = vpack.c.b16 %v1002, %v993
      %v1210 = vpack.c.b16 %v1012, %v1003
      %v1211 = vpack.c.b16 %v1013, %v1004
      %v1212 = vpack.c.b16 %v1014, %v1005
      %v1213 = vpack.c.b16 %v1015, %v1006
      %v1214 = vpack.c.b16 %v1016, %v1007
      %v1215 = vpack.c.b16 %v1017, %v1008
      %v1216 = vpack.c.b16 %v1018, %v1009
      %v1217 = vpack.c.b16 %v1019, %v1010
      %v1218 = vpack.c.b16 %v1020, %v1011
      %v1219 = vpack.c.b16 %v1030, %v1021
      %v1220 = vpack.c.b16 %v1031, %v1022
      %v1221 = vpack.c.b16 %v1032, %v1023
      %v1222 = vpack.c.b16 %v1033, %v1024
      %v1223 = vpack.c.b16 %v1034, %v1025
      %v1224 = vpack.c.b16 %v1035, %v1026
      %v1225 = vpack.c.b16 %v1036, %v1027
      %v1226 = vpack.c.b16 %v1037, %v1028
      %v1227 = vpack.c.b16 %v1038, %v1029
      %v1228 = vpack.c.b16 %v1048, %v1039
      %v1229 = vpack.c.b16 %v1049, %v1040
      %v1230 = vpack.c.b16 %v1050, %v1041
      %v1231 = vpack.c.b16 %v1051, %v1042
      %v1232 = vpack.c.b16 %v1052, %v1043
      %v1233 = vpack.c.b16 %v1053, %v1044
      %v1234 = vpack.c.b16 %v1054, %v1045
      %v1235 = vpack.c.b16 %v1055, %v1046
      %v1236 = vpack.c.b16 %v1056, %v1047
      %v1237 = vpack.c.b16 %v1066, %v1057
      %v1238 = vpack.c.b16 %v1067, %v1058
      %v1239 = vpack.c.b16 %v1068, %v1059
      %v1240 = vpack.c.b16 %v1069, %v1060
      %v1241 = vpack.c.b16 %v1070, %v1061
      %v1242 = vpack.c.b16 %v1071, %v1062
      %v1243 = vpack.c.b16 %v1072, %v1063
      %v1244 = vpack.c.b16 %v1073, %v1064
      %v1245 = vpack.c.b16 %v1074, %v1065
      %v1246 = vpack.c.b16 %v1084, %v1075
      %v1247 = vpack.c.b16 %v1085, %v1076
      %v1248 = vpack.c.b16 %v1086, %v1077
      %v1249 = vpack.c.b16 %v1087, %v1078
      %v1250 = vpack.c.b16 %v1088, %v1079
      %v1251 = vpack.c.b16 %v1089, %v1080
      %v1252 = vpack.c.b16 %v1090, %v1081
      %v1253 = vpack.c.b16 %v1091, %v1082
      %v1254 = vpack.c.b16 %v1092, %v1083
      %v1255 = vpack.c.b16 %v1102, %v1093
      %v1256 = vpack.c.b16 %v1103, %v1094
      %v1257 = vpack.c.b16 %v1104, %v1095
      %v1258 = vpack.c.b16 %v1105, %v1096
      %v1259 = vpack.c.b16 %v1106, %v1097
      %v1260 = vpack.c.b16 %v1107, %v1098
      %v1261 = vpack.c.b16 %v1108, %v1099
      %v1262 = vpack.c.b16 %v1109, %v1100
      %v1263 = vpack.c.b16 %v1110, %v1101
      %v1264 = vpack.c.b16 %v1120, %v1111
      %v1265 = vpack.c.b16 %v1121, %v1112
      %v1266 = vpack.c.b16 %v1122, %v1113
      %v1267 = vpack.c.b16 %v1123, %v1114
      %v1268 = vpack.c.b16 %v1124, %v1115
      %v1269 = vpack.c.b16 %v1125, %v1116
      %v1270 = vpack.c.b16 %v1126, %v1117
      %v1271 = vpack.c.b16 %v1127, %v1118
      %v1272 = vpack.c.b16 %v1128, %v1119
      %v1561 = vunpack.c.l.b16 %v537
      %v1562 = vunpack.c.l.b16 %v538
      %v1563 = vunpack.c.l.b16 %v539
      %v1564 = vunpack.c.l.b16 %v540
      %v1565 = vunpack.c.l.b16 %v541
      %v1566 = vunpack.c.l.b16 %v542
      %v1567 = vunpack.c.l.b16 %v543
      %v1568 = vunpack.c.l.b16 %v544
      %v1569 = vunpack.c.l.b16 %v545
      %v1570 = vunpack.c.l.b16 %v546
      %v1571 = vunpack.c.l.b16 %v547
      %v1572 = vunpack.c.l.b16 %v548
      %v1573 = vunpack.c.l.b16 %v549
      %v1574 = vunpack.c.l.b16 %v550
      %v1575 = vunpack.c.l.b16 %v551
      %v1576 = vunpack.c.l.b16 %v552
      %v1577 = vunpack.c.l.b16 %v553
      %v1578 = vunpack.c.l.b16 %v554
      %v1579 = vunpack.c.l.b16 %v555
      %v1580 = vunpack.c.l.b16 %v556
      %v1581 = vunpack.c.l.b16 %v557
      %v1582 = vunpack.c.l.b16 %v558
      %v1583 = vunpack.c.l.b16 %v559
      %v1584 = vunpack.c.l.b16 %v560
      %v1585 = vunpack.c.l.b16 %v561
      %v1586 = vunpack.c.l.b16 %v562
      %v1587 = vunpack.c.l.b16 %v563
      %v1588 = vunpack.c.l.b16 %v564
      %v1589 = vunpack.c.l.b16 %v565
      %v1590 = vunpack.c.l.b16 %v566
      %v1591 = vunpack.c.l.b16 %v567
      %v1592 = vunpack.c.l.b16 %v568
      %v1593 = vunpack.c.l.b16 %v569
      %v1594 = vunpack.c.l.b16 %v570
      %v1595 = vunpack.c.l.b16 %v571
      %v1596 = vunpack.c.l.b16 %v572
      %v1597 = vunpack.c.l.b16 %v573
      %v1598 = vunpack.c.l.b16 %v574
      %v1599 = vunpack.c.l.b16 %v575
      %v1600 = vunpack.c.l.b16 %v576
      %v1601 = vunpack.c.l.b16 %v577
      %v1602 = vunpack.c.l.b16 %v578
      %v1603 = vunpack.c.l.b16 %v579
      %v1604 = vunpack.c.l.b16 %v580
      %v1605 = vunpack.c.l.b16 %v581
      %v1606 = vunpack.c.l.b16 %v582
      %v1607 = vunpack.c.l.b16 %v583
      %v1608 = vunpack.c.l.b16 %v584
      %v1609 = vunpack.c.l.b16 %v585
      %v1610 = vunpack.c.l.b16 %v586
      %v1611 = vunpack.c.l.b16 %v587
      %v1612 = vunpack.c.l.b16 %v588
      %v1613 = vunpack.c.l.b16 %v589
      %v1614 = vunpack.c.l.b16 %v590
      %v1615 = vunpack.c.l.b16 %v591
      %v1616 = vunpack.c.l.b16 %v592
      %v1617 = vunpack.c.l.b16 %v593
      %v1618 = vunpack.c.l.b16 %v594
      %v1619 = vunpack.c.l.b16 %v595
      %v1620 = vunpack.c.l.b16 %v596
      %v1621 = vunpack.c.l.b16 %v597
      %v1622 = vunpack.c.l.b16 %v598
      %v1623 = vunpack.c.l.b16 %v599
      %v1624 = vunpack.c.l.b16 %v600
      %v1625 = vunpack.c.l.b16 %v601
      %v1626 = vunpack.c.l.b16 %v602
      %v1627 = vunpack.c.l.b16 %v603
      %v1628 = vunpack.c.l.b16 %v604
      %v1629 = vunpack.c.l.b16 %v605
      %v1630 = vunpack.c.l.b16 %v606
      %v1631 = vunpack.c.l.b16 %v607
      %v1632 = vunpack.c.l.b16 %v608
      %v1633 = vunpack.c.l.b16 %v609
      %v1634 = vunpack.c.l.b16 %v610
      %v1635 = vunpack.c.l.b16 %v611
      %v1636 = vunpack.c.l.b16 %v612
      %v1637 = vunpack.c.l.b16 %v613
      %v1638 = vunpack.c.l.b16 %v614
      %v1639 = vunpack.c.l.b16 %v615
      %v1640 = vunpack.c.l.b16 %v616
      %v1641 = vunpack.c.l.b16 %v617
      %v1642 = vunpack.c.l.b16 %v618
      %v1643 = vunpack.c.l.b16 %v619
      %v1644 = vunpack.c.l.b16 %v620
      %v1645 = vunpack.c.l.b16 %v621
      %v1646 = vunpack.c.l.b16 %v622
      %v1647 = vunpack.c.l.b16 %v623
      %v1648 = vunpack.c.l.b16 %v624
      %v1649 = vunpack.c.l.b16 %v625
      %v1650 = vunpack.c.l.b16 %v626
      %v1651 = vunpack.c.l.b16 %v627
      %v1652 = vunpack.c.l.b16 %v628
      %v1653 = vunpack.c.l.b16 %v629
      %v1654 = vunpack.c.l.b16 %v630
      %v1655 = vunpack.c.l.b16 %v631
      %v1656 = vunpack.c.l.b16 %v632
      %v1657 = vunpack.c.l.b16 %v633
      %v1658 = vunpack.c.l.b16 %v634
      %v1659 = vunpack.c.l.b16 %v635
      %v1660 = vunpack.c.l.b16 %v636
      %v1661 = vunpack.c.l.b16 %v637
      %v1662 = vunpack.c.l.b16 %v638
      %v1663 = vunpack.c.l.b16 %v639
      %v1664 = vunpack.c.l.b16 %v640
      %v1665 = vunpack.c.l.b16 %v641
      %v1666 = vunpack.c.l.b16 %v642
      %v1667 = vunpack.c.l.b16 %v643
      %v1668 = vunpack.c.l.b16 %v644
      %v1669 = vunpack.c.l.b16 %v645
      %v1670 = vunpack.c.l.b16 %v646
      %v1671 = vunpack.c.l.b16 %v647
      %v1672 = vunpack.c.l.b16 %v648
      %v1673 = vunpack.c.l.b16 %v649
      %v1674 = vunpack.c.l.b16 %v650
      %v1675 = vunpack.c.l.b16 %v651
      %v1676 = vunpack.c.l.b16 %v652
      %v1677 = vunpack.c.l.b16 %v653
      %v1678 = vunpack.c.l.b16 %v654
      %v1679 = vunpack.c.l.b16 %v655
      %v1680 = vunpack.c.l.b16 %v656
      %v1681 = vunpack.c.l.b16 %v657
      %v1682 = vunpack.c.l.b16 %v658
      %v1683 = vunpack.c.l.b16 %v659
      %v1684 = vunpack.c.l.b16 %v660
      %v1685 = vunpack.c.l.b16 %v661
      %v1686 = vunpack.c.l.b16 %v662
      %v1687 = vunpack.c.l.b16 %v663
      %v1688 = vunpack.c.l.b16 %v664
      %v1689 = vunpack.c.l.b16 %v665
      %v1690 = vunpack.c.l.b16 %v666
      %v1691 = vunpack.c.l.b16 %v667
      %v1692 = vunpack.c.l.b16 %v668
      %v1693 = vunpack.c.l.b16 %v669
      %v1694 = vunpack.c.l.b16 %v670
      %v1695 = vunpack.c.l.b16 %v671
      %v1696 = vunpack.c.l.b16 %v672
      %v1697 = vunpack.c.l.b16 %v673
      %v1698 = vunpack.c.l.b16 %v674
      %v1699 = vunpack.c.l.b16 %v675
      %v1700 = vunpack.c.l.b16 %v676
      %v1701 = vunpack.c.l.b16 %v677
      %v1702 = vunpack.c.l.b16 %v678
      %v1703 = vunpack.c.l.b16 %v679
      %v1704 = vunpack.c.l.b16 %v680
      %v1705 = vpack.c.b16 %v1562, %v1561
      %v1706 = vpack.c.b16 %v1564, %v1563
      %v1707 = vpack.c.b16 %v1566, %v1565
      %v1708 = vpack.c.b16 %v1568, %v1567
      %v1709 = vpack.c.b16 %v1570, %v1569
      %v1710 = vpack.c.b16 %v1572, %v1571
      %v1711 = vpack.c.b16 %v1574, %v1573
      %v1712 = vpack.c.b16 %v1576, %v1575
      %v1713 = vpack.c.b16 %v1578, %v1577
      %v1714 = vpack.c.b16 %v1580, %v1579
      %v1715 = vpack.c.b16 %v1582, %v1581
      %v1716 = vpack.c.b16 %v1584, %v1583
      %v1717 = vpack.c.b16 %v1586, %v1585
      %v1718 = vpack.c.b16 %v1588, %v1587
      %v1719 = vpack.c.b16 %v1590, %v1589
      %v1720 = vpack.c.b16 %v1592, %v1591
      %v1721 = vpack.c.b16 %v1594, %v1593
      %v1722 = vpack.c.b16 %v1596, %v1595
      %v1723 = vpack.c.b16 %v1598, %v1597
      %v1724 = vpack.c.b16 %v1600, %v1599
      %v1725 = vpack.c.b16 %v1602, %v1601
      %v1726 = vpack.c.b16 %v1604, %v1603
      %v1727 = vpack.c.b16 %v1606, %v1605
      %v1728 = vpack.c.b16 %v1608, %v1607
      %v1729 = vpack.c.b16 %v1610, %v1609
      %v1730 = vpack.c.b16 %v1612, %v1611
      %v1731 = vpack.c.b16 %v1614, %v1613
      %v1732 = vpack.c.b16 %v1616, %v1615
      %v1733 = vpack.c.b16 %v1618, %v1617
      %v1734 = vpack.c.b16 %v1620, %v1619
      %v1735 = vpack.c.b16 %v1622, %v1621
      %v1736 = vpack.c.b16 %v1624, %v1623
      %v1737 = vpack.c.b16 %v1626, %v1625
      %v1738 = vpack.c.b16 %v1628, %v1627
      %v1739 = vpack.c.b16 %v1630, %v1629
      %v1740 = vpack.c.b16 %v1632, %v1631
      %v1741 = vpack.c.b16 %v1634, %v1633
      %v1742 = vpack.c.b16 %v1636, %v1635
      %v1743 = vpack.c.b16 %v1638, %v1637
      %v1744 = vpack.c.b16 %v1640, %v1639
      %v1745 = vpack.c.b16 %v1642, %v1641
      %v1746 = vpack.c.b16 %v1644, %v1643
      %v1747 = vpack.c.b16 %v1646, %v1645
      %v1748 = vpack.c.b16 %v1648, %v1647
      %v1749 = vpack.c.b16 %v1650, %v1649
      %v1750 = vpack.c.b16 %v1652, %v1651
      %v1751 = vpack.c.b16 %v1654, %v1653
      %v1752 = vpack.c.b16 %v1656, %v1655
      %v1753 = vpack.c.b16 %v1658, %v1657
      %v1754 = vpack.c.b16 %v1660, %v1659
      %v1755 = vpack.c.b16 %v1662, %v1661
      %v1756 = vpack.c.b16 %v1664, %v1663
      %v1757 = vpack.c.b16 %v1666, %v1665
      %v1758 = vpack.c.b16 %v1668, %v1667
      %v1759 = vpack.c.b16 %v1670, %v1669
      %v1760 = vpack.c.b16 %v1672, %v1671
      %v1761 = vpack.c.b16 %v1674, %v1673
      %v1762 = vpack.c.b16 %v1676, %v1675
      %v1763 = vpack.c.b16 %v1678, %v1677
      %v1764 = vpack.c.b16 %v1680, %v1679
      %v1765 = vpack.c.b16 %v1682, %v1681
      %v1766 = vpack.c.b16 %v1684, %v1683
      %v1767 = vpack.c.b16 %v1686, %v1685
      %v1768 = vpack.c.b16 %v1688, %v1687
      %v1769 = vpack.c.b16 %v1690, %v1689
      %v1770 = vpack.c.b16 %v1692, %v1691
      %v1771 = vpack.c.b16 %v1694, %v1693
      %v1772 = vpack.c.b16 %v1696, %v1695
      %v1773 = vpack.c.b16 %v1698, %v1697
      %v1774 = vpack.c.b16 %v1700, %v1699
      %v1775 = vpack.c.b16 %v1702, %v1701
      %v1776 = vpack.c.b16 %v1704, %v1703
      %1849 = vmatprep.subr.bf16.mxu0 0
      %1850 = vmatpush1.bf16.msra.mxu0 %v1705
      %1851 = vmatprep.subr.bf16.mxu0 0
      %1852 = vmatpush1.bf16.msra.mxu0 %v1706
      %1853 = vmatprep.subr.bf16.mxu0 0
      %1854 = vmatpush1.bf16.msra.mxu0 %v1707
      %1855 = vmatprep.subr.bf16.mxu0 0
      %1856 = vmatpush1.bf16.msra.mxu0 %v1708
      %1857 = vmatprep.subr.bf16.mxu0 0
      %1858 = vmatpush1.bf16.msra.mxu0 %v1709
      %1859 = vmatprep.subr.bf16.mxu0 0
      %1860 = vmatpush1.bf16.msra.mxu0 %v1710
      %1861 = vmatprep.subr.bf16.mxu0 0
      %1862 = vmatpush1.bf16.msra.mxu0 %v1711
      %1863 = vmatprep.subr.bf16.mxu0 0
      %1864 = vmatpush1.bf16.msra.mxu0 %v1712
      %1865 = vmatprep.subr.bf16.mxu0 0
      %1866 = vmatpush1.bf16.msra.mxu0 %v1713
      %1867 = vmatprep.subr.bf16.mxu0 0
      %1868 = vmatpush1.bf16.msra.mxu0 %v1714
      %1869 = vmatprep.subr.bf16.mxu0 0
      %1870 = vmatpush1.bf16.msra.mxu0 %v1715
      %1871 = vmatprep.subr.bf16.mxu0 0
      %1872 = vmatpush1.bf16.msra.mxu0 %v1716
      %1873 = vmatprep.subr.bf16.mxu0 0
      %1874 = vmatpush1.bf16.msra.mxu0 %v1717
      %1875 = vmatprep.subr.bf16.mxu0 0
      %1876 = vmatpush1.bf16.msra.mxu0 %v1718
      %1877 = vmatprep.subr.bf16.mxu0 0
      %1878 = vmatpush1.bf16.msra.mxu0 %v1719
      %1879 = vmatprep.subr.bf16.mxu0 0
      %1880 = vmatpush1.bf16.msra.mxu0 %v1720
      %1881 = vmatprep.mubr.bf16.mxu0 %v1130
      %1882 = vmatmul.mubr.bf16.gmra.mrb[0].mxu0 %v1129
      %v1883 = vpop.f32.mrb[0].mxu0
      %v1884 = vadd.f32 0.0, %v1883
      %v1885 = vpop.f32.mrb[0].mxu0
      %v1886 = vpop.f32.mrb[0].mxu0
      %v1887 = vadd.f32 0.0, %v1886
      %v1888 = vpop.f32.mrb[0].mxu0
      %1889 = vmatprep.mubr.bf16.mxu0 %v1139
      %1890 = vmatmul.mubr.bf16.gmra.mrb[0].mxu0 %v1138
      %v1891 = vpop.f32.mrb[0].mxu0
      %v1892 = vadd.f32 0.0, %v1891
      %v1893 = vpop.f32.mrb[0].mxu0
      %v1894 = vpop.f32.mrb[0].mxu0
      %v1895 = vadd.f32 0.0, %v1894
      %v1896 = vpop.f32.mrb[0].mxu0
      %1897 = vmatprep.mubr.bf16.mxu0 %v1148
      %1898 = vmatmul.mubr.bf16.gmra.mrb[0].mxu0 %v1147
      %v1899 = vpop.f32.mrb[0].mxu0
      %v1900 = vadd.f32 0.0, %v1899
      %v1901 = vpop.f32.mrb[0].mxu0
      %v1902 = vpop.f32.mrb[0].mxu0
      %v1903 = vadd.f32 0.0, %v1902
      %v1904 = vpop.f32.mrb[0].mxu0
      %1905 = vmatprep.mubr.bf16.mxu0 %v1157
      %1906 = vmatmul.mubr.bf16.gmra.mrb[0].mxu0 %v1156
      %v1907 = vpop.f32.mrb[0].mxu0
      %v1908 = vadd.f32 0.0, %v1907
      %v1909 = vpop.f32.mrb[0].mxu0
      %v1910 = vpop.f32.mrb[0].mxu0
      %v1911 = vadd.f32 0.0, %v1910
      %v1912 = vpop.f32.mrb[0].mxu0
      %1913 = vmatprep.mubr.bf16.mxu0 %v1166
      %1914 = vmatmul.mubr.bf16.gmra.mrb[0].mxu0 %v1165
      %v1915 = vpop.f32.mrb[0].mxu0
      %v1916 = vadd.f32 0.0, %v1915
      %v1917 = vpop.f32.mrb[0].mxu0
      %v1918 = vpop.f32.mrb[0].mxu0
      %v1919 = vadd.f32 0.0, %v1918
      %v1920 = vpop.f32.mrb[0].mxu0
      %1921 = vmatprep.mubr.bf16.mxu0 %v1175
      %1922 = vmatmul.mubr.bf16.gmra.mrb[0].mxu0 %v1174
      %v1923 = vpop.f32.mrb[0].mxu0
      %v1924 = vadd.f32 0.0, %v1923
      %v1925 = vpop.f32.mrb[0].mxu0
      %v1926 = vpop.f32.mrb[0].mxu0
      %v1927 = vadd.f32 0.0, %v1926
      %v1928 = vpop.f32.mrb[0].mxu0
      %1929 = vmatprep.mubr.bf16.mxu0 %v1184
      %1930 = vmatmul.mubr.bf16.gmra.mrb[0].mxu0 %v1183
      %v1931 = vpop.f32.mrb[0].mxu0
      %v1932 = vadd.f32 0.0, %v1931
      %v1933 = vpop.f32.mrb[0].mxu0
      %v1934 = vpop.f32.mrb[0].mxu0
      %v1935 = vadd.f32 0.0, %v1934
      %v1936 = vpop.f32.mrb[0].mxu0
      %1937 = vmatprep.mubr.bf16.mxu0 %v1193
      %1938 = vmatmul.mubr.bf16.gmra.mrb[0].mxu0 %v1192
      %v1939 = vpop.f32.mrb[0].mxu0
      %v1940 = vadd.f32 0.0, %v1939
      %v1941 = vpop.f32.mrb[0].mxu0
      %v1942 = vpop.f32.mrb[0].mxu0
      %v1943 = vadd.f32 0.0, %v1942
      %v1944 = vpop.f32.mrb[0].mxu0
      %1945 = vmatprep.mubr.bf16.mxu0 %v1202
      %1946 = vmatmul.mubr.bf16.gmra.mrb[0].mxu0 %v1201
      %v1947 = vpop.f32.mrb[0].mxu0
      %v1948 = vadd.f32 0.0, %v1947
      %v1949 = vpop.f32.mrb[0].mxu0
      %v1950 = vpop.f32.mrb[0].mxu0
      %v1951 = vadd.f32 0.0, %v1950
      %v1952 = vpop.f32.mrb[0].mxu0
      %1953 = vmatprep.mubr.bf16.mxu0 %v1211
      %1954 = vmatmul.mubr.bf16.gmra.mrb[0].mxu0 %v1210
      %v1955 = vpop.f32.mrb[0].mxu0
      %v1956 = vadd.f32 0.0, %v1955
      %v1957 = vpop.f32.mrb[0].mxu0
      %v1958 = vpop.f32.mrb[0].mxu0
      %v1959 = vadd.f32 0.0, %v1958
      %v1960 = vpop.f32.mrb[0].mxu0
      %1961 = vmatprep.mubr.bf16.mxu0 %v1220
      %1962 = vmatmul.mubr.bf16.gmra.mrb[0].mxu0 %v1219
      %v1963 = vpop.f32.mrb[0].mxu0
      %v1964 = vadd.f32 0.0, %v1963
      %v1965 = vpop.f32.mrb[0].mxu0
      %v1966 = vpop.f32.mrb[0].mxu0
      %v1967 = vadd.f32 0.0, %v1966
      %v1968 = vpop.f32.mrb[0].mxu0
      %1969 = vmatprep.mubr.bf16.mxu0 %v1229
      %1970 = vmatmul.mubr.bf16.gmra.mrb[0].mxu0 %v1228
      %v1971 = vpop.f32.mrb[0].mxu0
      %v1972 = vadd.f32 0.0, %v1971
      %v1973 = vpop.f32.mrb[0].mxu0
      %v1974 = vpop.f32.mrb[0].mxu0
      %v1975 = vadd.f32 0.0, %v1974
      %v1976 = vpop.f32.mrb[0].mxu0
      %1977 = vmatprep.mubr.bf16.mxu0 %v1238
      %1978 = vmatmul.mubr.bf16.gmra.mrb[0].mxu0 %v1237
      %v1979 = vpop.f32.mrb[0].mxu0
      %v1980 = vadd.f32 0.0, %v1979
      %v1981 = vpop.f32.mrb[0].mxu0
      %v1982 = vpop.f32.mrb[0].mxu0
      %v1983 = vadd.f32 0.0, %v1982
      %v1984 = vpop.f32.mrb[0].mxu0
      %1985 = vmatprep.mubr.bf16.mxu0 %v1247
      %1986 = vmatmul.mubr.bf16.gmra.mrb[0].mxu0 %v1246
      %v1987 = vpop.f32.mrb[0].mxu0
      %v1988 = vadd.f32 0.0, %v1987
      %v1989 = vpop.f32.mrb[0].mxu0
      %v1990 = vpop.f32.mrb[0].mxu0
      %v1991 = vadd.f32 0.0, %v1990
      %v1992 = vpop.f32.mrb[0].mxu0
      %1993 = vmatprep.mubr.bf16.mxu0 %v1256
      %1994 = vmatmul.mubr.bf16.gmra.mrb[0].mxu0 %v1255
      %v1995 = vpop.f32.mrb[0].mxu0
      %v1996 = vadd.f32 0.0, %v1995
      %v1997 = vpop.f32.mrb[0].mxu0
      %v1998 = vpop.f32.mrb[0].mxu0
      %v1999 = vadd.f32 0.0, %v1998
      %v2000 = vpop.f32.mrb[0].mxu0
      %2001 = vmatprep.mubr.bf16.mxu0 %v1265
      %2002 = vmatmul.mubr.bf16.gmra.mrb[0].mxu0 %v1264
      %v2003 = vpop.f32.mrb[0].mxu0
      %v2004 = vadd.f32 0.0, %v2003
      %v2005 = vpop.f32.mrb[0].mxu0
      %v2006 = vpop.f32.mrb[0].mxu0
      %v2007 = vadd.f32 0.0, %v2006
      %v2008 = vpop.f32.mrb[0].mxu0
      %2009 = vdwg.mxu0
      %2010 = vmatprep.subr.bf16.mxu0 0
      %2011 = vmatpush1.bf16.msra.mxu0 %v1721
      %2012 = vmatprep.subr.bf16.mxu0 0
      %2013 = vmatpush1.bf16.msra.mxu0 %v1722
      %2014 = vmatprep.subr.bf16.mxu0 0
      %2015 = vmatpush1.bf16.msra.mxu0 %v1723
      %2016 = vmatprep.subr.bf16.mxu0 0
      %2017 = vmatpush1.bf16.msra.mxu0 %v1724
      %2018 = vmatprep.subr.bf16.mxu0 0
      %2019 = vmatpush1.bf16.msra.mxu0 %v1725
      %2020 = vmatprep.subr.bf16.mxu0 0
      %2021 = vmatpush1.bf16.msra.mxu0 %v1726
      %2022 = vmatprep.subr.bf16.mxu0 0
      %2023 = vmatpush1.bf16.msra.mxu0 %v1727
      %2024 = vmatprep.subr.bf16.mxu0 0
      %2025 = vmatpush1.bf16.msra.mxu0 %v1728
      %2026 = vmatprep.subr.bf16.mxu0 0
      %2027 = vmatpush1.bf16.msra.mxu0 %v1729
      %2028 = vmatprep.subr.bf16.mxu0 0
      %2029 = vmatpush1.bf16.msra.mxu0 %v1730
      %2030 = vmatprep.subr.bf16.mxu0 0
      %2031 = vmatpush1.bf16.msra.mxu0 %v1731
      %2032 = vmatprep.subr.bf16.mxu0 0
      %2033 = vmatpush1.bf16.msra.mxu0 %v1732
      %2034 = vmatprep.subr.bf16.mxu0 0
      %2035 = vmatpush1.bf16.msra.mxu0 %v1733
      %2036 = vmatprep.subr.bf16.mxu0 0
      %2037 = vmatpush1.bf16.msra.mxu0 %v1734
      %2038 = vmatprep.subr.bf16.mxu0 0
      %2039 = vmatpush1.bf16.msra.mxu0 %v1735
      %2040 = vmatprep.subr.bf16.mxu0 0
      %2041 = vmatpush1.bf16.msra.mxu0 %v1736
      %2042 = vmatprep.mubr.bf16.mxu0 %v1132
      %2043 = vmatmul.mubr.bf16.gmra.mrb[0].mxu0 %v1131
      %v2044 = vpop.f32.mrb[0].mxu0
      %v2045 = vadd.f32 %v1884, %v2044
      %v2046 = vpop.f32.mrb[0].mxu0
      %v2047 = vpop.f32.mrb[0].mxu0
      %v2048 = vadd.f32 %v1887, %v2047
      %v2049 = vpop.f32.mrb[0].mxu0
      %2050 = vmatprep.mubr.bf16.mxu0 %v1141
      %2051 = vmatmul.mubr.bf16.gmra.mrb[0].mxu0 %v1140
      %v2052 = vpop.f32.mrb[0].mxu0
      %v2053 = vadd.f32 %v1892, %v2052
      %v2054 = vpop.f32.mrb[0].mxu0
      %v2055 = vpop.f32.mrb[0].mxu0
      %v2056 = vadd.f32 %v1895, %v2055
      %v2057 = vpop.f32.mrb[0].mxu0
      %2058 = vmatprep.mubr.bf16.mxu0 %v1150
      %2059 = vmatmul.mubr.bf16.gmra.mrb[0].mxu0 %v1149
      %v2060 = vpop.f32.mrb[0].mxu0
      %v2061 = vadd.f32 %v1900, %v2060
      %v2062 = vpop.f32.mrb[0].mxu0
      %v2063 = vpop.f32.mrb[0].mxu0
      %v2064 = vadd.f32 %v1903, %v2063
      %v2065 = vpop.f32.mrb[0].mxu0
      %2066 = vmatprep.mubr.bf16.mxu0 %v1159
      %2067 = vmatmul.mubr.bf16.gmra.mrb[0].mxu0 %v1158
      %v2068 = vpop.f32.mrb[0].mxu0
      %v2069 = vadd.f32 %v1908, %v2068
      %v2070 = vpop.f32.mrb[0].mxu0
      %v2071 = vpop.f32.mrb[0].mxu0
      %v2072 = vadd.f32 %v1911, %v2071
      %v2073 = vpop.f32.mrb[0].mxu0
      %2074 = vmatprep.mubr.bf16.mxu0 %v1168
      %2075 = vmatmul.mubr.bf16.gmra.mrb[0].mxu0 %v1167
      %v2076 = vpop.f32.mrb[0].mxu0
      %v2077 = vadd.f32 %v1916, %v2076
      %v2078 = vpop.f32.mrb[0].mxu0
      %v2079 = vpop.f32.mrb[0].mxu0
      %v2080 = vadd.f32 %v1919, %v2079
      %v2081 = vpop.f32.mrb[0].mxu0
      %2082 = vmatprep.mubr.bf16.mxu0 %v1177
      %2083 = vmatmul.mubr.bf16.gmra.mrb[0].mxu0 %v1176
      %v2084 = vpop.f32.mrb[0].mxu0
      %v2085 = vadd.f32 %v1924, %v2084
      %v2086 = vpop.f32.mrb[0].mxu0
      %v2087 = vpop.f32.mrb[0].mxu0
      %v2088 = vadd.f32 %v1927, %v2087
      %v2089 = vpop.f32.mrb[0].mxu0
      %2090 = vmatprep.mubr.bf16.mxu0 %v1186
      %2091 = vmatmul.mubr.bf16.gmra.mrb[0].mxu0 %v1185
      %v2092 = vpop.f32.mrb[0].mxu0
      %v2093 = vadd.f32 %v1932, %v2092
      %v2094 = vpop.f32.mrb[0].mxu0
      %v2095 = vpop.f32.mrb[0].mxu0
      %v2096 = vadd.f32 %v1935, %v2095
      %v2097 = vpop.f32.mrb[0].mxu0
      %2098 = vmatprep.mubr.bf16.mxu0 %v1195
      %2099 = vmatmul.mubr.bf16.gmra.mrb[0].mxu0 %v1194
      %v2100 = vpop.f32.mrb[0].mxu0
      %v2101 = vadd.f32 %v1940, %v2100
      %v2102 = vpop.f32.mrb[0].mxu0
      %v2103 = vpop.f32.mrb[0].mxu0
      %v2104 = vadd.f32 %v1943, %v2103
      %v2105 = vpop.f32.mrb[0].mxu0
      %2106 = vmatprep.mubr.bf16.mxu0 %v1204
      %2107 = vmatmul.mubr.bf16.gmra.mrb[0].mxu0 %v1203
      %v2108 = vpop.f32.mrb[0].mxu0
      %v2109 = vadd.f32 %v1948, %v2108
      %v2110 = vpop.f32.mrb[0].mxu0
      %v2111 = vpop.f32.mrb[0].mxu0
      %v2112 = vadd.f32 %v1951, %v2111
      %v2113 = vpop.f32.mrb[0].mxu0
      %2114 = vmatprep.mubr.bf16.mxu0 %v1213
      %2115 = vmatmul.mubr.bf16.gmra.mrb[0].mxu0 %v1212
      %v2116 = vpop.f32.mrb[0].mxu0
      %v2117 = vadd.f32 %v1956, %v2116
      %v2118 = vpop.f32.mrb[0].mxu0
      %v2119 = vpop.f32.mrb[0].mxu0
      %v2120 = vadd.f32 %v1959, %v2119
      %v2121 = vpop.f32.mrb[0].mxu0
      %2122 = vmatprep.mubr.bf16.mxu0 %v1222
      %2123 = vmatmul.mubr.bf16.gmra.mrb[0].mxu0 %v1221
      %v2124 = vpop.f32.mrb[0].mxu0
      %v2125 = vadd.f32 %v1964, %v2124
      %v2126 = vpop.f32.mrb[0].mxu0
      %v2127 = vpop.f32.mrb[0].mxu0
      %v2128 = vadd.f32 %v1967, %v2127
      %v2129 = vpop.f32.mrb[0].mxu0
      %2130 = vmatprep.mubr.bf16.mxu0 %v1231
      %2131 = vmatmul.mubr.bf16.gmra.mrb[0].mxu0 %v1230
      %v2132 = vpop.f32.mrb[0].mxu0
      %v2133 = vadd.f32 %v1972, %v2132
      %v2134 = vpop.f32.mrb[0].mxu0
      %v2135 = vpop.f32.mrb[0].mxu0
      %v2136 = vadd.f32 %v1975, %v2135
      %v2137 = vpop.f32.mrb[0].mxu0
      %2138 = vmatprep.mubr.bf16.mxu0 %v1240
      %2139 = vmatmul.mubr.bf16.gmra.mrb[0].mxu0 %v1239
      %v2140 = vpop.f32.mrb[0].mxu0
      %v2141 = vadd.f32 %v1980, %v2140
      %v2142 = vpop.f32.mrb[0].mxu0
      %v2143 = vpop.f32.mrb[0].mxu0
      %v2144 = vadd.f32 %v1983, %v2143
      %v2145 = vpop.f32.mrb[0].mxu0
      %2146 = vmatprep.mubr.bf16.mxu0 %v1249
      %2147 = vmatmul.mubr.bf16.gmra.mrb[0].mxu0 %v1248
      %v2148 = vpop.f32.mrb[0].mxu0
      %v2149 = vadd.f32 %v1988, %v2148
      %v2150 = vpop.f32.mrb[0].mxu0
      %v2151 = vpop.f32.mrb[0].mxu0
      %v2152 = vadd.f32 %v1991, %v2151
      %v2153 = vpop.f32.mrb[0].mxu0
      %2154 = vmatprep.mubr.bf16.mxu0 %v1258
      %2155 = vmatmul.mubr.bf16.gmra.mrb[0].mxu0 %v1257
      %v2156 = vpop.f32.mrb[0].mxu0
      %v2157 = vadd.f32 %v1996, %v2156
      %v2158 = vpop.f32.mrb[0].mxu0
      %v2159 = vpop.f32.mrb[0].mxu0
      %v2160 = vadd.f32 %v1999, %v2159
      %v2161 = vpop.f32.mrb[0].mxu0
      %2162 = vmatprep.mubr.bf16.mxu0 %v1267
      %2163 = vmatmul.mubr.bf16.gmra.mrb[0].mxu0 %v1266
      %v2164 = vpop.f32.mrb[0].mxu0
      %v2165 = vadd.f32 %v2004, %v2164
      %v2166 = vpop.f32.mrb[0].mxu0
      %v2167 = vpop.f32.mrb[0].mxu0
      %v2168 = vadd.f32 %v2007, %v2167
      %v2169 = vpop.f32.mrb[0].mxu0
      %2170 = vdwg.mxu0
      %2171 = vmatprep.subr.bf16.mxu0 0
      %2172 = vmatpush1.bf16.msra.mxu0 %v1737
      %2173 = vmatprep.subr.bf16.mxu0 0
      %2174 = vmatpush1.bf16.msra.mxu0 %v1738
      %2175 = vmatprep.subr.bf16.mxu0 0
      %2176 = vmatpush1.bf16.msra.mxu0 %v1739
      %2177 = vmatprep.subr.bf16.mxu0 0
      %2178 = vmatpush1.bf16.msra.mxu0 %v1740
      %2179 = vmatprep.subr.bf16.mxu0 0
      %2180 = vmatpush1.bf16.msra.mxu0 %v1741
      %2181 = vmatprep.subr.bf16.mxu0 0
      %2182 = vmatpush1.bf16.msra.mxu0 %v1742
      %2183 = vmatprep.subr.bf16.mxu0 0
      %2184 = vmatpush1.bf16.msra.mxu0 %v1743
      %2185 = vmatprep.subr.bf16.mxu0 0
      %2186 = vmatpush1.bf16.msra.mxu0 %v1744
      %2187 = vmatprep.subr.bf16.mxu0 0
      %2188 = vmatpush1.bf16.msra.mxu0 %v1745
      %2189 = vmatprep.subr.bf16.mxu0 0
      %2190 = vmatpush1.bf16.msra.mxu0 %v1746
      %2191 = vmatprep.subr.bf16.mxu0 0
      %2192 = vmatpush1.bf16.msra.mxu0 %v1747
      %2193 = vmatprep.subr.bf16.mxu0 0
      %2194 = vmatpush1.bf16.msra.mxu0 %v1748
      %2195 = vmatprep.subr.bf16.mxu0 0
      %2196 = vmatpush1.bf16.msra.mxu0 %v1749
      %2197 = vmatprep.subr.bf16.mxu0 0
      %2198 = vmatpush1.bf16.msra.mxu0 %v1750
      %2199 = vmatprep.subr.bf16.mxu0 0
      %2200 = vmatpush1.bf16.msra.mxu0 %v1751
      %2201 = vmatprep.subr.bf16.mxu0 0
      %2202 = vmatpush1.bf16.msra.mxu0 %v1752
      %2203 = vmatprep.mubr.bf16.mxu0 %v1134
      %2204 = vmatmul.mubr.bf16.gmra.mrb[0].mxu0 %v1133
      %v2205 = vpop.f32.mrb[0].mxu0
      %v2206 = vadd.f32 %v2045, %v2205
      %v2207 = vpop.f32.mrb[0].mxu0
      %v2208 = vpop.f32.mrb[0].mxu0
      %v2209 = vadd.f32 %v2048, %v2208
      %v2210 = vpop.f32.mrb[0].mxu0
      %2211 = vmatprep.mubr.bf16.mxu0 %v1143
      %2212 = vmatmul.mubr.bf16.gmra.mrb[0].mxu0 %v1142
      %v2213 = vpop.f32.mrb[0].mxu0
      %v2214 = vadd.f32 %v2053, %v2213
      %v2215 = vpop.f32.mrb[0].mxu0
      %v2216 = vpop.f32.mrb[0].mxu0
      %v2217 = vadd.f32 %v2056, %v2216
      %v2218 = vpop.f32.mrb[0].mxu0
      %2219 = vmatprep.mubr.bf16.mxu0 %v1152
      %2220 = vmatmul.mubr.bf16.gmra.mrb[0].mxu0 %v1151
      %v2221 = vpop.f32.mrb[0].mxu0
      %v2222 = vadd.f32 %v2061, %v2221
      %v2223 = vpop.f32.mrb[0].mxu0
      %v2224 = vpop.f32.mrb[0].mxu0
      %v2225 = vadd.f32 %v2064, %v2224
      %v2226 = vpop.f32.mrb[0].mxu0
      %2227 = vmatprep.mubr.bf16.mxu0 %v1161
      %2228 = vmatmul.mubr.bf16.gmra.mrb[0].mxu0 %v1160
      %v2229 = vpop.f32.mrb[0].mxu0
      %v2230 = vadd.f32 %v2069, %v2229
      %v2231 = vpop.f32.mrb[0].mxu0
      %v2232 = vpop.f32.mrb[0].mxu0
      %v2233 = vadd.f32 %v2072, %v2232
      %v2234 = vpop.f32.mrb[0].mxu0
      %2235 = vmatprep.mubr.bf16.mxu0 %v1170
      %2236 = vmatmul.mubr.bf16.gmra.mrb[0].mxu0 %v1169
      %v2237 = vpop.f32.mrb[0].mxu0
      %v2238 = vadd.f32 %v2077, %v2237
      %v2239 = vpop.f32.mrb[0].mxu0
      %v2240 = vpop.f32.mrb[0].mxu0
      %v2241 = vadd.f32 %v2080, %v2240
      %v2242 = vpop.f32.mrb[0].mxu0
      %2243 = vmatprep.mubr.bf16.mxu0 %v1179
      %2244 = vmatmul.mubr.bf16.gmra.mrb[0].mxu0 %v1178
      %v2245 = vpop.f32.mrb[0].mxu0
      %v2246 = vadd.f32 %v2085, %v2245
      %v2247 = vpop.f32.mrb[0].mxu0
      %v2248 = vpop.f32.mrb[0].mxu0
      %v2249 = vadd.f32 %v2088, %v2248
      %v2250 = vpop.f32.mrb[0].mxu0
      %2251 = vmatprep.mubr.bf16.mxu0 %v1188
      %2252 = vmatmul.mubr.bf16.gmra.mrb[0].mxu0 %v1187
      %v2253 = vpop.f32.mrb[0].mxu0
      %v2254 = vadd.f32 %v2093, %v2253
      %v2255 = vpop.f32.mrb[0].mxu0
      %v2256 = vpop.f32.mrb[0].mxu0
      %v2257 = vadd.f32 %v2096, %v2256
      %v2258 = vpop.f32.mrb[0].mxu0
      %2259 = vmatprep.mubr.bf16.mxu0 %v1197
      %2260 = vmatmul.mubr.bf16.gmra.mrb[0].mxu0 %v1196
      %v2261 = vpop.f32.mrb[0].mxu0
      %v2262 = vadd.f32 %v2101, %v2261
      %v2263 = vpop.f32.mrb[0].mxu0
      %v2264 = vpop.f32.mrb[0].mxu0
      %v2265 = vadd.f32 %v2104, %v2264
      %v2266 = vpop.f32.mrb[0].mxu0
      %2267 = vmatprep.mubr.bf16.mxu0 %v1206
      %2268 = vmatmul.mubr.bf16.gmra.mrb[0].mxu0 %v1205
      %v2269 = vpop.f32.mrb[0].mxu0
      %v2270 = vadd.f32 %v2109, %v2269
      %v2271 = vpop.f32.mrb[0].mxu0
      %v2272 = vpop.f32.mrb[0].mxu0
      %v2273 = vadd.f32 %v2112, %v2272
      %v2274 = vpop.f32.mrb[0].mxu0
      %2275 = vmatprep.mubr.bf16.mxu0 %v1215
      %2276 = vmatmul.mubr.bf16.gmra.mrb[0].mxu0 %v1214
      %v2277 = vpop.f32.mrb[0].mxu0
      %v2278 = vadd.f32 %v2117, %v2277
      %v2279 = vpop.f32.mrb[0].mxu0
      %v2280 = vpop.f32.mrb[0].mxu0
      %v2281 = vadd.f32 %v2120, %v2280
      %v2282 = vpop.f32.mrb[0].mxu0
      %2283 = vmatprep.mubr.bf16.mxu0 %v1224
      %2284 = vmatmul.mubr.bf16.gmra.mrb[0].mxu0 %v1223
      %v2285 = vpop.f32.mrb[0].mxu0
      %v2286 = vadd.f32 %v2125, %v2285
      %v2287 = vpop.f32.mrb[0].mxu0
      %v2288 = vpop.f32.mrb[0].mxu0
      %v2289 = vadd.f32 %v2128, %v2288
      %v2290 = vpop.f32.mrb[0].mxu0
      %2291 = vmatprep.mubr.bf16.mxu0 %v1233
      %2292 = vmatmul.mubr.bf16.gmra.mrb[0].mxu0 %v1232
      %v2293 = vpop.f32.mrb[0].mxu0
      %v2294 = vadd.f32 %v2133, %v2293
      %v2295 = vpop.f32.mrb[0].mxu0
      %v2296 = vpop.f32.mrb[0].mxu0
      %v2297 = vadd.f32 %v2136, %v2296
      %v2298 = vpop.f32.mrb[0].mxu0
      %2299 = vmatprep.mubr.bf16.mxu0 %v1242
      %2300 = vmatmul.mubr.bf16.gmra.mrb[0].mxu0 %v1241
      %v2301 = vpop.f32.mrb[0].mxu0
      %v2302 = vadd.f32 %v2141, %v2301
      %v2303 = vpop.f32.mrb[0].mxu0
      %v2304 = vpop.f32.mrb[0].mxu0
      %v2305 = vadd.f32 %v2144, %v2304
      %v2306 = vpop.f32.mrb[0].mxu0
      %2307 = vmatprep.mubr.bf16.mxu0 %v1251
      %2308 = vmatmul.mubr.bf16.gmra.mrb[0].mxu0 %v1250
      %v2309 = vpop.f32.mrb[0].mxu0
      %v2310 = vadd.f32 %v2149, %v2309
      %v2311 = vpop.f32.mrb[0].mxu0
      %v2312 = vpop.f32.mrb[0].mxu0
      %v2313 = vadd.f32 %v2152, %v2312
      %v2314 = vpop.f32.mrb[0].mxu0
      %2315 = vmatprep.mubr.bf16.mxu0 %v1260
      %2316 = vmatmul.mubr.bf16.gmra.mrb[0].mxu0 %v1259
      %v2317 = vpop.f32.mrb[0].mxu0
      %v2318 = vadd.f32 %v2157, %v2317
      %v2319 = vpop.f32.mrb[0].mxu0
      %v2320 = vpop.f32.mrb[0].mxu0
      %v2321 = vadd.f32 %v2160, %v2320
      %v2322 = vpop.f32.mrb[0].mxu0
      %2323 = vmatprep.mubr.bf16.mxu0 %v1269
      %2324 = vmatmul.mubr.bf16.gmra.mrb[0].mxu0 %v1268
      %v2325 = vpop.f32.mrb[0].mxu0
      %v2326 = vadd.f32 %v2165, %v2325
      %v2327 = vpop.f32.mrb[0].mxu0
      %v2328 = vpop.f32.mrb[0].mxu0
      %v2329 = vadd.f32 %v2168, %v2328
      %v2330 = vpop.f32.mrb[0].mxu0
      %2331 = vdwg.mxu0
      %2332 = vmatprep.subr.bf16.mxu0 0
      %2333 = vmatpush1.bf16.msra.mxu0 %v1753
      %2334 = vmatprep.subr.bf16.mxu0 0
      %2335 = vmatpush1.bf16.msra.mxu0 %v1754
      %2336 = vmatprep.subr.bf16.mxu0 0
      %2337 = vmatpush1.bf16.msra.mxu0 %v1755
      %2338 = vmatprep.subr.bf16.mxu0 0
      %2339 = vmatpush1.bf16.msra.mxu0 %v1756
      %2340 = vmatprep.subr.bf16.mxu0 0
      %2341 = vmatpush1.bf16.msra.mxu0 %v1757
      %2342 = vmatprep.subr.bf16.mxu0 0
      %2343 = vmatpush1.bf16.msra.mxu0 %v1758
      %2344 = vmatprep.subr.bf16.mxu0 0
      %2345 = vmatpush1.bf16.msra.mxu0 %v1759
      %2346 = vmatprep.subr.bf16.mxu0 0
      %2347 = vmatpush1.bf16.msra.mxu0 %v1760
      %2348 = vmatprep.subr.bf16.mxu0 0
      %2349 = vmatpush1.bf16.msra.mxu0 %v1761
      %2350 = vmatprep.subr.bf16.mxu0 0
      %2351 = vmatpush1.bf16.msra.mxu0 %v1762
      %2352 = vmatprep.subr.bf16.mxu0 0
      %2353 = vmatpush1.bf16.msra.mxu0 %v1763
      %2354 = vmatprep.subr.bf16.mxu0 0
      %2355 = vmatpush1.bf16.msra.mxu0 %v1764
      %2356 = vmatprep.subr.bf16.mxu0 0
      %2357 = vmatpush1.bf16.msra.mxu0 %v1765
      %2358 = vmatprep.subr.bf16.mxu0 0
      %2359 = vmatpush1.bf16.msra.mxu0 %v1766
      %2360 = vmatprep.subr.bf16.mxu0 0
      %2361 = vmatpush1.bf16.msra.mxu0 %v1767
      %2362 = vmatprep.subr.bf16.mxu0 0
      %2363 = vmatpush1.bf16.msra.mxu0 %v1768
      %2364 = vmatprep.mubr.bf16.mxu0 %v1136
      %2365 = vmatmul.mubr.bf16.gmra.mrb[0].mxu0 %v1135
      %v2366 = vpop.f32.mrb[0].mxu0
      %v2367 = vadd.f32 %v2206, %v2366
      %v2368 = vpop.f32.mrb[0].mxu0
      %v2369 = vpop.f32.mrb[0].mxu0
      %v2370 = vadd.f32 %v2209, %v2369
      %v2371 = vpop.f32.mrb[0].mxu0
      %2372 = vmatprep.mubr.bf16.mxu0 %v1145
      %2373 = vmatmul.mubr.bf16.gmra.mrb[0].mxu0 %v1144
      %v2374 = vpop.f32.mrb[0].mxu0
      %v2375 = vadd.f32 %v2214, %v2374
      %v2376 = vpop.f32.mrb[0].mxu0
      %v2377 = vpop.f32.mrb[0].mxu0
      %v2378 = vadd.f32 %v2217, %v2377
      %v2379 = vpop.f32.mrb[0].mxu0
      %2380 = vmatprep.mubr.bf16.mxu0 %v1154
      %2381 = vmatmul.mubr.bf16.gmra.mrb[0].mxu0 %v1153
      %v2382 = vpop.f32.mrb[0].mxu0
      %v2383 = vadd.f32 %v2222, %v2382
      %v2384 = vpop.f32.mrb[0].mxu0
      %v2385 = vpop.f32.mrb[0].mxu0
      %v2386 = vadd.f32 %v2225, %v2385
      %v2387 = vpop.f32.mrb[0].mxu0
      %2388 = vmatprep.mubr.bf16.mxu0 %v1163
      %2389 = vmatmul.mubr.bf16.gmra.mrb[0].mxu0 %v1162
      %v2390 = vpop.f32.mrb[0].mxu0
      %v2391 = vadd.f32 %v2230, %v2390
      %v2392 = vpop.f32.mrb[0].mxu0
      %v2393 = vpop.f32.mrb[0].mxu0
      %v2394 = vadd.f32 %v2233, %v2393
      %v2395 = vpop.f32.mrb[0].mxu0
      %2396 = vmatprep.mubr.bf16.mxu0 %v1172
      %2397 = vmatmul.mubr.bf16.gmra.mrb[0].mxu0 %v1171
      %v2398 = vpop.f32.mrb[0].mxu0
      %v2399 = vadd.f32 %v2238, %v2398
      %v2400 = vpop.f32.mrb[0].mxu0
      %v2401 = vpop.f32.mrb[0].mxu0
      %v2402 = vadd.f32 %v2241, %v2401
      %v2403 = vpop.f32.mrb[0].mxu0
      %2404 = vmatprep.mubr.bf16.mxu0 %v1181
      %2405 = vmatmul.mubr.bf16.gmra.mrb[0].mxu0 %v1180
      %v2406 = vpop.f32.mrb[0].mxu0
      %v2407 = vadd.f32 %v2246, %v2406
      %v2408 = vpop.f32.mrb[0].mxu0
      %v2409 = vpop.f32.mrb[0].mxu0
      %v2410 = vadd.f32 %v2249, %v2409
      %v2411 = vpop.f32.mrb[0].mxu0
      %2412 = vmatprep.mubr.bf16.mxu0 %v1190
      %2413 = vmatmul.mubr.bf16.gmra.mrb[0].mxu0 %v1189
      %v2414 = vpop.f32.mrb[0].mxu0
      %v2415 = vadd.f32 %v2254, %v2414
      %v2416 = vpop.f32.mrb[0].mxu0
      %v2417 = vpop.f32.mrb[0].mxu0
      %v2418 = vadd.f32 %v2257, %v2417
      %v2419 = vpop.f32.mrb[0].mxu0
      %2420 = vmatprep.mubr.bf16.mxu0 %v1199
      %2421 = vmatmul.mubr.bf16.gmra.mrb[0].mxu0 %v1198
      %v2422 = vpop.f32.mrb[0].mxu0
      %v2423 = vadd.f32 %v2262, %v2422
      %v2424 = vpop.f32.mrb[0].mxu0
      %v2425 = vpop.f32.mrb[0].mxu0
      %v2426 = vadd.f32 %v2265, %v2425
      %v2427 = vpop.f32.mrb[0].mxu0
      %2428 = vmatprep.mubr.bf16.mxu0 %v1208
      %2429 = vmatmul.mubr.bf16.gmra.mrb[0].mxu0 %v1207
      %v2430 = vpop.f32.mrb[0].mxu0
      %v2431 = vadd.f32 %v2270, %v2430
      %v2432 = vpop.f32.mrb[0].mxu0
      %v2433 = vpop.f32.mrb[0].mxu0
      %v2434 = vadd.f32 %v2273, %v2433
      %v2435 = vpop.f32.mrb[0].mxu0
      %2436 = vmatprep.mubr.bf16.mxu0 %v1217
      %2437 = vmatmul.mubr.bf16.gmra.mrb[0].mxu0 %v1216
      %v2438 = vpop.f32.mrb[0].mxu0
      %v2439 = vadd.f32 %v2278, %v2438
      %v2440 = vpop.f32.mrb[0].mxu0
      %v2441 = vpop.f32.mrb[0].mxu0
      %v2442 = vadd.f32 %v2281, %v2441
      %v2443 = vpop.f32.mrb[0].mxu0
      %2444 = vmatprep.mubr.bf16.mxu0 %v1226
      %2445 = vmatmul.mubr.bf16.gmra.mrb[0].mxu0 %v1225
      %v2446 = vpop.f32.mrb[0].mxu0
      %v2447 = vadd.f32 %v2286, %v2446
      %v2448 = vpop.f32.mrb[0].mxu0
      %v2449 = vpop.f32.mrb[0].mxu0
      %v2450 = vadd.f32 %v2289, %v2449
      %v2451 = vpop.f32.mrb[0].mxu0
      %2452 = vmatprep.mubr.bf16.mxu0 %v1235
      %2453 = vmatmul.mubr.bf16.gmra.mrb[0].mxu0 %v1234
      %v2454 = vpop.f32.mrb[0].mxu0
      %v2455 = vadd.f32 %v2294, %v2454
      %v2456 = vpop.f32.mrb[0].mxu0
      %v2457 = vpop.f32.mrb[0].mxu0
      %v2458 = vadd.f32 %v2297, %v2457
      %v2459 = vpop.f32.mrb[0].mxu0
      %2460 = vmatprep.mubr.bf16.mxu0 %v1244
      %2461 = vmatmul.mubr.bf16.gmra.mrb[0].mxu0 %v1243
      %v2462 = vpop.f32.mrb[0].mxu0
      %v2463 = vadd.f32 %v2302, %v2462
      %v2464 = vpop.f32.mrb[0].mxu0
      %v2465 = vpop.f32.mrb[0].mxu0
      %v2466 = vadd.f32 %v2305, %v2465
      %v2467 = vpop.f32.mrb[0].mxu0
      %2468 = vmatprep.mubr.bf16.mxu0 %v1253
      %2469 = vmatmul.mubr.bf16.gmra.mrb[0].mxu0 %v1252
      %v2470 = vpop.f32.mrb[0].mxu0
      %v2471 = vadd.f32 %v2310, %v2470
      %v2472 = vpop.f32.mrb[0].mxu0
      %v2473 = vpop.f32.mrb[0].mxu0
      %v2474 = vadd.f32 %v2313, %v2473
      %v2475 = vpop.f32.mrb[0].mxu0
      %2476 = vmatprep.mubr.bf16.mxu0 %v1262
      %2477 = vmatmul.mubr.bf16.gmra.mrb[0].mxu0 %v1261
      %v2478 = vpop.f32.mrb[0].mxu0
      %v2479 = vadd.f32 %v2318, %v2478
      %v2480 = vpop.f32.mrb[0].mxu0
      %v2481 = vpop.f32.mrb[0].mxu0
      %v2482 = vadd.f32 %v2321, %v2481
      %v2483 = vpop.f32.mrb[0].mxu0
      %2484 = vmatprep.mubr.bf16.mxu0 %v1271
      %2485 = vmatmul.mubr.bf16.gmra.mrb[0].mxu0 %v1270
      %v2486 = vpop.f32.mrb[0].mxu0
      %v2487 = vadd.f32 %v2326, %v2486
      %v2488 = vpop.f32.mrb[0].mxu0
      %v2489 = vpop.f32.mrb[0].mxu0
      %v2490 = vadd.f32 %v2329, %v2489
      %v2491 = vpop.f32.mrb[0].mxu0
      %2492 = vdwg.mxu0
      %2493 = vmatprep.subr.bf16.mxu0 0
      %2494 = vmatpush1.bf16.msra.mxu0 %v1769
      %2495 = vmatprep.subr.bf16.mxu0 0
      %2496 = vmatpush1.bf16.msra.mxu0 %v1770
      %2497 = vmatprep.subr.bf16.mxu0 0
      %2498 = vmatpush1.bf16.msra.mxu0 %v1771
      %2499 = vmatprep.subr.bf16.mxu0 0
      %2500 = vmatpush1.bf16.msra.mxu0 %v1772
      %2501 = vmatprep.subr.bf16.mxu0 0
      %2502 = vmatpush1.bf16.msra.mxu0 %v1773
      %2503 = vmatprep.subr.bf16.mxu0 0
      %2504 = vmatpush1.bf16.msra.mxu0 %v1774
      %2505 = vmatprep.subr.bf16.mxu0 0
      %2506 = vmatpush1.bf16.msra.mxu0 %v1775
      %2507 = vmatprep.subr.bf16.mxu0 0
      %2508 = vmatpush1.bf16.msra.mxu0 %v1776
      %2509 = vmatprep.subr.bf16.mxu0 0
      %2510 = vmatpush1.bf16.msra.mxu0 0
      %2511 = vmatprep.subr.bf16.mxu0 0
      %2512 = vmatpush1.bf16.msra.mxu0 0
      %2513 = vmatprep.subr.bf16.mxu0 0
      %2514 = vmatpush1.bf16.msra.mxu0 0
      %2515 = vmatprep.subr.bf16.mxu0 0
      %2516 = vmatpush1.bf16.msra.mxu0 0
      %2517 = vmatprep.subr.bf16.mxu0 0
      %2518 = vmatpush1.bf16.msra.mxu0 0
      %2519 = vmatprep.subr.bf16.mxu0 0
      %2520 = vmatpush1.bf16.msra.mxu0 0
      %2521 = vmatprep.subr.bf16.mxu0 0
      %2522 = vmatpush1.bf16.msra.mxu0 0
      %2523 = vmatprep.subr.bf16.mxu0 0
      %2524 = vmatpush1.bf16.msra.mxu0 0
      %2525 = vmatprep.mubr.bf16.mxu0 0
      %2526 = vmatmul.mubr.bf16.gmra.mrb[0].mxu0 %v1137
      %v2527 = vpop.f32.mrb[0].mxu0
      %v2528 = vadd.f32 %v2367, %v2527
      %v2529 = vpop.f32.mrb[0].mxu0
      %v2530 = vpop.f32.mrb[0].mxu0
      %v2531 = vadd.f32 %v2370, %v2530
      %v2532 = vpop.f32.mrb[0].mxu0
      %2533 = vmatprep.mubr.bf16.mxu0 0
      %2534 = vmatmul.mubr.bf16.gmra.mrb[0].mxu0 %v1146
      %v2535 = vpop.f32.mrb[0].mxu0
      %v2536 = vadd.f32 %v2375, %v2535
      %v2537 = vpop.f32.mrb[0].mxu0
      %v2538 = vpop.f32.mrb[0].mxu0
      %v2539 = vadd.f32 %v2378, %v2538
      %v2540 = vpop.f32.mrb[0].mxu0
      %2541 = vmatprep.mubr.bf16.mxu0 0
      %2542 = vmatmul.mubr.bf16.gmra.mrb[0].mxu0 %v1155
      %v2543 = vpop.f32.mrb[0].mxu0
      %v2544 = vadd.f32 %v2383, %v2543
      %v2545 = vpop.f32.mrb[0].mxu0
      %v2546 = vpop.f32.mrb[0].mxu0
      %v2547 = vadd.f32 %v2386, %v2546
      %v2548 = vpop.f32.mrb[0].mxu0
      %2549 = vmatprep.mubr.bf16.mxu0 0
      %2550 = vmatmul.mubr.bf16.gmra.mrb[0].mxu0 %v1164
      %v2551 = vpop.f32.mrb[0].mxu0
      %v2552 = vadd.f32 %v2391, %v2551
      %v2553 = vpop.f32.mrb[0].mxu0
      %v2554 = vpop.f32.mrb[0].mxu0
      %v2555 = vadd.f32 %v2394, %v2554
      %v2556 = vpop.f32.mrb[0].mxu0
      %2557 = vmatprep.mubr.bf16.mxu0 0
      %2558 = vmatmul.mubr.bf16.gmra.mrb[0].mxu0 %v1173
      %v2559 = vpop.f32.mrb[0].mxu0
      %v2560 = vadd.f32 %v2399, %v2559
      %v2561 = vpop.f32.mrb[0].mxu0
      %v2562 = vpop.f32.mrb[0].mxu0
      %v2563 = vadd.f32 %v2402, %v2562
      %v2564 = vpop.f32.mrb[0].mxu0
      %2565 = vmatprep.mubr.bf16.mxu0 0
      %2566 = vmatmul.mubr.bf16.gmra.mrb[0].mxu0 %v1182
      %v2567 = vpop.f32.mrb[0].mxu0
      %v2568 = vadd.f32 %v2407, %v2567
      %v2569 = vpop.f32.mrb[0].mxu0
      %v2570 = vpop.f32.mrb[0].mxu0
      %v2571 = vadd.f32 %v2410, %v2570
      %v2572 = vpop.f32.mrb[0].mxu0
      %2573 = vmatprep.mubr.bf16.mxu0 0
      %2574 = vmatmul.mubr.bf16.gmra.mrb[0].mxu0 %v1191
      %v2575 = vpop.f32.mrb[0].mxu0
      %v2576 = vadd.f32 %v2415, %v2575
      %v2577 = vpop.f32.mrb[0].mxu0
      %v2578 = vpop.f32.mrb[0].mxu0
      %v2579 = vadd.f32 %v2418, %v2578
      %v2580 = vpop.f32.mrb[0].mxu0
      %2581 = vmatprep.mubr.bf16.mxu0 0
      %2582 = vmatmul.mubr.bf16.gmra.mrb[0].mxu0 %v1200
      %v2583 = vpop.f32.mrb[0].mxu0
      %v2584 = vadd.f32 %v2423, %v2583
      %v2585 = vpop.f32.mrb[0].mxu0
      %v2586 = vpop.f32.mrb[0].mxu0
      %v2587 = vadd.f32 %v2426, %v2586
      %v2588 = vpop.f32.mrb[0].mxu0
      %2589 = vmatprep.mubr.bf16.mxu0 0
      %2590 = vmatmul.mubr.bf16.gmra.mrb[0].mxu0 %v1209
      %v2591 = vpop.f32.mrb[0].mxu0
      %v2592 = vadd.f32 %v2431, %v2591
      %v2593 = vpop.f32.mrb[0].mxu0
      %v2594 = vpop.f32.mrb[0].mxu0
      %v2595 = vadd.f32 %v2434, %v2594
      %v2596 = vpop.f32.mrb[0].mxu0
      %2597 = vmatprep.mubr.bf16.mxu0 0
      %2598 = vmatmul.mubr.bf16.gmra.mrb[0].mxu0 %v1218
      %v2599 = vpop.f32.mrb[0].mxu0
      %v2600 = vadd.f32 %v2439, %v2599
      %v2601 = vpop.f32.mrb[0].mxu0
      %v2602 = vpop.f32.mrb[0].mxu0
      %v2603 = vadd.f32 %v2442, %v2602
      %v2604 = vpop.f32.mrb[0].mxu0
      %2605 = vmatprep.mubr.bf16.mxu0 0
      %2606 = vmatmul.mubr.bf16.gmra.mrb[0].mxu0 %v1227
      %v2607 = vpop.f32.mrb[0].mxu0
      %v2608 = vadd.f32 %v2447, %v2607
      %v2609 = vpop.f32.mrb[0].mxu0
      %v2610 = vpop.f32.mrb[0].mxu0
      %v2611 = vadd.f32 %v2450, %v2610
      %v2612 = vpop.f32.mrb[0].mxu0
      %2613 = vmatprep.mubr.bf16.mxu0 0
      %2614 = vmatmul.mubr.bf16.gmra.mrb[0].mxu0 %v1236
      %v2615 = vpop.f32.mrb[0].mxu0
      %v2616 = vadd.f32 %v2455, %v2615
      %v2617 = vpop.f32.mrb[0].mxu0
      %v2618 = vpop.f32.mrb[0].mxu0
      %v2619 = vadd.f32 %v2458, %v2618
      %v2620 = vpop.f32.mrb[0].mxu0
      %2621 = vmatprep.mubr.bf16.mxu0 0
      %2622 = vmatmul.mubr.bf16.gmra.mrb[0].mxu0 %v1245
      %v2623 = vpop.f32.mrb[0].mxu0
      %v2624 = vadd.f32 %v2463, %v2623
      %v2625 = vpop.f32.mrb[0].mxu0
      %v2626 = vpop.f32.mrb[0].mxu0
      %v2627 = vadd.f32 %v2466, %v2626
      %v2628 = vpop.f32.mrb[0].mxu0
      %2629 = vmatprep.mubr.bf16.mxu0 0
      %2630 = vmatmul.mubr.bf16.gmra.mrb[0].mxu0 %v1254
      %v2631 = vpop.f32.mrb[0].mxu0
      %v2632 = vadd.f32 %v2471, %v2631
      %v2633 = vpop.f32.mrb[0].mxu0
      %v2634 = vpop.f32.mrb[0].mxu0
      %v2635 = vadd.f32 %v2474, %v2634
      %v2636 = vpop.f32.mrb[0].mxu0
      %2637 = vmatprep.mubr.bf16.mxu0 0
      %2638 = vmatmul.mubr.bf16.gmra.mrb[0].mxu0 %v1263
      %v2639 = vpop.f32.mrb[0].mxu0
      %v2640 = vadd.f32 %v2479, %v2639
      %v2641 = vpop.f32.mrb[0].mxu0
      %v2642 = vpop.f32.mrb[0].mxu0
      %v2643 = vadd.f32 %v2482, %v2642
      %v2644 = vpop.f32.mrb[0].mxu0
      %2645 = vmatprep.mubr.bf16.mxu0 0
      %2646 = vmatmul.mubr.bf16.gmra.mrb[0].mxu0 %v1272
      %v2647 = vpop.f32.mrb[0].mxu0
      %v2648 = vadd.f32 %v2487, %v2647
      %v2649 = vpop.f32.mrb[0].mxu0
      %v2650 = vpop.f32.mrb[0].mxu0
      %v2651 = vadd.f32 %v2490, %v2650
      %v2652 = vpop.f32.mrb[0].mxu0
      %2653 = vdwg.mxu0
      %v2654 = vadd.f32 %v345, %v2528
      %v2655 = vadd.f32 %v346, %v2531
      %v2656 = vadd.f32 %v347, %v2536
      %v2657 = vadd.f32 %v348, %v2539
      %v2658 = vadd.f32 %v349, %v2544
      %v2659 = vadd.f32 %v350, %v2547
      %v2660 = vadd.f32 %v351, %v2552
      %v2661 = vadd.f32 %v352, %v2555
      %v2662 = vadd.f32 %v353, %v2560
      %v2663 = vadd.f32 %v354, %v2563
      %v2664 = vadd.f32 %v355, %v2568
      %v2665 = vadd.f32 %v356, %v2571
      %v2666 = vadd.f32 %v357, %v2576
      %v2667 = vadd.f32 %v358, %v2579
      %v2668 = vadd.f32 %v359, %v2584
      %v2669 = vadd.f32 %v360, %v2587
      %v2670 = vadd.f32 %v361, %v2592
      %v2671 = vadd.f32 %v362, %v2595
      %v2672 = vadd.f32 %v363, %v2600
      %v2673 = vadd.f32 %v364, %v2603
      %v2674 = vadd.f32 %v365, %v2608
      %v2675 = vadd.f32 %v366, %v2611
      %v2676 = vadd.f32 %v367, %v2616
      %v2677 = vadd.f32 %v368, %v2619
      %v2678 = vadd.f32 %v369, %v2624
      %v2679 = vadd.f32 %v370, %v2627
      %v2680 = vadd.f32 %v371, %v2632
      %v2681 = vadd.f32 %v372, %v2635
      %v2682 = vadd.f32 %v373, %v2640
      %v2683 = vadd.f32 %v374, %v2643
      %v2684 = vadd.f32 %v375, %v2648
      %v2685 = vadd.f32 %v376, %v2651
      %2686 = vst [vmem:[#allocation2] sm:$0xff] %v2654
      %2687 = vst [vmem:[#allocation2 + $0x8] sm:$0xff] %v2655
      %2688 = vst [vmem:[#allocation2 + $0x10] sm:$0xff] %v2656
      %2689 = vst [vmem:[#allocation2 + $0x18] sm:$0xff] %v2657
      %2690 = vst [vmem:[#allocation2 + $0x20] sm:$0xff] %v2658
      %2691 = vst [vmem:[#allocation2 + $0x28] sm:$0xff] %v2659
      %2692 = vst [vmem:[#allocation2 + $0x30] sm:$0xff] %v2660
      %2693 = vst [vmem:[#allocation2 + $0x38] sm:$0xff] %v2661
      %2694 = vst [vmem:[#allocation2 + $0x40] sm:$0xff] %v2662
      %2695 = vst [vmem:[#allocation2 + $0x48] sm:$0xff] %v2663
      %2696 = vst [vmem:[#allocation2 + $0x50] sm:$0xff] %v2664
      %2697 = vst [vmem:[#allocation2 + $0x58] sm:$0xff] %v2665
      %2698 = vst [vmem:[#allocation2 + $0x60] sm:$0xff] %v2666
      %2699 = vst [vmem:[#allocation2 + $0x68] sm:$0xff] %v2667
      %2700 = vst [vmem:[#allocation2 + $0x70] sm:$0xff] %v2668
      %2701 = vst [vmem:[#allocation2 + $0x78] sm:$0xff] %v2669
      %2702 = vst [vmem:[#allocation2 + $0x80] sm:$0xff] %v2670
      %2703 = vst [vmem:[#allocation2 + $0x88] sm:$0xff] %v2671
      %2704 = vst [vmem:[#allocation2 + $0x90] sm:$0xff] %v2672
      %2705 = vst [vmem:[#allocation2 + $0x98] sm:$0xff] %v2673
      %2706 = vst [vmem:[#allocation2 + $0xa0] sm:$0xff] %v2674
      %2707 = vst [vmem:[#allocation2 + $0xa8] sm:$0xff] %v2675
      %2708 = vst [vmem:[#allocation2 + $0xb0] sm:$0xff] %v2676
      %2709 = vst [vmem:[#allocation2 + $0xb8] sm:$0xff] %v2677
      %2710 = vst [vmem:[#allocation2 + $0xc0] sm:$0xff] %v2678
      %2711 = vst [vmem:[#allocation2 + $0xc8] sm:$0xff] %v2679
      %2712 = vst [vmem:[#allocation2 + $0xd0] sm:$0xff] %v2680
      %2713 = vst [vmem:[#allocation2 + $0xd8] sm:$0xff] %v2681
      %2714 = vst [vmem:[#allocation2 + $0xe0] sm:$0xff] %v2682
      %2715 = vst [vmem:[#allocation2 + $0xe8] sm:$0xff] %v2683
      %2716 = vst [vmem:[#allocation2 + $0xf0] sm:$0xff] %v2684
      %2717 = vst [vmem:[#allocation2 + $0xf8] sm:$0xff] %v2685
      // Predicated region
      $region41: #{_lambda_.6} parent=35 // pred_check
        %p2718 = pneg %p309
      $region42: #{_lambda_.6} parent=35 // pred_check_branch
        %2720 = sbr.rel (%p2718) target = $region44
      $region43: #{_lambda_.6} parent=35 // pred_region
        %v2721 = vld [vmem:[#allocation2] sm:$0xff]
        %v2722 = vld [vmem:[#allocation2 + $0x8] sm:$0xff]
        %v2723 = vld [vmem:[#allocation2 + $0x10] sm:$0xff]
        %v2724 = vld [vmem:[#allocation2 + $0x18] sm:$0xff]
        %v2725 = vld [vmem:[#allocation2 + $0x20] sm:$0xff]
        %v2726 = vld [vmem:[#allocation2 + $0x28] sm:$0xff]
        %v2727 = vld [vmem:[#allocation2 + $0x30] sm:$0xff]
        %v2728 = vld [vmem:[#allocation2 + $0x38] sm:$0xff]
        %v2729 = vld [vmem:[#allocation2 + $0x40] sm:$0xff]
        %v2730 = vld [vmem:[#allocation2 + $0x48] sm:$0xff]
        %v2731 = vld [vmem:[#allocation2 + $0x50] sm:$0xff]
        %v2732 = vld [vmem:[#allocation2 + $0x58] sm:$0xff]
        %v2733 = vld [vmem:[#allocation2 + $0x60] sm:$0xff]
        %v2734 = vld [vmem:[#allocation2 + $0x68] sm:$0xff]
        %v2735 = vld [vmem:[#allocation2 + $0x70] sm:$0xff]
        %v2736 = vld [vmem:[#allocation2 + $0x78] sm:$0xff]
        %v2737 = vld [vmem:[#allocation2 + $0x80] sm:$0xff]
        %v2738 = vld [vmem:[#allocation2 + $0x88] sm:$0xff]
        %v2739 = vld [vmem:[#allocation2 + $0x90] sm:$0xff]
        %v2740 = vld [vmem:[#allocation2 + $0x98] sm:$0xff]
        %v2741 = vld [vmem:[#allocation2 + $0xa0] sm:$0xff]
        %v2742 = vld [vmem:[#allocation2 + $0xa8] sm:$0xff]
        %v2743 = vld [vmem:[#allocation2 + $0xb0] sm:$0xff]
        %v2744 = vld [vmem:[#allocation2 + $0xb8] sm:$0xff]
        %v2745 = vld [vmem:[#allocation2 + $0xc0] sm:$0xff]
        %v2746 = vld [vmem:[#allocation2 + $0xc8] sm:$0xff]
        %v2747 = vld [vmem:[#allocation2 + $0xd0] sm:$0xff]
        %v2748 = vld [vmem:[#allocation2 + $0xd8] sm:$0xff]
        %v2749 = vld [vmem:[#allocation2 + $0xe0] sm:$0xff]
        %v2750 = vld [vmem:[#allocation2 + $0xe8] sm:$0xff]
        %v2751 = vld [vmem:[#allocation2 + $0xf0] sm:$0xff]
        %v2752 = vld [vmem:[#allocation2 + $0xf8] sm:$0xff]
        %v2753 = vld [vmem:[%s295] sm:$0x1]
        %v2755 = vlaneseq
        %v2756 = vshrl.u32 %v2755, 7
        %v2757 = vsub.s32 0, %v2756
        %v2758 = vrot.slane %v2753, %v2757
        %v2760 = vmul.f32 %v2721, %v2758
        %v2761 = vmul.f32 %v2722, %v2758
        %v2762 = vmul.f32 %v2723, %v2758
        %v2763 = vmul.f32 %v2724, %v2758
        %v2764 = vmul.f32 %v2725, %v2758
        %v2765 = vmul.f32 %v2726, %v2758
        %v2766 = vmul.f32 %v2727, %v2758
        %v2767 = vmul.f32 %v2728, %v2758
        %v2768 = vmul.f32 %v2729, %v2758
        %v2769 = vmul.f32 %v2730, %v2758
        %v2770 = vmul.f32 %v2731, %v2758
        %v2771 = vmul.f32 %v2732, %v2758
        %v2772 = vmul.f32 %v2733, %v2758
        %v2773 = vmul.f32 %v2734, %v2758
        %v2774 = vmul.f32 %v2735, %v2758
        %v2775 = vmul.f32 %v2736, %v2758
        %v2776 = vmul.f32 %v2737, %v2758
        %v2777 = vmul.f32 %v2738, %v2758
        %v2778 = vmul.f32 %v2739, %v2758
        %v2779 = vmul.f32 %v2740, %v2758
        %v2780 = vmul.f32 %v2741, %v2758
        %v2781 = vmul.f32 %v2742, %v2758
        %v2782 = vmul.f32 %v2743, %v2758
        %v2783 = vmul.f32 %v2744, %v2758
        %v2784 = vmul.f32 %v2745, %v2758
        %v2785 = vmul.f32 %v2746, %v2758
        %v2786 = vmul.f32 %v2747, %v2758
        %v2787 = vmul.f32 %v2748, %v2758
        %v2788 = vmul.f32 %v2749, %v2758
        %v2789 = vmul.f32 %v2750, %v2758
        %v2790 = vmul.f32 %v2751, %v2758
        %v2791 = vmul.f32 %v2752, %v2758
        %v2792 = vld [vmem:[%s298] sm:$0x1]
        %v2794 = vlaneseq
        %v2795 = vshrl.u32 %v2794, 7
        %v2796 = vsub.s32 0, %v2795
        %v2797 = vrot.slane %v2792, %v2796
        %v2799 = vadd.f32 %v2760, %v2797
        %v2800 = vadd.f32 %v2761, %v2797
        %v2801 = vadd.f32 %v2762, %v2797
        %v2802 = vadd.f32 %v2763, %v2797
        %v2803 = vadd.f32 %v2764, %v2797
        %v2804 = vadd.f32 %v2765, %v2797
        %v2805 = vadd.f32 %v2766, %v2797
        %v2806 = vadd.f32 %v2767, %v2797
        %v2807 = vadd.f32 %v2768, %v2797
        %v2808 = vadd.f32 %v2769, %v2797
        %v2809 = vadd.f32 %v2770, %v2797
        %v2810 = vadd.f32 %v2771, %v2797
        %v2811 = vadd.f32 %v2772, %v2797
        %v2812 = vadd.f32 %v2773, %v2797
        %v2813 = vadd.f32 %v2774, %v2797
        %v2814 = vadd.f32 %v2775, %v2797
        %v2815 = vadd.f32 %v2776, %v2797
        %v2816 = vadd.f32 %v2777, %v2797
        %v2817 = vadd.f32 %v2778, %v2797
        %v2818 = vadd.f32 %v2779, %v2797
        %v2819 = vadd.f32 %v2780, %v2797
        %v2820 = vadd.f32 %v2781, %v2797
        %v2821 = vadd.f32 %v2782, %v2797
        %v2822 = vadd.f32 %v2783, %v2797
        %v2823 = vadd.f32 %v2784, %v2797
        %v2824 = vadd.f32 %v2785, %v2797
        %v2825 = vadd.f32 %v2786, %v2797
        %v2826 = vadd.f32 %v2787, %v2797
        %v2827 = vadd.f32 %v2788, %v2797
        %v2828 = vadd.f32 %v2789, %v2797
        %v2829 = vadd.f32 %v2790, %v2797
        %v2830 = vadd.f32 %v2791, %v2797
        %v2831 = vmax.f32 %v2799, 0.0
        %v2832 = vmax.f32 %v2800, 0.0
        %v2833 = vmax.f32 %v2801, 0.0
        %v2834 = vmax.f32 %v2802, 0.0
        %v2835 = vmax.f32 %v2803, 0.0
        %v2836 = vmax.f32 %v2804, 0.0
        %v2837 = vmax.f32 %v2805, 0.0
        %v2838 = vmax.f32 %v2806, 0.0
        %v2839 = vmax.f32 %v2807, 0.0
        %v2840 = vmax.f32 %v2808, 0.0
        %v2841 = vmax.f32 %v2809, 0.0
        %v2842 = vmax.f32 %v2810, 0.0
        %v2843 = vmax.f32 %v2811, 0.0
        %v2844 = vmax.f32 %v2812, 0.0
        %v2845 = vmax.f32 %v2813, 0.0
        %v2846 = vmax.f32 %v2814, 0.0
        %v2847 = vmax.f32 %v2815, 0.0
        %v2848 = vmax.f32 %v2816, 0.0
        %v2849 = vmax.f32 %v2817, 0.0
        %v2850 = vmax.f32 %v2818, 0.0
        %v2851 = vmax.f32 %v2819, 0.0
        %v2852 = vmax.f32 %v2820, 0.0
        %v2853 = vmax.f32 %v2821, 0.0
        %v2854 = vmax.f32 %v2822, 0.0
        %v2855 = vmax.f32 %v2823, 0.0
        %v2856 = vmax.f32 %v2824, 0.0
        %v2857 = vmax.f32 %v2825, 0.0
        %v2858 = vmax.f32 %v2826, 0.0
        %v2859 = vmax.f32 %v2827, 0.0
        %v2860 = vmax.f32 %v2828, 0.0
        %v2861 = vmax.f32 %v2829, 0.0
        %v2862 = vmax.f32 %v2830, 0.0
        %v2863 = vpack.c.bf16 %v2832, %v2831
        %v2864 = vpack.c.bf16 %v2834, %v2833
        %v2865 = vpack.c.bf16 %v2836, %v2835
        %v2866 = vpack.c.bf16 %v2838, %v2837
        %v2867 = vpack.c.bf16 %v2840, %v2839
        %v2868 = vpack.c.bf16 %v2842, %v2841
        %v2869 = vpack.c.bf16 %v2844, %v2843
        %v2870 = vpack.c.bf16 %v2846, %v2845
        %v2871 = vpack.c.bf16 %v2848, %v2847
        %v2872 = vpack.c.bf16 %v2850, %v2849
        %v2873 = vpack.c.bf16 %v2852, %v2851
        %v2874 = vpack.c.bf16 %v2854, %v2853
        %v2875 = vpack.c.bf16 %v2856, %v2855
        %v2876 = vpack.c.bf16 %v2858, %v2857
        %v2877 = vpack.c.bf16 %v2860, %v2859
        %v2878 = vpack.c.bf16 %v2862, %v2861
        %v2895 = vunpack.c.l.b16 %v2863
        %v2896 = vunpack.c.h.b16 %v2863
        %v2897 = vunpack.c.l.b16 %v2864
        %v2898 = vunpack.c.h.b16 %v2864
        %v2899 = vunpack.c.l.b16 %v2865
        %v2900 = vunpack.c.h.b16 %v2865
        %v2901 = vunpack.c.l.b16 %v2866
        %v2902 = vunpack.c.h.b16 %v2866
        %v2903 = vunpack.c.l.b16 %v2867
        %v2904 = vunpack.c.h.b16 %v2867
        %v2905 = vunpack.c.l.b16 %v2868
        %v2906 = vunpack.c.h.b16 %v2868
        %v2907 = vunpack.c.l.b16 %v2869
        %v2908 = vunpack.c.h.b16 %v2869
        %v2909 = vunpack.c.l.b16 %v2870
        %v2910 = vunpack.c.h.b16 %v2870
        %v2911 = vunpack.c.l.b16 %v2871
        %v2912 = vunpack.c.h.b16 %v2871
        %v2913 = vunpack.c.l.b16 %v2872
        %v2914 = vunpack.c.h.b16 %v2872
        %v2915 = vunpack.c.l.b16 %v2873
        %v2916 = vunpack.c.h.b16 %v2873
        %v2917 = vunpack.c.l.b16 %v2874
        %v2918 = vunpack.c.h.b16 %v2874
        %v2919 = vunpack.c.l.b16 %v2875
        %v2920 = vunpack.c.h.b16 %v2875
        %v2921 = vunpack.c.l.b16 %v2876
        %v2922 = vunpack.c.h.b16 %v2876
        %v2923 = vunpack.c.l.b16 %v2877
        %v2924 = vunpack.c.h.b16 %v2877
        %v2925 = vunpack.c.l.b16 %v2878
        %v2926 = vunpack.c.h.b16 %v2878
        %v2927 = vpack.c.b16 %v2895, %v2895
        %v2928 = vpack.c.b16 %v2896, %v2896
        %v2929 = vpack.c.b16 %v2897, %v2897
        %v2930 = vpack.c.b16 %v2898, %v2898
        %v2931 = vpack.c.b16 %v2899, %v2899
        %v2932 = vpack.c.b16 %v2900, %v2900
        %v2933 = vpack.c.b16 %v2901, %v2901
        %v2934 = vpack.c.b16 %v2902, %v2902
        %v2935 = vpack.c.b16 %v2903, %v2903
        %v2936 = vpack.c.b16 %v2904, %v2904
        %v2937 = vpack.c.b16 %v2905, %v2905
        %v2938 = vpack.c.b16 %v2906, %v2906
        %v2939 = vpack.c.b16 %v2907, %v2907
        %v2940 = vpack.c.b16 %v2908, %v2908
        %v2941 = vpack.c.b16 %v2909, %v2909
        %v2942 = vpack.c.b16 %v2910, %v2910
        %v2943 = vpack.c.b16 %v2911, %v2911
        %v2944 = vpack.c.b16 %v2912, %v2912
        %v2945 = vpack.c.b16 %v2913, %v2913
        %v2946 = vpack.c.b16 %v2914, %v2914
        %v2947 = vpack.c.b16 %v2915, %v2915
        %v2948 = vpack.c.b16 %v2916, %v2916
        %v2949 = vpack.c.b16 %v2917, %v2917
        %v2950 = vpack.c.b16 %v2918, %v2918
        %v2951 = vpack.c.b16 %v2919, %v2919
        %v2952 = vpack.c.b16 %v2920, %v2920
        %v2953 = vpack.c.b16 %v2921, %v2921
        %v2954 = vpack.c.b16 %v2922, %v2922
        %v2955 = vpack.c.b16 %v2923, %v2923
        %v2956 = vpack.c.b16 %v2924, %v2924
        %v2957 = vpack.c.b16 %v2925, %v2925
        %v2958 = vpack.c.b16 %v2926, %v2926
        %2991 = vst [vmem:[%s306] sm:$0xf] %v2927
        %2992 = vst [vmem:[%s306 + $0x4] sm:$0xf] %v2928
        %2993 = vst [vmem:[%s306 + $0x8] sm:$0xf] %v2929
        %2994 = vst [vmem:[%s306 + $0xc] sm:$0xf] %v2930
        %2995 = vst [vmem:[%s306 + $0x10] sm:$0xf] %v2931
        %2996 = vst [vmem:[%s306 + $0x14] sm:$0xf] %v2932
        %2997 = vst [vmem:[%s306 + $0x18] sm:$0xf] %v2933
        %2998 = vst [vmem:[%s306 + $0x1c] sm:$0xf] %v2934
        %2999 = vst [vmem:[%s306 + $0x20] sm:$0xf] %v2935
        %3000 = vst [vmem:[%s306 + $0x24] sm:$0xf] %v2936
        %3001 = vst [vmem:[%s306 + $0x28] sm:$0xf] %v2937
        %3002 = vst [vmem:[%s306 + $0x2c] sm:$0xf] %v2938
        %3003 = vst [vmem:[%s306 + $0x30] sm:$0xf] %v2939
        %3004 = vst [vmem:[%s306 + $0x34] sm:$0xf] %v2940
        %3005 = vst [vmem:[%s306 + $0x38] sm:$0xf] %v2941
        %3006 = vst [vmem:[%s306 + $0x3c] sm:$0xf] %v2942
        %3007 = vst [vmem:[%s306 + $0x40] sm:$0xf] %v2943
        %3008 = vst [vmem:[%s306 + $0x44] sm:$0xf] %v2944
        %3009 = vst [vmem:[%s306 + $0x48] sm:$0xf] %v2945
        %3010 = vst [vmem:[%s306 + $0x4c] sm:$0xf] %v2946
        %3011 = vst [vmem:[%s306 + $0x50] sm:$0xf] %v2947
        %3012 = vst [vmem:[%s306 + $0x54] sm:$0xf] %v2948
        %3013 = vst [vmem:[%s306 + $0x58] sm:$0xf] %v2949
        %3014 = vst [vmem:[%s306 + $0x5c] sm:$0xf] %v2950
        %3015 = vst [vmem:[%s306 + $0x60] sm:$0xf] %v2951
        %3016 = vst [vmem:[%s306 + $0x64] sm:$0xf] %v2952
        %3017 = vst [vmem:[%s306 + $0x68] sm:$0xf] %v2953
        %3018 = vst [vmem:[%s306 + $0x6c] sm:$0xf] %v2954
        %3019 = vst [vmem:[%s306 + $0x70] sm:$0xf] %v2955
        %3020 = vst [vmem:[%s306 + $0x74] sm:$0xf] %v2956
        %3021 = vst [vmem:[%s306 + $0x78] sm:$0xf] %v2957
        %3022 = vst [vmem:[%s306 + $0x7c] sm:$0xf] %v2958
      $region44: #{_lambda_.6} parent=35 // pred_fallthru
        _
      %s3023 = smul.u32 32, %s20
      %p3024 = scmp.lt.s32.totalorder %s3023, 63
      %s3025 = scalar_select %p3024, %s3023, 63
      %p3026 = scmp.lt.s32.totalorder %s21, 0
      %s3027 = scalar_select %p3026, %s21, 0
      %s3028 = sadd.s32 %s3027, %s3025
      %s3029 = smul.addr %s3028, 4
      %s3030 = scalar_lea.vmem %s4, %s3029
      // Predicated region
      $region45: #{_lambda_.6} parent=35 // pred_check
        %p3031 = pneg %p162
      $region46: #{_lambda_.6} parent=35 // pred_check_branch
        %3033 = sbr.rel (%p3031) target = $region48
      $region47: #{_lambda_.6} parent=35 // pred_region
        %s3034 = smul.u32 32, %s20
      $region48: #{_lambda_.6} parent=35 // pred_fallthru
        _
    $region36: #{_lambda_.6} parent=5 // pred_fallthru
      _
    %p3035 = scmp.le.s32.totalorder 2, %s10
    // Predicated region
    $region49: #{_lambda_.6} parent=5 // pred_check
      %p3036 = pneg %p3035
    $region50: #{_lambda_.6} parent=5 // pred_check_branch
      %3038 = sbr.rel (%p3036) target = $region52
    $region51: #{_lambda_.6} parent=5 // pred_region
      %s3039 = ssub.s32 %s10, 2
      // Predicated region
      $region53: #{_lambda_.6} parent=51 // pred_check
        %p3040 = pneg %p168
      $region54: #{_lambda_.6} parent=51 // pred_check_branch
        %3042 = sbr.rel (%p3040) target = $region56
      $region55: #{_lambda_.6} parent=51 // pred_region
        %s3043 = smul.u32 32, %s23
        %p3044 = scmp.lt.s32.totalorder %s3043, 63
        %s3045 = scalar_select %p3044, %s3043, 63
        %p3046 = scmp.lt.s32.totalorder %s24, 0
        %s3047 = scalar_select %p3046, %s24, 0
        %s3048 = sadd.s32 %s3047, %s3045
        %s3049 = smul.addr %s3048, 4
        %s3050 = scalar_lea.vmem %s4, %s3049
      $region56: #{_lambda_.6} parent=51 // pred_fallthru
        _
    $region52: #{_lambda_.6} parent=5 // pred_fallthru
      _
  $region6: #{_lambda_.6} parent=0 // loop_footer
    %s14 = sadd.s32 1, %s10
  $region7: #{_lambda_.6} parent=0 // loop_footer_branch
    %9 = sbr.rel target = $region3
  $region8: #{_lambda_.6} parent=0 // loop_exit
    _

// kernel: _lambda_.7
$region0: #{_lambda_.7}
  #allocation0 [shape = 'u32[]', space=smem, size = 0x4, offset = 0x4, fixed_abs, tag = 'smem constant byte address 0x4 - core index']
  #allocation1 [shape = 'u32[144,128]{1,0:T(1,128)}', space=vmem, size = 0x12000, scoped, tag = 'internal scratch']
  #allocation2 [shape = 'f32[96,128]{1,0:T(8,128)}', space=vmem, size = 0xc000, scoped, tag = 'scratch operand']
  %s0 = inlined_call_operand.vmem [shape: bf16[96,1024], index: 0, kind: input, shape index: {}]
  %s1 = inlined_call_operand.vmem [shape: bf16[1024,128], index: 1, kind: input, shape index: {}]
  %s2 = inlined_call_operand.vmem [shape: f32[1,128], index: 2, kind: input, shape index: {}]
  %s3 = inlined_call_operand.vmem [shape: f32[1,128], index: 3, kind: input, shape index: {}]
  %s4 = inlined_call_operand.vmem [shape: bf16[96,128], index: 4, kind: output, shape index: {}]
  %s5 = sld [smem:[#allocation0]]
  $region34: #{_lambda_.7} parent=0
    _
  %s7 = ssub.s32 1, %s5
  %s8 = scalar_select 0, %s7, %s5
  // Predicated region
  $region2: #{_lambda_.7} parent=0 // pred_check
    _
  $region3: #{_lambda_.7} parent=0 // pred_check_branch
    %10 = sbr.rel (0) target = $region5
  $region4: #{_lambda_.7} parent=0 // pred_region
    _
  $region5: #{_lambda_.7} parent=0 // pred_fallthru
    _
  // Predicated region
  $region6: #{_lambda_.7} parent=0 // pred_check
    _
  $region7: #{_lambda_.7} parent=0 // pred_check_branch
    %12 = sbr.rel (0) target = $region9
  $region8: #{_lambda_.7} parent=0 // pred_region
    _
  $region9: #{_lambda_.7} parent=0 // pred_fallthru
    _
  // Predicated region
  $region10: #{_lambda_.7} parent=0 // pred_check
    _
  $region11: #{_lambda_.7} parent=0 // pred_check_branch
    %14 = sbr.rel (0) target = $region13
  $region12: #{_lambda_.7} parent=0 // pred_region
    _
  $region13: #{_lambda_.7} parent=0 // pred_fallthru
    _
  // Predicated region
  $region14: #{_lambda_.7} parent=0 // pred_check
    _
  $region15: #{_lambda_.7} parent=0 // pred_check_branch
    %16 = sbr.rel (0) target = $region17
  $region16: #{_lambda_.7} parent=0 // pred_region
    _
  $region17: #{_lambda_.7} parent=0 // pred_fallthru
    _
  %p18 = scmp.eq.s32.totalorder 0, 0
  // Predicated region
  $region18: #{_lambda_.7} parent=0 // pred_check
    %p19 = pneg %p18
  $region19: #{_lambda_.7} parent=0 // pred_check_branch
    %21 = sbr.rel (%p19) target = $region21
  $region20: #{_lambda_.7} parent=0 // pred_region
    %22 = vst [vmem:[#allocation2] sm:$0xff] 0.0
    %23 = vst [vmem:[#allocation2 + $0x8] sm:$0xff] 0.0
    %24 = vst [vmem:[#allocation2 + $0x10] sm:$0xff] 0.0
    %25 = vst [vmem:[#allocation2 + $0x18] sm:$0xff] 0.0
    %26 = vst [vmem:[#allocation2 + $0x20] sm:$0xff] 0.0
    %27 = vst [vmem:[#allocation2 + $0x28] sm:$0xff] 0.0
    %28 = vst [vmem:[#allocation2 + $0x30] sm:$0xff] 0.0
    %29 = vst [vmem:[#allocation2 + $0x38] sm:$0xff] 0.0
    %30 = vst [vmem:[#allocation2 + $0x40] sm:$0xff] 0.0
    %31 = vst [vmem:[#allocation2 + $0x48] sm:$0xff] 0.0
    %32 = vst [vmem:[#allocation2 + $0x50] sm:$0xff] 0.0
    %33 = vst [vmem:[#allocation2 + $0x58] sm:$0xff] 0.0
  $region21: #{_lambda_.7} parent=0 // pred_fallthru
    _
  %v34 = vld [vmem:[#allocation2] sm:$0xff]
  %v35 = vld [vmem:[#allocation2 + $0x8] sm:$0xff]
  %v36 = vld [vmem:[#allocation2 + $0x10] sm:$0xff]
  %v37 = vld [vmem:[#allocation2 + $0x18] sm:$0xff]
  %v38 = vld [vmem:[#allocation2 + $0x20] sm:$0xff]
  %v39 = vld [vmem:[#allocation2 + $0x28] sm:$0xff]
  %v40 = vld [vmem:[#allocation2 + $0x30] sm:$0xff]
  %v41 = vld [vmem:[#allocation2 + $0x38] sm:$0xff]
  %v42 = vld [vmem:[#allocation2 + $0x40] sm:$0xff]
  %v43 = vld [vmem:[#allocation2 + $0x48] sm:$0xff]
  %v44 = vld [vmem:[#allocation2 + $0x50] sm:$0xff]
  %v45 = vld [vmem:[#allocation2 + $0x58] sm:$0xff]
  %v46 = vld [vmem:[%s0] sm:$0xff]
  %v47 = vld [vmem:[%s0 + $0x8] sm:$0xff]
  %v48 = vld [vmem:[%s0 + $0x10] sm:$0xff]
  %v49 = vld [vmem:[%s0 + $0x18] sm:$0xff]
  %v50 = vld [vmem:[%s0 + $0x20] sm:$0xff]
  %v51 = vld [vmem:[%s0 + $0x28] sm:$0xff]
  %v52 = vld [vmem:[%s0 + $0x30] sm:$0xff]
  %v53 = vld [vmem:[%s0 + $0x38] sm:$0xff]
  %v54 = vld [vmem:[%s0 + $0x40] sm:$0xff]
  %v55 = vld [vmem:[%s0 + $0x48] sm:$0xff]
  %v56 = vld [vmem:[%s0 + $0x50] sm:$0xff]
  %v57 = vld [vmem:[%s0 + $0x58] sm:$0xff]
  %v58 = vld [vmem:[%s0 + $0x60] sm:$0xff]
  %v59 = vld [vmem:[%s0 + $0x68] sm:$0xff]
  %v60 = vld [vmem:[%s0 + $0x70] sm:$0xff]
  %v61 = vld [vmem:[%s0 + $0x78] sm:$0xff]
  %v62 = vld [vmem:[%s0 + $0x80] sm:$0xff]
  %v63 = vld [vmem:[%s0 + $0x88] sm:$0xff]
  %v64 = vld [vmem:[%s0 + $0x90] sm:$0xff]
  %v65 = vld [vmem:[%s0 + $0x98] sm:$0xff]
  %v66 = vld [vmem:[%s0 + $0xa0] sm:$0xff]
  %v67 = vld [vmem:[%s0 + $0xa8] sm:$0xff]
  %v68 = vld [vmem:[%s0 + $0xb0] sm:$0xff]
  %v69 = vld [vmem:[%s0 + $0xb8] sm:$0xff]
  %v70 = vld [vmem:[%s0 + $0xc0] sm:$0xff]
  %v71 = vld [vmem:[%s0 + $0xc8] sm:$0xff]
  %v72 = vld [vmem:[%s0 + $0xd0] sm:$0xff]
  %v73 = vld [vmem:[%s0 + $0xd8] sm:$0xff]
  %v74 = vld [vmem:[%s0 + $0xe0] sm:$0xff]
  %v75 = vld [vmem:[%s0 + $0xe8] sm:$0xff]
  %v76 = vld [vmem:[%s0 + $0xf0] sm:$0xff]
  %v77 = vld [vmem:[%s0 + $0xf8] sm:$0xff]
  %v78 = vld [vmem:[%s0 + $0x100] sm:$0xff]
  %v79 = vld [vmem:[%s0 + $0x108] sm:$0xff]
  %v80 = vld [vmem:[%s0 + $0x110] sm:$0xff]
  %v81 = vld [vmem:[%s0 + $0x118] sm:$0xff]
  %v82 = vld [vmem:[%s0 + $0x120] sm:$0xff]
  %v83 = vld [vmem:[%s0 + $0x128] sm:$0xff]
  %v84 = vld [vmem:[%s0 + $0x130] sm:$0xff]
  %v85 = vld [vmem:[%s0 + $0x138] sm:$0xff]
  %v86 = vld [vmem:[%s0 + $0x140] sm:$0xff]
  %v87 = vld [vmem:[%s0 + $0x148] sm:$0xff]
  %v88 = vld [vmem:[%s0 + $0x150] sm:$0xff]
  %v89 = vld [vmem:[%s0 + $0x158] sm:$0xff]
  %v90 = vld [vmem:[%s0 + $0x160] sm:$0xff]
  %v91 = vld [vmem:[%s0 + $0x168] sm:$0xff]
  %v92 = vld [vmem:[%s0 + $0x170] sm:$0xff]
  %v93 = vld [vmem:[%s0 + $0x178] sm:$0xff]
  %v94 = vld [vmem:[%s1] sm:$0xf]
  %v95 = vld [vmem:[%s1 + $0x4] sm:$0xf]
  %v96 = vld [vmem:[%s1 + $0x8] sm:$0xf]
  %v97 = vld [vmem:[%s1 + $0xc] sm:$0xf]
  %v98 = vld [vmem:[%s1 + $0x10] sm:$0xf]
  %v99 = vld [vmem:[%s1 + $0x14] sm:$0xf]
  %v100 = vld [vmem:[%s1 + $0x18] sm:$0xf]
  %v101 = vld [vmem:[%s1 + $0x1c] sm:$0xf]
  %v102 = vld [vmem:[%s1 + $0x20] sm:$0xf]
  %v103 = vld [vmem:[%s1 + $0x24] sm:$0xf]
  %v104 = vld [vmem:[%s1 + $0x28] sm:$0xf]
  %v105 = vld [vmem:[%s1 + $0x2c] sm:$0xf]
  %v106 = vld [vmem:[%s1 + $0x30] sm:$0xf]
  %v107 = vld [vmem:[%s1 + $0x34] sm:$0xf]
  %v108 = vld [vmem:[%s1 + $0x38] sm:$0xf]
  %v109 = vld [vmem:[%s1 + $0x3c] sm:$0xf]
  %v110 = vld [vmem:[%s1 + $0x40] sm:$0xf]
  %v111 = vld [vmem:[%s1 + $0x44] sm:$0xf]
  %v112 = vld [vmem:[%s1 + $0x48] sm:$0xf]
  %v113 = vld [vmem:[%s1 + $0x4c] sm:$0xf]
  %v114 = vld [vmem:[%s1 + $0x50] sm:$0xf]
  %v115 = vld [vmem:[%s1 + $0x54] sm:$0xf]
  %v116 = vld [vmem:[%s1 + $0x58] sm:$0xf]
  %v117 = vld [vmem:[%s1 + $0x5c] sm:$0xf]
  %v118 = vld [vmem:[%s1 + $0x60] sm:$0xf]
  %v119 = vld [vmem:[%s1 + $0x64] sm:$0xf]
  %v120 = vld [vmem:[%s1 + $0x68] sm:$0xf]
  %v121 = vld [vmem:[%s1 + $0x6c] sm:$0xf]
  %v122 = vld [vmem:[%s1 + $0x70] sm:$0xf]
  %v123 = vld [vmem:[%s1 + $0x74] sm:$0xf]
  %v124 = vld [vmem:[%s1 + $0x78] sm:$0xf]
  %v125 = vld [vmem:[%s1 + $0x7c] sm:$0xf]
  %v126 = vld [vmem:[%s1 + $0x80] sm:$0xf]
  %v127 = vld [vmem:[%s1 + $0x84] sm:$0xf]
  %v128 = vld [vmem:[%s1 + $0x88] sm:$0xf]
  %v129 = vld [vmem:[%s1 + $0x8c] sm:$0xf]
  %v130 = vld [vmem:[%s1 + $0x90] sm:$0xf]
  %v131 = vld [vmem:[%s1 + $0x94] sm:$0xf]
  %v132 = vld [vmem:[%s1 + $0x98] sm:$0xf]
  %v133 = vld [vmem:[%s1 + $0x9c] sm:$0xf]
  %v134 = vld [vmem:[%s1 + $0xa0] sm:$0xf]
  %v135 = vld [vmem:[%s1 + $0xa4] sm:$0xf]
  %v136 = vld [vmem:[%s1 + $0xa8] sm:$0xf]
  %v137 = vld [vmem:[%s1 + $0xac] sm:$0xf]
  %v138 = vld [vmem:[%s1 + $0xb0] sm:$0xf]
  %v139 = vld [vmem:[%s1 + $0xb4] sm:$0xf]
  %v140 = vld [vmem:[%s1 + $0xb8] sm:$0xf]
  %v141 = vld [vmem:[%s1 + $0xbc] sm:$0xf]
  %v142 = vld [vmem:[%s1 + $0xc0] sm:$0xf]
  %v143 = vld [vmem:[%s1 + $0xc4] sm:$0xf]
  %v144 = vld [vmem:[%s1 + $0xc8] sm:$0xf]
  %v145 = vld [vmem:[%s1 + $0xcc] sm:$0xf]
  %v146 = vld [vmem:[%s1 + $0xd0] sm:$0xf]
  %v147 = vld [vmem:[%s1 + $0xd4] sm:$0xf]
  %v148 = vld [vmem:[%s1 + $0xd8] sm:$0xf]
  %v149 = vld [vmem:[%s1 + $0xdc] sm:$0xf]
  %v150 = vld [vmem:[%s1 + $0xe0] sm:$0xf]
  %v151 = vld [vmem:[%s1 + $0xe4] sm:$0xf]
  %v152 = vld [vmem:[%s1 + $0xe8] sm:$0xf]
  %v153 = vld [vmem:[%s1 + $0xec] sm:$0xf]
  %v154 = vld [vmem:[%s1 + $0xf0] sm:$0xf]
  %v155 = vld [vmem:[%s1 + $0xf4] sm:$0xf]
  %v156 = vld [vmem:[%s1 + $0xf8] sm:$0xf]
  %v157 = vld [vmem:[%s1 + $0xfc] sm:$0xf]
  %v158 = vld [vmem:[%s1 + $0x100] sm:$0xf]
  %v159 = vld [vmem:[%s1 + $0x104] sm:$0xf]
  %v160 = vld [vmem:[%s1 + $0x108] sm:$0xf]
  %v161 = vld [vmem:[%s1 + $0x10c] sm:$0xf]
  %v162 = vld [vmem:[%s1 + $0x110] sm:$0xf]
  %v163 = vld [vmem:[%s1 + $0x114] sm:$0xf]
  %v164 = vld [vmem:[%s1 + $0x118] sm:$0xf]
  %v165 = vld [vmem:[%s1 + $0x11c] sm:$0xf]
  %v166 = vld [vmem:[%s1 + $0x120] sm:$0xf]
  %v167 = vld [vmem:[%s1 + $0x124] sm:$0xf]
  %v168 = vld [vmem:[%s1 + $0x128] sm:$0xf]
  %v169 = vld [vmem:[%s1 + $0x12c] sm:$0xf]
  %v170 = vld [vmem:[%s1 + $0x130] sm:$0xf]
  %v171 = vld [vmem:[%s1 + $0x134] sm:$0xf]
  %v172 = vld [vmem:[%s1 + $0x138] sm:$0xf]
  %v173 = vld [vmem:[%s1 + $0x13c] sm:$0xf]
  %v174 = vld [vmem:[%s1 + $0x140] sm:$0xf]
  %v175 = vld [vmem:[%s1 + $0x144] sm:$0xf]
  %v176 = vld [vmem:[%s1 + $0x148] sm:$0xf]
  %v177 = vld [vmem:[%s1 + $0x14c] sm:$0xf]
  %v178 = vld [vmem:[%s1 + $0x150] sm:$0xf]
  %v179 = vld [vmem:[%s1 + $0x154] sm:$0xf]
  %v180 = vld [vmem:[%s1 + $0x158] sm:$0xf]
  %v181 = vld [vmem:[%s1 + $0x15c] sm:$0xf]
  %v182 = vld [vmem:[%s1 + $0x160] sm:$0xf]
  %v183 = vld [vmem:[%s1 + $0x164] sm:$0xf]
  %v184 = vld [vmem:[%s1 + $0x168] sm:$0xf]
  %v185 = vld [vmem:[%s1 + $0x16c] sm:$0xf]
  %v186 = vld [vmem:[%s1 + $0x170] sm:$0xf]
  %v187 = vld [vmem:[%s1 + $0x174] sm:$0xf]
  %v188 = vld [vmem:[%s1 + $0x178] sm:$0xf]
  %v189 = vld [vmem:[%s1 + $0x17c] sm:$0xf]
  %v190 = vld [vmem:[%s1 + $0x180] sm:$0xf]
  %v191 = vld [vmem:[%s1 + $0x184] sm:$0xf]
  %v192 = vld [vmem:[%s1 + $0x188] sm:$0xf]
  %v193 = vld [vmem:[%s1 + $0x18c] sm:$0xf]
  %v194 = vld [vmem:[%s1 + $0x190] sm:$0xf]
  %v195 = vld [vmem:[%s1 + $0x194] sm:$0xf]
  %v196 = vld [vmem:[%s1 + $0x198] sm:$0xf]
  %v197 = vld [vmem:[%s1 + $0x19c] sm:$0xf]
  %v198 = vld [vmem:[%s1 + $0x1a0] sm:$0xf]
  %v199 = vld [vmem:[%s1 + $0x1a4] sm:$0xf]
  %v200 = vld [vmem:[%s1 + $0x1a8] sm:$0xf]
  %v201 = vld [vmem:[%s1 + $0x1ac] sm:$0xf]
  %v202 = vld [vmem:[%s1 + $0x1b0] sm:$0xf]
  %v203 = vld [vmem:[%s1 + $0x1b4] sm:$0xf]
  %v204 = vld [vmem:[%s1 + $0x1b8] sm:$0xf]
  %v205 = vld [vmem:[%s1 + $0x1bc] sm:$0xf]
  %v206 = vld [vmem:[%s1 + $0x1c0] sm:$0xf]
  %v207 = vld [vmem:[%s1 + $0x1c4] sm:$0xf]
  %v208 = vld [vmem:[%s1 + $0x1c8] sm:$0xf]
  %v209 = vld [vmem:[%s1 + $0x1cc] sm:$0xf]
  %v210 = vld [vmem:[%s1 + $0x1d0] sm:$0xf]
  %v211 = vld [vmem:[%s1 + $0x1d4] sm:$0xf]
  %v212 = vld [vmem:[%s1 + $0x1d8] sm:$0xf]
  %v213 = vld [vmem:[%s1 + $0x1dc] sm:$0xf]
  %v214 = vld [vmem:[%s1 + $0x1e0] sm:$0xf]
  %v215 = vld [vmem:[%s1 + $0x1e4] sm:$0xf]
  %v216 = vld [vmem:[%s1 + $0x1e8] sm:$0xf]
  %v217 = vld [vmem:[%s1 + $0x1ec] sm:$0xf]
  %v218 = vld [vmem:[%s1 + $0x1f0] sm:$0xf]
  %v219 = vld [vmem:[%s1 + $0x1f4] sm:$0xf]
  %v220 = vld [vmem:[%s1 + $0x1f8] sm:$0xf]
  %v221 = vld [vmem:[%s1 + $0x1fc] sm:$0xf]
  %v270 = vunpack.c.l.b16 %v46
  %v271 = vunpack.c.h.b16 %v46
  %v272 = vunpack.c.l.b16 %v47
  %v273 = vunpack.c.h.b16 %v47
  %v274 = vunpack.c.l.b16 %v48
  %v275 = vunpack.c.h.b16 %v48
  %v276 = vunpack.c.l.b16 %v49
  %v277 = vunpack.c.h.b16 %v49
  %v278 = vunpack.c.l.b16 %v50
  %v279 = vunpack.c.h.b16 %v50
  %v280 = vunpack.c.l.b16 %v51
  %v281 = vunpack.c.h.b16 %v51
  %v282 = vunpack.c.l.b16 %v52
  %v283 = vunpack.c.h.b16 %v52
  %v284 = vunpack.c.l.b16 %v53
  %v285 = vunpack.c.h.b16 %v53
  %v286 = vunpack.c.l.b16 %v54
  %v287 = vunpack.c.h.b16 %v54
  %v288 = vunpack.c.l.b16 %v55
  %v289 = vunpack.c.h.b16 %v55
  %v290 = vunpack.c.l.b16 %v56
  %v291 = vunpack.c.h.b16 %v56
  %v292 = vunpack.c.l.b16 %v57
  %v293 = vunpack.c.h.b16 %v57
  %v294 = vunpack.c.l.b16 %v58
  %v295 = vunpack.c.h.b16 %v58
  %v296 = vunpack.c.l.b16 %v59
  %v297 = vunpack.c.h.b16 %v59
  %v298 = vunpack.c.l.b16 %v60
  %v299 = vunpack.c.h.b16 %v60
  %v300 = vunpack.c.l.b16 %v61
  %v301 = vunpack.c.h.b16 %v61
  %v302 = vunpack.c.l.b16 %v62
  %v303 = vunpack.c.h.b16 %v62
  %v304 = vunpack.c.l.b16 %v63
  %v305 = vunpack.c.h.b16 %v63
  %v306 = vunpack.c.l.b16 %v64
  %v307 = vunpack.c.h.b16 %v64
  %v308 = vunpack.c.l.b16 %v65
  %v309 = vunpack.c.h.b16 %v65
  %v310 = vunpack.c.l.b16 %v66
  %v311 = vunpack.c.h.b16 %v66
  %v312 = vunpack.c.l.b16 %v67
  %v313 = vunpack.c.h.b16 %v67
  %v314 = vunpack.c.l.b16 %v68
  %v315 = vunpack.c.h.b16 %v68
  %v316 = vunpack.c.l.b16 %v69
  %v317 = vunpack.c.h.b16 %v69
  %v318 = vunpack.c.l.b16 %v70
  %v319 = vunpack.c.h.b16 %v70
  %v320 = vunpack.c.l.b16 %v71
  %v321 = vunpack.c.h.b16 %v71
  %v322 = vunpack.c.l.b16 %v72
  %v323 = vunpack.c.h.b16 %v72
  %v324 = vunpack.c.l.b16 %v73
  %v325 = vunpack.c.h.b16 %v73
  %v326 = vunpack.c.l.b16 %v74
  %v327 = vunpack.c.h.b16 %v74
  %v328 = vunpack.c.l.b16 %v75
  %v329 = vunpack.c.h.b16 %v75
  %v330 = vunpack.c.l.b16 %v76
  %v331 = vunpack.c.h.b16 %v76
  %v332 = vunpack.c.l.b16 %v77
  %v333 = vunpack.c.h.b16 %v77
  %v334 = vunpack.c.l.b16 %v78
  %v335 = vunpack.c.h.b16 %v78
  %v336 = vunpack.c.l.b16 %v79
  %v337 = vunpack.c.h.b16 %v79
  %v338 = vunpack.c.l.b16 %v80
  %v339 = vunpack.c.h.b16 %v80
  %v340 = vunpack.c.l.b16 %v81
  %v341 = vunpack.c.h.b16 %v81
  %v342 = vunpack.c.l.b16 %v82
  %v343 = vunpack.c.h.b16 %v82
  %v344 = vunpack.c.l.b16 %v83
  %v345 = vunpack.c.h.b16 %v83
  %v346 = vunpack.c.l.b16 %v84
  %v347 = vunpack.c.h.b16 %v84
  %v348 = vunpack.c.l.b16 %v85
  %v349 = vunpack.c.h.b16 %v85
  %v350 = vunpack.c.l.b16 %v86
  %v351 = vunpack.c.h.b16 %v86
  %v352 = vunpack.c.l.b16 %v87
  %v353 = vunpack.c.h.b16 %v87
  %v354 = vunpack.c.l.b16 %v88
  %v355 = vunpack.c.h.b16 %v88
  %v356 = vunpack.c.l.b16 %v89
  %v357 = vunpack.c.h.b16 %v89
  %v358 = vunpack.c.l.b16 %v90
  %v359 = vunpack.c.h.b16 %v90
  %v360 = vunpack.c.l.b16 %v91
  %v361 = vunpack.c.h.b16 %v91
  %v362 = vunpack.c.l.b16 %v92
  %v363 = vunpack.c.h.b16 %v92
  %v364 = vunpack.c.l.b16 %v93
  %v365 = vunpack.c.h.b16 %v93
  %v366 = vpack.c.b16 %v278, %v270
  %v367 = vpack.c.b16 %v279, %v271
  %v368 = vpack.c.b16 %v280, %v272
  %v369 = vpack.c.b16 %v281, %v273
  %v370 = vpack.c.b16 %v282, %v274
  %v371 = vpack.c.b16 %v283, %v275
  %v372 = vpack.c.b16 %v284, %v276
  %v373 = vpack.c.b16 %v285, %v277
  %v374 = vpack.c.b16 %v294, %v286
  %v375 = vpack.c.b16 %v295, %v287
  %v376 = vpack.c.b16 %v296, %v288
  %v377 = vpack.c.b16 %v297, %v289
  %v378 = vpack.c.b16 %v298, %v290
  %v379 = vpack.c.b16 %v299, %v291
  %v380 = vpack.c.b16 %v300, %v292
  %v381 = vpack.c.b16 %v301, %v293
  %v382 = vpack.c.b16 %v310, %v302
  %v383 = vpack.c.b16 %v311, %v303
  %v384 = vpack.c.b16 %v312, %v304
  %v385 = vpack.c.b16 %v313, %v305
  %v386 = vpack.c.b16 %v314, %v306
  %v387 = vpack.c.b16 %v315, %v307
  %v388 = vpack.c.b16 %v316, %v308
  %v389 = vpack.c.b16 %v317, %v309
  %v390 = vpack.c.b16 %v326, %v318
  %v391 = vpack.c.b16 %v327, %v319
  %v392 = vpack.c.b16 %v328, %v320
  %v393 = vpack.c.b16 %v329, %v321
  %v394 = vpack.c.b16 %v330, %v322
  %v395 = vpack.c.b16 %v331, %v323
  %v396 = vpack.c.b16 %v332, %v324
  %v397 = vpack.c.b16 %v333, %v325
  %v398 = vpack.c.b16 %v342, %v334
  %v399 = vpack.c.b16 %v343, %v335
  %v400 = vpack.c.b16 %v344, %v336
  %v401 = vpack.c.b16 %v345, %v337
  %v402 = vpack.c.b16 %v346, %v338
  %v403 = vpack.c.b16 %v347, %v339
  %v404 = vpack.c.b16 %v348, %v340
  %v405 = vpack.c.b16 %v349, %v341
  %v406 = vpack.c.b16 %v358, %v350
  %v407 = vpack.c.b16 %v359, %v351
  %v408 = vpack.c.b16 %v360, %v352
  %v409 = vpack.c.b16 %v361, %v353
  %v410 = vpack.c.b16 %v362, %v354
  %v411 = vpack.c.b16 %v363, %v355
  %v412 = vpack.c.b16 %v364, %v356
  %v413 = vpack.c.b16 %v365, %v357
  %v590 = vunpack.c.l.b16 %v94
  %v591 = vunpack.c.l.b16 %v95
  %v592 = vunpack.c.l.b16 %v96
  %v593 = vunpack.c.l.b16 %v97
  %v594 = vunpack.c.l.b16 %v98
  %v595 = vunpack.c.l.b16 %v99
  %v596 = vunpack.c.l.b16 %v100
  %v597 = vunpack.c.l.b16 %v101
  %v598 = vunpack.c.l.b16 %v102
  %v599 = vunpack.c.l.b16 %v103
  %v600 = vunpack.c.l.b16 %v104
  %v601 = vunpack.c.l.b16 %v105
  %v602 = vunpack.c.l.b16 %v106
  %v603 = vunpack.c.l.b16 %v107
  %v604 = vunpack.c.l.b16 %v108
  %v605 = vunpack.c.l.b16 %v109
  %v606 = vunpack.c.l.b16 %v110
  %v607 = vunpack.c.l.b16 %v111
  %v608 = vunpack.c.l.b16 %v112
  %v609 = vunpack.c.l.b16 %v113
  %v610 = vunpack.c.l.b16 %v114
  %v611 = vunpack.c.l.b16 %v115
  %v612 = vunpack.c.l.b16 %v116
  %v613 = vunpack.c.l.b16 %v117
  %v614 = vunpack.c.l.b16 %v118
  %v615 = vunpack.c.l.b16 %v119
  %v616 = vunpack.c.l.b16 %v120
  %v617 = vunpack.c.l.b16 %v121
  %v618 = vunpack.c.l.b16 %v122
  %v619 = vunpack.c.l.b16 %v123
  %v620 = vunpack.c.l.b16 %v124
  %v621 = vunpack.c.l.b16 %v125
  %v622 = vunpack.c.l.b16 %v126
  %v623 = vunpack.c.l.b16 %v127
  %v624 = vunpack.c.l.b16 %v128
  %v625 = vunpack.c.l.b16 %v129
  %v626 = vunpack.c.l.b16 %v130
  %v627 = vunpack.c.l.b16 %v131
  %v628 = vunpack.c.l.b16 %v132
  %v629 = vunpack.c.l.b16 %v133
  %v630 = vunpack.c.l.b16 %v134
  %v631 = vunpack.c.l.b16 %v135
  %v632 = vunpack.c.l.b16 %v136
  %v633 = vunpack.c.l.b16 %v137
  %v634 = vunpack.c.l.b16 %v138
  %v635 = vunpack.c.l.b16 %v139
  %v636 = vunpack.c.l.b16 %v140
  %v637 = vunpack.c.l.b16 %v141
  %v638 = vunpack.c.l.b16 %v142
  %v639 = vunpack.c.l.b16 %v143
  %v640 = vunpack.c.l.b16 %v144
  %v641 = vunpack.c.l.b16 %v145
  %v642 = vunpack.c.l.b16 %v146
  %v643 = vunpack.c.l.b16 %v147
  %v644 = vunpack.c.l.b16 %v148
  %v645 = vunpack.c.l.b16 %v149
  %v646 = vunpack.c.l.b16 %v150
  %v647 = vunpack.c.l.b16 %v151
  %v648 = vunpack.c.l.b16 %v152
  %v649 = vunpack.c.l.b16 %v153
  %v650 = vunpack.c.l.b16 %v154
  %v651 = vunpack.c.l.b16 %v155
  %v652 = vunpack.c.l.b16 %v156
  %v653 = vunpack.c.l.b16 %v157
  %v654 = vunpack.c.l.b16 %v158
  %v655 = vunpack.c.l.b16 %v159
  %v656 = vunpack.c.l.b16 %v160
  %v657 = vunpack.c.l.b16 %v161
  %v658 = vunpack.c.l.b16 %v162
  %v659 = vunpack.c.l.b16 %v163
  %v660 = vunpack.c.l.b16 %v164
  %v661 = vunpack.c.l.b16 %v165
  %v662 = vunpack.c.l.b16 %v166
  %v663 = vunpack.c.l.b16 %v167
  %v664 = vunpack.c.l.b16 %v168
  %v665 = vunpack.c.l.b16 %v169
  %v666 = vunpack.c.l.b16 %v170
  %v667 = vunpack.c.l.b16 %v171
  %v668 = vunpack.c.l.b16 %v172
  %v669 = vunpack.c.l.b16 %v173
  %v670 = vunpack.c.l.b16 %v174
  %v671 = vunpack.c.l.b16 %v175
  %v672 = vunpack.c.l.b16 %v176
  %v673 = vunpack.c.l.b16 %v177
  %v674 = vunpack.c.l.b16 %v178
  %v675 = vunpack.c.l.b16 %v179
  %v676 = vunpack.c.l.b16 %v180
  %v677 = vunpack.c.l.b16 %v181
  %v678 = vunpack.c.l.b16 %v182
  %v679 = vunpack.c.l.b16 %v183
  %v680 = vunpack.c.l.b16 %v184
  %v681 = vunpack.c.l.b16 %v185
  %v682 = vunpack.c.l.b16 %v186
  %v683 = vunpack.c.l.b16 %v187
  %v684 = vunpack.c.l.b16 %v188
  %v685 = vunpack.c.l.b16 %v189
  %v686 = vunpack.c.l.b16 %v190
  %v687 = vunpack.c.l.b16 %v191
  %v688 = vunpack.c.l.b16 %v192
  %v689 = vunpack.c.l.b16 %v193
  %v690 = vunpack.c.l.b16 %v194
  %v691 = vunpack.c.l.b16 %v195
  %v692 = vunpack.c.l.b16 %v196
  %v693 = vunpack.c.l.b16 %v197
  %v694 = vunpack.c.l.b16 %v198
  %v695 = vunpack.c.l.b16 %v199
  %v696 = vunpack.c.l.b16 %v200
  %v697 = vunpack.c.l.b16 %v201
  %v698 = vunpack.c.l.b16 %v202
  %v699 = vunpack.c.l.b16 %v203
  %v700 = vunpack.c.l.b16 %v204
  %v701 = vunpack.c.l.b16 %v205
  %v702 = vunpack.c.l.b16 %v206
  %v703 = vunpack.c.l.b16 %v207
  %v704 = vunpack.c.l.b16 %v208
  %v705 = vunpack.c.l.b16 %v209
  %v706 = vunpack.c.l.b16 %v210
  %v707 = vunpack.c.l.b16 %v211
  %v708 = vunpack.c.l.b16 %v212
  %v709 = vunpack.c.l.b16 %v213
  %v710 = vunpack.c.l.b16 %v214
  %v711 = vunpack.c.l.b16 %v215
  %v712 = vunpack.c.l.b16 %v216
  %v713 = vunpack.c.l.b16 %v217
  %v714 = vunpack.c.l.b16 %v218
  %v715 = vunpack.c.l.b16 %v219
  %v716 = vunpack.c.l.b16 %v220
  %v717 = vunpack.c.l.b16 %v221
  %v718 = vpack.c.b16 %v591, %v590
  %v719 = vpack.c.b16 %v593, %v592
  %v720 = vpack.c.b16 %v595, %v594
  %v721 = vpack.c.b16 %v597, %v596
  %v722 = vpack.c.b16 %v599, %v598
  %v723 = vpack.c.b16 %v601, %v600
  %v724 = vpack.c.b16 %v603, %v602
  %v725 = vpack.c.b16 %v605, %v604
  %v726 = vpack.c.b16 %v607, %v606
  %v727 = vpack.c.b16 %v609, %v608
  %v728 = vpack.c.b16 %v611, %v610
  %v729 = vpack.c.b16 %v613, %v612
  %v730 = vpack.c.b16 %v615, %v614
  %v731 = vpack.c.b16 %v617, %v616
  %v732 = vpack.c.b16 %v619, %v618
  %v733 = vpack.c.b16 %v621, %v620
  %v734 = vpack.c.b16 %v623, %v622
  %v735 = vpack.c.b16 %v625, %v624
  %v736 = vpack.c.b16 %v627, %v626
  %v737 = vpack.c.b16 %v629, %v628
  %v738 = vpack.c.b16 %v631, %v630
  %v739 = vpack.c.b16 %v633, %v632
  %v740 = vpack.c.b16 %v635, %v634
  %v741 = vpack.c.b16 %v637, %v636
  %v742 = vpack.c.b16 %v639, %v638
  %v743 = vpack.c.b16 %v641, %v640
  %v744 = vpack.c.b16 %v643, %v642
  %v745 = vpack.c.b16 %v645, %v644
  %v746 = vpack.c.b16 %v647, %v646
  %v747 = vpack.c.b16 %v649, %v648
  %v748 = vpack.c.b16 %v651, %v650
  %v749 = vpack.c.b16 %v653, %v652
  %v750 = vpack.c.b16 %v655, %v654
  %v751 = vpack.c.b16 %v657, %v656
  %v752 = vpack.c.b16 %v659, %v658
  %v753 = vpack.c.b16 %v661, %v660
  %v754 = vpack.c.b16 %v663, %v662
  %v755 = vpack.c.b16 %v665, %v664
  %v756 = vpack.c.b16 %v667, %v666
  %v757 = vpack.c.b16 %v669, %v668
  %v758 = vpack.c.b16 %v671, %v670
  %v759 = vpack.c.b16 %v673, %v672
  %v760 = vpack.c.b16 %v675, %v674
  %v761 = vpack.c.b16 %v677, %v676
  %v762 = vpack.c.b16 %v679, %v678
  %v763 = vpack.c.b16 %v681, %v680
  %v764 = vpack.c.b16 %v683, %v682
  %v765 = vpack.c.b16 %v685, %v684
  %v766 = vpack.c.b16 %v687, %v686
  %v767 = vpack.c.b16 %v689, %v688
  %v768 = vpack.c.b16 %v691, %v690
  %v769 = vpack.c.b16 %v693, %v692
  %v770 = vpack.c.b16 %v695, %v694
  %v771 = vpack.c.b16 %v697, %v696
  %v772 = vpack.c.b16 %v699, %v698
  %v773 = vpack.c.b16 %v701, %v700
  %v774 = vpack.c.b16 %v703, %v702
  %v775 = vpack.c.b16 %v705, %v704
  %v776 = vpack.c.b16 %v707, %v706
  %v777 = vpack.c.b16 %v709, %v708
  %v778 = vpack.c.b16 %v711, %v710
  %v779 = vpack.c.b16 %v713, %v712
  %v780 = vpack.c.b16 %v715, %v714
  %v781 = vpack.c.b16 %v717, %v716
  %846 = vmatprep.subr.bf16.mxu0 0
  %847 = vmatpush1.bf16.msra.mxu0 %v718
  %848 = vmatprep.subr.bf16.mxu0 0
  %849 = vmatpush1.bf16.msra.mxu0 %v719
  %850 = vmatprep.subr.bf16.mxu0 0
  %851 = vmatpush1.bf16.msra.mxu0 %v720
  %852 = vmatprep.subr.bf16.mxu0 0
  %853 = vmatpush1.bf16.msra.mxu0 %v721
  %854 = vmatprep.subr.bf16.mxu0 0
  %855 = vmatpush1.bf16.msra.mxu0 %v722
  %856 = vmatprep.subr.bf16.mxu0 0
  %857 = vmatpush1.bf16.msra.mxu0 %v723
  %858 = vmatprep.subr.bf16.mxu0 0
  %859 = vmatpush1.bf16.msra.mxu0 %v724
  %860 = vmatprep.subr.bf16.mxu0 0
  %861 = vmatpush1.bf16.msra.mxu0 %v725
  %862 = vmatprep.subr.bf16.mxu0 0
  %863 = vmatpush1.bf16.msra.mxu0 %v726
  %864 = vmatprep.subr.bf16.mxu0 0
  %865 = vmatpush1.bf16.msra.mxu0 %v727
  %866 = vmatprep.subr.bf16.mxu0 0
  %867 = vmatpush1.bf16.msra.mxu0 %v728
  %868 = vmatprep.subr.bf16.mxu0 0
  %869 = vmatpush1.bf16.msra.mxu0 %v729
  %870 = vmatprep.subr.bf16.mxu0 0
  %871 = vmatpush1.bf16.msra.mxu0 %v730
  %872 = vmatprep.subr.bf16.mxu0 0
  %873 = vmatpush1.bf16.msra.mxu0 %v731
  %874 = vmatprep.subr.bf16.mxu0 0
  %875 = vmatpush1.bf16.msra.mxu0 %v732
  %876 = vmatprep.subr.bf16.mxu0 0
  %877 = vmatpush1.bf16.msra.mxu0 %v733
  %878 = vmatprep.mubr.bf16.mxu0 %v367
  %879 = vmatmul.mubr.bf16.gmra.mrb[0].mxu0 %v366
  %v880 = vpop.f32.mrb[0].mxu0
  %v881 = vadd.f32 0.0, %v880
  %v882 = vpop.f32.mrb[0].mxu0
  %v883 = vpop.f32.mrb[0].mxu0
  %v884 = vadd.f32 0.0, %v883
  %v885 = vpop.f32.mrb[0].mxu0
  %886 = vmatprep.mubr.bf16.mxu0 %v375
  %887 = vmatmul.mubr.bf16.gmra.mrb[0].mxu0 %v374
  %v888 = vpop.f32.mrb[0].mxu0
  %v889 = vadd.f32 0.0, %v888
  %v890 = vpop.f32.mrb[0].mxu0
  %v891 = vpop.f32.mrb[0].mxu0
  %v892 = vadd.f32 0.0, %v891
  %v893 = vpop.f32.mrb[0].mxu0
  %894 = vmatprep.mubr.bf16.mxu0 %v383
  %895 = vmatmul.mubr.bf16.gmra.mrb[0].mxu0 %v382
  %v896 = vpop.f32.mrb[0].mxu0
  %v897 = vadd.f32 0.0, %v896
  %v898 = vpop.f32.mrb[0].mxu0
  %v899 = vpop.f32.mrb[0].mxu0
  %v900 = vadd.f32 0.0, %v899
  %v901 = vpop.f32.mrb[0].mxu0
  %902 = vmatprep.mubr.bf16.mxu0 %v391
  %903 = vmatmul.mubr.bf16.gmra.mrb[0].mxu0 %v390
  %v904 = vpop.f32.mrb[0].mxu0
  %v905 = vadd.f32 0.0, %v904
  %v906 = vpop.f32.mrb[0].mxu0
  %v907 = vpop.f32.mrb[0].mxu0
  %v908 = vadd.f32 0.0, %v907
  %v909 = vpop.f32.mrb[0].mxu0
  %910 = vmatprep.mubr.bf16.mxu0 %v399
  %911 = vmatmul.mubr.bf16.gmra.mrb[0].mxu0 %v398
  %v912 = vpop.f32.mrb[0].mxu0
  %v913 = vadd.f32 0.0, %v912
  %v914 = vpop.f32.mrb[0].mxu0
  %v915 = vpop.f32.mrb[0].mxu0
  %v916 = vadd.f32 0.0, %v915
  %v917 = vpop.f32.mrb[0].mxu0
  %918 = vmatprep.mubr.bf16.mxu0 %v407
  %919 = vmatmul.mubr.bf16.gmra.mrb[0].mxu0 %v406
  %v920 = vpop.f32.mrb[0].mxu0
  %v921 = vadd.f32 0.0, %v920
  %v922 = vpop.f32.mrb[0].mxu0
  %v923 = vpop.f32.mrb[0].mxu0
  %v924 = vadd.f32 0.0, %v923
  %v925 = vpop.f32.mrb[0].mxu0
  %926 = vdwg.mxu0
  %927 = vmatprep.subr.bf16.mxu0 0
  %928 = vmatpush1.bf16.msra.mxu0 %v734
  %929 = vmatprep.subr.bf16.mxu0 0
  %930 = vmatpush1.bf16.msra.mxu0 %v735
  %931 = vmatprep.subr.bf16.mxu0 0
  %932 = vmatpush1.bf16.msra.mxu0 %v736
  %933 = vmatprep.subr.bf16.mxu0 0
  %934 = vmatpush1.bf16.msra.mxu0 %v737
  %935 = vmatprep.subr.bf16.mxu0 0
  %936 = vmatpush1.bf16.msra.mxu0 %v738
  %937 = vmatprep.subr.bf16.mxu0 0
  %938 = vmatpush1.bf16.msra.mxu0 %v739
  %939 = vmatprep.subr.bf16.mxu0 0
  %940 = vmatpush1.bf16.msra.mxu0 %v740
  %941 = vmatprep.subr.bf16.mxu0 0
  %942 = vmatpush1.bf16.msra.mxu0 %v741
  %943 = vmatprep.subr.bf16.mxu0 0
  %944 = vmatpush1.bf16.msra.mxu0 %v742
  %945 = vmatprep.subr.bf16.mxu0 0
  %946 = vmatpush1.bf16.msra.mxu0 %v743
  %947 = vmatprep.subr.bf16.mxu0 0
  %948 = vmatpush1.bf16.msra.mxu0 %v744
  %949 = vmatprep.subr.bf16.mxu0 0
  %950 = vmatpush1.bf16.msra.mxu0 %v745
  %951 = vmatprep.subr.bf16.mxu0 0
  %952 = vmatpush1.bf16.msra.mxu0 %v746
  %953 = vmatprep.subr.bf16.mxu0 0
  %954 = vmatpush1.bf16.msra.mxu0 %v747
  %955 = vmatprep.subr.bf16.mxu0 0
  %956 = vmatpush1.bf16.msra.mxu0 %v748
  %957 = vmatprep.subr.bf16.mxu0 0
  %958 = vmatpush1.bf16.msra.mxu0 %v749
  %959 = vmatprep.mubr.bf16.mxu0 %v369
  %960 = vmatmul.mubr.bf16.gmra.mrb[0].mxu0 %v368
  %v961 = vpop.f32.mrb[0].mxu0
  %v962 = vadd.f32 %v881, %v961
  %v963 = vpop.f32.mrb[0].mxu0
  %v964 = vpop.f32.mrb[0].mxu0
  %v965 = vadd.f32 %v884, %v964
  %v966 = vpop.f32.mrb[0].mxu0
  %967 = vmatprep.mubr.bf16.mxu0 %v377
  %968 = vmatmul.mubr.bf16.gmra.mrb[0].mxu0 %v376
  %v969 = vpop.f32.mrb[0].mxu0
  %v970 = vadd.f32 %v889, %v969
  %v971 = vpop.f32.mrb[0].mxu0
  %v972 = vpop.f32.mrb[0].mxu0
  %v973 = vadd.f32 %v892, %v972
  %v974 = vpop.f32.mrb[0].mxu0
  %975 = vmatprep.mubr.bf16.mxu0 %v385
  %976 = vmatmul.mubr.bf16.gmra.mrb[0].mxu0 %v384
  %v977 = vpop.f32.mrb[0].mxu0
  %v978 = vadd.f32 %v897, %v977
  %v979 = vpop.f32.mrb[0].mxu0
  %v980 = vpop.f32.mrb[0].mxu0
  %v981 = vadd.f32 %v900, %v980
  %v982 = vpop.f32.mrb[0].mxu0
  %983 = vmatprep.mubr.bf16.mxu0 %v393
  %984 = vmatmul.mubr.bf16.gmra.mrb[0].mxu0 %v392
  %v985 = vpop.f32.mrb[0].mxu0
  %v986 = vadd.f32 %v905, %v985
  %v987 = vpop.f32.mrb[0].mxu0
  %v988 = vpop.f32.mrb[0].mxu0
  %v989 = vadd.f32 %v908, %v988
  %v990 = vpop.f32.mrb[0].mxu0
  %991 = vmatprep.mubr.bf16.mxu0 %v401
  %992 = vmatmul.mubr.bf16.gmra.mrb[0].mxu0 %v400
  %v993 = vpop.f32.mrb[0].mxu0
  %v994 = vadd.f32 %v913, %v993
  %v995 = vpop.f32.mrb[0].mxu0
  %v996 = vpop.f32.mrb[0].mxu0
  %v997 = vadd.f32 %v916, %v996
  %v998 = vpop.f32.mrb[0].mxu0
  %999 = vmatprep.mubr.bf16.mxu0 %v409
  %1000 = vmatmul.mubr.bf16.gmra.mrb[0].mxu0 %v408
  %v1001 = vpop.f32.mrb[0].mxu0
  %v1002 = vadd.f32 %v921, %v1001
  %v1003 = vpop.f32.mrb[0].mxu0
  %v1004 = vpop.f32.mrb[0].mxu0
  %v1005 = vadd.f32 %v924, %v1004
  %v1006 = vpop.f32.mrb[0].mxu0
  %1007 = vdwg.mxu0
  %1008 = vmatprep.subr.bf16.mxu0 0
  %1009 = vmatpush1.bf16.msra.mxu0 %v750
  %1010 = vmatprep.subr.bf16.mxu0 0
  %1011 = vmatpush1.bf16.msra.mxu0 %v751
  %1012 = vmatprep.subr.bf16.mxu0 0
  %1013 = vmatpush1.bf16.msra.mxu0 %v752
  %1014 = vmatprep.subr.bf16.mxu0 0
  %1015 = vmatpush1.bf16.msra.mxu0 %v753
  %1016 = vmatprep.subr.bf16.mxu0 0
  %1017 = vmatpush1.bf16.msra.mxu0 %v754
  %1018 = vmatprep.subr.bf16.mxu0 0
  %1019 = vmatpush1.bf16.msra.mxu0 %v755
  %1020 = vmatprep.subr.bf16.mxu0 0
  %1021 = vmatpush1.bf16.msra.mxu0 %v756
  %1022 = vmatprep.subr.bf16.mxu0 0
  %1023 = vmatpush1.bf16.msra.mxu0 %v757
  %1024 = vmatprep.subr.bf16.mxu0 0
  %1025 = vmatpush1.bf16.msra.mxu0 %v758
  %1026 = vmatprep.subr.bf16.mxu0 0
  %1027 = vmatpush1.bf16.msra.mxu0 %v759
  %1028 = vmatprep.subr.bf16.mxu0 0
  %1029 = vmatpush1.bf16.msra.mxu0 %v760
  %1030 = vmatprep.subr.bf16.mxu0 0
  %1031 = vmatpush1.bf16.msra.mxu0 %v761
  %1032 = vmatprep.subr.bf16.mxu0 0
  %1033 = vmatpush1.bf16.msra.mxu0 %v762
  %1034 = vmatprep.subr.bf16.mxu0 0
  %1035 = vmatpush1.bf16.msra.mxu0 %v763
  %1036 = vmatprep.subr.bf16.mxu0 0
  %1037 = vmatpush1.bf16.msra.mxu0 %v764
  %1038 = vmatprep.subr.bf16.mxu0 0
  %1039 = vmatpush1.bf16.msra.mxu0 %v765
  %1040 = vmatprep.mubr.bf16.mxu0 %v371
  %1041 = vmatmul.mubr.bf16.gmra.mrb[0].mxu0 %v370
  %v1042 = vpop.f32.mrb[0].mxu0
  %v1043 = vadd.f32 %v962, %v1042
  %v1044 = vpop.f32.mrb[0].mxu0
  %v1045 = vpop.f32.mrb[0].mxu0
  %v1046 = vadd.f32 %v965, %v1045
  %v1047 = vpop.f32.mrb[0].mxu0
  %1048 = vmatprep.mubr.bf16.mxu0 %v379
  %1049 = vmatmul.mubr.bf16.gmra.mrb[0].mxu0 %v378
  %v1050 = vpop.f32.mrb[0].mxu0
  %v1051 = vadd.f32 %v970, %v1050
  %v1052 = vpop.f32.mrb[0].mxu0
  %v1053 = vpop.f32.mrb[0].mxu0
  %v1054 = vadd.f32 %v973, %v1053
  %v1055 = vpop.f32.mrb[0].mxu0
  %1056 = vmatprep.mubr.bf16.mxu0 %v387
  %1057 = vmatmul.mubr.bf16.gmra.mrb[0].mxu0 %v386
  %v1058 = vpop.f32.mrb[0].mxu0
  %v1059 = vadd.f32 %v978, %v1058
  %v1060 = vpop.f32.mrb[0].mxu0
  %v1061 = vpop.f32.mrb[0].mxu0
  %v1062 = vadd.f32 %v981, %v1061
  %v1063 = vpop.f32.mrb[0].mxu0
  %1064 = vmatprep.mubr.bf16.mxu0 %v395
  %1065 = vmatmul.mubr.bf16.gmra.mrb[0].mxu0 %v394
  %v1066 = vpop.f32.mrb[0].mxu0
  %v1067 = vadd.f32 %v986, %v1066
  %v1068 = vpop.f32.mrb[0].mxu0
  %v1069 = vpop.f32.mrb[0].mxu0
  %v1070 = vadd.f32 %v989, %v1069
  %v1071 = vpop.f32.mrb[0].mxu0
  %1072 = vmatprep.mubr.bf16.mxu0 %v403
  %1073 = vmatmul.mubr.bf16.gmra.mrb[0].mxu0 %v402
  %v1074 = vpop.f32.mrb[0].mxu0
  %v1075 = vadd.f32 %v994, %v1074
  %v1076 = vpop.f32.mrb[0].mxu0
  %v1077 = vpop.f32.mrb[0].mxu0
  %v1078 = vadd.f32 %v997, %v1077
  %v1079 = vpop.f32.mrb[0].mxu0
  %1080 = vmatprep.mubr.bf16.mxu0 %v411
  %1081 = vmatmul.mubr.bf16.gmra.mrb[0].mxu0 %v410
  %v1082 = vpop.f32.mrb[0].mxu0
  %v1083 = vadd.f32 %v1002, %v1082
  %v1084 = vpop.f32.mrb[0].mxu0
  %v1085 = vpop.f32.mrb[0].mxu0
  %v1086 = vadd.f32 %v1005, %v1085
  %v1087 = vpop.f32.mrb[0].mxu0
  %1088 = vdwg.mxu0
  %1089 = vmatprep.subr.bf16.mxu0 0
  %1090 = vmatpush1.bf16.msra.mxu0 %v766
  %1091 = vmatprep.subr.bf16.mxu0 0
  %1092 = vmatpush1.bf16.msra.mxu0 %v767
  %1093 = vmatprep.subr.bf16.mxu0 0
  %1094 = vmatpush1.bf16.msra.mxu0 %v768
  %1095 = vmatprep.subr.bf16.mxu0 0
  %1096 = vmatpush1.bf16.msra.mxu0 %v769
  %1097 = vmatprep.subr.bf16.mxu0 0
  %1098 = vmatpush1.bf16.msra.mxu0 %v770
  %1099 = vmatprep.subr.bf16.mxu0 0
  %1100 = vmatpush1.bf16.msra.mxu0 %v771
  %1101 = vmatprep.subr.bf16.mxu0 0
  %1102 = vmatpush1.bf16.msra.mxu0 %v772
  %1103 = vmatprep.subr.bf16.mxu0 0
  %1104 = vmatpush1.bf16.msra.mxu0 %v773
  %1105 = vmatprep.subr.bf16.mxu0 0
  %1106 = vmatpush1.bf16.msra.mxu0 %v774
  %1107 = vmatprep.subr.bf16.mxu0 0
  %1108 = vmatpush1.bf16.msra.mxu0 %v775
  %1109 = vmatprep.subr.bf16.mxu0 0
  %1110 = vmatpush1.bf16.msra.mxu0 %v776
  %1111 = vmatprep.subr.bf16.mxu0 0
  %1112 = vmatpush1.bf16.msra.mxu0 %v777
  %1113 = vmatprep.subr.bf16.mxu0 0
  %1114 = vmatpush1.bf16.msra.mxu0 %v778
  %1115 = vmatprep.subr.bf16.mxu0 0
  %1116 = vmatpush1.bf16.msra.mxu0 %v779
  %1117 = vmatprep.subr.bf16.mxu0 0
  %1118 = vmatpush1.bf16.msra.mxu0 %v780
  %1119 = vmatprep.subr.bf16.mxu0 0
  %1120 = vmatpush1.bf16.msra.mxu0 %v781
  %1121 = vmatprep.mubr.bf16.mxu0 %v373
  %1122 = vmatmul.mubr.bf16.gmra.mrb[0].mxu0 %v372
  %v1123 = vpop.f32.mrb[0].mxu0
  %v1124 = vadd.f32 %v1043, %v1123
  %v1125 = vpop.f32.mrb[0].mxu0
  %v1126 = vpop.f32.mrb[0].mxu0
  %v1127 = vadd.f32 %v1046, %v1126
  %v1128 = vpop.f32.mrb[0].mxu0
  %1129 = vmatprep.mubr.bf16.mxu0 %v381
  %1130 = vmatmul.mubr.bf16.gmra.mrb[0].mxu0 %v380
  %v1131 = vpop.f32.mrb[0].mxu0
  %v1132 = vadd.f32 %v1051, %v1131
  %v1133 = vpop.f32.mrb[0].mxu0
  %v1134 = vpop.f32.mrb[0].mxu0
  %v1135 = vadd.f32 %v1054, %v1134
  %v1136 = vpop.f32.mrb[0].mxu0
  %1137 = vmatprep.mubr.bf16.mxu0 %v389
  %1138 = vmatmul.mubr.bf16.gmra.mrb[0].mxu0 %v388
  %v1139 = vpop.f32.mrb[0].mxu0
  %v1140 = vadd.f32 %v1059, %v1139
  %v1141 = vpop.f32.mrb[0].mxu0
  %v1142 = vpop.f32.mrb[0].mxu0
  %v1143 = vadd.f32 %v1062, %v1142
  %v1144 = vpop.f32.mrb[0].mxu0
  %1145 = vmatprep.mubr.bf16.mxu0 %v397
  %1146 = vmatmul.mubr.bf16.gmra.mrb[0].mxu0 %v396
  %v1147 = vpop.f32.mrb[0].mxu0
  %v1148 = vadd.f32 %v1067, %v1147
  %v1149 = vpop.f32.mrb[0].mxu0
  %v1150 = vpop.f32.mrb[0].mxu0
  %v1151 = vadd.f32 %v1070, %v1150
  %v1152 = vpop.f32.mrb[0].mxu0
  %1153 = vmatprep.mubr.bf16.mxu0 %v405
  %1154 = vmatmul.mubr.bf16.gmra.mrb[0].mxu0 %v404
  %v1155 = vpop.f32.mrb[0].mxu0
  %v1156 = vadd.f32 %v1075, %v1155
  %v1157 = vpop.f32.mrb[0].mxu0
  %v1158 = vpop.f32.mrb[0].mxu0
  %v1159 = vadd.f32 %v1078, %v1158
  %v1160 = vpop.f32.mrb[0].mxu0
  %1161 = vmatprep.mubr.bf16.mxu0 %v413
  %1162 = vmatmul.mubr.bf16.gmra.mrb[0].mxu0 %v412
  %v1163 = vpop.f32.mrb[0].mxu0
  %v1164 = vadd.f32 %v1083, %v1163
  %v1165 = vpop.f32.mrb[0].mxu0
  %v1166 = vpop.f32.mrb[0].mxu0
  %v1167 = vadd.f32 %v1086, %v1166
  %v1168 = vpop.f32.mrb[0].mxu0
  %1169 = vdwg.mxu0
  %v1170 = vadd.f32 %v34, %v1124
  %v1171 = vadd.f32 %v35, %v1127
  %v1172 = vadd.f32 %v36, %v1132
  %v1173 = vadd.f32 %v37, %v1135
  %v1174 = vadd.f32 %v38, %v1140
  %v1175 = vadd.f32 %v39, %v1143
  %v1176 = vadd.f32 %v40, %v1148
  %v1177 = vadd.f32 %v41, %v1151
  %v1178 = vadd.f32 %v42, %v1156
  %v1179 = vadd.f32 %v43, %v1159
  %v1180 = vadd.f32 %v44, %v1164
  %v1181 = vadd.f32 %v45, %v1167
  %1182 = vst [vmem:[#allocation2] sm:$0xff] %v1170
  %1183 = vst [vmem:[#allocation2 + $0x8] sm:$0xff] %v1171
  %1184 = vst [vmem:[#allocation2 + $0x10] sm:$0xff] %v1172
  %1185 = vst [vmem:[#allocation2 + $0x18] sm:$0xff] %v1173
  %1186 = vst [vmem:[#allocation2 + $0x20] sm:$0xff] %v1174
  %1187 = vst [vmem:[#allocation2 + $0x28] sm:$0xff] %v1175
  %1188 = vst [vmem:[#allocation2 + $0x30] sm:$0xff] %v1176
  %1189 = vst [vmem:[#allocation2 + $0x38] sm:$0xff] %v1177
  %1190 = vst [vmem:[#allocation2 + $0x40] sm:$0xff] %v1178
  %1191 = vst [vmem:[#allocation2 + $0x48] sm:$0xff] %v1179
  %1192 = vst [vmem:[#allocation2 + $0x50] sm:$0xff] %v1180
  %1193 = vst [vmem:[#allocation2 + $0x58] sm:$0xff] %v1181
  // Predicated region
  $region22: #{_lambda_.7} parent=0 // pred_check
    %p1194 = pneg %p18
  $region23: #{_lambda_.7} parent=0 // pred_check_branch
    %1196 = sbr.rel (%p1194) target = $region25
  $region24: #{_lambda_.7} parent=0 // pred_region
    %v1197 = vld [vmem:[#allocation2] sm:$0xff]
    %v1198 = vld [vmem:[#allocation2 + $0x8] sm:$0xff]
    %v1199 = vld [vmem:[#allocation2 + $0x10] sm:$0xff]
    %v1200 = vld [vmem:[#allocation2 + $0x18] sm:$0xff]
    %v1201 = vld [vmem:[#allocation2 + $0x20] sm:$0xff]
    %v1202 = vld [vmem:[#allocation2 + $0x28] sm:$0xff]
    %v1203 = vld [vmem:[#allocation2 + $0x30] sm:$0xff]
    %v1204 = vld [vmem:[#allocation2 + $0x38] sm:$0xff]
    %v1205 = vld [vmem:[#allocation2 + $0x40] sm:$0xff]
    %v1206 = vld [vmem:[#allocation2 + $0x48] sm:$0xff]
    %v1207 = vld [vmem:[#allocation2 + $0x50] sm:$0xff]
    %v1208 = vld [vmem:[#allocation2 + $0x58] sm:$0xff]
    %v1209 = vld [vmem:[%s2] sm:$0x1]
    %v1211 = vlaneseq
    %v1212 = vshrl.u32 %v1211, 7
    %v1213 = vsub.s32 0, %v1212
    %v1214 = vrot.slane %v1209, %v1213
    %v1216 = vmul.f32 %v1197, %v1214
    %v1217 = vmul.f32 %v1198, %v1214
    %v1218 = vmul.f32 %v1199, %v1214
    %v1219 = vmul.f32 %v1200, %v1214
    %v1220 = vmul.f32 %v1201, %v1214
    %v1221 = vmul.f32 %v1202, %v1214
    %v1222 = vmul.f32 %v1203, %v1214
    %v1223 = vmul.f32 %v1204, %v1214
    %v1224 = vmul.f32 %v1205, %v1214
    %v1225 = vmul.f32 %v1206, %v1214
    %v1226 = vmul.f32 %v1207, %v1214
    %v1227 = vmul.f32 %v1208, %v1214
    %v1228 = vld [vmem:[%s3] sm:$0x1]
    %v1230 = vlaneseq
    %v1231 = vshrl.u32 %v1230, 7
    %v1232 = vsub.s32 0, %v1231
    %v1233 = vrot.slane %v1228, %v1232
    %v1235 = vadd.f32 %v1216, %v1233
    %v1236 = vadd.f32 %v1217, %v1233
    %v1237 = vadd.f32 %v1218, %v1233
    %v1238 = vadd.f32 %v1219, %v1233
    %v1239 = vadd.f32 %v1220, %v1233
    %v1240 = vadd.f32 %v1221, %v1233
    %v1241 = vadd.f32 %v1222, %v1233
    %v1242 = vadd.f32 %v1223, %v1233
    %v1243 = vadd.f32 %v1224, %v1233
    %v1244 = vadd.f32 %v1225, %v1233
    %v1245 = vadd.f32 %v1226, %v1233
    %v1246 = vadd.f32 %v1227, %v1233
    %v1247 = vmax.f32 %v1235, 0.0
    %v1248 = vmax.f32 %v1236, 0.0
    %v1249 = vmax.f32 %v1237, 0.0
    %v1250 = vmax.f32 %v1238, 0.0
    %v1251 = vmax.f32 %v1239, 0.0
    %v1252 = vmax.f32 %v1240, 0.0
    %v1253 = vmax.f32 %v1241, 0.0
    %v1254 = vmax.f32 %v1242, 0.0
    %v1255 = vmax.f32 %v1243, 0.0
    %v1256 = vmax.f32 %v1244, 0.0
    %v1257 = vmax.f32 %v1245, 0.0
    %v1258 = vmax.f32 %v1246, 0.0
    %v1259 = vpack.c.bf16 %v1248, %v1247
    %v1260 = vpack.c.bf16 %v1250, %v1249
    %v1261 = vpack.c.bf16 %v1252, %v1251
    %v1262 = vpack.c.bf16 %v1254, %v1253
    %v1263 = vpack.c.bf16 %v1256, %v1255
    %v1264 = vpack.c.bf16 %v1258, %v1257
    %v1271 = vunpack.c.l.b16 %v1259
    %v1272 = vunpack.c.h.b16 %v1259
    %v1273 = vunpack.c.l.b16 %v1260
    %v1274 = vunpack.c.h.b16 %v1260
    %v1275 = vunpack.c.l.b16 %v1261
    %v1276 = vunpack.c.h.b16 %v1261
    %v1277 = vunpack.c.l.b16 %v1262
    %v1278 = vunpack.c.h.b16 %v1262
    %v1279 = vunpack.c.l.b16 %v1263
    %v1280 = vunpack.c.h.b16 %v1263
    %v1281 = vunpack.c.l.b16 %v1264
    %v1282 = vunpack.c.h.b16 %v1264
    %v1283 = vpack.c.b16 %v1271, %v1271
    %v1284 = vpack.c.b16 %v1272, %v1272
    %v1285 = vpack.c.b16 %v1273, %v1273
    %v1286 = vpack.c.b16 %v1274, %v1274
    %v1287 = vpack.c.b16 %v1275, %v1275
    %v1288 = vpack.c.b16 %v1276, %v1276
    %v1289 = vpack.c.b16 %v1277, %v1277
    %v1290 = vpack.c.b16 %v1278, %v1278
    %v1291 = vpack.c.b16 %v1279, %v1279
    %v1292 = vpack.c.b16 %v1280, %v1280
    %v1293 = vpack.c.b16 %v1281, %v1281
    %v1294 = vpack.c.b16 %v1282, %v1282
    %1307 = vst [vmem:[%s4] sm:$0xf] %v1283
    %1308 = vst [vmem:[%s4 + $0x4] sm:$0xf] %v1284
    %1309 = vst [vmem:[%s4 + $0x8] sm:$0xf] %v1285
    %1310 = vst [vmem:[%s4 + $0xc] sm:$0xf] %v1286
    %1311 = vst [vmem:[%s4 + $0x10] sm:$0xf] %v1287
    %1312 = vst [vmem:[%s4 + $0x14] sm:$0xf] %v1288
    %1313 = vst [vmem:[%s4 + $0x18] sm:$0xf] %v1289
    %1314 = vst [vmem:[%s4 + $0x1c] sm:$0xf] %v1290
    %1315 = vst [vmem:[%s4 + $0x20] sm:$0xf] %v1291
    %1316 = vst [vmem:[%s4 + $0x24] sm:$0xf] %v1292
    %1317 = vst [vmem:[%s4 + $0x28] sm:$0xf] %v1293
    %1318 = vst [vmem:[%s4 + $0x2c] sm:$0xf] %v1294
  $region25: #{_lambda_.7} parent=0 // pred_fallthru
    _
  // Predicated region
  $region26: #{_lambda_.7} parent=0 // pred_check
    _
  $region27: #{_lambda_.7} parent=0 // pred_check_branch
    %1320 = sbr.rel (0) target = $region29
  $region28: #{_lambda_.7} parent=0 // pred_region
    _
  $region29: #{_lambda_.7} parent=0 // pred_fallthru
    _
  // Predicated region
  $region30: #{_lambda_.7} parent=0 // pred_check
    _
  $region31: #{_lambda_.7} parent=0 // pred_check_branch
    %1322 = sbr.rel (0) target = $region33
  $region32: #{_lambda_.7} parent=0 // pred_region
    _
  $region33: #{_lambda_.7} parent=0 // pred_fallthru
    _

// kernel: _lambda_.9
$region0: #{_lambda_.9}
  #allocation0 [shape = 'u32[]', space=smem, size = 0x4, offset = 0x4, fixed_abs, tag = 'smem constant byte address 0x4 - core index']
  #allocation1 [shape = 'u32[144,128]{1,0:T(1,128)}', space=vmem, size = 0x12000, scoped, tag = 'internal scratch']
  %s0 = inlined_call_operand.vmem [shape: bf16[2,8,256], index: 0, kind: input, shape index: {}]
  %s1 = inlined_call_operand.vmem [shape: f32[256,128], index: 1, kind: input, shape index: {}]
  %s2 = inlined_call_operand.vmem [shape: f32[1,128], index: 2, kind: input, shape index: {}]
  %s3 = inlined_call_operand.vmem [shape: f32[128,128], index: 3, kind: input, shape index: {}]
  %s4 = inlined_call_operand.vmem [shape: f32[1,128], index: 4, kind: input, shape index: {}]
  %s5 = inlined_call_operand.hbm [shape: f32[2,128], index: 5, kind: output, shape index: {}]
  %s6 = sld [smem:[#allocation0]]
  $region30: #{_lambda_.9} parent=0
    _
  %s8 = ssub.s32 1, %s6
  %s9 = scalar_select 0, %s8, %s6
  $region1: #{_lambda_.9} parent=0
    #allocation2 [shape = 'u8[1024]{0}', space=vmem, size = 0x400, scoped, tag = 'output window, operand 0, single buffered']
    #allocation3 [shape = 's32[1]{0}', space=sflag, size = 0x4, scoped, tag = 'scoped memory for _lambda_.9']
    %10 = vsyncpa [#allocation3], 0
    // Predicated region
    $region2: #{_lambda_.9} parent=1 // pred_check
      _
    $region3: #{_lambda_.9} parent=1 // pred_check_branch
      %12 = sbr.rel (0) target = $region5
    $region4: #{_lambda_.9} parent=1 // pred_region
      _
    $region5: #{_lambda_.9} parent=1 // pred_fallthru
      _
    // Predicated region
    $region6: #{_lambda_.9} parent=1 // pred_check
      _
    $region7: #{_lambda_.9} parent=1 // pred_check_branch
      %14 = sbr.rel (0) target = $region9
    $region8: #{_lambda_.9} parent=1 // pred_region
      _
    $region9: #{_lambda_.9} parent=1 // pred_fallthru
      _
    // Predicated region
    $region10: #{_lambda_.9} parent=1 // pred_check
      _
    $region11: #{_lambda_.9} parent=1 // pred_check_branch
      %16 = sbr.rel (0) target = $region13
    $region12: #{_lambda_.9} parent=1 // pred_region
      _
    $region13: #{_lambda_.9} parent=1 // pred_fallthru
      _
    // Predicated region
    $region14: #{_lambda_.9} parent=1 // pred_check
      _
    $region15: #{_lambda_.9} parent=1 // pred_check_branch
      %18 = sbr.rel (0) target = $region17
    $region16: #{_lambda_.9} parent=1 // pred_region
      _
    $region17: #{_lambda_.9} parent=1 // pred_fallthru
      _
    // Predicated region
    $region18: #{_lambda_.9} parent=1 // pred_check
      _
    $region19: #{_lambda_.9} parent=1 // pred_check_branch
      %20 = sbr.rel (0) target = $region21
    $region20: #{_lambda_.9} parent=1 // pred_region
      _
    $region21: #{_lambda_.9} parent=1 // pred_fallthru
      _
    %v21 = vld [vmem:[%s0] sm:$0xff]
    %v22 = vld [vmem:[%s0 + $0x8] sm:$0xff]
    %v23 = vunpack.c.l.bf16 %v21
    %v24 = vunpack.c.h.bf16 %v21
    %v25 = vunpack.c.l.bf16 %v22
    %v26 = vunpack.c.h.bf16 %v22
    %v27 = vrot.slane %v23, 4
    %v28 = vadd.f32 %v23, %v27
    %v29 = vrot.slane %v28, 2
    %v30 = vadd.f32 %v28, %v29
    %v31 = vrot.slane %v30, 1
    %v32 = vadd.f32 %v30, %v31
    %v33 = vrot.slane %v24, 4
    %v34 = vadd.f32 %v24, %v33
    %v35 = vrot.slane %v34, 2
    %v36 = vadd.f32 %v34, %v35
    %v37 = vrot.slane %v36, 1
    %v38 = vadd.f32 %v36, %v37
    %v39 = vrot.slane %v25, 4
    %v40 = vadd.f32 %v25, %v39
    %v41 = vrot.slane %v40, 2
    %v42 = vadd.f32 %v40, %v41
    %v43 = vrot.slane %v42, 1
    %v44 = vadd.f32 %v42, %v43
    %v45 = vrot.slane %v26, 4
    %v46 = vadd.f32 %v26, %v45
    %v47 = vrot.slane %v46, 2
    %v48 = vadd.f32 %v46, %v47
    %v49 = vrot.slane %v48, 1
    %v50 = vadd.f32 %v48, %v49
    %v51 = vrcp.pop 8.0
    %v52 = vmul.f32 %v32, %v51
    %v53 = vmul.f32 %v38, %v51
    %v54 = vmul.f32 %v44, %v51
    %v55 = vmul.f32 %v50, %v51
    %v56 = vld [vmem:[%s1] sm:$0xff]
    %v57 = vld [vmem:[%s1 + $0x8] sm:$0xff]
    %v58 = vld [vmem:[%s1 + $0x10] sm:$0xff]
    %v59 = vld [vmem:[%s1 + $0x18] sm:$0xff]
    %v60 = vld [vmem:[%s1 + $0x20] sm:$0xff]
    %v61 = vld [vmem:[%s1 + $0x28] sm:$0xff]
    %v62 = vld [vmem:[%s1 + $0x30] sm:$0xff]
    %v63 = vld [vmem:[%s1 + $0x38] sm:$0xff]
    %v64 = vld [vmem:[%s1 + $0x40] sm:$0xff]
    %v65 = vld [vmem:[%s1 + $0x48] sm:$0xff]
    %v66 = vld [vmem:[%s1 + $0x50] sm:$0xff]
    %v67 = vld [vmem:[%s1 + $0x58] sm:$0xff]
    %v68 = vld [vmem:[%s1 + $0x60] sm:$0xff]
    %v69 = vld [vmem:[%s1 + $0x68] sm:$0xff]
    %v70 = vld [vmem:[%s1 + $0x70] sm:$0xff]
    %v71 = vld [vmem:[%s1 + $0x78] sm:$0xff]
    %v72 = vld [vmem:[%s1 + $0x80] sm:$0xff]
    %v73 = vld [vmem:[%s1 + $0x88] sm:$0xff]
    %v74 = vld [vmem:[%s1 + $0x90] sm:$0xff]
    %v75 = vld [vmem:[%s1 + $0x98] sm:$0xff]
    %v76 = vld [vmem:[%s1 + $0xa0] sm:$0xff]
    %v77 = vld [vmem:[%s1 + $0xa8] sm:$0xff]
    %v78 = vld [vmem:[%s1 + $0xb0] sm:$0xff]
    %v79 = vld [vmem:[%s1 + $0xb8] sm:$0xff]
    %v80 = vld [vmem:[%s1 + $0xc0] sm:$0xff]
    %v81 = vld [vmem:[%s1 + $0xc8] sm:$0xff]
    %v82 = vld [vmem:[%s1 + $0xd0] sm:$0xff]
    %v83 = vld [vmem:[%s1 + $0xd8] sm:$0xff]
    %v84 = vld [vmem:[%s1 + $0xe0] sm:$0xff]
    %v85 = vld [vmem:[%s1 + $0xe8] sm:$0xff]
    %v86 = vld [vmem:[%s1 + $0xf0] sm:$0xff]
    %v87 = vld [vmem:[%s1 + $0xf8] sm:$0xff]
    %v88 = vld [vmem:[%s2] sm:$0x1]
    %v90 = vlaneseq
    %v91 = vshrl.u32 %v90, 7
    %v92 = vsub.s32 0, %v91
    %v93 = vrot.slane %v88, %v92
    %vm99 = vcmask 1041409
    %v100 = vsel %vm99, %v54, %v52
    %v101 = vsel %vm99, %v55, %v53
    %104 = vmatprep.subr.mxu0 0.0
    %105 = vmatpush1.msra.mxu0 %v56
    %106 = vmatprep.subr.mxu0 0.0
    %107 = vmatpush1.msra.mxu0 %v57
    %108 = vmatprep.subr.mxu0 0.0
    %109 = vmatpush1.msra.mxu0 %v58
    %110 = vmatprep.subr.mxu0 0.0
    %111 = vmatpush1.msra.mxu0 %v59
    %112 = vmatprep.subr.mxu0 0.0
    %113 = vmatpush1.msra.mxu0 %v60
    %114 = vmatprep.subr.mxu0 0.0
    %115 = vmatpush1.msra.mxu0 %v61
    %116 = vmatprep.subr.mxu0 0.0
    %117 = vmatpush1.msra.mxu0 %v62
    %118 = vmatprep.subr.mxu0 0.0
    %119 = vmatpush1.msra.mxu0 %v63
    %120 = vmatprep.subr.mxu0 0.0
    %121 = vmatpush1.msra.mxu0 %v64
    %122 = vmatprep.subr.mxu0 0.0
    %123 = vmatpush1.msra.mxu0 %v65
    %124 = vmatprep.subr.mxu0 0.0
    %125 = vmatpush1.msra.mxu0 %v66
    %126 = vmatprep.subr.mxu0 0.0
    %127 = vmatpush1.msra.mxu0 %v67
    %128 = vmatprep.subr.mxu0 0.0
    %129 = vmatpush1.msra.mxu0 %v68
    %130 = vmatprep.subr.mxu0 0.0
    %131 = vmatpush1.msra.mxu0 %v69
    %132 = vmatprep.subr.mxu0 0.0
    %133 = vmatpush1.msra.mxu0 %v70
    %134 = vmatprep.subr.mxu0 0.0
    %135 = vmatpush1.msra.mxu0 %v71
    %136 = vmatprep.subr.mxu0 0.0
    %137 = vmatpush1.msra.mxu0 %v72
    %138 = vmatprep.subr.mxu0 0.0
    %139 = vmatpush1.msra.mxu0 %v73
    %140 = vmatprep.subr.mxu0 0.0
    %141 = vmatpush1.msra.mxu0 %v74
    %142 = vmatprep.subr.mxu0 0.0
    %143 = vmatpush1.msra.mxu0 %v75
    %144 = vmatprep.subr.mxu0 0.0
    %145 = vmatpush1.msra.mxu0 %v76
    %146 = vmatprep.subr.mxu0 0.0
    %147 = vmatpush1.msra.mxu0 %v77
    %148 = vmatprep.subr.mxu0 0.0
    %149 = vmatpush1.msra.mxu0 %v78
    %150 = vmatprep.subr.mxu0 0.0
    %151 = vmatpush1.msra.mxu0 %v79
    %152 = vmatprep.subr.mxu0 0.0
    %153 = vmatpush1.msra.mxu0 %v80
    %154 = vmatprep.subr.mxu0 0.0
    %155 = vmatpush1.msra.mxu0 %v81
    %156 = vmatprep.subr.mxu0 0.0
    %157 = vmatpush1.msra.mxu0 %v82
    %158 = vmatprep.subr.mxu0 0.0
    %159 = vmatpush1.msra.mxu0 %v83
    %160 = vmatprep.subr.mxu0 0.0
    %161 = vmatpush1.msra.mxu0 %v84
    %162 = vmatprep.subr.mxu0 0.0
    %163 = vmatpush1.msra.mxu0 %v85
    %164 = vmatprep.subr.mxu0 0.0
    %165 = vmatpush1.msra.mxu0 %v86
    %166 = vmatprep.subr.mxu0 0.0
    %167 = vmatpush1.msra.mxu0 %v87
    %168 = vmatprep.mubr.f32.mxu0 %v101
    %169 = vmatmul.mubr.f32.gmra.mrb[0].mxu0 %v100
    %v170 = vpop.f32.mrb[0].mxu0
    %v171 = vadd.f32 %v93, %v170
    %v172 = vpop.f32.mrb[0].mxu0
    %173 = vdwg.mxu0
    %v174 = vmax.f32 %v171, 0.0
    %v175 = vld [vmem:[%s3] sm:$0xff]
    %v176 = vld [vmem:[%s3 + $0x8] sm:$0xff]
    %v177 = vld [vmem:[%s3 + $0x10] sm:$0xff]
    %v178 = vld [vmem:[%s3 + $0x18] sm:$0xff]
    %v179 = vld [vmem:[%s3 + $0x20] sm:$0xff]
    %v180 = vld [vmem:[%s3 + $0x28] sm:$0xff]
    %v181 = vld [vmem:[%s3 + $0x30] sm:$0xff]
    %v182 = vld [vmem:[%s3 + $0x38] sm:$0xff]
    %v183 = vld [vmem:[%s3 + $0x40] sm:$0xff]
    %v184 = vld [vmem:[%s3 + $0x48] sm:$0xff]
    %v185 = vld [vmem:[%s3 + $0x50] sm:$0xff]
    %v186 = vld [vmem:[%s3 + $0x58] sm:$0xff]
    %v187 = vld [vmem:[%s3 + $0x60] sm:$0xff]
    %v188 = vld [vmem:[%s3 + $0x68] sm:$0xff]
    %v189 = vld [vmem:[%s3 + $0x70] sm:$0xff]
    %v190 = vld [vmem:[%s3 + $0x78] sm:$0xff]
    %v191 = vld [vmem:[%s4] sm:$0x1]
    %v193 = vlaneseq
    %v194 = vshrl.u32 %v193, 7
    %v195 = vsub.s32 0, %v194
    %v196 = vrot.slane %v191, %v195
    %198 = vmatprep.subr.mxu0 0.0
    %199 = vmatpush1.msra.mxu0 %v175
    %200 = vmatprep.subr.mxu0 0.0
    %201 = vmatpush1.msra.mxu0 %v176
    %202 = vmatprep.subr.mxu0 0.0
    %203 = vmatpush1.msra.mxu0 %v177
    %204 = vmatprep.subr.mxu0 0.0
    %205 = vmatpush1.msra.mxu0 %v178
    %206 = vmatprep.subr.mxu0 0.0
    %207 = vmatpush1.msra.mxu0 %v179
    %208 = vmatprep.subr.mxu0 0.0
    %209 = vmatpush1.msra.mxu0 %v180
    %210 = vmatprep.subr.mxu0 0.0
    %211 = vmatpush1.msra.mxu0 %v181
    %212 = vmatprep.subr.mxu0 0.0
    %213 = vmatpush1.msra.mxu0 %v182
    %214 = vmatprep.subr.mxu0 0.0
    %215 = vmatpush1.msra.mxu0 %v183
    %216 = vmatprep.subr.mxu0 0.0
    %217 = vmatpush1.msra.mxu0 %v184
    %218 = vmatprep.subr.mxu0 0.0
    %219 = vmatpush1.msra.mxu0 %v185
    %220 = vmatprep.subr.mxu0 0.0
    %221 = vmatpush1.msra.mxu0 %v186
    %222 = vmatprep.subr.mxu0 0.0
    %223 = vmatpush1.msra.mxu0 %v187
    %224 = vmatprep.subr.mxu0 0.0
    %225 = vmatpush1.msra.mxu0 %v188
    %226 = vmatprep.subr.mxu0 0.0
    %227 = vmatpush1.msra.mxu0 %v189
    %228 = vmatprep.subr.mxu0 0.0
    %229 = vmatpush1.msra.mxu0 %v190
    %230 = vmatprep.subr.mxu0 0.0
    %231 = vmatpush1.msra.mxu0 0.0
    %232 = vmatprep.subr.mxu0 0.0
    %233 = vmatpush1.msra.mxu0 0.0
    %234 = vmatprep.subr.mxu0 0.0
    %235 = vmatpush1.msra.mxu0 0.0
    %236 = vmatprep.subr.mxu0 0.0
    %237 = vmatpush1.msra.mxu0 0.0
    %238 = vmatprep.subr.mxu0 0.0
    %239 = vmatpush1.msra.mxu0 0.0
    %240 = vmatprep.subr.mxu0 0.0
    %241 = vmatpush1.msra.mxu0 0.0
    %242 = vmatprep.subr.mxu0 0.0
    %243 = vmatpush1.msra.mxu0 0.0
    %244 = vmatprep.subr.mxu0 0.0
    %245 = vmatpush1.msra.mxu0 0.0
    %246 = vmatprep.subr.mxu0 0.0
    %247 = vmatpush1.msra.mxu0 0.0
    %248 = vmatprep.subr.mxu0 0.0
    %249 = vmatpush1.msra.mxu0 0.0
    %250 = vmatprep.subr.mxu0 0.0
    %251 = vmatpush1.msra.mxu0 0.0
    %252 = vmatprep.subr.mxu0 0.0
    %253 = vmatpush1.msra.mxu0 0.0
    %254 = vmatprep.subr.mxu0 0.0
    %255 = vmatpush1.msra.mxu0 0.0
    %256 = vmatprep.subr.mxu0 0.0
    %257 = vmatpush1.msra.mxu0 0.0
    %258 = vmatprep.subr.mxu0 0.0
    %259 = vmatpush1.msra.mxu0 0.0
    %260 = vmatprep.subr.mxu0 0.0
    %261 = vmatpush1.msra.mxu0 0.0
    %262 = vmatprep.mubr.f32.mxu0 0.0
    %263 = vmatmul.mubr.f32.gmra.mrb[0].mxu0 %v174
    %v264 = vpop.f32.mrb[0].mxu0
    %v265 = vadd.f32 %v196, %v264
    %v266 = vpop.f32.mrb[0].mxu0
    %267 = vdwg.mxu0
    %268 = vst [vmem:[#allocation2] sm:$0x3] %v265
    // Predicated region
    $region22: #{_lambda_.9} parent=1 // pred_check
      _
    $region23: #{_lambda_.9} parent=1 // pred_check_branch
      %270 = sbr.rel (0) target = $region25
    $region24: #{_lambda_.9} parent=1 // pred_region
      %s272 = ssub.s32 32, 32
      %273 = vsyncadd [#allocation3], %s272
      %s275 = sshll.u32 [#allocation2], 4
      %s276 = int_to_ptr.vmem [resolvable:$true] %s275
      %278 = dma.vmem_to_hbm [thread:$0]  %s276, 32, %s5, [#allocation3]
    $region25: #{_lambda_.9} parent=1 // pred_fallthru
      _
    // Predicated region
    $region26: #{_lambda_.9} parent=1 // pred_check
      _
    $region27: #{_lambda_.9} parent=1 // pred_check_branch
      %280 = sbr.rel (0) target = $region29
    $region28: #{_lambda_.9} parent=1 // pred_region
      %281 = dma.done [#allocation3], 32
    $region29: #{_lambda_.9} parent=1 // pred_fallthru
      _
    %282 = vsyncpa [#allocation3], 1

// kernel: _lambda_.8
$region0: #{_lambda_.8}
  #allocation0 [shape = 'u32[]', space=smem, size = 0x4, offset = 0x4, fixed_abs, tag = 'smem constant byte address 0x4 - core index']
  #allocation1 [shape = 'u32[144,128]{1,0:T(1,128)}', space=vmem, size = 0x12000, scoped, tag = 'internal scratch']
  #allocation2 [shape = 'f32[16,256]{1,0:T(8,128)}', space=vmem, size = 0x4000, scoped, tag = 'scratch operand']
  %s0 = inlined_call_operand.vmem [shape: bf16[16,1920], index: 0, kind: input, shape index: {}]
  %s1 = inlined_call_operand.vmem [shape: bf16[1920,256], index: 1, kind: input, shape index: {}]
  %s2 = inlined_call_operand.vmem [shape: f32[1,256], index: 2, kind: input, shape index: {}]
  %s3 = inlined_call_operand.vmem [shape: f32[1,256], index: 3, kind: input, shape index: {}]
  %s4 = inlined_call_operand.vmem [shape: bf16[16,256], index: 4, kind: output, shape index: {}]
  %s5 = sld [smem:[#allocation0]]
  $region34: #{_lambda_.8} parent=0
    _
  %s7 = ssub.s32 1, %s5
  %s8 = scalar_select 0, %s7, %s5
  // Predicated region
  $region2: #{_lambda_.8} parent=0 // pred_check
    _
  $region3: #{_lambda_.8} parent=0 // pred_check_branch
    %10 = sbr.rel (0) target = $region5
  $region4: #{_lambda_.8} parent=0 // pred_region
    _
  $region5: #{_lambda_.8} parent=0 // pred_fallthru
    _
  // Predicated region
  $region6: #{_lambda_.8} parent=0 // pred_check
    _
  $region7: #{_lambda_.8} parent=0 // pred_check_branch
    %12 = sbr.rel (0) target = $region9
  $region8: #{_lambda_.8} parent=0 // pred_region
    _
  $region9: #{_lambda_.8} parent=0 // pred_fallthru
    _
  // Predicated region
  $region10: #{_lambda_.8} parent=0 // pred_check
    _
  $region11: #{_lambda_.8} parent=0 // pred_check_branch
    %14 = sbr.rel (0) target = $region13
  $region12: #{_lambda_.8} parent=0 // pred_region
    _
  $region13: #{_lambda_.8} parent=0 // pred_fallthru
    _
  // Predicated region
  $region14: #{_lambda_.8} parent=0 // pred_check
    _
  $region15: #{_lambda_.8} parent=0 // pred_check_branch
    %16 = sbr.rel (0) target = $region17
  $region16: #{_lambda_.8} parent=0 // pred_region
    _
  $region17: #{_lambda_.8} parent=0 // pred_fallthru
    _
  %p18 = scmp.eq.s32.totalorder 0, 0
  // Predicated region
  $region18: #{_lambda_.8} parent=0 // pred_check
    %p19 = pneg %p18
  $region19: #{_lambda_.8} parent=0 // pred_check_branch
    %21 = sbr.rel (%p19) target = $region21
  $region20: #{_lambda_.8} parent=0 // pred_region
    %22 = vst [vmem:[#allocation2] sm:$0xff] 0.0
    %23 = vst [vmem:[#allocation2 + $0x8] sm:$0xff] 0.0
    %24 = vst [vmem:[#allocation2 + $0x10] sm:$0xff] 0.0
    %25 = vst [vmem:[#allocation2 + $0x18] sm:$0xff] 0.0
  $region21: #{_lambda_.8} parent=0 // pred_fallthru
    _
  %v26 = vld [vmem:[#allocation2] sm:$0xff]
  %v27 = vld [vmem:[#allocation2 + $0x8] sm:$0xff]
  %v28 = vld [vmem:[#allocation2 + $0x10] sm:$0xff]
  %v29 = vld [vmem:[#allocation2 + $0x18] sm:$0xff]
  %v30 = vld [vmem:[%s0] sm:$0xff]
  %v31 = vld [vmem:[%s0 + $0x8] sm:$0xff]
  %v32 = vld [vmem:[%s0 + $0x10] sm:$0xff]
  %v33 = vld [vmem:[%s0 + $0x18] sm:$0xff]
  %v34 = vld [vmem:[%s0 + $0x20] sm:$0xff]
  %v35 = vld [vmem:[%s0 + $0x28] sm:$0xff]
  %v36 = vld [vmem:[%s0 + $0x30] sm:$0xff]
  %v37 = vld [vmem:[%s0 + $0x38] sm:$0xf]
  %v38 = vld [vmem:[%s0 + $0x3c] sm:$0xff]
  %v39 = vld [vmem:[%s0 + $0x44] sm:$0xff]
  %v40 = vld [vmem:[%s0 + $0x4c] sm:$0xff]
  %v41 = vld [vmem:[%s0 + $0x54] sm:$0xff]
  %v42 = vld [vmem:[%s0 + $0x5c] sm:$0xff]
  %v43 = vld [vmem:[%s0 + $0x64] sm:$0xff]
  %v44 = vld [vmem:[%s0 + $0x6c] sm:$0xff]
  %v45 = vld [vmem:[%s0 + $0x74] sm:$0xf]
  %v46 = vld [vmem:[%s1] sm:$0xff]
  %v47 = vld [vmem:[%s1 + $0x8] sm:$0xff]
  %v48 = vld [vmem:[%s1 + $0x10] sm:$0xff]
  %v49 = vld [vmem:[%s1 + $0x18] sm:$0xff]
  %v50 = vld [vmem:[%s1 + $0x20] sm:$0xff]
  %v51 = vld [vmem:[%s1 + $0x28] sm:$0xff]
  %v52 = vld [vmem:[%s1 + $0x30] sm:$0xff]
  %v53 = vld [vmem:[%s1 + $0x38] sm:$0xff]
  %v54 = vld [vmem:[%s1 + $0x40] sm:$0xff]
  %v55 = vld [vmem:[%s1 + $0x48] sm:$0xff]
  %v56 = vld [vmem:[%s1 + $0x50] sm:$0xff]
  %v57 = vld [vmem:[%s1 + $0x58] sm:$0xff]
  %v58 = vld [vmem:[%s1 + $0x60] sm:$0xff]
  %v59 = vld [vmem:[%s1 + $0x68] sm:$0xff]
  %v60 = vld [vmem:[%s1 + $0x70] sm:$0xff]
  %v61 = vld [vmem:[%s1 + $0x78] sm:$0xff]
  %v62 = vld [vmem:[%s1 + $0x80] sm:$0xff]
  %v63 = vld [vmem:[%s1 + $0x88] sm:$0xff]
  %v64 = vld [vmem:[%s1 + $0x90] sm:$0xff]
  %v65 = vld [vmem:[%s1 + $0x98] sm:$0xff]
  %v66 = vld [vmem:[%s1 + $0xa0] sm:$0xff]
  %v67 = vld [vmem:[%s1 + $0xa8] sm:$0xff]
  %v68 = vld [vmem:[%s1 + $0xb0] sm:$0xff]
  %v69 = vld [vmem:[%s1 + $0xb8] sm:$0xff]
  %v70 = vld [vmem:[%s1 + $0xc0] sm:$0xff]
  %v71 = vld [vmem:[%s1 + $0xc8] sm:$0xff]
  %v72 = vld [vmem:[%s1 + $0xd0] sm:$0xff]
  %v73 = vld [vmem:[%s1 + $0xd8] sm:$0xff]
  %v74 = vld [vmem:[%s1 + $0xe0] sm:$0xff]
  %v75 = vld [vmem:[%s1 + $0xe8] sm:$0xff]
  %v76 = vld [vmem:[%s1 + $0xf0] sm:$0xff]
  %v77 = vld [vmem:[%s1 + $0xf8] sm:$0xff]
  %v78 = vld [vmem:[%s1 + $0x100] sm:$0xff]
  %v79 = vld [vmem:[%s1 + $0x108] sm:$0xff]
  %v80 = vld [vmem:[%s1 + $0x110] sm:$0xff]
  %v81 = vld [vmem:[%s1 + $0x118] sm:$0xff]
  %v82 = vld [vmem:[%s1 + $0x120] sm:$0xff]
  %v83 = vld [vmem:[%s1 + $0x128] sm:$0xff]
  %v84 = vld [vmem:[%s1 + $0x130] sm:$0xff]
  %v85 = vld [vmem:[%s1 + $0x138] sm:$0xff]
  %v86 = vld [vmem:[%s1 + $0x140] sm:$0xff]
  %v87 = vld [vmem:[%s1 + $0x148] sm:$0xff]
  %v88 = vld [vmem:[%s1 + $0x150] sm:$0xff]
  %v89 = vld [vmem:[%s1 + $0x158] sm:$0xff]
  %v90 = vld [vmem:[%s1 + $0x160] sm:$0xff]
  %v91 = vld [vmem:[%s1 + $0x168] sm:$0xff]
  %v92 = vld [vmem:[%s1 + $0x170] sm:$0xff]
  %v93 = vld [vmem:[%s1 + $0x178] sm:$0xff]
  %v94 = vld [vmem:[%s1 + $0x180] sm:$0xff]
  %v95 = vld [vmem:[%s1 + $0x188] sm:$0xff]
  %v96 = vld [vmem:[%s1 + $0x190] sm:$0xff]
  %v97 = vld [vmem:[%s1 + $0x198] sm:$0xff]
  %v98 = vld [vmem:[%s1 + $0x1a0] sm:$0xff]
  %v99 = vld [vmem:[%s1 + $0x1a8] sm:$0xff]
  %v100 = vld [vmem:[%s1 + $0x1b0] sm:$0xff]
  %v101 = vld [vmem:[%s1 + $0x1b8] sm:$0xff]
  %v102 = vld [vmem:[%s1 + $0x1c0] sm:$0xff]
  %v103 = vld [vmem:[%s1 + $0x1c8] sm:$0xff]
  %v104 = vld [vmem:[%s1 + $0x1d0] sm:$0xff]
  %v105 = vld [vmem:[%s1 + $0x1d8] sm:$0xff]
  %v106 = vld [vmem:[%s1 + $0x1e0] sm:$0xff]
  %v107 = vld [vmem:[%s1 + $0x1e8] sm:$0xff]
  %v108 = vld [vmem:[%s1 + $0x1f0] sm:$0xff]
  %v109 = vld [vmem:[%s1 + $0x1f8] sm:$0xff]
  %v110 = vld [vmem:[%s1 + $0x200] sm:$0xff]
  %v111 = vld [vmem:[%s1 + $0x208] sm:$0xff]
  %v112 = vld [vmem:[%s1 + $0x210] sm:$0xff]
  %v113 = vld [vmem:[%s1 + $0x218] sm:$0xff]
  %v114 = vld [vmem:[%s1 + $0x220] sm:$0xff]
  %v115 = vld [vmem:[%s1 + $0x228] sm:$0xff]
  %v116 = vld [vmem:[%s1 + $0x230] sm:$0xff]
  %v117 = vld [vmem:[%s1 + $0x238] sm:$0xff]
  %v118 = vld [vmem:[%s1 + $0x240] sm:$0xff]
  %v119 = vld [vmem:[%s1 + $0x248] sm:$0xff]
  %v120 = vld [vmem:[%s1 + $0x250] sm:$0xff]
  %v121 = vld [vmem:[%s1 + $0x258] sm:$0xff]
  %v122 = vld [vmem:[%s1 + $0x260] sm:$0xff]
  %v123 = vld [vmem:[%s1 + $0x268] sm:$0xff]
  %v124 = vld [vmem:[%s1 + $0x270] sm:$0xff]
  %v125 = vld [vmem:[%s1 + $0x278] sm:$0xff]
  %v126 = vld [vmem:[%s1 + $0x280] sm:$0xff]
  %v127 = vld [vmem:[%s1 + $0x288] sm:$0xff]
  %v128 = vld [vmem:[%s1 + $0x290] sm:$0xff]
  %v129 = vld [vmem:[%s1 + $0x298] sm:$0xff]
  %v130 = vld [vmem:[%s1 + $0x2a0] sm:$0xff]
  %v131 = vld [vmem:[%s1 + $0x2a8] sm:$0xff]
  %v132 = vld [vmem:[%s1 + $0x2b0] sm:$0xff]
  %v133 = vld [vmem:[%s1 + $0x2b8] sm:$0xff]
  %v134 = vld [vmem:[%s1 + $0x2c0] sm:$0xff]
  %v135 = vld [vmem:[%s1 + $0x2c8] sm:$0xff]
  %v136 = vld [vmem:[%s1 + $0x2d0] sm:$0xff]
  %v137 = vld [vmem:[%s1 + $0x2d8] sm:$0xff]
  %v138 = vld [vmem:[%s1 + $0x2e0] sm:$0xff]
  %v139 = vld [vmem:[%s1 + $0x2e8] sm:$0xff]
  %v140 = vld [vmem:[%s1 + $0x2f0] sm:$0xff]
  %v141 = vld [vmem:[%s1 + $0x2f8] sm:$0xff]
  %v142 = vld [vmem:[%s1 + $0x300] sm:$0xff]
  %v143 = vld [vmem:[%s1 + $0x308] sm:$0xff]
  %v144 = vld [vmem:[%s1 + $0x310] sm:$0xff]
  %v145 = vld [vmem:[%s1 + $0x318] sm:$0xff]
  %v146 = vld [vmem:[%s1 + $0x320] sm:$0xff]
  %v147 = vld [vmem:[%s1 + $0x328] sm:$0xff]
  %v148 = vld [vmem:[%s1 + $0x330] sm:$0xff]
  %v149 = vld [vmem:[%s1 + $0x338] sm:$0xff]
  %v150 = vld [vmem:[%s1 + $0x340] sm:$0xff]
  %v151 = vld [vmem:[%s1 + $0x348] sm:$0xff]
  %v152 = vld [vmem:[%s1 + $0x350] sm:$0xff]
  %v153 = vld [vmem:[%s1 + $0x358] sm:$0xff]
  %v154 = vld [vmem:[%s1 + $0x360] sm:$0xff]
  %v155 = vld [vmem:[%s1 + $0x368] sm:$0xff]
  %v156 = vld [vmem:[%s1 + $0x370] sm:$0xff]
  %v157 = vld [vmem:[%s1 + $0x378] sm:$0xff]
  %v158 = vld [vmem:[%s1 + $0x380] sm:$0xff]
  %v159 = vld [vmem:[%s1 + $0x388] sm:$0xff]
  %v160 = vld [vmem:[%s1 + $0x390] sm:$0xff]
  %v161 = vld [vmem:[%s1 + $0x398] sm:$0xff]
  %v162 = vld [vmem:[%s1 + $0x3a0] sm:$0xff]
  %v163 = vld [vmem:[%s1 + $0x3a8] sm:$0xff]
  %v164 = vld [vmem:[%s1 + $0x3b0] sm:$0xff]
  %v165 = vld [vmem:[%s1 + $0x3b8] sm:$0xff]
  %v166 = vld [vmem:[%s1 + $0x3c0] sm:$0xff]
  %v167 = vld [vmem:[%s1 + $0x3c8] sm:$0xff]
  %v168 = vld [vmem:[%s1 + $0x3d0] sm:$0xff]
  %v169 = vld [vmem:[%s1 + $0x3d8] sm:$0xff]
  %v170 = vld [vmem:[%s1 + $0x3e0] sm:$0xff]
  %v171 = vld [vmem:[%s1 + $0x3e8] sm:$0xff]
  %v172 = vld [vmem:[%s1 + $0x3f0] sm:$0xff]
  %v173 = vld [vmem:[%s1 + $0x3f8] sm:$0xff]
  %v174 = vld [vmem:[%s1 + $0x400] sm:$0xff]
  %v175 = vld [vmem:[%s1 + $0x408] sm:$0xff]
  %v176 = vld [vmem:[%s1 + $0x410] sm:$0xff]
  %v177 = vld [vmem:[%s1 + $0x418] sm:$0xff]
  %v178 = vld [vmem:[%s1 + $0x420] sm:$0xff]
  %v179 = vld [vmem:[%s1 + $0x428] sm:$0xff]
  %v180 = vld [vmem:[%s1 + $0x430] sm:$0xff]
  %v181 = vld [vmem:[%s1 + $0x438] sm:$0xff]
  %v182 = vld [vmem:[%s1 + $0x440] sm:$0xff]
  %v183 = vld [vmem:[%s1 + $0x448] sm:$0xff]
  %v184 = vld [vmem:[%s1 + $0x450] sm:$0xff]
  %v185 = vld [vmem:[%s1 + $0x458] sm:$0xff]
  %v186 = vld [vmem:[%s1 + $0x460] sm:$0xff]
  %v187 = vld [vmem:[%s1 + $0x468] sm:$0xff]
  %v188 = vld [vmem:[%s1 + $0x470] sm:$0xff]
  %v189 = vld [vmem:[%s1 + $0x478] sm:$0xff]
  %v190 = vld [vmem:[%s1 + $0x480] sm:$0xff]
  %v191 = vld [vmem:[%s1 + $0x488] sm:$0xff]
  %v192 = vld [vmem:[%s1 + $0x490] sm:$0xff]
  %v193 = vld [vmem:[%s1 + $0x498] sm:$0xff]
  %v194 = vld [vmem:[%s1 + $0x4a0] sm:$0xff]
  %v195 = vld [vmem:[%s1 + $0x4a8] sm:$0xff]
  %v196 = vld [vmem:[%s1 + $0x4b0] sm:$0xff]
  %v197 = vld [vmem:[%s1 + $0x4b8] sm:$0xff]
  %v198 = vld [vmem:[%s1 + $0x4c0] sm:$0xff]
  %v199 = vld [vmem:[%s1 + $0x4c8] sm:$0xff]
  %v200 = vld [vmem:[%s1 + $0x4d0] sm:$0xff]
  %v201 = vld [vmem:[%s1 + $0x4d8] sm:$0xff]
  %v202 = vld [vmem:[%s1 + $0x4e0] sm:$0xff]
  %v203 = vld [vmem:[%s1 + $0x4e8] sm:$0xff]
  %v204 = vld [vmem:[%s1 + $0x4f0] sm:$0xff]
  %v205 = vld [vmem:[%s1 + $0x4f8] sm:$0xff]
  %v206 = vld [vmem:[%s1 + $0x500] sm:$0xff]
  %v207 = vld [vmem:[%s1 + $0x508] sm:$0xff]
  %v208 = vld [vmem:[%s1 + $0x510] sm:$0xff]
  %v209 = vld [vmem:[%s1 + $0x518] sm:$0xff]
  %v210 = vld [vmem:[%s1 + $0x520] sm:$0xff]
  %v211 = vld [vmem:[%s1 + $0x528] sm:$0xff]
  %v212 = vld [vmem:[%s1 + $0x530] sm:$0xff]
  %v213 = vld [vmem:[%s1 + $0x538] sm:$0xff]
  %v214 = vld [vmem:[%s1 + $0x540] sm:$0xff]
  %v215 = vld [vmem:[%s1 + $0x548] sm:$0xff]
  %v216 = vld [vmem:[%s1 + $0x550] sm:$0xff]
  %v217 = vld [vmem:[%s1 + $0x558] sm:$0xff]
  %v218 = vld [vmem:[%s1 + $0x560] sm:$0xff]
  %v219 = vld [vmem:[%s1 + $0x568] sm:$0xff]
  %v220 = vld [vmem:[%s1 + $0x570] sm:$0xff]
  %v221 = vld [vmem:[%s1 + $0x578] sm:$0xff]
  %v222 = vld [vmem:[%s1 + $0x580] sm:$0xff]
  %v223 = vld [vmem:[%s1 + $0x588] sm:$0xff]
  %v224 = vld [vmem:[%s1 + $0x590] sm:$0xff]
  %v225 = vld [vmem:[%s1 + $0x598] sm:$0xff]
  %v226 = vld [vmem:[%s1 + $0x5a0] sm:$0xff]
  %v227 = vld [vmem:[%s1 + $0x5a8] sm:$0xff]
  %v228 = vld [vmem:[%s1 + $0x5b0] sm:$0xff]
  %v229 = vld [vmem:[%s1 + $0x5b8] sm:$0xff]
  %v230 = vld [vmem:[%s1 + $0x5c0] sm:$0xff]
  %v231 = vld [vmem:[%s1 + $0x5c8] sm:$0xff]
  %v232 = vld [vmem:[%s1 + $0x5d0] sm:$0xff]
  %v233 = vld [vmem:[%s1 + $0x5d8] sm:$0xff]
  %v234 = vld [vmem:[%s1 + $0x5e0] sm:$0xff]
  %v235 = vld [vmem:[%s1 + $0x5e8] sm:$0xff]
  %v236 = vld [vmem:[%s1 + $0x5f0] sm:$0xff]
  %v237 = vld [vmem:[%s1 + $0x5f8] sm:$0xff]
  %v238 = vld [vmem:[%s1 + $0x600] sm:$0xff]
  %v239 = vld [vmem:[%s1 + $0x608] sm:$0xff]
  %v240 = vld [vmem:[%s1 + $0x610] sm:$0xff]
  %v241 = vld [vmem:[%s1 + $0x618] sm:$0xff]
  %v242 = vld [vmem:[%s1 + $0x620] sm:$0xff]
  %v243 = vld [vmem:[%s1 + $0x628] sm:$0xff]
  %v244 = vld [vmem:[%s1 + $0x630] sm:$0xff]
  %v245 = vld [vmem:[%s1 + $0x638] sm:$0xff]
  %v246 = vld [vmem:[%s1 + $0x640] sm:$0xff]
  %v247 = vld [vmem:[%s1 + $0x648] sm:$0xff]
  %v248 = vld [vmem:[%s1 + $0x650] sm:$0xff]
  %v249 = vld [vmem:[%s1 + $0x658] sm:$0xff]
  %v250 = vld [vmem:[%s1 + $0x660] sm:$0xff]
  %v251 = vld [vmem:[%s1 + $0x668] sm:$0xff]
  %v252 = vld [vmem:[%s1 + $0x670] sm:$0xff]
  %v253 = vld [vmem:[%s1 + $0x678] sm:$0xff]
  %v254 = vld [vmem:[%s1 + $0x680] sm:$0xff]
  %v255 = vld [vmem:[%s1 + $0x688] sm:$0xff]
  %v256 = vld [vmem:[%s1 + $0x690] sm:$0xff]
  %v257 = vld [vmem:[%s1 + $0x698] sm:$0xff]
  %v258 = vld [vmem:[%s1 + $0x6a0] sm:$0xff]
  %v259 = vld [vmem:[%s1 + $0x6a8] sm:$0xff]
  %v260 = vld [vmem:[%s1 + $0x6b0] sm:$0xff]
  %v261 = vld [vmem:[%s1 + $0x6b8] sm:$0xff]
  %v262 = vld [vmem:[%s1 + $0x6c0] sm:$0xff]
  %v263 = vld [vmem:[%s1 + $0x6c8] sm:$0xff]
  %v264 = vld [vmem:[%s1 + $0x6d0] sm:$0xff]
  %v265 = vld [vmem:[%s1 + $0x6d8] sm:$0xff]
  %v266 = vld [vmem:[%s1 + $0x6e0] sm:$0xff]
  %v267 = vld [vmem:[%s1 + $0x6e8] sm:$0xff]
  %v268 = vld [vmem:[%s1 + $0x6f0] sm:$0xff]
  %v269 = vld [vmem:[%s1 + $0x6f8] sm:$0xff]
  %v270 = vld [vmem:[%s1 + $0x700] sm:$0xff]
  %v271 = vld [vmem:[%s1 + $0x708] sm:$0xff]
  %v272 = vld [vmem:[%s1 + $0x710] sm:$0xff]
  %v273 = vld [vmem:[%s1 + $0x718] sm:$0xff]
  %v274 = vld [vmem:[%s1 + $0x720] sm:$0xff]
  %v275 = vld [vmem:[%s1 + $0x728] sm:$0xff]
  %v276 = vld [vmem:[%s1 + $0x730] sm:$0xff]
  %v277 = vld [vmem:[%s1 + $0x738] sm:$0xff]
  %v278 = vld [vmem:[%s1 + $0x740] sm:$0xff]
  %v279 = vld [vmem:[%s1 + $0x748] sm:$0xff]
  %v280 = vld [vmem:[%s1 + $0x750] sm:$0xff]
  %v281 = vld [vmem:[%s1 + $0x758] sm:$0xff]
  %v282 = vld [vmem:[%s1 + $0x760] sm:$0xff]
  %v283 = vld [vmem:[%s1 + $0x768] sm:$0xff]
  %v284 = vld [vmem:[%s1 + $0x770] sm:$0xff]
  %v285 = vld [vmem:[%s1 + $0x778] sm:$0xff]
  %v302 = vunpack.c.l.b16 %v30
  %v303 = vunpack.c.h.b16 %v30
  %v304 = vunpack.c.l.b16 %v31
  %v305 = vunpack.c.h.b16 %v31
  %v306 = vunpack.c.l.b16 %v32
  %v307 = vunpack.c.h.b16 %v32
  %v308 = vunpack.c.l.b16 %v33
  %v309 = vunpack.c.h.b16 %v33
  %v310 = vunpack.c.l.b16 %v34
  %v311 = vunpack.c.h.b16 %v34
  %v312 = vunpack.c.l.b16 %v35
  %v313 = vunpack.c.h.b16 %v35
  %v314 = vunpack.c.l.b16 %v36
  %v315 = vunpack.c.h.b16 %v36
  %v316 = vunpack.c.l.b16 %v37
  %v317 = vunpack.c.l.b16 %v38
  %v318 = vunpack.c.h.b16 %v38
  %v319 = vunpack.c.l.b16 %v39
  %v320 = vunpack.c.h.b16 %v39
  %v321 = vunpack.c.l.b16 %v40
  %v322 = vunpack.c.h.b16 %v40
  %v323 = vunpack.c.l.b16 %v41
  %v324 = vunpack.c.h.b16 %v41
  %v325 = vunpack.c.l.b16 %v42
  %v326 = vunpack.c.h.b16 %v42
  %v327 = vunpack.c.l.b16 %v43
  %v328 = vunpack.c.h.b16 %v43
  %v329 = vunpack.c.l.b16 %v44
  %v330 = vunpack.c.h.b16 %v44
  %v331 = vunpack.c.l.b16 %v45
  %v332 = vpack.c.b16 %v317, %v302
  %v333 = vpack.c.b16 %v318, %v303
  %v334 = vpack.c.b16 %v319, %v304
  %v335 = vpack.c.b16 %v320, %v305
  %v336 = vpack.c.b16 %v321, %v306
  %v337 = vpack.c.b16 %v322, %v307
  %v338 = vpack.c.b16 %v323, %v308
  %v339 = vpack.c.b16 %v324, %v309
  %v340 = vpack.c.b16 %v325, %v310
  %v341 = vpack.c.b16 %v326, %v311
  %v342 = vpack.c.b16 %v327, %v312
  %v343 = vpack.c.b16 %v328, %v313
  %v344 = vpack.c.b16 %v329, %v314
  %v345 = vpack.c.b16 %v330, %v315
  %v346 = vpack.c.b16 %v331, %v316
  %v602 = vunpack.c.l.b16 %v46
  %v603 = vunpack.c.h.b16 %v46
  %v604 = vunpack.c.l.b16 %v47
  %v605 = vunpack.c.h.b16 %v47
  %v606 = vunpack.c.l.b16 %v48
  %v607 = vunpack.c.h.b16 %v48
  %v608 = vunpack.c.l.b16 %v49
  %v609 = vunpack.c.h.b16 %v49
  %v610 = vunpack.c.l.b16 %v50
  %v611 = vunpack.c.h.b16 %v50
  %v612 = vunpack.c.l.b16 %v51
  %v613 = vunpack.c.h.b16 %v51
  %v614 = vunpack.c.l.b16 %v52
  %v615 = vunpack.c.h.b16 %v52
  %v616 = vunpack.c.l.b16 %v53
  %v617 = vunpack.c.h.b16 %v53
  %v618 = vunpack.c.l.b16 %v54
  %v619 = vunpack.c.h.b16 %v54
  %v620 = vunpack.c.l.b16 %v55
  %v621 = vunpack.c.h.b16 %v55
  %v622 = vunpack.c.l.b16 %v56
  %v623 = vunpack.c.h.b16 %v56
  %v624 = vunpack.c.l.b16 %v57
  %v625 = vunpack.c.h.b16 %v57
  %v626 = vunpack.c.l.b16 %v58
  %v627 = vunpack.c.h.b16 %v58
  %v628 = vunpack.c.l.b16 %v59
  %v629 = vunpack.c.h.b16 %v59
  %v630 = vunpack.c.l.b16 %v60
  %v631 = vunpack.c.h.b16 %v60
  %v632 = vunpack.c.l.b16 %v61
  %v633 = vunpack.c.h.b16 %v61
  %v634 = vunpack.c.l.b16 %v62
  %v635 = vunpack.c.h.b16 %v62
  %v636 = vunpack.c.l.b16 %v63
  %v637 = vunpack.c.h.b16 %v63
  %v638 = vunpack.c.l.b16 %v64
  %v639 = vunpack.c.h.b16 %v64
  %v640 = vunpack.c.l.b16 %v65
  %v641 = vunpack.c.h.b16 %v65
  %v642 = vunpack.c.l.b16 %v66
  %v643 = vunpack.c.h.b16 %v66
  %v644 = vunpack.c.l.b16 %v67
  %v645 = vunpack.c.h.b16 %v67
  %v646 = vunpack.c.l.b16 %v68
  %v647 = vunpack.c.h.b16 %v68
  %v648 = vunpack.c.l.b16 %v69
  %v649 = vunpack.c.h.b16 %v69
  %v650 = vunpack.c.l.b16 %v70
  %v651 = vunpack.c.h.b16 %v70
  %v652 = vunpack.c.l.b16 %v71
  %v653 = vunpack.c.h.b16 %v71
  %v654 = vunpack.c.l.b16 %v72
  %v655 = vunpack.c.h.b16 %v72
  %v656 = vunpack.c.l.b16 %v73
  %v657 = vunpack.c.h.b16 %v73
  %v658 = vunpack.c.l.b16 %v74
  %v659 = vunpack.c.h.b16 %v74
  %v660 = vunpack.c.l.b16 %v75
  %v661 = vunpack.c.h.b16 %v75
  %v662 = vunpack.c.l.b16 %v76
  %v663 = vunpack.c.h.b16 %v76
  %v664 = vunpack.c.l.b16 %v77
  %v665 = vunpack.c.h.b16 %v77
  %v666 = vunpack.c.l.b16 %v78
  %v667 = vunpack.c.h.b16 %v78
  %v668 = vunpack.c.l.b16 %v79
  %v669 = vunpack.c.h.b16 %v79
  %v670 = vunpack.c.l.b16 %v80
  %v671 = vunpack.c.h.b16 %v80
  %v672 = vunpack.c.l.b16 %v81
  %v673 = vunpack.c.h.b16 %v81
  %v674 = vunpack.c.l.b16 %v82
  %v675 = vunpack.c.h.b16 %v82
  %v676 = vunpack.c.l.b16 %v83
  %v677 = vunpack.c.h.b16 %v83
  %v678 = vunpack.c.l.b16 %v84
  %v679 = vunpack.c.h.b16 %v84
  %v680 = vunpack.c.l.b16 %v85
  %v681 = vunpack.c.h.b16 %v85
  %v682 = vunpack.c.l.b16 %v86
  %v683 = vunpack.c.h.b16 %v86
  %v684 = vunpack.c.l.b16 %v87
  %v685 = vunpack.c.h.b16 %v87
  %v686 = vunpack.c.l.b16 %v88
  %v687 = vunpack.c.h.b16 %v88
  %v688 = vunpack.c.l.b16 %v89
  %v689 = vunpack.c.h.b16 %v89
  %v690 = vunpack.c.l.b16 %v90
  %v691 = vunpack.c.h.b16 %v90
  %v692 = vunpack.c.l.b16 %v91
  %v693 = vunpack.c.h.b16 %v91
  %v694 = vunpack.c.l.b16 %v92
  %v695 = vunpack.c.h.b16 %v92
  %v696 = vunpack.c.l.b16 %v93
  %v697 = vunpack.c.h.b16 %v93
  %v698 = vunpack.c.l.b16 %v94
  %v699 = vunpack.c.h.b16 %v94
  %v700 = vunpack.c.l.b16 %v95
  %v701 = vunpack.c.h.b16 %v95
  %v702 = vunpack.c.l.b16 %v96
  %v703 = vunpack.c.h.b16 %v96
  %v704 = vunpack.c.l.b16 %v97
  %v705 = vunpack.c.h.b16 %v97
  %v706 = vunpack.c.l.b16 %v98
  %v707 = vunpack.c.h.b16 %v98
  %v708 = vunpack.c.l.b16 %v99
  %v709 = vunpack.c.h.b16 %v99
  %v710 = vunpack.c.l.b16 %v100
  %v711 = vunpack.c.h.b16 %v100
  %v712 = vunpack.c.l.b16 %v101
  %v713 = vunpack.c.h.b16 %v101
  %v714 = vunpack.c.l.b16 %v102
  %v715 = vunpack.c.h.b16 %v102
  %v716 = vunpack.c.l.b16 %v103
  %v717 = vunpack.c.h.b16 %v103
  %v718 = vunpack.c.l.b16 %v104
  %v719 = vunpack.c.h.b16 %v104
  %v720 = vunpack.c.l.b16 %v105
  %v721 = vunpack.c.h.b16 %v105
  %v722 = vunpack.c.l.b16 %v106
  %v723 = vunpack.c.h.b16 %v106
  %v724 = vunpack.c.l.b16 %v107
  %v725 = vunpack.c.h.b16 %v107
  %v726 = vunpack.c.l.b16 %v108
  %v727 = vunpack.c.h.b16 %v108
  %v728 = vunpack.c.l.b16 %v109
  %v729 = vunpack.c.h.b16 %v109
  %v730 = vunpack.c.l.b16 %v110
  %v731 = vunpack.c.h.b16 %v110
  %v732 = vunpack.c.l.b16 %v111
  %v733 = vunpack.c.h.b16 %v111
  %v734 = vunpack.c.l.b16 %v112
  %v735 = vunpack.c.h.b16 %v112
  %v736 = vunpack.c.l.b16 %v113
  %v737 = vunpack.c.h.b16 %v113
  %v738 = vunpack.c.l.b16 %v114
  %v739 = vunpack.c.h.b16 %v114
  %v740 = vunpack.c.l.b16 %v115
  %v741 = vunpack.c.h.b16 %v115
  %v742 = vunpack.c.l.b16 %v116
  %v743 = vunpack.c.h.b16 %v116
  %v744 = vunpack.c.l.b16 %v117
  %v745 = vunpack.c.h.b16 %v117
  %v746 = vunpack.c.l.b16 %v118
  %v747 = vunpack.c.h.b16 %v118
  %v748 = vunpack.c.l.b16 %v119
  %v749 = vunpack.c.h.b16 %v119
  %v750 = vunpack.c.l.b16 %v120
  %v751 = vunpack.c.h.b16 %v120
  %v752 = vunpack.c.l.b16 %v121
  %v753 = vunpack.c.h.b16 %v121
  %v754 = vunpack.c.l.b16 %v122
  %v755 = vunpack.c.h.b16 %v122
  %v756 = vunpack.c.l.b16 %v123
  %v757 = vunpack.c.h.b16 %v123
  %v758 = vunpack.c.l.b16 %v124
  %v759 = vunpack.c.h.b16 %v124
  %v760 = vunpack.c.l.b16 %v125
  %v761 = vunpack.c.h.b16 %v125
  %v762 = vunpack.c.l.b16 %v126
  %v763 = vunpack.c.h.b16 %v126
  %v764 = vunpack.c.l.b16 %v127
  %v765 = vunpack.c.h.b16 %v127
  %v766 = vunpack.c.l.b16 %v128
  %v767 = vunpack.c.h.b16 %v128
  %v768 = vunpack.c.l.b16 %v129
  %v769 = vunpack.c.h.b16 %v129
  %v770 = vunpack.c.l.b16 %v130
  %v771 = vunpack.c.h.b16 %v130
  %v772 = vunpack.c.l.b16 %v131
  %v773 = vunpack.c.h.b16 %v131
  %v774 = vunpack.c.l.b16 %v132
  %v775 = vunpack.c.h.b16 %v132
  %v776 = vunpack.c.l.b16 %v133
  %v777 = vunpack.c.h.b16 %v133
  %v778 = vunpack.c.l.b16 %v134
  %v779 = vunpack.c.h.b16 %v134
  %v780 = vunpack.c.l.b16 %v135
  %v781 = vunpack.c.h.b16 %v135
  %v782 = vunpack.c.l.b16 %v136
  %v783 = vunpack.c.h.b16 %v136
  %v784 = vunpack.c.l.b16 %v137
  %v785 = vunpack.c.h.b16 %v137
  %v786 = vunpack.c.l.b16 %v138
  %v787 = vunpack.c.h.b16 %v138
  %v788 = vunpack.c.l.b16 %v139
  %v789 = vunpack.c.h.b16 %v139
  %v790 = vunpack.c.l.b16 %v140
  %v791 = vunpack.c.h.b16 %v140
  %v792 = vunpack.c.l.b16 %v141
  %v793 = vunpack.c.h.b16 %v141
  %v794 = vunpack.c.l.b16 %v142
  %v795 = vunpack.c.h.b16 %v142
  %v796 = vunpack.c.l.b16 %v143
  %v797 = vunpack.c.h.b16 %v143
  %v798 = vunpack.c.l.b16 %v144
  %v799 = vunpack.c.h.b16 %v144
  %v800 = vunpack.c.l.b16 %v145
  %v801 = vunpack.c.h.b16 %v145
  %v802 = vunpack.c.l.b16 %v146
  %v803 = vunpack.c.h.b16 %v146
  %v804 = vunpack.c.l.b16 %v147
  %v805 = vunpack.c.h.b16 %v147
  %v806 = vunpack.c.l.b16 %v148
  %v807 = vunpack.c.h.b16 %v148
  %v808 = vunpack.c.l.b16 %v149
  %v809 = vunpack.c.h.b16 %v149
  %v810 = vunpack.c.l.b16 %v150
  %v811 = vunpack.c.h.b16 %v150
  %v812 = vunpack.c.l.b16 %v151
  %v813 = vunpack.c.h.b16 %v151
  %v814 = vunpack.c.l.b16 %v152
  %v815 = vunpack.c.h.b16 %v152
  %v816 = vunpack.c.l.b16 %v153
  %v817 = vunpack.c.h.b16 %v153
  %v818 = vunpack.c.l.b16 %v154
  %v819 = vunpack.c.h.b16 %v154
  %v820 = vunpack.c.l.b16 %v155
  %v821 = vunpack.c.h.b16 %v155
  %v822 = vunpack.c.l.b16 %v156
  %v823 = vunpack.c.h.b16 %v156
  %v824 = vunpack.c.l.b16 %v157
  %v825 = vunpack.c.h.b16 %v157
  %v826 = vunpack.c.l.b16 %v158
  %v827 = vunpack.c.h.b16 %v158
  %v828 = vunpack.c.l.b16 %v159
  %v829 = vunpack.c.h.b16 %v159
  %v830 = vunpack.c.l.b16 %v160
  %v831 = vunpack.c.h.b16 %v160
  %v832 = vunpack.c.l.b16 %v161
  %v833 = vunpack.c.h.b16 %v161
  %v834 = vunpack.c.l.b16 %v162
  %v835 = vunpack.c.h.b16 %v162
  %v836 = vunpack.c.l.b16 %v163
  %v837 = vunpack.c.h.b16 %v163
  %v838 = vunpack.c.l.b16 %v164
  %v839 = vunpack.c.h.b16 %v164
  %v840 = vunpack.c.l.b16 %v165
  %v841 = vunpack.c.h.b16 %v165
  %v842 = vunpack.c.l.b16 %v166
  %v843 = vunpack.c.h.b16 %v166
  %v844 = vunpack.c.l.b16 %v167
  %v845 = vunpack.c.h.b16 %v167
  %v846 = vunpack.c.l.b16 %v168
  %v847 = vunpack.c.h.b16 %v168
  %v848 = vunpack.c.l.b16 %v169
  %v849 = vunpack.c.h.b16 %v169
  %v850 = vunpack.c.l.b16 %v170
  %v851 = vunpack.c.h.b16 %v170
  %v852 = vunpack.c.l.b16 %v171
  %v853 = vunpack.c.h.b16 %v171
  %v854 = vunpack.c.l.b16 %v172
  %v855 = vunpack.c.h.b16 %v172
  %v856 = vunpack.c.l.b16 %v173
  %v857 = vunpack.c.h.b16 %v173
  %v858 = vunpack.c.l.b16 %v174
  %v859 = vunpack.c.h.b16 %v174
  %v860 = vunpack.c.l.b16 %v175
  %v861 = vunpack.c.h.b16 %v175
  %v862 = vunpack.c.l.b16 %v176
  %v863 = vunpack.c.h.b16 %v176
  %v864 = vunpack.c.l.b16 %v177
  %v865 = vunpack.c.h.b16 %v177
  %v866 = vunpack.c.l.b16 %v178
  %v867 = vunpack.c.h.b16 %v178
  %v868 = vunpack.c.l.b16 %v179
  %v869 = vunpack.c.h.b16 %v179
  %v870 = vunpack.c.l.b16 %v180
  %v871 = vunpack.c.h.b16 %v180
  %v872 = vunpack.c.l.b16 %v181
  %v873 = vunpack.c.h.b16 %v181
  %v874 = vunpack.c.l.b16 %v182
  %v875 = vunpack.c.h.b16 %v182
  %v876 = vunpack.c.l.b16 %v183
  %v877 = vunpack.c.h.b16 %v183
  %v878 = vunpack.c.l.b16 %v184
  %v879 = vunpack.c.h.b16 %v184
  %v880 = vunpack.c.l.b16 %v185
  %v881 = vunpack.c.h.b16 %v185
  %v882 = vunpack.c.l.b16 %v186
  %v883 = vunpack.c.h.b16 %v186
  %v884 = vunpack.c.l.b16 %v187
  %v885 = vunpack.c.h.b16 %v187
  %v886 = vunpack.c.l.b16 %v188
  %v887 = vunpack.c.h.b16 %v188
  %v888 = vunpack.c.l.b16 %v189
  %v889 = vunpack.c.h.b16 %v189
  %v890 = vunpack.c.l.b16 %v190
  %v891 = vunpack.c.h.b16 %v190
  %v892 = vunpack.c.l.b16 %v191
  %v893 = vunpack.c.h.b16 %v191
  %v894 = vunpack.c.l.b16 %v192
  %v895 = vunpack.c.h.b16 %v192
  %v896 = vunpack.c.l.b16 %v193
  %v897 = vunpack.c.h.b16 %v193
  %v898 = vunpack.c.l.b16 %v194
  %v899 = vunpack.c.h.b16 %v194
  %v900 = vunpack.c.l.b16 %v195
  %v901 = vunpack.c.h.b16 %v195
  %v902 = vunpack.c.l.b16 %v196
  %v903 = vunpack.c.h.b16 %v196
  %v904 = vunpack.c.l.b16 %v197
  %v905 = vunpack.c.h.b16 %v197
  %v906 = vunpack.c.l.b16 %v198
  %v907 = vunpack.c.h.b16 %v198
  %v908 = vunpack.c.l.b16 %v199
  %v909 = vunpack.c.h.b16 %v199
  %v910 = vunpack.c.l.b16 %v200
  %v911 = vunpack.c.h.b16 %v200
  %v912 = vunpack.c.l.b16 %v201
  %v913 = vunpack.c.h.b16 %v201
  %v914 = vunpack.c.l.b16 %v202
  %v915 = vunpack.c.h.b16 %v202
  %v916 = vunpack.c.l.b16 %v203
  %v917 = vunpack.c.h.b16 %v203
  %v918 = vunpack.c.l.b16 %v204
  %v919 = vunpack.c.h.b16 %v204
  %v920 = vunpack.c.l.b16 %v205
  %v921 = vunpack.c.h.b16 %v205
  %v922 = vunpack.c.l.b16 %v206
  %v923 = vunpack.c.h.b16 %v206
  %v924 = vunpack.c.l.b16 %v207
  %v925 = vunpack.c.h.b16 %v207
  %v926 = vunpack.c.l.b16 %v208
  %v927 = vunpack.c.h.b16 %v208
  %v928 = vunpack.c.l.b16 %v209
  %v929 = vunpack.c.h.b16 %v209
  %v930 = vunpack.c.l.b16 %v210
  %v931 = vunpack.c.h.b16 %v210
  %v932 = vunpack.c.l.b16 %v211
  %v933 = vunpack.c.h.b16 %v211
  %v934 = vunpack.c.l.b16 %v212
  %v935 = vunpack.c.h.b16 %v212
  %v936 = vunpack.c.l.b16 %v213
  %v937 = vunpack.c.h.b16 %v213
  %v938 = vunpack.c.l.b16 %v214
  %v939 = vunpack.c.h.b16 %v214
  %v940 = vunpack.c.l.b16 %v215
  %v941 = vunpack.c.h.b16 %v215
  %v942 = vunpack.c.l.b16 %v216
  %v943 = vunpack.c.h.b16 %v216
  %v944 = vunpack.c.l.b16 %v217
  %v945 = vunpack.c.h.b16 %v217
  %v946 = vunpack.c.l.b16 %v218
  %v947 = vunpack.c.h.b16 %v218
  %v948 = vunpack.c.l.b16 %v219
  %v949 = vunpack.c.h.b16 %v219
  %v950 = vunpack.c.l.b16 %v220
  %v951 = vunpack.c.h.b16 %v220
  %v952 = vunpack.c.l.b16 %v221
  %v953 = vunpack.c.h.b16 %v221
  %v954 = vunpack.c.l.b16 %v222
  %v955 = vunpack.c.h.b16 %v222
  %v956 = vunpack.c.l.b16 %v223
  %v957 = vunpack.c.h.b16 %v223
  %v958 = vunpack.c.l.b16 %v224
  %v959 = vunpack.c.h.b16 %v224
  %v960 = vunpack.c.l.b16 %v225
  %v961 = vunpack.c.h.b16 %v225
  %v962 = vunpack.c.l.b16 %v226
  %v963 = vunpack.c.h.b16 %v226
  %v964 = vunpack.c.l.b16 %v227
  %v965 = vunpack.c.h.b16 %v227
  %v966 = vunpack.c.l.b16 %v228
  %v967 = vunpack.c.h.b16 %v228
  %v968 = vunpack.c.l.b16 %v229
  %v969 = vunpack.c.h.b16 %v229
  %v970 = vunpack.c.l.b16 %v230
  %v971 = vunpack.c.h.b16 %v230
  %v972 = vunpack.c.l.b16 %v231
  %v973 = vunpack.c.h.b16 %v231
  %v974 = vunpack.c.l.b16 %v232
  %v975 = vunpack.c.h.b16 %v232
  %v976 = vunpack.c.l.b16 %v233
  %v977 = vunpack.c.h.b16 %v233
  %v978 = vunpack.c.l.b16 %v234
  %v979 = vunpack.c.h.b16 %v234
  %v980 = vunpack.c.l.b16 %v235
  %v981 = vunpack.c.h.b16 %v235
  %v982 = vunpack.c.l.b16 %v236
  %v983 = vunpack.c.h.b16 %v236
  %v984 = vunpack.c.l.b16 %v237
  %v985 = vunpack.c.h.b16 %v237
  %v986 = vunpack.c.l.b16 %v238
  %v987 = vunpack.c.h.b16 %v238
  %v988 = vunpack.c.l.b16 %v239
  %v989 = vunpack.c.h.b16 %v239
  %v990 = vunpack.c.l.b16 %v240
  %v991 = vunpack.c.h.b16 %v240
  %v992 = vunpack.c.l.b16 %v241
  %v993 = vunpack.c.h.b16 %v241
  %v994 = vunpack.c.l.b16 %v242
  %v995 = vunpack.c.h.b16 %v242
  %v996 = vunpack.c.l.b16 %v243
  %v997 = vunpack.c.h.b16 %v243
  %v998 = vunpack.c.l.b16 %v244
  %v999 = vunpack.c.h.b16 %v244
  %v1000 = vunpack.c.l.b16 %v245
  %v1001 = vunpack.c.h.b16 %v245
  %v1002 = vunpack.c.l.b16 %v246
  %v1003 = vunpack.c.h.b16 %v246
  %v1004 = vunpack.c.l.b16 %v247
  %v1005 = vunpack.c.h.b16 %v247
  %v1006 = vunpack.c.l.b16 %v248
  %v1007 = vunpack.c.h.b16 %v248
  %v1008 = vunpack.c.l.b16 %v249
  %v1009 = vunpack.c.h.b16 %v249
  %v1010 = vunpack.c.l.b16 %v250
  %v1011 = vunpack.c.h.b16 %v250
  %v1012 = vunpack.c.l.b16 %v251
  %v1013 = vunpack.c.h.b16 %v251
  %v1014 = vunpack.c.l.b16 %v252
  %v1015 = vunpack.c.h.b16 %v252
  %v1016 = vunpack.c.l.b16 %v253
  %v1017 = vunpack.c.h.b16 %v253
  %v1018 = vunpack.c.l.b16 %v254
  %v1019 = vunpack.c.h.b16 %v254
  %v1020 = vunpack.c.l.b16 %v255
  %v1021 = vunpack.c.h.b16 %v255
  %v1022 = vunpack.c.l.b16 %v256
  %v1023 = vunpack.c.h.b16 %v256
  %v1024 = vunpack.c.l.b16 %v257
  %v1025 = vunpack.c.h.b16 %v257
  %v1026 = vunpack.c.l.b16 %v258
  %v1027 = vunpack.c.h.b16 %v258
  %v1028 = vunpack.c.l.b16 %v259
  %v1029 = vunpack.c.h.b16 %v259
  %v1030 = vunpack.c.l.b16 %v260
  %v1031 = vunpack.c.h.b16 %v260
  %v1032 = vunpack.c.l.b16 %v261
  %v1033 = vunpack.c.h.b16 %v261
  %v1034 = vunpack.c.l.b16 %v262
  %v1035 = vunpack.c.h.b16 %v262
  %v1036 = vunpack.c.l.b16 %v263
  %v1037 = vunpack.c.h.b16 %v263
  %v1038 = vunpack.c.l.b16 %v264
  %v1039 = vunpack.c.h.b16 %v264
  %v1040 = vunpack.c.l.b16 %v265
  %v1041 = vunpack.c.h.b16 %v265
  %v1042 = vunpack.c.l.b16 %v266
  %v1043 = vunpack.c.h.b16 %v266
  %v1044 = vunpack.c.l.b16 %v267
  %v1045 = vunpack.c.h.b16 %v267
  %v1046 = vunpack.c.l.b16 %v268
  %v1047 = vunpack.c.h.b16 %v268
  %v1048 = vunpack.c.l.b16 %v269
  %v1049 = vunpack.c.h.b16 %v269
  %v1050 = vunpack.c.l.b16 %v270
  %v1051 = vunpack.c.h.b16 %v270
  %v1052 = vunpack.c.l.b16 %v271
  %v1053 = vunpack.c.h.b16 %v271
  %v1054 = vunpack.c.l.b16 %v272
  %v1055 = vunpack.c.h.b16 %v272
  %v1056 = vunpack.c.l.b16 %v273
  %v1057 = vunpack.c.h.b16 %v273
  %v1058 = vunpack.c.l.b16 %v274
  %v1059 = vunpack.c.h.b16 %v274
  %v1060 = vunpack.c.l.b16 %v275
  %v1061 = vunpack.c.h.b16 %v275
  %v1062 = vunpack.c.l.b16 %v276
  %v1063 = vunpack.c.h.b16 %v276
  %v1064 = vunpack.c.l.b16 %v277
  %v1065 = vunpack.c.h.b16 %v277
  %v1066 = vunpack.c.l.b16 %v278
  %v1067 = vunpack.c.h.b16 %v278
  %v1068 = vunpack.c.l.b16 %v279
  %v1069 = vunpack.c.h.b16 %v279
  %v1070 = vunpack.c.l.b16 %v280
  %v1071 = vunpack.c.h.b16 %v280
  %v1072 = vunpack.c.l.b16 %v281
  %v1073 = vunpack.c.h.b16 %v281
  %v1074 = vunpack.c.l.b16 %v282
  %v1075 = vunpack.c.h.b16 %v282
  %v1076 = vunpack.c.l.b16 %v283
  %v1077 = vunpack.c.h.b16 %v283
  %v1078 = vunpack.c.l.b16 %v284
  %v1079 = vunpack.c.h.b16 %v284
  %v1080 = vunpack.c.l.b16 %v285
  %v1081 = vunpack.c.h.b16 %v285
  %v1082 = vpack.c.b16 %v604, %v602
  %v1083 = vpack.c.b16 %v605, %v603
  %v1084 = vpack.c.b16 %v608, %v606
  %v1085 = vpack.c.b16 %v609, %v607
  %v1086 = vpack.c.b16 %v612, %v610
  %v1087 = vpack.c.b16 %v613, %v611
  %v1088 = vpack.c.b16 %v616, %v614
  %v1089 = vpack.c.b16 %v617, %v615
  %v1090 = vpack.c.b16 %v620, %v618
  %v1091 = vpack.c.b16 %v621, %v619
  %v1092 = vpack.c.b16 %v624, %v622
  %v1093 = vpack.c.b16 %v625, %v623
  %v1094 = vpack.c.b16 %v628, %v626
  %v1095 = vpack.c.b16 %v629, %v627
  %v1096 = vpack.c.b16 %v632, %v630
  %v1097 = vpack.c.b16 %v633, %v631
  %v1098 = vpack.c.b16 %v636, %v634
  %v1099 = vpack.c.b16 %v637, %v635
  %v1100 = vpack.c.b16 %v640, %v638
  %v1101 = vpack.c.b16 %v641, %v639
  %v1102 = vpack.c.b16 %v644, %v642
  %v1103 = vpack.c.b16 %v645, %v643
  %v1104 = vpack.c.b16 %v648, %v646
  %v1105 = vpack.c.b16 %v649, %v647
  %v1106 = vpack.c.b16 %v652, %v650
  %v1107 = vpack.c.b16 %v653, %v651
  %v1108 = vpack.c.b16 %v656, %v654
  %v1109 = vpack.c.b16 %v657, %v655
  %v1110 = vpack.c.b16 %v660, %v658
  %v1111 = vpack.c.b16 %v661, %v659
  %v1112 = vpack.c.b16 %v664, %v662
  %v1113 = vpack.c.b16 %v665, %v663
  %v1114 = vpack.c.b16 %v668, %v666
  %v1115 = vpack.c.b16 %v669, %v667
  %v1116 = vpack.c.b16 %v672, %v670
  %v1117 = vpack.c.b16 %v673, %v671
  %v1118 = vpack.c.b16 %v676, %v674
  %v1119 = vpack.c.b16 %v677, %v675
  %v1120 = vpack.c.b16 %v680, %v678
  %v1121 = vpack.c.b16 %v681, %v679
  %v1122 = vpack.c.b16 %v684, %v682
  %v1123 = vpack.c.b16 %v685, %v683
  %v1124 = vpack.c.b16 %v688, %v686
  %v1125 = vpack.c.b16 %v689, %v687
  %v1126 = vpack.c.b16 %v692, %v690
  %v1127 = vpack.c.b16 %v693, %v691
  %v1128 = vpack.c.b16 %v696, %v694
  %v1129 = vpack.c.b16 %v697, %v695
  %v1130 = vpack.c.b16 %v700, %v698
  %v1131 = vpack.c.b16 %v701, %v699
  %v1132 = vpack.c.b16 %v704, %v702
  %v1133 = vpack.c.b16 %v705, %v703
  %v1134 = vpack.c.b16 %v708, %v706
  %v1135 = vpack.c.b16 %v709, %v707
  %v1136 = vpack.c.b16 %v712, %v710
  %v1137 = vpack.c.b16 %v713, %v711
  %v1138 = vpack.c.b16 %v716, %v714
  %v1139 = vpack.c.b16 %v717, %v715
  %v1140 = vpack.c.b16 %v720, %v718
  %v1141 = vpack.c.b16 %v721, %v719
  %v1142 = vpack.c.b16 %v724, %v722
  %v1143 = vpack.c.b16 %v725, %v723
  %v1144 = vpack.c.b16 %v728, %v726
  %v1145 = vpack.c.b16 %v729, %v727
  %v1146 = vpack.c.b16 %v732, %v730
  %v1147 = vpack.c.b16 %v733, %v731
  %v1148 = vpack.c.b16 %v736, %v734
  %v1149 = vpack.c.b16 %v737, %v735
  %v1150 = vpack.c.b16 %v740, %v738
  %v1151 = vpack.c.b16 %v741, %v739
  %v1152 = vpack.c.b16 %v744, %v742
  %v1153 = vpack.c.b16 %v745, %v743
  %v1154 = vpack.c.b16 %v748, %v746
  %v1155 = vpack.c.b16 %v749, %v747
  %v1156 = vpack.c.b16 %v752, %v750
  %v1157 = vpack.c.b16 %v753, %v751
  %v1158 = vpack.c.b16 %v756, %v754
  %v1159 = vpack.c.b16 %v757, %v755
  %v1160 = vpack.c.b16 %v760, %v758
  %v1161 = vpack.c.b16 %v761, %v759
  %v1162 = vpack.c.b16 %v764, %v762
  %v1163 = vpack.c.b16 %v765, %v763
  %v1164 = vpack.c.b16 %v768, %v766
  %v1165 = vpack.c.b16 %v769, %v767
  %v1166 = vpack.c.b16 %v772, %v770
  %v1167 = vpack.c.b16 %v773, %v771
  %v1168 = vpack.c.b16 %v776, %v774
  %v1169 = vpack.c.b16 %v777, %v775
  %v1170 = vpack.c.b16 %v780, %v778
  %v1171 = vpack.c.b16 %v781, %v779
  %v1172 = vpack.c.b16 %v784, %v782
  %v1173 = vpack.c.b16 %v785, %v783
  %v1174 = vpack.c.b16 %v788, %v786
  %v1175 = vpack.c.b16 %v789, %v787
  %v1176 = vpack.c.b16 %v792, %v790
  %v1177 = vpack.c.b16 %v793, %v791
  %v1178 = vpack.c.b16 %v796, %v794
  %v1179 = vpack.c.b16 %v797, %v795
  %v1180 = vpack.c.b16 %v800, %v798
  %v1181 = vpack.c.b16 %v801, %v799
  %v1182 = vpack.c.b16 %v804, %v802
  %v1183 = vpack.c.b16 %v805, %v803
  %v1184 = vpack.c.b16 %v808, %v806
  %v1185 = vpack.c.b16 %v809, %v807
  %v1186 = vpack.c.b16 %v812, %v810
  %v1187 = vpack.c.b16 %v813, %v811
  %v1188 = vpack.c.b16 %v816, %v814
  %v1189 = vpack.c.b16 %v817, %v815
  %v1190 = vpack.c.b16 %v820, %v818
  %v1191 = vpack.c.b16 %v821, %v819
  %v1192 = vpack.c.b16 %v824, %v822
  %v1193 = vpack.c.b16 %v825, %v823
  %v1194 = vpack.c.b16 %v828, %v826
  %v1195 = vpack.c.b16 %v829, %v827
  %v1196 = vpack.c.b16 %v832, %v830
  %v1197 = vpack.c.b16 %v833, %v831
  %v1198 = vpack.c.b16 %v836, %v834
  %v1199 = vpack.c.b16 %v837, %v835
  %v1200 = vpack.c.b16 %v840, %v838
  %v1201 = vpack.c.b16 %v841, %v839
  %v1202 = vpack.c.b16 %v844, %v842
  %v1203 = vpack.c.b16 %v845, %v843
  %v1204 = vpack.c.b16 %v848, %v846
  %v1205 = vpack.c.b16 %v849, %v847
  %v1206 = vpack.c.b16 %v852, %v850
  %v1207 = vpack.c.b16 %v853, %v851
  %v1208 = vpack.c.b16 %v856, %v854
  %v1209 = vpack.c.b16 %v857, %v855
  %v1210 = vpack.c.b16 %v860, %v858
  %v1211 = vpack.c.b16 %v861, %v859
  %v1212 = vpack.c.b16 %v864, %v862
  %v1213 = vpack.c.b16 %v865, %v863
  %v1214 = vpack.c.b16 %v868, %v866
  %v1215 = vpack.c.b16 %v869, %v867
  %v1216 = vpack.c.b16 %v872, %v870
  %v1217 = vpack.c.b16 %v873, %v871
  %v1218 = vpack.c.b16 %v876, %v874
  %v1219 = vpack.c.b16 %v877, %v875
  %v1220 = vpack.c.b16 %v880, %v878
  %v1221 = vpack.c.b16 %v881, %v879
  %v1222 = vpack.c.b16 %v884, %v882
  %v1223 = vpack.c.b16 %v885, %v883
  %v1224 = vpack.c.b16 %v888, %v886
  %v1225 = vpack.c.b16 %v889, %v887
  %v1226 = vpack.c.b16 %v892, %v890
  %v1227 = vpack.c.b16 %v893, %v891
  %v1228 = vpack.c.b16 %v896, %v894
  %v1229 = vpack.c.b16 %v897, %v895
  %v1230 = vpack.c.b16 %v900, %v898
  %v1231 = vpack.c.b16 %v901, %v899
  %v1232 = vpack.c.b16 %v904, %v902
  %v1233 = vpack.c.b16 %v905, %v903
  %v1234 = vpack.c.b16 %v908, %v906
  %v1235 = vpack.c.b16 %v909, %v907
  %v1236 = vpack.c.b16 %v912, %v910
  %v1237 = vpack.c.b16 %v913, %v911
  %v1238 = vpack.c.b16 %v916, %v914
  %v1239 = vpack.c.b16 %v917, %v915
  %v1240 = vpack.c.b16 %v920, %v918
  %v1241 = vpack.c.b16 %v921, %v919
  %v1242 = vpack.c.b16 %v924, %v922
  %v1243 = vpack.c.b16 %v925, %v923
  %v1244 = vpack.c.b16 %v928, %v926
  %v1245 = vpack.c.b16 %v929, %v927
  %v1246 = vpack.c.b16 %v932, %v930
  %v1247 = vpack.c.b16 %v933, %v931
  %v1248 = vpack.c.b16 %v936, %v934
  %v1249 = vpack.c.b16 %v937, %v935
  %v1250 = vpack.c.b16 %v940, %v938
  %v1251 = vpack.c.b16 %v941, %v939
  %v1252 = vpack.c.b16 %v944, %v942
  %v1253 = vpack.c.b16 %v945, %v943
  %v1254 = vpack.c.b16 %v948, %v946
  %v1255 = vpack.c.b16 %v949, %v947
  %v1256 = vpack.c.b16 %v952, %v950
  %v1257 = vpack.c.b16 %v953, %v951
  %v1258 = vpack.c.b16 %v956, %v954
  %v1259 = vpack.c.b16 %v957, %v955
  %v1260 = vpack.c.b16 %v960, %v958
  %v1261 = vpack.c.b16 %v961, %v959
  %v1262 = vpack.c.b16 %v964, %v962
  %v1263 = vpack.c.b16 %v965, %v963
  %v1264 = vpack.c.b16 %v968, %v966
  %v1265 = vpack.c.b16 %v969, %v967
  %v1266 = vpack.c.b16 %v972, %v970
  %v1267 = vpack.c.b16 %v973, %v971
  %v1268 = vpack.c.b16 %v976, %v974
  %v1269 = vpack.c.b16 %v977, %v975
  %v1270 = vpack.c.b16 %v980, %v978
  %v1271 = vpack.c.b16 %v981, %v979
  %v1272 = vpack.c.b16 %v984, %v982
  %v1273 = vpack.c.b16 %v985, %v983
  %v1274 = vpack.c.b16 %v988, %v986
  %v1275 = vpack.c.b16 %v989, %v987
  %v1276 = vpack.c.b16 %v992, %v990
  %v1277 = vpack.c.b16 %v993, %v991
  %v1278 = vpack.c.b16 %v996, %v994
  %v1279 = vpack.c.b16 %v997, %v995
  %v1280 = vpack.c.b16 %v1000, %v998
  %v1281 = vpack.c.b16 %v1001, %v999
  %v1282 = vpack.c.b16 %v1004, %v1002
  %v1283 = vpack.c.b16 %v1005, %v1003
  %v1284 = vpack.c.b16 %v1008, %v1006
  %v1285 = vpack.c.b16 %v1009, %v1007
  %v1286 = vpack.c.b16 %v1012, %v1010
  %v1287 = vpack.c.b16 %v1013, %v1011
  %v1288 = vpack.c.b16 %v1016, %v1014
  %v1289 = vpack.c.b16 %v1017, %v1015
  %v1290 = vpack.c.b16 %v1020, %v1018
  %v1291 = vpack.c.b16 %v1021, %v1019
  %v1292 = vpack.c.b16 %v1024, %v1022
  %v1293 = vpack.c.b16 %v1025, %v1023
  %v1294 = vpack.c.b16 %v1028, %v1026
  %v1295 = vpack.c.b16 %v1029, %v1027
  %v1296 = vpack.c.b16 %v1032, %v1030
  %v1297 = vpack.c.b16 %v1033, %v1031
  %v1298 = vpack.c.b16 %v1036, %v1034
  %v1299 = vpack.c.b16 %v1037, %v1035
  %v1300 = vpack.c.b16 %v1040, %v1038
  %v1301 = vpack.c.b16 %v1041, %v1039
  %v1302 = vpack.c.b16 %v1044, %v1042
  %v1303 = vpack.c.b16 %v1045, %v1043
  %v1304 = vpack.c.b16 %v1048, %v1046
  %v1305 = vpack.c.b16 %v1049, %v1047
  %v1306 = vpack.c.b16 %v1052, %v1050
  %v1307 = vpack.c.b16 %v1053, %v1051
  %v1308 = vpack.c.b16 %v1056, %v1054
  %v1309 = vpack.c.b16 %v1057, %v1055
  %v1310 = vpack.c.b16 %v1060, %v1058
  %v1311 = vpack.c.b16 %v1061, %v1059
  %v1312 = vpack.c.b16 %v1064, %v1062
  %v1313 = vpack.c.b16 %v1065, %v1063
  %v1314 = vpack.c.b16 %v1068, %v1066
  %v1315 = vpack.c.b16 %v1069, %v1067
  %v1316 = vpack.c.b16 %v1072, %v1070
  %v1317 = vpack.c.b16 %v1073, %v1071
  %v1318 = vpack.c.b16 %v1076, %v1074
  %v1319 = vpack.c.b16 %v1077, %v1075
  %v1320 = vpack.c.b16 %v1080, %v1078
  %v1321 = vpack.c.b16 %v1081, %v1079
  %1562 = vmatprep.subr.bf16.mxu0 %v1083
  %1563 = vmatpush1.bf16.msra.mxu0 %v1082
  %1564 = vmatprep.subr.bf16.mxu0 %v1085
  %1565 = vmatpush1.bf16.msra.mxu0 %v1084
  %1566 = vmatprep.subr.bf16.mxu0 %v1087
  %1567 = vmatpush1.bf16.msra.mxu0 %v1086
  %1568 = vmatprep.subr.bf16.mxu0 %v1089
  %1569 = vmatpush1.bf16.msra.mxu0 %v1088
  %1570 = vmatprep.subr.bf16.mxu0 %v1091
  %1571 = vmatpush1.bf16.msra.mxu0 %v1090
  %1572 = vmatprep.subr.bf16.mxu0 %v1093
  %1573 = vmatpush1.bf16.msra.mxu0 %v1092
  %1574 = vmatprep.subr.bf16.mxu0 %v1095
  %1575 = vmatpush1.bf16.msra.mxu0 %v1094
  %1576 = vmatprep.subr.bf16.mxu0 %v1097
  %1577 = vmatpush1.bf16.msra.mxu0 %v1096
  %1578 = vmatprep.subr.bf16.mxu0 %v1099
  %1579 = vmatpush1.bf16.msra.mxu0 %v1098
  %1580 = vmatprep.subr.bf16.mxu0 %v1101
  %1581 = vmatpush1.bf16.msra.mxu0 %v1100
  %1582 = vmatprep.subr.bf16.mxu0 %v1103
  %1583 = vmatpush1.bf16.msra.mxu0 %v1102
  %1584 = vmatprep.subr.bf16.mxu0 %v1105
  %1585 = vmatpush1.bf16.msra.mxu0 %v1104
  %1586 = vmatprep.subr.bf16.mxu0 %v1107
  %1587 = vmatpush1.bf16.msra.mxu0 %v1106
  %1588 = vmatprep.subr.bf16.mxu0 %v1109
  %1589 = vmatpush1.bf16.msra.mxu0 %v1108
  %1590 = vmatprep.subr.bf16.mxu0 %v1111
  %1591 = vmatpush1.bf16.msra.mxu0 %v1110
  %1592 = vmatprep.subr.bf16.mxu0 %v1113
  %1593 = vmatpush1.bf16.msra.mxu0 %v1112
  %1594 = vmatprep.mubr.bf16.mxu0 %v333
  %1595 = vmatmul.mubr.bf16.gmra.mrb[0].mxu0 %v332
  %v1596 = vpop.f32.mrb[0].mxu0
  %v1597 = vadd.f32 0.0, %v1596
  %v1598 = vpop.f32.mrb[0].mxu0
  %v1599 = vadd.f32 0.0, %v1598
  %v1600 = vpop.f32.mrb[0].mxu0
  %v1601 = vadd.f32 0.0, %v1600
  %v1602 = vpop.f32.mrb[0].mxu0
  %v1603 = vadd.f32 0.0, %v1602
  %1604 = vdwg.mxu0
  %1605 = vmatprep.subr.bf16.mxu0 %v1115
  %1606 = vmatpush1.bf16.msra.mxu0 %v1114
  %1607 = vmatprep.subr.bf16.mxu0 %v1117
  %1608 = vmatpush1.bf16.msra.mxu0 %v1116
  %1609 = vmatprep.subr.bf16.mxu0 %v1119
  %1610 = vmatpush1.bf16.msra.mxu0 %v1118
  %1611 = vmatprep.subr.bf16.mxu0 %v1121
  %1612 = vmatpush1.bf16.msra.mxu0 %v1120
  %1613 = vmatprep.subr.bf16.mxu0 %v1123
  %1614 = vmatpush1.bf16.msra.mxu0 %v1122
  %1615 = vmatprep.subr.bf16.mxu0 %v1125
  %1616 = vmatpush1.bf16.msra.mxu0 %v1124
  %1617 = vmatprep.subr.bf16.mxu0 %v1127
  %1618 = vmatpush1.bf16.msra.mxu0 %v1126
  %1619 = vmatprep.subr.bf16.mxu0 %v1129
  %1620 = vmatpush1.bf16.msra.mxu0 %v1128
  %1621 = vmatprep.subr.bf16.mxu0 %v1131
  %1622 = vmatpush1.bf16.msra.mxu0 %v1130
  %1623 = vmatprep.subr.bf16.mxu0 %v1133
  %1624 = vmatpush1.bf16.msra.mxu0 %v1132
  %1625 = vmatprep.subr.bf16.mxu0 %v1135
  %1626 = vmatpush1.bf16.msra.mxu0 %v1134
  %1627 = vmatprep.subr.bf16.mxu0 %v1137
  %1628 = vmatpush1.bf16.msra.mxu0 %v1136
  %1629 = vmatprep.subr.bf16.mxu0 %v1139
  %1630 = vmatpush1.bf16.msra.mxu0 %v1138
  %1631 = vmatprep.subr.bf16.mxu0 %v1141
  %1632 = vmatpush1.bf16.msra.mxu0 %v1140
  %1633 = vmatprep.subr.bf16.mxu0 %v1143
  %1634 = vmatpush1.bf16.msra.mxu0 %v1142
  %1635 = vmatprep.subr.bf16.mxu0 %v1145
  %1636 = vmatpush1.bf16.msra.mxu0 %v1144
  %1637 = vmatprep.mubr.bf16.mxu0 %v335
  %1638 = vmatmul.mubr.bf16.gmra.mrb[0].mxu0 %v334
  %v1639 = vpop.f32.mrb[0].mxu0
  %v1640 = vadd.f32 %v1597, %v1639
  %v1641 = vpop.f32.mrb[0].mxu0
  %v1642 = vadd.f32 %v1599, %v1641
  %v1643 = vpop.f32.mrb[0].mxu0
  %v1644 = vadd.f32 %v1601, %v1643
  %v1645 = vpop.f32.mrb[0].mxu0
  %v1646 = vadd.f32 %v1603, %v1645
  %1647 = vdwg.mxu0
  %1648 = vmatprep.subr.bf16.mxu0 %v1147
  %1649 = vmatpush1.bf16.msra.mxu0 %v1146
  %1650 = vmatprep.subr.bf16.mxu0 %v1149
  %1651 = vmatpush1.bf16.msra.mxu0 %v1148
  %1652 = vmatprep.subr.bf16.mxu0 %v1151
  %1653 = vmatpush1.bf16.msra.mxu0 %v1150
  %1654 = vmatprep.subr.bf16.mxu0 %v1153
  %1655 = vmatpush1.bf16.msra.mxu0 %v1152
  %1656 = vmatprep.subr.bf16.mxu0 %v1155
  %1657 = vmatpush1.bf16.msra.mxu0 %v1154
  %1658 = vmatprep.subr.bf16.mxu0 %v1157
  %1659 = vmatpush1.bf16.msra.mxu0 %v1156
  %1660 = vmatprep.subr.bf16.mxu0 %v1159
  %1661 = vmatpush1.bf16.msra.mxu0 %v1158
  %1662 = vmatprep.subr.bf16.mxu0 %v1161
  %1663 = vmatpush1.bf16.msra.mxu0 %v1160
  %1664 = vmatprep.subr.bf16.mxu0 %v1163
  %1665 = vmatpush1.bf16.msra.mxu0 %v1162
  %1666 = vmatprep.subr.bf16.mxu0 %v1165
  %1667 = vmatpush1.bf16.msra.mxu0 %v1164
  %1668 = vmatprep.subr.bf16.mxu0 %v1167
  %1669 = vmatpush1.bf16.msra.mxu0 %v1166
  %1670 = vmatprep.subr.bf16.mxu0 %v1169
  %1671 = vmatpush1.bf16.msra.mxu0 %v1168
  %1672 = vmatprep.subr.bf16.mxu0 %v1171
  %1673 = vmatpush1.bf16.msra.mxu0 %v1170
  %1674 = vmatprep.subr.bf16.mxu0 %v1173
  %1675 = vmatpush1.bf16.msra.mxu0 %v1172
  %1676 = vmatprep.subr.bf16.mxu0 %v1175
  %1677 = vmatpush1.bf16.msra.mxu0 %v1174
  %1678 = vmatprep.subr.bf16.mxu0 %v1177
  %1679 = vmatpush1.bf16.msra.mxu0 %v1176
  %1680 = vmatprep.mubr.bf16.mxu0 %v337
  %1681 = vmatmul.mubr.bf16.gmra.mrb[0].mxu0 %v336
  %v1682 = vpop.f32.mrb[0].mxu0
  %v1683 = vadd.f32 %v1640, %v1682
  %v1684 = vpop.f32.mrb[0].mxu0
  %v1685 = vadd.f32 %v1642, %v1684
  %v1686 = vpop.f32.mrb[0].mxu0
  %v1687 = vadd.f32 %v1644, %v1686
  %v1688 = vpop.f32.mrb[0].mxu0
  %v1689 = vadd.f32 %v1646, %v1688
  %1690 = vdwg.mxu0
  %1691 = vmatprep.subr.bf16.mxu0 %v1179
  %1692 = vmatpush1.bf16.msra.mxu0 %v1178
  %1693 = vmatprep.subr.bf16.mxu0 %v1181
  %1694 = vmatpush1.bf16.msra.mxu0 %v1180
  %1695 = vmatprep.subr.bf16.mxu0 %v1183
  %1696 = vmatpush1.bf16.msra.mxu0 %v1182
  %1697 = vmatprep.subr.bf16.mxu0 %v1185
  %1698 = vmatpush1.bf16.msra.mxu0 %v1184
  %1699 = vmatprep.subr.bf16.mxu0 %v1187
  %1700 = vmatpush1.bf16.msra.mxu0 %v1186
  %1701 = vmatprep.subr.bf16.mxu0 %v1189
  %1702 = vmatpush1.bf16.msra.mxu0 %v1188
  %1703 = vmatprep.subr.bf16.mxu0 %v1191
  %1704 = vmatpush1.bf16.msra.mxu0 %v1190
  %1705 = vmatprep.subr.bf16.mxu0 %v1193
  %1706 = vmatpush1.bf16.msra.mxu0 %v1192
  %1707 = vmatprep.subr.bf16.mxu0 %v1195
  %1708 = vmatpush1.bf16.msra.mxu0 %v1194
  %1709 = vmatprep.subr.bf16.mxu0 %v1197
  %1710 = vmatpush1.bf16.msra.mxu0 %v1196
  %1711 = vmatprep.subr.bf16.mxu0 %v1199
  %1712 = vmatpush1.bf16.msra.mxu0 %v1198
  %1713 = vmatprep.subr.bf16.mxu0 %v1201
  %1714 = vmatpush1.bf16.msra.mxu0 %v1200
  %1715 = vmatprep.subr.bf16.mxu0 %v1203
  %1716 = vmatpush1.bf16.msra.mxu0 %v1202
  %1717 = vmatprep.subr.bf16.mxu0 %v1205
  %1718 = vmatpush1.bf16.msra.mxu0 %v1204
  %1719 = vmatprep.subr.bf16.mxu0 %v1207
  %1720 = vmatpush1.bf16.msra.mxu0 %v1206
  %1721 = vmatprep.subr.bf16.mxu0 %v1209
  %1722 = vmatpush1.bf16.msra.mxu0 %v1208
  %1723 = vmatprep.mubr.bf16.mxu0 %v339
  %1724 = vmatmul.mubr.bf16.gmra.mrb[0].mxu0 %v338
  %v1725 = vpop.f32.mrb[0].mxu0
  %v1726 = vadd.f32 %v1683, %v1725
  %v1727 = vpop.f32.mrb[0].mxu0
  %v1728 = vadd.f32 %v1685, %v1727
  %v1729 = vpop.f32.mrb[0].mxu0
  %v1730 = vadd.f32 %v1687, %v1729
  %v1731 = vpop.f32.mrb[0].mxu0
  %v1732 = vadd.f32 %v1689, %v1731
  %1733 = vdwg.mxu0
  %1734 = vmatprep.subr.bf16.mxu0 %v1211
  %1735 = vmatpush1.bf16.msra.mxu0 %v1210
  %1736 = vmatprep.subr.bf16.mxu0 %v1213
  %1737 = vmatpush1.bf16.msra.mxu0 %v1212
  %1738 = vmatprep.subr.bf16.mxu0 %v1215
  %1739 = vmatpush1.bf16.msra.mxu0 %v1214
  %1740 = vmatprep.subr.bf16.mxu0 %v1217
  %1741 = vmatpush1.bf16.msra.mxu0 %v1216
  %1742 = vmatprep.subr.bf16.mxu0 %v1219
  %1743 = vmatpush1.bf16.msra.mxu0 %v1218
  %1744 = vmatprep.subr.bf16.mxu0 %v1221
  %1745 = vmatpush1.bf16.msra.mxu0 %v1220
  %1746 = vmatprep.subr.bf16.mxu0 %v1223
  %1747 = vmatpush1.bf16.msra.mxu0 %v1222
  %1748 = vmatprep.subr.bf16.mxu0 %v1225
  %1749 = vmatpush1.bf16.msra.mxu0 %v1224
  %1750 = vmatprep.subr.bf16.mxu0 %v1227
  %1751 = vmatpush1.bf16.msra.mxu0 %v1226
  %1752 = vmatprep.subr.bf16.mxu0 %v1229
  %1753 = vmatpush1.bf16.msra.mxu0 %v1228
  %1754 = vmatprep.subr.bf16.mxu0 %v1231
  %1755 = vmatpush1.bf16.msra.mxu0 %v1230
  %1756 = vmatprep.subr.bf16.mxu0 %v1233
  %1757 = vmatpush1.bf16.msra.mxu0 %v1232
  %1758 = vmatprep.subr.bf16.mxu0 %v1235
  %1759 = vmatpush1.bf16.msra.mxu0 %v1234
  %1760 = vmatprep.subr.bf16.mxu0 %v1237
  %1761 = vmatpush1.bf16.msra.mxu0 %v1236
  %1762 = vmatprep.subr.bf16.mxu0 %v1239
  %1763 = vmatpush1.bf16.msra.mxu0 %v1238
  %1764 = vmatprep.subr.bf16.mxu0 %v1241
  %1765 = vmatpush1.bf16.msra.mxu0 %v1240
  %1766 = vmatprep.mubr.bf16.mxu0 %v341
  %1767 = vmatmul.mubr.bf16.gmra.mrb[0].mxu0 %v340
  %v1768 = vpop.f32.mrb[0].mxu0
  %v1769 = vadd.f32 %v1726, %v1768
  %v1770 = vpop.f32.mrb[0].mxu0
  %v1771 = vadd.f32 %v1728, %v1770
  %v1772 = vpop.f32.mrb[0].mxu0
  %v1773 = vadd.f32 %v1730, %v1772
  %v1774 = vpop.f32.mrb[0].mxu0
  %v1775 = vadd.f32 %v1732, %v1774
  %1776 = vdwg.mxu0
  %1777 = vmatprep.subr.bf16.mxu0 %v1243
  %1778 = vmatpush1.bf16.msra.mxu0 %v1242
  %1779 = vmatprep.subr.bf16.mxu0 %v1245
  %1780 = vmatpush1.bf16.msra.mxu0 %v1244
  %1781 = vmatprep.subr.bf16.mxu0 %v1247
  %1782 = vmatpush1.bf16.msra.mxu0 %v1246
  %1783 = vmatprep.subr.bf16.mxu0 %v1249
  %1784 = vmatpush1.bf16.msra.mxu0 %v1248
  %1785 = vmatprep.subr.bf16.mxu0 %v1251
  %1786 = vmatpush1.bf16.msra.mxu0 %v1250
  %1787 = vmatprep.subr.bf16.mxu0 %v1253
  %1788 = vmatpush1.bf16.msra.mxu0 %v1252
  %1789 = vmatprep.subr.bf16.mxu0 %v1255
  %1790 = vmatpush1.bf16.msra.mxu0 %v1254
  %1791 = vmatprep.subr.bf16.mxu0 %v1257
  %1792 = vmatpush1.bf16.msra.mxu0 %v1256
  %1793 = vmatprep.subr.bf16.mxu0 %v1259
  %1794 = vmatpush1.bf16.msra.mxu0 %v1258
  %1795 = vmatprep.subr.bf16.mxu0 %v1261
  %1796 = vmatpush1.bf16.msra.mxu0 %v1260
  %1797 = vmatprep.subr.bf16.mxu0 %v1263
  %1798 = vmatpush1.bf16.msra.mxu0 %v1262
  %1799 = vmatprep.subr.bf16.mxu0 %v1265
  %1800 = vmatpush1.bf16.msra.mxu0 %v1264
  %1801 = vmatprep.subr.bf16.mxu0 %v1267
  %1802 = vmatpush1.bf16.msra.mxu0 %v1266
  %1803 = vmatprep.subr.bf16.mxu0 %v1269
  %1804 = vmatpush1.bf16.msra.mxu0 %v1268
  %1805 = vmatprep.subr.bf16.mxu0 %v1271
  %1806 = vmatpush1.bf16.msra.mxu0 %v1270
  %1807 = vmatprep.subr.bf16.mxu0 %v1273
  %1808 = vmatpush1.bf16.msra.mxu0 %v1272
  %1809 = vmatprep.mubr.bf16.mxu0 %v343
  %1810 = vmatmul.mubr.bf16.gmra.mrb[0].mxu0 %v342
  %v1811 = vpop.f32.mrb[0].mxu0
  %v1812 = vadd.f32 %v1769, %v1811
  %v1813 = vpop.f32.mrb[0].mxu0
  %v1814 = vadd.f32 %v1771, %v1813
  %v1815 = vpop.f32.mrb[0].mxu0
  %v1816 = vadd.f32 %v1773, %v1815
  %v1817 = vpop.f32.mrb[0].mxu0
  %v1818 = vadd.f32 %v1775, %v1817
  %1819 = vdwg.mxu0
  %1820 = vmatprep.subr.bf16.mxu0 %v1275
  %1821 = vmatpush1.bf16.msra.mxu0 %v1274
  %1822 = vmatprep.subr.bf16.mxu0 %v1277
  %1823 = vmatpush1.bf16.msra.mxu0 %v1276
  %1824 = vmatprep.subr.bf16.mxu0 %v1279
  %1825 = vmatpush1.bf16.msra.mxu0 %v1278
  %1826 = vmatprep.subr.bf16.mxu0 %v1281
  %1827 = vmatpush1.bf16.msra.mxu0 %v1280
  %1828 = vmatprep.subr.bf16.mxu0 %v1283
  %1829 = vmatpush1.bf16.msra.mxu0 %v1282
  %1830 = vmatprep.subr.bf16.mxu0 %v1285
  %1831 = vmatpush1.bf16.msra.mxu0 %v1284
  %1832 = vmatprep.subr.bf16.mxu0 %v1287
  %1833 = vmatpush1.bf16.msra.mxu0 %v1286
  %1834 = vmatprep.subr.bf16.mxu0 %v1289
  %1835 = vmatpush1.bf16.msra.mxu0 %v1288
  %1836 = vmatprep.subr.bf16.mxu0 %v1291
  %1837 = vmatpush1.bf16.msra.mxu0 %v1290
  %1838 = vmatprep.subr.bf16.mxu0 %v1293
  %1839 = vmatpush1.bf16.msra.mxu0 %v1292
  %1840 = vmatprep.subr.bf16.mxu0 %v1295
  %1841 = vmatpush1.bf16.msra.mxu0 %v1294
  %1842 = vmatprep.subr.bf16.mxu0 %v1297
  %1843 = vmatpush1.bf16.msra.mxu0 %v1296
  %1844 = vmatprep.subr.bf16.mxu0 %v1299
  %1845 = vmatpush1.bf16.msra.mxu0 %v1298
  %1846 = vmatprep.subr.bf16.mxu0 %v1301
  %1847 = vmatpush1.bf16.msra.mxu0 %v1300
  %1848 = vmatprep.subr.bf16.mxu0 %v1303
  %1849 = vmatpush1.bf16.msra.mxu0 %v1302
  %1850 = vmatprep.subr.bf16.mxu0 %v1305
  %1851 = vmatpush1.bf16.msra.mxu0 %v1304
  %1852 = vmatprep.mubr.bf16.mxu0 %v345
  %1853 = vmatmul.mubr.bf16.gmra.mrb[0].mxu0 %v344
  %v1854 = vpop.f32.mrb[0].mxu0
  %v1855 = vadd.f32 %v1812, %v1854
  %v1856 = vpop.f32.mrb[0].mxu0
  %v1857 = vadd.f32 %v1814, %v1856
  %v1858 = vpop.f32.mrb[0].mxu0
  %v1859 = vadd.f32 %v1816, %v1858
  %v1860 = vpop.f32.mrb[0].mxu0
  %v1861 = vadd.f32 %v1818, %v1860
  %1862 = vdwg.mxu0
  %1863 = vmatprep.subr.bf16.mxu0 %v1307
  %1864 = vmatpush1.bf16.msra.mxu0 %v1306
  %1865 = vmatprep.subr.bf16.mxu0 %v1309
  %1866 = vmatpush1.bf16.msra.mxu0 %v1308
  %1867 = vmatprep.subr.bf16.mxu0 %v1311
  %1868 = vmatpush1.bf16.msra.mxu0 %v1310
  %1869 = vmatprep.subr.bf16.mxu0 %v1313
  %1870 = vmatpush1.bf16.msra.mxu0 %v1312
  %1871 = vmatprep.subr.bf16.mxu0 %v1315
  %1872 = vmatpush1.bf16.msra.mxu0 %v1314
  %1873 = vmatprep.subr.bf16.mxu0 %v1317
  %1874 = vmatpush1.bf16.msra.mxu0 %v1316
  %1875 = vmatprep.subr.bf16.mxu0 %v1319
  %1876 = vmatpush1.bf16.msra.mxu0 %v1318
  %1877 = vmatprep.subr.bf16.mxu0 %v1321
  %1878 = vmatpush1.bf16.msra.mxu0 %v1320
  %1879 = vmatprep.subr.bf16.mxu0 0
  %1880 = vmatpush1.bf16.msra.mxu0 0
  %1881 = vmatprep.subr.bf16.mxu0 0
  %1882 = vmatpush1.bf16.msra.mxu0 0
  %1883 = vmatprep.subr.bf16.mxu0 0
  %1884 = vmatpush1.bf16.msra.mxu0 0
  %1885 = vmatprep.subr.bf16.mxu0 0
  %1886 = vmatpush1.bf16.msra.mxu0 0
  %1887 = vmatprep.subr.bf16.mxu0 0
  %1888 = vmatpush1.bf16.msra.mxu0 0
  %1889 = vmatprep.subr.bf16.mxu0 0
  %1890 = vmatpush1.bf16.msra.mxu0 0
  %1891 = vmatprep.subr.bf16.mxu0 0
  %1892 = vmatpush1.bf16.msra.mxu0 0
  %1893 = vmatprep.subr.bf16.mxu0 0
  %1894 = vmatpush1.bf16.msra.mxu0 0
  %1895 = vmatprep.mubr.bf16.mxu0 0
  %1896 = vmatmul.mubr.bf16.gmra.mrb[0].mxu0 %v346
  %v1897 = vpop.f32.mrb[0].mxu0
  %v1898 = vadd.f32 %v1855, %v1897
  %v1899 = vpop.f32.mrb[0].mxu0
  %v1900 = vadd.f32 %v1857, %v1899
  %v1901 = vpop.f32.mrb[0].mxu0
  %v1902 = vadd.f32 %v1859, %v1901
  %v1903 = vpop.f32.mrb[0].mxu0
  %v1904 = vadd.f32 %v1861, %v1903
  %1905 = vdwg.mxu0
  %v1906 = vadd.f32 %v26, %v1898
  %v1907 = vadd.f32 %v27, %v1900
  %v1908 = vadd.f32 %v28, %v1902
  %v1909 = vadd.f32 %v29, %v1904
  %1910 = vst [vmem:[#allocation2] sm:$0xff] %v1906
  %1911 = vst [vmem:[#allocation2 + $0x8] sm:$0xff] %v1907
  %1912 = vst [vmem:[#allocation2 + $0x10] sm:$0xff] %v1908
  %1913 = vst [vmem:[#allocation2 + $0x18] sm:$0xff] %v1909
  // Predicated region
  $region22: #{_lambda_.8} parent=0 // pred_check
    %p1914 = pneg %p18
  $region23: #{_lambda_.8} parent=0 // pred_check_branch
    %1916 = sbr.rel (%p1914) target = $region25
  $region24: #{_lambda_.8} parent=0 // pred_region
    %v1917 = vld [vmem:[#allocation2] sm:$0xff]
    %v1918 = vld [vmem:[#allocation2 + $0x8] sm:$0xff]
    %v1919 = vld [vmem:[#allocation2 + $0x10] sm:$0xff]
    %v1920 = vld [vmem:[#allocation2 + $0x18] sm:$0xff]
    %v1921 = vld [vmem:[%s2] sm:$0x3]
    %v1923 = vlaneseq
    %v1924 = vshrl.u32 %v1923, 7
    %v1925 = vsub.s32 0, %v1924
    %v1926 = vrot.slane %v1921, %v1925
    %v1927 = vlaneseq
    %v1928 = vshrl.u32 %v1927, 7
    %v1929 = vsub.s32 1, %v1928
    %v1930 = vrot.slane %v1921, %v1929
    %v1933 = vmul.f32 %v1917, %v1926
    %v1934 = vmul.f32 %v1918, %v1930
    %v1935 = vmul.f32 %v1919, %v1926
    %v1936 = vmul.f32 %v1920, %v1930
    %v1937 = vld [vmem:[%s3] sm:$0x3]
    %v1939 = vlaneseq
    %v1940 = vshrl.u32 %v1939, 7
    %v1941 = vsub.s32 0, %v1940
    %v1942 = vrot.slane %v1937, %v1941
    %v1943 = vlaneseq
    %v1944 = vshrl.u32 %v1943, 7
    %v1945 = vsub.s32 1, %v1944
    %v1946 = vrot.slane %v1937, %v1945
    %v1949 = vadd.f32 %v1933, %v1942
    %v1950 = vadd.f32 %v1934, %v1946
    %v1951 = vadd.f32 %v1935, %v1942
    %v1952 = vadd.f32 %v1936, %v1946
    %v1953 = vmax.f32 %v1949, 0.0
    %v1954 = vmax.f32 %v1950, 0.0
    %v1955 = vmax.f32 %v1951, 0.0
    %v1956 = vmax.f32 %v1952, 0.0
    %v1957 = vpack.c.bf16 %v1955, %v1953
    %v1958 = vpack.c.bf16 %v1956, %v1954
    %v1961 = vunpack.c.l.b16 %v1957
    %v1962 = vunpack.c.l.b16 %v1958
    %v1963 = vunpack.c.h.b16 %v1957
    %v1964 = vunpack.c.h.b16 %v1958
    %v1965 = vpack.c.b16 %v1962, %v1961
    %v1966 = vpack.c.b16 %v1964, %v1963
    %1969 = vst [vmem:[%s4] sm:$0xff] %v1965
    %1970 = vst [vmem:[%s4 + $0x8] sm:$0xff] %v1966
  $region25: #{_lambda_.8} parent=0 // pred_fallthru
    _
  // Predicated region
  $region26: #{_lambda_.8} parent=0 // pred_check
    _
  $region27: #{_lambda_.8} parent=0 // pred_check_branch
    %1972 = sbr.rel (0) target = $region29
  $region28: #{_lambda_.8} parent=0 // pred_region
    _
  $region29: #{_lambda_.8} parent=0 // pred_fallthru
    _
  // Predicated region
  $region30: #{_lambda_.8} parent=0 // pred_check
    _
  $region31: #{_lambda_.8} parent=0 // pred_check_branch
    %1974 = sbr.rel (0) target = $region33
  $region32: #{_lambda_.8} parent=0 // pred_region
    _
  $region33: #{_lambda_.8} parent=0 // pred_fallthru
    _

</llo_original>
